<compile_context>
chip_gen: v7x
topology: tpu7x:2x2x1
jax: 0.10.0
libtpu: 0.0.40
codegen_flags: <defaults>
</compile_context>

<pallas_src>
import jax
import jax.numpy as jnp
from jax.experimental import pallas as pl
from jax.experimental.pallas import tpu as pltpu


def _round_up(n, m):
    return -(-n // m) * m


def _pad2d(a, rows, cols):
    return jnp.pad(a, ((0, rows - a.shape[0]), (0, cols - a.shape[1])))


# ----------------------------------------------------------------------------
# Fused forward kernel (single invocation, everything VMEM-resident)
# ----------------------------------------------------------------------------
def make_fused_kernel(num_layers, T, B, H):
    """B is the padded batch (multiple of 8)."""
    n_in = 1 + 3 * num_layers + 8   # x, LSTM params, w1..w3, b1..b3, w4row, b4

    def kernel(*refs):
        x_ref = refs[0]
        lstm_refs = [(refs[1 + 3 * l], refs[2 + 3 * l], refs[3 + 3 * l])
                     for l in range(num_layers)]
        base = 1 + 3 * num_layers
        w1_hbm, w2_hbm, w3_hbm = refs[base], refs[base + 1], refs[base + 2]
        b1_ref, b2_ref, b3_ref = refs[base + 3], refs[base + 4], refs[base + 5]
        w4_ref, b4_ref = refs[base + 6], refs[base + 7]
        o_ref = refs[n_in]
        (w1_scr, w2_scr, w3_scr, dma_sem, seq_scr, flat_scr) = refs[n_in + 1:]

        # ---- Kick off the MLP weight DMAs; they hide behind the recurrence.
        cp1 = pltpu.make_async_copy(w1_hbm, w1_scr, dma_sem.at[0])
        cp2 = pltpu.make_async_copy(w2_hbm, w2_scr, dma_sem.at[1])
        cp3 = pltpu.make_async_copy(w3_hbm, w3_scr, dma_sem.at[2])
        cp1.start()
        cp2.start()
        cp3.start()

        # ---- LSTM stack (fully unrolled; T and num_layers are small here).
        for layer in range(num_layers):
            wih = lstm_refs[layer][0][...]   # (feat, 4H), gate order [i,f,o,g]
            whh = lstm_refs[layer][1][...]   # (H, 4H)
            bl = lstm_refs[layer][2][...]    # (1, 4H)  (b_ih + b_hh)
            seq = x_ref[...] if layer == 0 else seq_scr[...]

            # Hoisted input projection + bias: one lane-dense MXU matmul.
            gx = jnp.dot(seq, wih, preferred_element_type=jnp.float32) + bl

            h = jnp.zeros((B, H), jnp.float32)
            c = jnp.zeros((B, H), jnp.float32)
            last = layer == num_layers - 1
            for t in range(T):   # serial recurrence
                gates = gx[t * B:(t + 1) * B, :] + jnp.dot(
                    h, whh, preferred_element_type=jnp.float32)     # (B, 4H)
                # Gate columns were reordered host-side to [i, f, o | g]:
                # sigmoid over the first 3H lanes, tanh only over the last H.
                sg = jax.nn.sigmoid(gates[:, :3 * H])
                g_g = jnp.tanh(gates[:, 3 * H:])
                i_g = sg[:, 0:H]
                f_g = sg[:, H:2 * H]
                o_g = sg[:, 2 * H:3 * H]
                c = f_g * c + i_g * g_g
                h = o_g * jnp.tanh(c)
                if last:
                    # (B, T*H) lane slab == torch's x.reshape(B, -1)
                    flat_scr[:, t * H:(t + 1) * H] = h
                else:
                    # input sequence of the next layer (rows per timestep)
                    seq_scr[t * B:(t + 1) * B, :] = h

        # ---- MLP head: Linear->ReLU x3 (Dropout = identity), then 128->1.
        flat = flat_scr[...]                                       # (B, T*H)
        cp1.wait()
        h1 = jnp.maximum(
            jnp.dot(flat, w1_scr[...].astype(jnp.float32),
                    preferred_element_type=jnp.float32) + b1_ref[...], 0.0)
        cp2.wait()
        h2 = jnp.maximum(
            jnp.dot(h1, w2_scr[...].astype(jnp.float32),
                    preferred_element_type=jnp.float32) + b2_ref[...], 0.0)
        cp3.wait()
        h3 = jnp.maximum(
            jnp.dot(h2, w3_scr[...].astype(jnp.float32),
                    preferred_element_type=jnp.float32) + b3_ref[...], 0.0)
        # Final (128 -> 1) layer as a VPU multiply + cross-lane reduce.
        out = jnp.sum(h3 * w4_ref[...], axis=-1, keepdims=True) + b4_ref[...]
        o_ref[...] = out.astype(o_ref.dtype)

    return kernel


# ----------------------------------------------------------------------------
# Wrapper: layout plumbing (transpose / pad / reorder) + single pallas_call
# ----------------------------------------------------------------------------
def reg_lstm_forward(x, lstm_params, mlp_params):
    """x: (B, T, input_size) batch_first, like the PyTorch module."""
    B, T, I = x.shape
    H = lstm_params[0][1].shape[0]
    num_layers = len(lstm_params)
    B_pad = _round_up(max(B, 8), 8)

    # (B,T,I) -> (T,B_pad,I) -> (T*B_pad,I); rows [t*B_pad:(t+1)*B_pad] = step t.
    xt = jnp.transpose(x.astype(jnp.float32), (1, 0, 2))
    xt = jnp.pad(xt, ((0, 0), (0, B_pad - B), (0, 0)))
    x_flat = xt.reshape(T * B_pad, I)

    # Reorder LSTM gate columns from PyTorch's [i, f, g, o] to [i, f, o, g].
    def reorder_gates(w):
        return jnp.concatenate(
            [w[..., :2 * H], w[..., 3 * H:4 * H], w[..., 2 * H:3 * H]], axis=-1)

    lstm_args = []
    for (wih_t, whh_t, bl) in lstm_params:
        lstm_args += [reorder_gates(wih_t), reorder_gates(whh_t),
                      reorder_gates(bl)]

    # Pad MLP widths to 128-lane multiples with zero rows/cols (exact math),
    # store the big weights in bf16 (halves HBM DMA + VMEM residency).
    w1, b1, w2, b2, w3, b3, w4, b4 = mlp_params
    D1 = _round_up(w1.shape[1], 128)   # 1200 -> 1280
    D2 = _round_up(w2.shape[1], 128)   # 600  -> 640
    D3 = _round_up(w3.shape[1], 128)   # 128  -> 128
    w1p = _pad2d(w1, w1.shape[0], D1).astype(jnp.bfloat16)
    w2p = _pad2d(w2, D1, D2).astype(jnp.bfloat16)
    w3p = _pad2d(w3, D2, D3).astype(jnp.bfloat16)
    b1p = _pad2d(b1, 1, D1)
    b2p = _pad2d(b2, 1, D2)
    b3p = _pad2d(b3, 1, D3)
    w4row = _pad2d(w4.T, 1, D3)        # (1, D3) for the VPU reduction

    args = [x_flat] + lstm_args + [w1p, w2p, w3p] + [b1p, b2p, b3p, w4row, b4]

    vmem = pl.BlockSpec(memory_space=pltpu.MemorySpace.VMEM)
    hbm = pl.BlockSpec(memory_space=pl.ANY)
    in_specs = ([vmem] * (1 + 3 * num_layers)   # x + LSTM weights (small)
                + [hbm, hbm, hbm]               # w1/w2/w3: manual DMA overlap
                + [vmem] * 5)                   # biases + final-layer row

    out_pad = pl.pallas_call(
        make_fused_kernel(num_layers, T, B_pad, H),
        out_shape=jax.ShapeDtypeStruct((B_pad, 1), jnp.float32),
        in_specs=in_specs,
        out_specs=pl.BlockSpec(memory_space=pltpu.MemorySpace.VMEM),
        scratch_shapes=[
            pltpu.VMEM(w1p.shape, jnp.bfloat16),      # w1 landing buffer
            pltpu.VMEM(w2p.shape, jnp.bfloat16),      # w2 landing buffer
            pltpu.VMEM(w3p.shape, jnp.bfloat16),      # w3 landing buffer
            pltpu.SemaphoreType.DMA((3,)),
            pltpu.VMEM((T * B_pad, H), jnp.float32),  # inter-layer sequence
            pltpu.VMEM((B_pad, T * H), jnp.float32),  # flattened h slab
        ],
        compiler_params=pltpu.CompilerParams(vmem_limit_bytes=32 * 1024 * 1024),
    )(*args)
    return out_pad[:B]


# ----------------------------------------------------------------------------
# Deterministic parameter init (same shapes as the PyTorch module)
# ----------------------------------------------------------------------------
def init_params(key, input_size, hidden_size, num_layers, line_length):
    lstm_params = []
    k_lstm = 1.0 / jnp.sqrt(hidden_size)
    for layer in range(num_layers):
        in_dim = input_size if layer == 0 else hidden_size
        key, k1, k2, k3, k4 = jax.random.split(key, 5)
        # PyTorch stores W_ih (4H, I), W_hh (4H, H); we keep them pre-transposed.
        wih_t = jax.random.uniform(k1, (in_dim, 4 * hidden_size),
                                   minval=-k_lstm, maxval=k_lstm, dtype=jnp.float32)
        whh_t = jax.random.uniform(k2, (hidden_size, 4 * hidden_size),
                                   minval=-k_lstm, maxval=k_lstm, dtype=jnp.float32)
        b_ih = jax.random.uniform(k3, (4 * hidden_size,),
                                  minval=-k_lstm, maxval=k_lstm, dtype=jnp.float32)
        b_hh = jax.random.uniform(k4, (4 * hidden_size,),
                                  minval=-k_lstm, maxval=k_lstm, dtype=jnp.float32)
        lstm_params.append((wih_t, whh_t, (b_ih + b_hh).reshape(1, -1)))

    dims = [hidden_size * line_length, 1200, 600, 128, 1]
    mlp_params = []
    for d_in, d_out in zip(dims[:-1], dims[1:]):
        key, kw, kb = jax.random.split(key, 3)
        bound = 1.0 / jnp.sqrt(d_in)
        w = jax.random.uniform(kw, (d_in, d_out), minval=-bound, maxval=bound,
                               dtype=jnp.float32)
        b = jax.random.uniform(kb, (1, d_out), minval=-bound, maxval=bound,
                               dtype=jnp.float32)
        mlp_params.extend([w, b])
    return lstm_params, tuple(mlp_params)


# ----------------------------------------------------------------------------
# Pure-JAX reference (for correctness check); gate order [i, f, g, o]
# ----------------------------------------------------------------------------
def reg_lstm_ref(x, lstm_params, mlp_params):
    B, T, _ = x.shape
    h_seq = x.astype(jnp.float32)
    for (wih_t, whh_t, b) in lstm_params:
        H = whh_t.shape[0]
        h = jnp.zeros((B, H), jnp.float32)
        c = jnp.zeros((B, H), jnp.float32)
        outs = []
        for t in range(T):
            gates = h_seq[:, t, :] @ wih_t + h @ whh_t + b
            i = jax.nn.sigmoid(gates[:, :H])
            f = jax.nn.sigmoid(gates[:, H:2 * H])
            g = jnp.tanh(gates[:, 2 * H:3 * H])
            o = jax.nn.sigmoid(gates[:, 3 * H:4 * H])
            c = f * c + i * g
            h = o * jnp.tanh(c)
            outs.append(h)
        h_seq = jnp.stack(outs, axis=1)
    y = h_seq.reshape(B, -1)
    w1, b1, w2, b2, w3, b3, w4, b4 = mlp_params
    y = jnp.maximum(y @ w1 + b1, 0.0)
    y = jnp.maximum(y @ w2 + b2, 0.0)
    y = jnp.maximum(y @ w3 + b3, 0.0)
    return y @ w4 + b4


if __name__ == "__main__":
    # Small, module-consistent shapes.
    batch = 2
    input_size = 16
    hidden_size = 32
    hidden_num_layers = 2
    line_length = 8   # seq length; reg head input = hidden_size * line_length

    key = jax.random.PRNGKey(0)
    key, kx, kp = jax.random.split(key, 3)
    x = jax.random.normal(kx, (batch, line_length, input_size), dtype=jnp.float32)

    lstm_params, mlp_params = init_params(
        kp, input_size, hidden_size, hidden_num_layers, line_length)

    out = jax.block_until_ready(reg_lstm_forward(x, lstm_params, mlp_params))

    # Reference uses the same bf16-rounded MLP weights the kernel consumes
    # (bf16 weight storage is the deliberate deployment choice); math in f32.
    mlp_ref = list(mlp_params)
    for i in (0, 2, 4):   # w1, w2, w3
        mlp_ref[i] = mlp_ref[i].astype(jnp.bfloat16).astype(jnp.float32)
    ref = jax.block_until_ready(reg_lstm_ref(x, lstm_params, tuple(mlp_ref)))

    assert out.shape == (batch, 1), out.shape
    assert jnp.all(jnp.isfinite(out))
    assert jnp.allclose(out, ref, rtol=2e-3, atol=2e-3), (out, ref)

    print("KERNEL_OK")
</pallas_src>

<mosaic_0001>
module attributes {stable_mosaic.version = 11 : i64} {
  func.func @kernel(%arg0: memref<64x16xf32, #tpu.memory_space<vmem>>, %arg1: memref<16x128xf32, #tpu.memory_space<vmem>>, %arg2: memref<32x128xf32, #tpu.memory_space<vmem>>, %arg3: memref<1x128xf32, #tpu.memory_space<vmem>>, %arg4: memref<32x128xf32, #tpu.memory_space<vmem>>, %arg5: memref<32x128xf32, #tpu.memory_space<vmem>>, %arg6: memref<1x128xf32, #tpu.memory_space<vmem>>, %arg7: memref<256x1280xbf16, #tpu.memory_space<any>>, %arg8: memref<1280x640xbf16, #tpu.memory_space<any>>, %arg9: memref<640x128xbf16, #tpu.memory_space<any>>, %arg10: memref<1x1280xf32, #tpu.memory_space<vmem>>, %arg11: memref<1x640xf32, #tpu.memory_space<vmem>>, %arg12: memref<1x128xf32, #tpu.memory_space<vmem>>, %arg13: memref<1x128xf32, #tpu.memory_space<vmem>>, %arg14: memref<1x1xf32, #tpu.memory_space<vmem>>, %arg15: memref<8x1xf32, #tpu.memory_space<vmem>>, %arg16: memref<256x1280xbf16, #tpu.memory_space<vmem>>, %arg17: memref<1280x640xbf16, #tpu.memory_space<vmem>>, %arg18: memref<640x128xbf16, #tpu.memory_space<vmem>>, %arg19: memref<3x!tpu.dma_semaphore, #tpu.memory_space<semaphore_mem>>, %arg20: memref<64x32xf32, #tpu.memory_space<vmem>>, %arg21: memref<8x256xf32, #tpu.memory_space<vmem>>) attributes {dimension_semantics = [], scalar_prefetch = 0 : i64, scratch_operands = 6 : i64, tpu.core_type = #tpu.core_type<tc>} {
    %c0_i32 = arith.constant 0 : i32
    %0 = tpu.memref_slice %arg19[%c0_i32] : memref<3x!tpu.dma_semaphore, #tpu.memory_space<semaphore_mem>> -> memref<1x!tpu.dma_semaphore, #tpu.memory_space<semaphore_mem>>
    %1 = tpu.memref_squeeze %0 : memref<1x!tpu.dma_semaphore, #tpu.memory_space<semaphore_mem>> -> memref<!tpu.dma_semaphore, #tpu.memory_space<semaphore_mem>>
    tpu.enqueue_dma source(%arg7 : memref<256x1280xbf16, #tpu.memory_space<any>>) target(%arg16 : memref<256x1280xbf16, #tpu.memory_space<vmem>>) target_semaphore(%1 : memref<!tpu.dma_semaphore, #tpu.memory_space<semaphore_mem>>)
    %c1_i32 = arith.constant 1 : i32
    %2 = tpu.memref_slice %arg19[%c1_i32] : memref<3x!tpu.dma_semaphore, #tpu.memory_space<semaphore_mem>> -> memref<1x!tpu.dma_semaphore, #tpu.memory_space<semaphore_mem>>
    %3 = tpu.memref_squeeze %2 : memref<1x!tpu.dma_semaphore, #tpu.memory_space<semaphore_mem>> -> memref<!tpu.dma_semaphore, #tpu.memory_space<semaphore_mem>>
    tpu.enqueue_dma source(%arg8 : memref<1280x640xbf16, #tpu.memory_space<any>>) target(%arg17 : memref<1280x640xbf16, #tpu.memory_space<vmem>>) target_semaphore(%3 : memref<!tpu.dma_semaphore, #tpu.memory_space<semaphore_mem>>)
    %c2_i32 = arith.constant 2 : i32
    %4 = tpu.memref_slice %arg19[%c2_i32] : memref<3x!tpu.dma_semaphore, #tpu.memory_space<semaphore_mem>> -> memref<1x!tpu.dma_semaphore, #tpu.memory_space<semaphore_mem>>
    %5 = tpu.memref_squeeze %4 : memref<1x!tpu.dma_semaphore, #tpu.memory_space<semaphore_mem>> -> memref<!tpu.dma_semaphore, #tpu.memory_space<semaphore_mem>>
    tpu.enqueue_dma source(%arg9 : memref<640x128xbf16, #tpu.memory_space<any>>) target(%arg18 : memref<640x128xbf16, #tpu.memory_space<vmem>>) target_semaphore(%5 : memref<!tpu.dma_semaphore, #tpu.memory_space<semaphore_mem>>)
    %c0 = arith.constant 0 : index
    %c0_0 = arith.constant 0 : index
    %6 = vector.load %arg1[%c0, %c0_0] : memref<16x128xf32, #tpu.memory_space<vmem>>, vector<16x128xf32>
    %c0_1 = arith.constant 0 : index
    %c0_2 = arith.constant 0 : index
    %7 = vector.load %arg2[%c0_1, %c0_2] : memref<32x128xf32, #tpu.memory_space<vmem>>, vector<32x128xf32>
    %c0_3 = arith.constant 0 : index
    %c0_4 = arith.constant 0 : index
    %8 = vector.load %arg3[%c0_3, %c0_4] : memref<1x128xf32, #tpu.memory_space<vmem>>, vector<1x128xf32>
    %c0_5 = arith.constant 0 : index
    %c0_6 = arith.constant 0 : index
    %9 = vector.load %arg0[%c0_5, %c0_6] : memref<64x16xf32, #tpu.memory_space<vmem>>, vector<64x16xf32>
    %cst = arith.constant dense<0.000000e+00> : vector<64x128xf32>
    %10 = tpu.matmul %9, %6, %cst {dimension_numbers = #tpu.dot_dimension_numbers<[1], [0], [0], [1], [0, 0, 1, 1], [], []>} : vector<64x16xf32>, vector<16x128xf32>, vector<64x128xf32> -> vector<64x128xf32>
    %11 = vector.broadcast %8 : vector<1x128xf32> to vector<64x128xf32>
    %12 = arith.addf %10, %11 : vector<64x128xf32>
    %cst_7 = arith.constant 0.000000e+00 : f32
    %13 = vector.broadcast %cst_7 : f32 to vector<8x32xf32>
    %cst_8 = arith.constant 0.000000e+00 : f32
    %14 = vector.broadcast %cst_8 : f32 to vector<8x32xf32>
    %15 = vector.extract_strided_slice %12 {offsets = [0, 0], sizes = [8, 128], strides = [1, 1]} : vector<64x128xf32> to vector<8x128xf32>
    %cst_9 = arith.constant dense<0.000000e+00> : vector<8x128xf32>
    %16 = tpu.matmul %13, %7, %cst_9 {dimension_numbers = #tpu.dot_dimension_numbers<[1], [0], [0], [1], [0, 0, 1, 1], [], []>} : vector<8x32xf32>, vector<32x128xf32>, vector<8x128xf32> -> vector<8x128xf32>
    %17 = arith.addf %15, %16 : vector<8x128xf32>
    %18 = vector.extract_strided_slice %17 {offsets = [0, 0], sizes = [8, 96], strides = [1, 1]} : vector<8x128xf32> to vector<8x96xf32>
    %19 = arith.negf %18 : vector<8x96xf32>
    %20 = math.exp %19 : vector<8x96xf32>
    %cst_10 = arith.constant 1.000000e+00 : f32
    %21 = vector.broadcast %cst_10 : f32 to vector<8x96xf32>
    %22 = arith.addf %21, %20 : vector<8x96xf32>
    %23 = arith.divf %21, %22 : vector<8x96xf32>
    %24 = vector.extract_strided_slice %17 {offsets = [0, 96], sizes = [8, 32], strides = [1, 1]} : vector<8x128xf32> to vector<8x32xf32>
    %25 = math.tanh %24 : vector<8x32xf32>
    %26 = vector.extract_strided_slice %23 {offsets = [0, 0], sizes = [8, 32], strides = [1, 1]} : vector<8x96xf32> to vector<8x32xf32>
    %27 = vector.extract_strided_slice %23 {offsets = [0, 32], sizes = [8, 32], strides = [1, 1]} : vector<8x96xf32> to vector<8x32xf32>
    %28 = vector.extract_strided_slice %23 {offsets = [0, 64], sizes = [8, 32], strides = [1, 1]} : vector<8x96xf32> to vector<8x32xf32>
    %29 = arith.mulf %27, %14 : vector<8x32xf32>
    %30 = arith.mulf %26, %25 : vector<8x32xf32>
    %31 = arith.addf %29, %30 : vector<8x32xf32>
    %32 = math.tanh %31 : vector<8x32xf32>
    %33 = arith.mulf %28, %32 : vector<8x32xf32>
    %c0_11 = arith.constant 0 : index
    %c0_12 = arith.constant 0 : index
    %34 = vector.load %arg20[%c0_11, %c0_12] : memref<64x32xf32, #tpu.memory_space<vmem>>, vector<8x32xf32>
    tpu.vector_store %arg20[%c0_11, %c0_12], %33 {strides = array<i32>} : memref<64x32xf32, #tpu.memory_space<vmem>>, vector<8x32xf32>,
    %35 = vector.extract_strided_slice %12 {offsets = [8, 0], sizes = [8, 128], strides = [1, 1]} : vector<64x128xf32> to vector<8x128xf32>
    %cst_13 = arith.constant dense<0.000000e+00> : vector<8x128xf32>
    %36 = tpu.matmul %33, %7, %cst_13 {dimension_numbers = #tpu.dot_dimension_numbers<[1], [0], [0], [1], [0, 0, 1, 1], [], []>} : vector<8x32xf32>, vector<32x128xf32>, vector<8x128xf32> -> vector<8x128xf32>
    %37 = arith.addf %35, %36 : vector<8x128xf32>
    %38 = vector.extract_strided_slice %37 {offsets = [0, 0], sizes = [8, 96], strides = [1, 1]} : vector<8x128xf32> to vector<8x96xf32>
    %39 = arith.negf %38 : vector<8x96xf32>
    %40 = math.exp %39 : vector<8x96xf32>
    %cst_14 = arith.constant 1.000000e+00 : f32
    %41 = vector.broadcast %cst_14 : f32 to vector<8x96xf32>
    %42 = arith.addf %41, %40 : vector<8x96xf32>
    %43 = arith.divf %41, %42 : vector<8x96xf32>
    %44 = vector.extract_strided_slice %37 {offsets = [0, 96], sizes = [8, 32], strides = [1, 1]} : vector<8x128xf32> to vector<8x32xf32>
    %45 = math.tanh %44 : vector<8x32xf32>
    %46 = vector.extract_strided_slice %43 {offsets = [0, 0], sizes = [8, 32], strides = [1, 1]} : vector<8x96xf32> to vector<8x32xf32>
    %47 = vector.extract_strided_slice %43 {offsets = [0, 32], sizes = [8, 32], strides = [1, 1]} : vector<8x96xf32> to vector<8x32xf32>
    %48 = vector.extract_strided_slice %43 {offsets = [0, 64], sizes = [8, 32], strides = [1, 1]} : vector<8x96xf32> to vector<8x32xf32>
    %49 = arith.mulf %47, %31 : vector<8x32xf32>
    %50 = arith.mulf %46, %45 : vector<8x32xf32>
    %51 = arith.addf %49, %50 : vector<8x32xf32>
    %52 = math.tanh %51 : vector<8x32xf32>
    %53 = arith.mulf %48, %52 : vector<8x32xf32>
    %c8 = arith.constant 8 : index
    %c0_15 = arith.constant 0 : index
    %54 = vector.load %arg20[%c8, %c0_15] : memref<64x32xf32, #tpu.memory_space<vmem>>, vector<8x32xf32>
    tpu.vector_store %arg20[%c8, %c0_15], %53 {strides = array<i32>} : memref<64x32xf32, #tpu.memory_space<vmem>>, vector<8x32xf32>,
    %55 = vector.extract_strided_slice %12 {offsets = [16, 0], sizes = [8, 128], strides = [1, 1]} : vector<64x128xf32> to vector<8x128xf32>
    %cst_16 = arith.constant dense<0.000000e+00> : vector<8x128xf32>
    %56 = tpu.matmul %53, %7, %cst_16 {dimension_numbers = #tpu.dot_dimension_numbers<[1], [0], [0], [1], [0, 0, 1, 1], [], []>} : vector<8x32xf32>, vector<32x128xf32>, vector<8x128xf32> -> vector<8x128xf32>
    %57 = arith.addf %55, %56 : vector<8x128xf32>
    %58 = vector.extract_strided_slice %57 {offsets = [0, 0], sizes = [8, 96], strides = [1, 1]} : vector<8x128xf32> to vector<8x96xf32>
    %59 = arith.negf %58 : vector<8x96xf32>
    %60 = math.exp %59 : vector<8x96xf32>
    %cst_17 = arith.constant 1.000000e+00 : f32
    %61 = vector.broadcast %cst_17 : f32 to vector<8x96xf32>
    %62 = arith.addf %61, %60 : vector<8x96xf32>
    %63 = arith.divf %61, %62 : vector<8x96xf32>
    %64 = vector.extract_strided_slice %57 {offsets = [0, 96], sizes = [8, 32], strides = [1, 1]} : vector<8x128xf32> to vector<8x32xf32>
    %65 = math.tanh %64 : vector<8x32xf32>
    %66 = vector.extract_strided_slice %63 {offsets = [0, 0], sizes = [8, 32], strides = [1, 1]} : vector<8x96xf32> to vector<8x32xf32>
    %67 = vector.extract_strided_slice %63 {offsets = [0, 32], sizes = [8, 32], strides = [1, 1]} : vector<8x96xf32> to vector<8x32xf32>
    %68 = vector.extract_strided_slice %63 {offsets = [0, 64], sizes = [8, 32], strides = [1, 1]} : vector<8x96xf32> to vector<8x32xf32>
    %69 = arith.mulf %67, %51 : vector<8x32xf32>
    %70 = arith.mulf %66, %65 : vector<8x32xf32>
    %71 = arith.addf %69, %70 : vector<8x32xf32>
    %72 = math.tanh %71 : vector<8x32xf32>
    %73 = arith.mulf %68, %72 : vector<8x32xf32>
    %c16 = arith.constant 16 : index
    %c0_18 = arith.constant 0 : index
    %74 = vector.load %arg20[%c16, %c0_18] : memref<64x32xf32, #tpu.memory_space<vmem>>, vector<8x32xf32>
    tpu.vector_store %arg20[%c16, %c0_18], %73 {strides = array<i32>} : memref<64x32xf32, #tpu.memory_space<vmem>>, vector<8x32xf32>,
    %75 = vector.extract_strided_slice %12 {offsets = [24, 0], sizes = [8, 128], strides = [1, 1]} : vector<64x128xf32> to vector<8x128xf32>
    %cst_19 = arith.constant dense<0.000000e+00> : vector<8x128xf32>
    %76 = tpu.matmul %73, %7, %cst_19 {dimension_numbers = #tpu.dot_dimension_numbers<[1], [0], [0], [1], [0, 0, 1, 1], [], []>} : vector<8x32xf32>, vector<32x128xf32>, vector<8x128xf32> -> vector<8x128xf32>
    %77 = arith.addf %75, %76 : vector<8x128xf32>
    %78 = vector.extract_strided_slice %77 {offsets = [0, 0], sizes = [8, 96], strides = [1, 1]} : vector<8x128xf32> to vector<8x96xf32>
    %79 = arith.negf %78 : vector<8x96xf32>
    %80 = math.exp %79 : vector<8x96xf32>
    %cst_20 = arith.constant 1.000000e+00 : f32
    %81 = vector.broadcast %cst_20 : f32 to vector<8x96xf32>
    %82 = arith.addf %81, %80 : vector<8x96xf32>
    %83 = arith.divf %81, %82 : vector<8x96xf32>
    %84 = vector.extract_strided_slice %77 {offsets = [0, 96], sizes = [8, 32], strides = [1, 1]} : vector<8x128xf32> to vector<8x32xf32>
    %85 = math.tanh %84 : vector<8x32xf32>
    %86 = vector.extract_strided_slice %83 {offsets = [0, 0], sizes = [8, 32], strides = [1, 1]} : vector<8x96xf32> to vector<8x32xf32>
    %87 = vector.extract_strided_slice %83 {offsets = [0, 32], sizes = [8, 32], strides = [1, 1]} : vector<8x96xf32> to vector<8x32xf32>
    %88 = vector.extract_strided_slice %83 {offsets = [0, 64], sizes = [8, 32], strides = [1, 1]} : vector<8x96xf32> to vector<8x32xf32>
    %89 = arith.mulf %87, %71 : vector<8x32xf32>
    %90 = arith.mulf %86, %85 : vector<8x32xf32>
    %91 = arith.addf %89, %90 : vector<8x32xf32>
    %92 = math.tanh %91 : vector<8x32xf32>
    %93 = arith.mulf %88, %92 : vector<8x32xf32>
    %c24 = arith.constant 24 : index
    %c0_21 = arith.constant 0 : index
    %94 = vector.load %arg20[%c24, %c0_21] : memref<64x32xf32, #tpu.memory_space<vmem>>, vector<8x32xf32>
    tpu.vector_store %arg20[%c24, %c0_21], %93 {strides = array<i32>} : memref<64x32xf32, #tpu.memory_space<vmem>>, vector<8x32xf32>,
    %95 = vector.extract_strided_slice %12 {offsets = [32, 0], sizes = [8, 128], strides = [1, 1]} : vector<64x128xf32> to vector<8x128xf32>
    %cst_22 = arith.constant dense<0.000000e+00> : vector<8x128xf32>
    %96 = tpu.matmul %93, %7, %cst_22 {dimension_numbers = #tpu.dot_dimension_numbers<[1], [0], [0], [1], [0, 0, 1, 1], [], []>} : vector<8x32xf32>, vector<32x128xf32>, vector<8x128xf32> -> vector<8x128xf32>
    %97 = arith.addf %95, %96 : vector<8x128xf32>
    %98 = vector.extract_strided_slice %97 {offsets = [0, 0], sizes = [8, 96], strides = [1, 1]} : vector<8x128xf32> to vector<8x96xf32>
    %99 = arith.negf %98 : vector<8x96xf32>
    %100 = math.exp %99 : vector<8x96xf32>
    %cst_23 = arith.constant 1.000000e+00 : f32
    %101 = vector.broadcast %cst_23 : f32 to vector<8x96xf32>
    %102 = arith.addf %101, %100 : vector<8x96xf32>
    %103 = arith.divf %101, %102 : vector<8x96xf32>
    %104 = vector.extract_strided_slice %97 {offsets = [0, 96], sizes = [8, 32], strides = [1, 1]} : vector<8x128xf32> to vector<8x32xf32>
    %105 = math.tanh %104 : vector<8x32xf32>
    %106 = vector.extract_strided_slice %103 {offsets = [0, 0], sizes = [8, 32], strides = [1, 1]} : vector<8x96xf32> to vector<8x32xf32>
    %107 = vector.extract_strided_slice %103 {offsets = [0, 32], sizes = [8, 32], strides = [1, 1]} : vector<8x96xf32> to vector<8x32xf32>
    %108 = vector.extract_strided_slice %103 {offsets = [0, 64], sizes = [8, 32], strides = [1, 1]} : vector<8x96xf32> to vector<8x32xf32>
    %109 = arith.mulf %107, %91 : vector<8x32xf32>
    %110 = arith.mulf %106, %105 : vector<8x32xf32>
    %111 = arith.addf %109, %110 : vector<8x32xf32>
    %112 = math.tanh %111 : vector<8x32xf32>
    %113 = arith.mulf %108, %112 : vector<8x32xf32>
    %c32 = arith.constant 32 : index
    %c0_24 = arith.constant 0 : index
    %114 = vector.load %arg20[%c32, %c0_24] : memref<64x32xf32, #tpu.memory_space<vmem>>, vector<8x32xf32>
    tpu.vector_store %arg20[%c32, %c0_24], %113 {strides = array<i32>} : memref<64x32xf32, #tpu.memory_space<vmem>>, vector<8x32xf32>,
    %115 = vector.extract_strided_slice %12 {offsets = [40, 0], sizes = [8, 128], strides = [1, 1]} : vector<64x128xf32> to vector<8x128xf32>
    %cst_25 = arith.constant dense<0.000000e+00> : vector<8x128xf32>
    %116 = tpu.matmul %113, %7, %cst_25 {dimension_numbers = #tpu.dot_dimension_numbers<[1], [0], [0], [1], [0, 0, 1, 1], [], []>} : vector<8x32xf32>, vector<32x128xf32>, vector<8x128xf32> -> vector<8x128xf32>
    %117 = arith.addf %115, %116 : vector<8x128xf32>
    %118 = vector.extract_strided_slice %117 {offsets = [0, 0], sizes = [8, 96], strides = [1, 1]} : vector<8x128xf32> to vector<8x96xf32>
    %119 = arith.negf %118 : vector<8x96xf32>
    %120 = math.exp %119 : vector<8x96xf32>
    %cst_26 = arith.constant 1.000000e+00 : f32
    %121 = vector.broadcast %cst_26 : f32 to vector<8x96xf32>
    %122 = arith.addf %121, %120 : vector<8x96xf32>
    %123 = arith.divf %121, %122 : vector<8x96xf32>
    %124 = vector.extract_strided_slice %117 {offsets = [0, 96], sizes = [8, 32], strides = [1, 1]} : vector<8x128xf32> to vector<8x32xf32>
    %125 = math.tanh %124 : vector<8x32xf32>
    %126 = vector.extract_strided_slice %123 {offsets = [0, 0], sizes = [8, 32], strides = [1, 1]} : vector<8x96xf32> to vector<8x32xf32>
    %127 = vector.extract_strided_slice %123 {offsets = [0, 32], sizes = [8, 32], strides = [1, 1]} : vector<8x96xf32> to vector<8x32xf32>
    %128 = vector.extract_strided_slice %123 {offsets = [0, 64], sizes = [8, 32], strides = [1, 1]} : vector<8x96xf32> to vector<8x32xf32>
    %129 = arith.mulf %127, %111 : vector<8x32xf32>
    %130 = arith.mulf %126, %125 : vector<8x32xf32>
    %131 = arith.addf %129, %130 : vector<8x32xf32>
    %132 = math.tanh %131 : vector<8x32xf32>
    %133 = arith.mulf %128, %132 : vector<8x32xf32>
    %c40 = arith.constant 40 : index
    %c0_27 = arith.constant 0 : index
    %134 = vector.load %arg20[%c40, %c0_27] : memref<64x32xf32, #tpu.memory_space<vmem>>, vector<8x32xf32>
    tpu.vector_store %arg20[%c40, %c0_27], %133 {strides = array<i32>} : memref<64x32xf32, #tpu.memory_space<vmem>>, vector<8x32xf32>,
    %135 = vector.extract_strided_slice %12 {offsets = [48, 0], sizes = [8, 128], strides = [1, 1]} : vector<64x128xf32> to vector<8x128xf32>
    %cst_28 = arith.constant dense<0.000000e+00> : vector<8x128xf32>
    %136 = tpu.matmul %133, %7, %cst_28 {dimension_numbers = #tpu.dot_dimension_numbers<[1], [0], [0], [1], [0, 0, 1, 1], [], []>} : vector<8x32xf32>, vector<32x128xf32>, vector<8x128xf32> -> vector<8x128xf32>
    %137 = arith.addf %135, %136 : vector<8x128xf32>
    %138 = vector.extract_strided_slice %137 {offsets = [0, 0], sizes = [8, 96], strides = [1, 1]} : vector<8x128xf32> to vector<8x96xf32>
    %139 = arith.negf %138 : vector<8x96xf32>
    %140 = math.exp %139 : vector<8x96xf32>
    %cst_29 = arith.constant 1.000000e+00 : f32
    %141 = vector.broadcast %cst_29 : f32 to vector<8x96xf32>
    %142 = arith.addf %141, %140 : vector<8x96xf32>
    %143 = arith.divf %141, %142 : vector<8x96xf32>
    %144 = vector.extract_strided_slice %137 {offsets = [0, 96], sizes = [8, 32], strides = [1, 1]} : vector<8x128xf32> to vector<8x32xf32>
    %145 = math.tanh %144 : vector<8x32xf32>
    %146 = vector.extract_strided_slice %143 {offsets = [0, 0], sizes = [8, 32], strides = [1, 1]} : vector<8x96xf32> to vector<8x32xf32>
    %147 = vector.extract_strided_slice %143 {offsets = [0, 32], sizes = [8, 32], strides = [1, 1]} : vector<8x96xf32> to vector<8x32xf32>
    %148 = vector.extract_strided_slice %143 {offsets = [0, 64], sizes = [8, 32], strides = [1, 1]} : vector<8x96xf32> to vector<8x32xf32>
    %149 = arith.mulf %147, %131 : vector<8x32xf32>
    %150 = arith.mulf %146, %145 : vector<8x32xf32>
    %151 = arith.addf %149, %150 : vector<8x32xf32>
    %152 = math.tanh %151 : vector<8x32xf32>
    %153 = arith.mulf %148, %152 : vector<8x32xf32>
    %c48 = arith.constant 48 : index
    %c0_30 = arith.constant 0 : index
    %154 = vector.load %arg20[%c48, %c0_30] : memref<64x32xf32, #tpu.memory_space<vmem>>, vector<8x32xf32>
    tpu.vector_store %arg20[%c48, %c0_30], %153 {strides = array<i32>} : memref<64x32xf32, #tpu.memory_space<vmem>>, vector<8x32xf32>,
    %155 = vector.extract_strided_slice %12 {offsets = [56, 0], sizes = [8, 128], strides = [1, 1]} : vector<64x128xf32> to vector<8x128xf32>
    %cst_31 = arith.constant dense<0.000000e+00> : vector<8x128xf32>
    %156 = tpu.matmul %153, %7, %cst_31 {dimension_numbers = #tpu.dot_dimension_numbers<[1], [0], [0], [1], [0, 0, 1, 1], [], []>} : vector<8x32xf32>, vector<32x128xf32>, vector<8x128xf32> -> vector<8x128xf32>
    %157 = arith.addf %155, %156 : vector<8x128xf32>
    %158 = vector.extract_strided_slice %157 {offsets = [0, 0], sizes = [8, 96], strides = [1, 1]} : vector<8x128xf32> to vector<8x96xf32>
    %159 = arith.negf %158 : vector<8x96xf32>
    %160 = math.exp %159 : vector<8x96xf32>
    %cst_32 = arith.constant 1.000000e+00 : f32
    %161 = vector.broadcast %cst_32 : f32 to vector<8x96xf32>
    %162 = arith.addf %161, %160 : vector<8x96xf32>
    %163 = arith.divf %161, %162 : vector<8x96xf32>
    %164 = vector.extract_strided_slice %157 {offsets = [0, 96], sizes = [8, 32], strides = [1, 1]} : vector<8x128xf32> to vector<8x32xf32>
    %165 = math.tanh %164 : vector<8x32xf32>
    %166 = vector.extract_strided_slice %163 {offsets = [0, 0], sizes = [8, 32], strides = [1, 1]} : vector<8x96xf32> to vector<8x32xf32>
    %167 = vector.extract_strided_slice %163 {offsets = [0, 32], sizes = [8, 32], strides = [1, 1]} : vector<8x96xf32> to vector<8x32xf32>
    %168 = vector.extract_strided_slice %163 {offsets = [0, 64], sizes = [8, 32], strides = [1, 1]} : vector<8x96xf32> to vector<8x32xf32>
    %169 = arith.mulf %167, %151 : vector<8x32xf32>
    %170 = arith.mulf %166, %165 : vector<8x32xf32>
    %171 = arith.addf %169, %170 : vector<8x32xf32>
    %172 = math.tanh %171 : vector<8x32xf32>
    %173 = arith.mulf %168, %172 : vector<8x32xf32>
    %c56 = arith.constant 56 : index
    %c0_33 = arith.constant 0 : index
    %174 = vector.load %arg20[%c56, %c0_33] : memref<64x32xf32, #tpu.memory_space<vmem>>, vector<8x32xf32>
    tpu.vector_store %arg20[%c56, %c0_33], %173 {strides = array<i32>} : memref<64x32xf32, #tpu.memory_space<vmem>>, vector<8x32xf32>,
    %c0_34 = arith.constant 0 : index
    %c0_35 = arith.constant 0 : index
    %175 = vector.load %arg4[%c0_34, %c0_35] : memref<32x128xf32, #tpu.memory_space<vmem>>, vector<32x128xf32>
    %c0_36 = arith.constant 0 : index
    %c0_37 = arith.constant 0 : index
    %176 = vector.load %arg5[%c0_36, %c0_37] : memref<32x128xf32, #tpu.memory_space<vmem>>, vector<32x128xf32>
    %c0_38 = arith.constant 0 : index
    %c0_39 = arith.constant 0 : index
    %177 = vector.load %arg6[%c0_38, %c0_39] : memref<1x128xf32, #tpu.memory_space<vmem>>, vector<1x128xf32>
    %c0_40 = arith.constant 0 : index
    %c0_41 = arith.constant 0 : index
    %178 = vector.load %arg20[%c0_40, %c0_41] : memref<64x32xf32, #tpu.memory_space<vmem>>, vector<64x32xf32>
    %cst_42 = arith.constant dense<0.000000e+00> : vector<64x128xf32>
    %179 = tpu.matmul %178, %175, %cst_42 {dimension_numbers = #tpu.dot_dimension_numbers<[1], [0], [0], [1], [0, 0, 1, 1], [], []>} : vector<64x32xf32>, vector<32x128xf32>, vector<64x128xf32> -> vector<64x128xf32>
    %180 = vector.broadcast %177 : vector<1x128xf32> to vector<64x128xf32>
    %181 = arith.addf %179, %180 : vector<64x128xf32>
    %cst_43 = arith.constant 0.000000e+00 : f32
    %182 = vector.broadcast %cst_43 : f32 to vector<8x32xf32>
    %cst_44 = arith.constant 0.000000e+00 : f32
    %183 = vector.broadcast %cst_44 : f32 to vector<8x32xf32>
    %184 = vector.extract_strided_slice %181 {offsets = [0, 0], sizes = [8, 128], strides = [1, 1]} : vector<64x128xf32> to vector<8x128xf32>
    %cst_45 = arith.constant dense<0.000000e+00> : vector<8x128xf32>
    %185 = tpu.matmul %182, %176, %cst_45 {dimension_numbers = #tpu.dot_dimension_numbers<[1], [0], [0], [1], [0, 0, 1, 1], [], []>} : vector<8x32xf32>, vector<32x128xf32>, vector<8x128xf32> -> vector<8x128xf32>
    %186 = arith.addf %184, %185 : vector<8x128xf32>
    %187 = vector.extract_strided_slice %186 {offsets = [0, 0], sizes = [8, 96], strides = [1, 1]} : vector<8x128xf32> to vector<8x96xf32>
    %188 = arith.negf %187 : vector<8x96xf32>
    %189 = math.exp %188 : vector<8x96xf32>
    %cst_46 = arith.constant 1.000000e+00 : f32
    %190 = vector.broadcast %cst_46 : f32 to vector<8x96xf32>
    %191 = arith.addf %190, %189 : vector<8x96xf32>
    %192 = arith.divf %190, %191 : vector<8x96xf32>
    %193 = vector.extract_strided_slice %186 {offsets = [0, 96], sizes = [8, 32], strides = [1, 1]} : vector<8x128xf32> to vector<8x32xf32>
    %194 = math.tanh %193 : vector<8x32xf32>
    %195 = vector.extract_strided_slice %192 {offsets = [0, 0], sizes = [8, 32], strides = [1, 1]} : vector<8x96xf32> to vector<8x32xf32>
    %196 = vector.extract_strided_slice %192 {offsets = [0, 32], sizes = [8, 32], strides = [1, 1]} : vector<8x96xf32> to vector<8x32xf32>
    %197 = vector.extract_strided_slice %192 {offsets = [0, 64], sizes = [8, 32], strides = [1, 1]} : vector<8x96xf32> to vector<8x32xf32>
    %198 = arith.mulf %196, %183 : vector<8x32xf32>
    %199 = arith.mulf %195, %194 : vector<8x32xf32>
    %200 = arith.addf %198, %199 : vector<8x32xf32>
    %201 = math.tanh %200 : vector<8x32xf32>
    %202 = arith.mulf %197, %201 : vector<8x32xf32>
    %c0_47 = arith.constant 0 : index
    %c0_48 = arith.constant 0 : index
    %203 = vector.load %arg21[%c0_47, %c0_48] : memref<8x256xf32, #tpu.memory_space<vmem>>, vector<8x32xf32>
    tpu.vector_store %arg21[%c0_47, %c0_48], %202 {strides = array<i32>} : memref<8x256xf32, #tpu.memory_space<vmem>>, vector<8x32xf32>,
    %204 = vector.extract_strided_slice %181 {offsets = [8, 0], sizes = [8, 128], strides = [1, 1]} : vector<64x128xf32> to vector<8x128xf32>
    %cst_49 = arith.constant dense<0.000000e+00> : vector<8x128xf32>
    %205 = tpu.matmul %202, %176, %cst_49 {dimension_numbers = #tpu.dot_dimension_numbers<[1], [0], [0], [1], [0, 0, 1, 1], [], []>} : vector<8x32xf32>, vector<32x128xf32>, vector<8x128xf32> -> vector<8x128xf32>
    %206 = arith.addf %204, %205 : vector<8x128xf32>
    %207 = vector.extract_strided_slice %206 {offsets = [0, 0], sizes = [8, 96], strides = [1, 1]} : vector<8x128xf32> to vector<8x96xf32>
    %208 = arith.negf %207 : vector<8x96xf32>
    %209 = math.exp %208 : vector<8x96xf32>
    %cst_50 = arith.constant 1.000000e+00 : f32
    %210 = vector.broadcast %cst_50 : f32 to vector<8x96xf32>
    %211 = arith.addf %210, %209 : vector<8x96xf32>
    %212 = arith.divf %210, %211 : vector<8x96xf32>
    %213 = vector.extract_strided_slice %206 {offsets = [0, 96], sizes = [8, 32], strides = [1, 1]} : vector<8x128xf32> to vector<8x32xf32>
    %214 = math.tanh %213 : vector<8x32xf32>
    %215 = vector.extract_strided_slice %212 {offsets = [0, 0], sizes = [8, 32], strides = [1, 1]} : vector<8x96xf32> to vector<8x32xf32>
    %216 = vector.extract_strided_slice %212 {offsets = [0, 32], sizes = [8, 32], strides = [1, 1]} : vector<8x96xf32> to vector<8x32xf32>
    %217 = vector.extract_strided_slice %212 {offsets = [0, 64], sizes = [8, 32], strides = [1, 1]} : vector<8x96xf32> to vector<8x32xf32>
    %218 = arith.mulf %216, %200 : vector<8x32xf32>
    %219 = arith.mulf %215, %214 : vector<8x32xf32>
    %220 = arith.addf %218, %219 : vector<8x32xf32>
    %221 = math.tanh %220 : vector<8x32xf32>
    %222 = arith.mulf %217, %221 : vector<8x32xf32>
    %c0_51 = arith.constant 0 : index
    %c32_52 = arith.constant 32 : index
    %223 = vector.load %arg21[%c0_51, %c32_52] : memref<8x256xf32, #tpu.memory_space<vmem>>, vector<8x32xf32>
    tpu.vector_store %arg21[%c0_51, %c32_52], %222 {strides = array<i32>} : memref<8x256xf32, #tpu.memory_space<vmem>>, vector<8x32xf32>,
    %224 = vector.extract_strided_slice %181 {offsets = [16, 0], sizes = [8, 128], strides = [1, 1]} : vector<64x128xf32> to vector<8x128xf32>
    %cst_53 = arith.constant dense<0.000000e+00> : vector<8x128xf32>
    %225 = tpu.matmul %222, %176, %cst_53 {dimension_numbers = #tpu.dot_dimension_numbers<[1], [0], [0], [1], [0, 0, 1, 1], [], []>} : vector<8x32xf32>, vector<32x128xf32>, vector<8x128xf32> -> vector<8x128xf32>
    %226 = arith.addf %224, %225 : vector<8x128xf32>
    %227 = vector.extract_strided_slice %226 {offsets = [0, 0], sizes = [8, 96], strides = [1, 1]} : vector<8x128xf32> to vector<8x96xf32>
    %228 = arith.negf %227 : vector<8x96xf32>
    %229 = math.exp %228 : vector<8x96xf32>
    %cst_54 = arith.constant 1.000000e+00 : f32
    %230 = vector.broadcast %cst_54 : f32 to vector<8x96xf32>
    %231 = arith.addf %230, %229 : vector<8x96xf32>
    %232 = arith.divf %230, %231 : vector<8x96xf32>
    %233 = vector.extract_strided_slice %226 {offsets = [0, 96], sizes = [8, 32], strides = [1, 1]} : vector<8x128xf32> to vector<8x32xf32>
    %234 = math.tanh %233 : vector<8x32xf32>
    %235 = vector.extract_strided_slice %232 {offsets = [0, 0], sizes = [8, 32], strides = [1, 1]} : vector<8x96xf32> to vector<8x32xf32>
    %236 = vector.extract_strided_slice %232 {offsets = [0, 32], sizes = [8, 32], strides = [1, 1]} : vector<8x96xf32> to vector<8x32xf32>
    %237 = vector.extract_strided_slice %232 {offsets = [0, 64], sizes = [8, 32], strides = [1, 1]} : vector<8x96xf32> to vector<8x32xf32>
    %238 = arith.mulf %236, %220 : vector<8x32xf32>
    %239 = arith.mulf %235, %234 : vector<8x32xf32>
    %240 = arith.addf %238, %239 : vector<8x32xf32>
    %241 = math.tanh %240 : vector<8x32xf32>
    %242 = arith.mulf %237, %241 : vector<8x32xf32>
    %c0_55 = arith.constant 0 : index
    %c64 = arith.constant 64 : index
    %243 = vector.load %arg21[%c0_55, %c64] : memref<8x256xf32, #tpu.memory_space<vmem>>, vector<8x32xf32>
    tpu.vector_store %arg21[%c0_55, %c64], %242 {strides = array<i32>} : memref<8x256xf32, #tpu.memory_space<vmem>>, vector<8x32xf32>,
    %244 = vector.extract_strided_slice %181 {offsets = [24, 0], sizes = [8, 128], strides = [1, 1]} : vector<64x128xf32> to vector<8x128xf32>
    %cst_56 = arith.constant dense<0.000000e+00> : vector<8x128xf32>
    %245 = tpu.matmul %242, %176, %cst_56 {dimension_numbers = #tpu.dot_dimension_numbers<[1], [0], [0], [1], [0, 0, 1, 1], [], []>} : vector<8x32xf32>, vector<32x128xf32>, vector<8x128xf32> -> vector<8x128xf32>
    %246 = arith.addf %244, %245 : vector<8x128xf32>
    %247 = vector.extract_strided_slice %246 {offsets = [0, 0], sizes = [8, 96], strides = [1, 1]} : vector<8x128xf32> to vector<8x96xf32>
    %248 = arith.negf %247 : vector<8x96xf32>
    %249 = math.exp %248 : vector<8x96xf32>
    %cst_57 = arith.constant 1.000000e+00 : f32
    %250 = vector.broadcast %cst_57 : f32 to vector<8x96xf32>
    %251 = arith.addf %250, %249 : vector<8x96xf32>
    %252 = arith.divf %250, %251 : vector<8x96xf32>
    %253 = vector.extract_strided_slice %246 {offsets = [0, 96], sizes = [8, 32], strides = [1, 1]} : vector<8x128xf32> to vector<8x32xf32>
    %254 = math.tanh %253 : vector<8x32xf32>
    %255 = vector.extract_strided_slice %252 {offsets = [0, 0], sizes = [8, 32], strides = [1, 1]} : vector<8x96xf32> to vector<8x32xf32>
    %256 = vector.extract_strided_slice %252 {offsets = [0, 32], sizes = [8, 32], strides = [1, 1]} : vector<8x96xf32> to vector<8x32xf32>
    %257 = vector.extract_strided_slice %252 {offsets = [0, 64], sizes = [8, 32], strides = [1, 1]} : vector<8x96xf32> to vector<8x32xf32>
    %258 = arith.mulf %256, %240 : vector<8x32xf32>
    %259 = arith.mulf %255, %254 : vector<8x32xf32>
    %260 = arith.addf %258, %259 : vector<8x32xf32>
    %261 = math.tanh %260 : vector<8x32xf32>
    %262 = arith.mulf %257, %261 : vector<8x32xf32>
    %c0_58 = arith.constant 0 : index
    %c96 = arith.constant 96 : index
    %263 = vector.load %arg21[%c0_58, %c96] : memref<8x256xf32, #tpu.memory_space<vmem>>, vector<8x32xf32>
    tpu.vector_store %arg21[%c0_58, %c96], %262 {strides = array<i32>} : memref<8x256xf32, #tpu.memory_space<vmem>>, vector<8x32xf32>,
    %264 = vector.extract_strided_slice %181 {offsets = [32, 0], sizes = [8, 128], strides = [1, 1]} : vector<64x128xf32> to vector<8x128xf32>
    %cst_59 = arith.constant dense<0.000000e+00> : vector<8x128xf32>
    %265 = tpu.matmul %262, %176, %cst_59 {dimension_numbers = #tpu.dot_dimension_numbers<[1], [0], [0], [1], [0, 0, 1, 1], [], []>} : vector<8x32xf32>, vector<32x128xf32>, vector<8x128xf32> -> vector<8x128xf32>
    %266 = arith.addf %264, %265 : vector<8x128xf32>
    %267 = vector.extract_strided_slice %266 {offsets = [0, 0], sizes = [8, 96], strides = [1, 1]} : vector<8x128xf32> to vector<8x96xf32>
    %268 = arith.negf %267 : vector<8x96xf32>
    %269 = math.exp %268 : vector<8x96xf32>
    %cst_60 = arith.constant 1.000000e+00 : f32
    %270 = vector.broadcast %cst_60 : f32 to vector<8x96xf32>
    %271 = arith.addf %270, %269 : vector<8x96xf32>
    %272 = arith.divf %270, %271 : vector<8x96xf32>
    %273 = vector.extract_strided_slice %266 {offsets = [0, 96], sizes = [8, 32], strides = [1, 1]} : vector<8x128xf32> to vector<8x32xf32>
    %274 = math.tanh %273 : vector<8x32xf32>
    %275 = vector.extract_strided_slice %272 {offsets = [0, 0], sizes = [8, 32], strides = [1, 1]} : vector<8x96xf32> to vector<8x32xf32>
    %276 = vector.extract_strided_slice %272 {offsets = [0, 32], sizes = [8, 32], strides = [1, 1]} : vector<8x96xf32> to vector<8x32xf32>
    %277 = vector.extract_strided_slice %272 {offsets = [0, 64], sizes = [8, 32], strides = [1, 1]} : vector<8x96xf32> to vector<8x32xf32>
    %278 = arith.mulf %276, %260 : vector<8x32xf32>
    %279 = arith.mulf %275, %274 : vector<8x32xf32>
    %280 = arith.addf %278, %279 : vector<8x32xf32>
    %281 = math.tanh %280 : vector<8x32xf32>
    %282 = arith.mulf %277, %281 : vector<8x32xf32>
    %c0_61 = arith.constant 0 : index
    %c128 = arith.constant 128 : index
    %283 = vector.load %arg21[%c0_61, %c128] : memref<8x256xf32, #tpu.memory_space<vmem>>, vector<8x32xf32>
    tpu.vector_store %arg21[%c0_61, %c128], %282 {strides = array<i32>} : memref<8x256xf32, #tpu.memory_space<vmem>>, vector<8x32xf32>,
    %284 = vector.extract_strided_slice %181 {offsets = [40, 0], sizes = [8, 128], strides = [1, 1]} : vector<64x128xf32> to vector<8x128xf32>
    %cst_62 = arith.constant dense<0.000000e+00> : vector<8x128xf32>
    %285 = tpu.matmul %282, %176, %cst_62 {dimension_numbers = #tpu.dot_dimension_numbers<[1], [0], [0], [1], [0, 0, 1, 1], [], []>} : vector<8x32xf32>, vector<32x128xf32>, vector<8x128xf32> -> vector<8x128xf32>
    %286 = arith.addf %284, %285 : vector<8x128xf32>
    %287 = vector.extract_strided_slice %286 {offsets = [0, 0], sizes = [8, 96], strides = [1, 1]} : vector<8x128xf32> to vector<8x96xf32>
    %288 = arith.negf %287 : vector<8x96xf32>
    %289 = math.exp %288 : vector<8x96xf32>
    %cst_63 = arith.constant 1.000000e+00 : f32
    %290 = vector.broadcast %cst_63 : f32 to vector<8x96xf32>
    %291 = arith.addf %290, %289 : vector<8x96xf32>
    %292 = arith.divf %290, %291 : vector<8x96xf32>
    %293 = vector.extract_strided_slice %286 {offsets = [0, 96], sizes = [8, 32], strides = [1, 1]} : vector<8x128xf32> to vector<8x32xf32>
    %294 = math.tanh %293 : vector<8x32xf32>
    %295 = vector.extract_strided_slice %292 {offsets = [0, 0], sizes = [8, 32], strides = [1, 1]} : vector<8x96xf32> to vector<8x32xf32>
    %296 = vector.extract_strided_slice %292 {offsets = [0, 32], sizes = [8, 32], strides = [1, 1]} : vector<8x96xf32> to vector<8x32xf32>
    %297 = vector.extract_strided_slice %292 {offsets = [0, 64], sizes = [8, 32], strides = [1, 1]} : vector<8x96xf32> to vector<8x32xf32>
    %298 = arith.mulf %296, %280 : vector<8x32xf32>
    %299 = arith.mulf %295, %294 : vector<8x32xf32>
    %300 = arith.addf %298, %299 : vector<8x32xf32>
    %301 = math.tanh %300 : vector<8x32xf32>
    %302 = arith.mulf %297, %301 : vector<8x32xf32>
    %c0_64 = arith.constant 0 : index
    %c160 = arith.constant 160 : index
    %303 = vector.load %arg21[%c0_64, %c160] : memref<8x256xf32, #tpu.memory_space<vmem>>, vector<8x32xf32>
    tpu.vector_store %arg21[%c0_64, %c160], %302 {strides = array<i32>} : memref<8x256xf32, #tpu.memory_space<vmem>>, vector<8x32xf32>,
    %304 = vector.extract_strided_slice %181 {offsets = [48, 0], sizes = [8, 128], strides = [1, 1]} : vector<64x128xf32> to vector<8x128xf32>
    %cst_65 = arith.constant dense<0.000000e+00> : vector<8x128xf32>
    %305 = tpu.matmul %302, %176, %cst_65 {dimension_numbers = #tpu.dot_dimension_numbers<[1], [0], [0], [1], [0, 0, 1, 1], [], []>} : vector<8x32xf32>, vector<32x128xf32>, vector<8x128xf32> -> vector<8x128xf32>
    %306 = arith.addf %304, %305 : vector<8x128xf32>
    %307 = vector.extract_strided_slice %306 {offsets = [0, 0], sizes = [8, 96], strides = [1, 1]} : vector<8x128xf32> to vector<8x96xf32>
    %308 = arith.negf %307 : vector<8x96xf32>
    %309 = math.exp %308 : vector<8x96xf32>
    %cst_66 = arith.constant 1.000000e+00 : f32
    %310 = vector.broadcast %cst_66 : f32 to vector<8x96xf32>
    %311 = arith.addf %310, %309 : vector<8x96xf32>
    %312 = arith.divf %310, %311 : vector<8x96xf32>
    %313 = vector.extract_strided_slice %306 {offsets = [0, 96], sizes = [8, 32], strides = [1, 1]} : vector<8x128xf32> to vector<8x32xf32>
    %314 = math.tanh %313 : vector<8x32xf32>
    %315 = vector.extract_strided_slice %312 {offsets = [0, 0], sizes = [8, 32], strides = [1, 1]} : vector<8x96xf32> to vector<8x32xf32>
    %316 = vector.extract_strided_slice %312 {offsets = [0, 32], sizes = [8, 32], strides = [1, 1]} : vector<8x96xf32> to vector<8x32xf32>
    %317 = vector.extract_strided_slice %312 {offsets = [0, 64], sizes = [8, 32], strides = [1, 1]} : vector<8x96xf32> to vector<8x32xf32>
    %318 = arith.mulf %316, %300 : vector<8x32xf32>
    %319 = arith.mulf %315, %314 : vector<8x32xf32>
    %320 = arith.addf %318, %319 : vector<8x32xf32>
    %321 = math.tanh %320 : vector<8x32xf32>
    %322 = arith.mulf %317, %321 : vector<8x32xf32>
    %c0_67 = arith.constant 0 : index
    %c192 = arith.constant 192 : index
    %323 = vector.load %arg21[%c0_67, %c192] : memref<8x256xf32, #tpu.memory_space<vmem>>, vector<8x32xf32>
    tpu.vector_store %arg21[%c0_67, %c192], %322 {strides = array<i32>} : memref<8x256xf32, #tpu.memory_space<vmem>>, vector<8x32xf32>,
    %324 = vector.extract_strided_slice %181 {offsets = [56, 0], sizes = [8, 128], strides = [1, 1]} : vector<64x128xf32> to vector<8x128xf32>
    %cst_68 = arith.constant dense<0.000000e+00> : vector<8x128xf32>
    %325 = tpu.matmul %322, %176, %cst_68 {dimension_numbers = #tpu.dot_dimension_numbers<[1], [0], [0], [1], [0, 0, 1, 1], [], []>} : vector<8x32xf32>, vector<32x128xf32>, vector<8x128xf32> -> vector<8x128xf32>
    %326 = arith.addf %324, %325 : vector<8x128xf32>
    %327 = vector.extract_strided_slice %326 {offsets = [0, 0], sizes = [8, 96], strides = [1, 1]} : vector<8x128xf32> to vector<8x96xf32>
    %328 = arith.negf %327 : vector<8x96xf32>
    %329 = math.exp %328 : vector<8x96xf32>
    %cst_69 = arith.constant 1.000000e+00 : f32
    %330 = vector.broadcast %cst_69 : f32 to vector<8x96xf32>
    %331 = arith.addf %330, %329 : vector<8x96xf32>
    %332 = arith.divf %330, %331 : vector<8x96xf32>
    %333 = vector.extract_strided_slice %326 {offsets = [0, 96], sizes = [8, 32], strides = [1, 1]} : vector<8x128xf32> to vector<8x32xf32>
    %334 = math.tanh %333 : vector<8x32xf32>
    %335 = vector.extract_strided_slice %332 {offsets = [0, 0], sizes = [8, 32], strides = [1, 1]} : vector<8x96xf32> to vector<8x32xf32>
    %336 = vector.extract_strided_slice %332 {offsets = [0, 32], sizes = [8, 32], strides = [1, 1]} : vector<8x96xf32> to vector<8x32xf32>
    %337 = vector.extract_strided_slice %332 {offsets = [0, 64], sizes = [8, 32], strides = [1, 1]} : vector<8x96xf32> to vector<8x32xf32>
    %338 = arith.mulf %336, %320 : vector<8x32xf32>
    %339 = arith.mulf %335, %334 : vector<8x32xf32>
    %340 = arith.addf %338, %339 : vector<8x32xf32>
    %341 = math.tanh %340 : vector<8x32xf32>
    %342 = arith.mulf %337, %341 : vector<8x32xf32>
    %c0_70 = arith.constant 0 : index
    %c224 = arith.constant 224 : index
    %343 = vector.load %arg21[%c0_70, %c224] : memref<8x256xf32, #tpu.memory_space<vmem>>, vector<8x32xf32>
    tpu.vector_store %arg21[%c0_70, %c224], %342 {strides = array<i32>} : memref<8x256xf32, #tpu.memory_space<vmem>>, vector<8x32xf32>,
    %c0_71 = arith.constant 0 : index
    %c0_72 = arith.constant 0 : index
    %344 = vector.load %arg21[%c0_71, %c0_72] : memref<8x256xf32, #tpu.memory_space<vmem>>, vector<8x256xf32>
    %c0_i32_73 = arith.constant 0 : i32
    %345 = tpu.memref_slice %arg19[%c0_i32_73] : memref<3x!tpu.dma_semaphore, #tpu.memory_space<semaphore_mem>> -> memref<1x!tpu.dma_semaphore, #tpu.memory_space<semaphore_mem>>
    %346 = tpu.memref_squeeze %345 : memref<1x!tpu.dma_semaphore, #tpu.memory_space<semaphore_mem>> -> memref<!tpu.dma_semaphore, #tpu.memory_space<semaphore_mem>>
    tpu.wait_dma2 semaphore(%346 : memref<!tpu.dma_semaphore, #tpu.memory_space<semaphore_mem>>) src(%arg7 : memref<256x1280xbf16, #tpu.memory_space<any>>) dst(%arg16 : memref<256x1280xbf16, #tpu.memory_space<vmem>>)
    %c0_74 = arith.constant 0 : index
    %c0_75 = arith.constant 0 : index
    %347 = vector.load %arg16[%c0_74, %c0_75] : memref<256x1280xbf16, #tpu.memory_space<vmem>>, vector<256x1280xbf16>
    %348 = arith.extf %347 : vector<256x1280xbf16> to vector<256x1280xf32>
    %cst_76 = arith.constant dense<0.000000e+00> : vector<8x1280xf32>
    %349 = tpu.matmul %344, %348, %cst_76 {dimension_numbers = #tpu.dot_dimension_numbers<[1], [0], [0], [1], [0, 0, 1, 1], [], []>} : vector<8x256xf32>, vector<256x1280xf32>, vector<8x1280xf32> -> vector<8x1280xf32>
    %c0_77 = arith.constant 0 : index
    %c0_78 = arith.constant 0 : index
    %350 = vector.load %arg10[%c0_77, %c0_78] : memref<1x1280xf32, #tpu.memory_space<vmem>>, vector<1x1280xf32>
    %351 = vector.broadcast %350 : vector<1x1280xf32> to vector<8x1280xf32>
    %352 = arith.addf %349, %351 : vector<8x1280xf32>
    %cst_79 = arith.constant 0.000000e+00 : f32
    %353 = vector.broadcast %cst_79 : f32 to vector<8x1280xf32>
    %354 = arith.maximumf %352, %353 : vector<8x1280xf32>
    %c1_i32_80 = arith.constant 1 : i32
    %355 = tpu.memref_slice %arg19[%c1_i32_80] : memref<3x!tpu.dma_semaphore, #tpu.memory_space<semaphore_mem>> -> memref<1x!tpu.dma_semaphore, #tpu.memory_space<semaphore_mem>>
    %356 = tpu.memref_squeeze %355 : memref<1x!tpu.dma_semaphore, #tpu.memory_space<semaphore_mem>> -> memref<!tpu.dma_semaphore, #tpu.memory_space<semaphore_mem>>
    tpu.wait_dma2 semaphore(%356 : memref<!tpu.dma_semaphore, #tpu.memory_space<semaphore_mem>>) src(%arg8 : memref<1280x640xbf16, #tpu.memory_space<any>>) dst(%arg17 : memref<1280x640xbf16, #tpu.memory_space<vmem>>)
    %c0_81 = arith.constant 0 : index
    %c0_82 = arith.constant 0 : index
    %357 = vector.load %arg17[%c0_81, %c0_82] : memref<1280x640xbf16, #tpu.memory_space<vmem>>, vector<1280x640xbf16>
    %358 = arith.extf %357 : vector<1280x640xbf16> to vector<1280x640xf32>
    %cst_83 = arith.constant dense<0.000000e+00> : vector<8x640xf32>
    %359 = tpu.matmul %354, %358, %cst_83 {dimension_numbers = #tpu.dot_dimension_numbers<[1], [0], [0], [1], [0, 0, 1, 1], [], []>} : vector<8x1280xf32>, vector<1280x640xf32>, vector<8x640xf32> -> vector<8x640xf32>
    %c0_84 = arith.constant 0 : index
    %c0_85 = arith.constant 0 : index
    %360 = vector.load %arg11[%c0_84, %c0_85] : memref<1x640xf32, #tpu.memory_space<vmem>>, vector<1x640xf32>
    %361 = vector.broadcast %360 : vector<1x640xf32> to vector<8x640xf32>
    %362 = arith.addf %359, %361 : vector<8x640xf32>
    %cst_86 = arith.constant 0.000000e+00 : f32
    %363 = vector.broadcast %cst_86 : f32 to vector<8x640xf32>
    %364 = arith.maximumf %362, %363 : vector<8x640xf32>
    %c2_i32_87 = arith.constant 2 : i32
    %365 = tpu.memref_slice %arg19[%c2_i32_87] : memref<3x!tpu.dma_semaphore, #tpu.memory_space<semaphore_mem>> -> memref<1x!tpu.dma_semaphore, #tpu.memory_space<semaphore_mem>>
    %366 = tpu.memref_squeeze %365 : memref<1x!tpu.dma_semaphore, #tpu.memory_space<semaphore_mem>> -> memref<!tpu.dma_semaphore, #tpu.memory_space<semaphore_mem>>
    tpu.wait_dma2 semaphore(%366 : memref<!tpu.dma_semaphore, #tpu.memory_space<semaphore_mem>>) src(%arg9 : memref<640x128xbf16, #tpu.memory_space<any>>) dst(%arg18 : memref<640x128xbf16, #tpu.memory_space<vmem>>)
    %c0_88 = arith.constant 0 : index
    %c0_89 = arith.constant 0 : index
    %367 = vector.load %arg18[%c0_88, %c0_89] : memref<640x128xbf16, #tpu.memory_space<vmem>>, vector<640x128xbf16>
    %368 = arith.extf %367 : vector<640x128xbf16> to vector<640x128xf32>
    %cst_90 = arith.constant dense<0.000000e+00> : vector<8x128xf32>
    %369 = tpu.matmul %364, %368, %cst_90 {dimension_numbers = #tpu.dot_dimension_numbers<[1], [0], [0], [1], [0, 0, 1, 1], [], []>} : vector<8x640xf32>, vector<640x128xf32>, vector<8x128xf32> -> vector<8x128xf32>
    %c0_91 = arith.constant 0 : index
    %c0_92 = arith.constant 0 : index
    %370 = vector.load %arg12[%c0_91, %c0_92] : memref<1x128xf32, #tpu.memory_space<vmem>>, vector<1x128xf32>
    %371 = vector.broadcast %370 : vector<1x128xf32> to vector<8x128xf32>
    %372 = arith.addf %369, %371 : vector<8x128xf32>
    %cst_93 = arith.constant 0.000000e+00 : f32
    %373 = vector.broadcast %cst_93 : f32 to vector<8x128xf32>
    %374 = arith.maximumf %372, %373 : vector<8x128xf32>
    %c0_94 = arith.constant 0 : index
    %c0_95 = arith.constant 0 : index
    %375 = vector.load %arg13[%c0_94, %c0_95] : memref<1x128xf32, #tpu.memory_space<vmem>>, vector<1x128xf32>
    %376 = vector.broadcast %375 : vector<1x128xf32> to vector<8x128xf32>
    %377 = arith.mulf %374, %376 : vector<8x128xf32>
    %cst_96 = arith.constant dense<0.000000e+00> : vector<8xf32>
    %378 = vector.multi_reduction <add>, %377, %cst_96 [1] : vector<8x128xf32> to vector<8xf32>
    %379 = vector.shape_cast %378 : vector<8xf32> to vector<8x1xf32>
    %c0_97 = arith.constant 0 : index
    %c0_98 = arith.constant 0 : index
    %380 = vector.load %arg14[%c0_97, %c0_98] : memref<1x1xf32, #tpu.memory_space<vmem>>, vector<1x1xf32>
    %381 = vector.broadcast %380 : vector<1x1xf32> to vector<8x1xf32>
    %382 = arith.addf %379, %381 : vector<8x1xf32>
    %c0_99 = arith.constant 0 : index
    %c0_100 = arith.constant 0 : index
    %383 = vector.load %arg15[%c0_99, %c0_100] : memref<8x1xf32, #tpu.memory_space<vmem>>, vector<8x1xf32>
    tpu.vector_store %arg15[%c0_99, %c0_100], %382 {strides = array<i32>} : memref<8x1xf32, #tpu.memory_space<vmem>>, vector<8x1xf32>,
    return
  }
}

</mosaic_0001>

<llo_original>
// kernel: tpu_custom_call.1
$region0: #{tpu_custom_call.1}
  #allocation0 [shape = 'u32[]', space=smem, size = 0x4, offset = 0x4, fixed_abs, tag = 'smem constant byte address 0x4 - core index']
  #allocation1 [shape = 'u32[144,128]{1,0:T(1,128)}', space=vmem, size = 0x12000, scoped, tag = 'internal scratch']
  #allocation2 [shape = 'bf16[256,1280]{1,0:T(16,128)(2,1)}', space=vmem, size = 0xa0000, scoped, tag = 'scratch operand']
  #allocation3 [shape = 'bf16[1280,640]{1,0:T(16,128)(2,1)}', space=vmem, size = 0x190000, scoped, tag = 'scratch operand']
  #allocation4 [shape = 'bf16[640,128]{1,0:T(16,128)(2,1)}', space=vmem, size = 0x28000, scoped, tag = 'scratch operand']
  #allocation5 [shape = 's32[3]{0}', space=sflag, size = 0xc, scoped, tag = 'scratch operand']
  #allocation6 [shape = 'f32[64,32]{1,0:T(8,128)}', space=vmem, size = 0x8000, scoped, tag = 'scratch operand']
  #allocation7 [shape = 'f32[8,256]{1,0:T(8,128)}', space=vmem, size = 0x2000, scoped, tag = 'scratch operand']
  #allocation8 [shape = 'f32[1,1]{1,0:T(1,128)S(1)}', space=vmem, size = 0x200, scoped, tag = 'scoped memory for tpu_custom_call.1']
  #allocation25 [shape = 's32[]', space=sflag, size = 0x4, offset = 0, fixed_abs, tag = 'sflag constant byte address 0x0 - dummy sync flag']
  #allocation27 [shape = 's32[]', space=sflag, size = 0x4, offset = 0, fixed_abs, tag = 'sflag constant byte address 0x0 - dummy sync flag']
  #allocation29 [shape = 's32[]', space=sflag, size = 0x4, offset = 0, fixed_abs, tag = 'sflag constant byte address 0x0 - dummy sync flag']
  #allocation30 [shape = 's32[]', space=sflag, size = 0x4, offset = 0, fixed_abs, tag = 'sflag constant byte address 0x0 - dummy sync flag']
  #allocation31 [shape = 'u32[]', space=smem, size = 0x4, offset = 0x44, fixed_abs, tag = 'smem constant byte address 0x44 - assertion arg 0']
  #allocation32 [shape = 'u32[]', space=smem, size = 0x4, offset = 0x48, fixed_abs, tag = 'smem constant byte address 0x48 - assertion arg 1']
  %s0 = inlined_call_operand.vmem [shape: f32[64,16], index: 0, kind: input, shape index: {}]
  %s1 = inlined_call_operand.hbm [shape: f32[16,128], index: 1, kind: input, shape index: {}]
  %s2 = inlined_call_operand.hbm [shape: f32[32,128], index: 2, kind: input, shape index: {}]
  %s3 = inlined_call_operand.hbm [shape: f32[1,128], index: 3, kind: input, shape index: {}]
  %s4 = inlined_call_operand.hbm [shape: f32[32,128], index: 4, kind: input, shape index: {}]
  %s5 = inlined_call_operand.hbm [shape: f32[32,128], index: 5, kind: input, shape index: {}]
  %s6 = inlined_call_operand.hbm [shape: f32[1,128], index: 6, kind: input, shape index: {}]
  %s7 = inlined_call_operand.hbm [shape: bf16[256,1280], index: 7, kind: input, shape index: {}]
  %s8 = inlined_call_operand.hbm [shape: bf16[1280,640], index: 8, kind: input, shape index: {}]
  %s9 = inlined_call_operand.hbm [shape: bf16[640,128], index: 9, kind: input, shape index: {}]
  %s10 = inlined_call_operand.hbm [shape: f32[1,1280], index: 10, kind: input, shape index: {}]
  %s11 = inlined_call_operand.hbm [shape: f32[1,640], index: 11, kind: input, shape index: {}]
  %s12 = inlined_call_operand.hbm [shape: f32[1,128], index: 12, kind: input, shape index: {}]
  %s13 = inlined_call_operand.hbm [shape: f32[1,128], index: 13, kind: input, shape index: {}]
  %s14 = inlined_call_operand.<no memory space> [shape: f32[1,1], index: 14, kind: input, shape index: {}]
  %s15 = inlined_call_operand.vmem [shape: f32[8,1], index: 15, kind: output, shape index: {}]
  %s16 = sld [smem:[#allocation0]]
  $region102: #{tpu_custom_call.1} parent=0
    _
  %s18 = ssub.s32 1, %s16
  %s19 = scalar_select 0, %s18, %s16
  %v20 = vstv %s14
  %21 = vst [vmem:[#allocation8] sm:$0x1] %v20
  $region1: #{tpu_custom_call.1} parent=0
    #allocation9 [shape = 'u8[8192]{0}', space=vmem, size = 0x2000, scoped, tag = 'input window, operand 1, single buffered']
    #allocation10 [shape = 's32[1]{0}', space=sflag, size = 0x4, scoped, tag = 'scoped memory for tpu_custom_call.1']
    #allocation11 [shape = 'u8[16384]{0}', space=vmem, size = 0x4000, scoped, tag = 'input window, operand 2, single buffered']
    #allocation12 [shape = 's32[1]{0}', space=sflag, size = 0x4, scoped, tag = 'scoped memory for tpu_custom_call.1']
    #allocation13 [shape = 'u8[512]{0}', space=vmem, size = 0x400, scoped, tag = 'input window, operand 3, single buffered']
    #allocation14 [shape = 'u8[16384]{0}', space=vmem, size = 0x4000, scoped, tag = 'input window, operand 4, single buffered']
    #allocation15 [shape = 's32[1]{0}', space=sflag, size = 0x4, scoped, tag = 'scoped memory for tpu_custom_call.1']
    #allocation16 [shape = 'u8[16384]{0}', space=vmem, size = 0x4000, scoped, tag = 'input window, operand 5, single buffered']
    #allocation17 [shape = 'u8[512]{0}', space=vmem, size = 0x400, scoped, tag = 'input window, operand 6, single buffered']
    #allocation18 [shape = 's32[1]{0}', space=sflag, size = 0x4, scoped, tag = 'scoped memory for tpu_custom_call.1']
    #allocation19 [shape = 'u8[5120]{0}', space=vmem, size = 0x1400, scoped, tag = 'input window, operand 10, single buffered']
    #allocation20 [shape = 'u8[2560]{0}', space=vmem, size = 0xc00, scoped, tag = 'input window, operand 11, single buffered']
    #allocation21 [shape = 's32[1]{0}', space=sflag, size = 0x4, scoped, tag = 'scoped memory for tpu_custom_call.1']
    #allocation22 [shape = 'u8[512]{0}', space=vmem, size = 0x400, scoped, tag = 'input window, operand 12, single buffered']
    #allocation23 [shape = 'u8[512]{0}', space=vmem, size = 0x400, scoped, tag = 'input window, operand 13, single buffered']
    #allocation24 [shape = 's32[1]{0}', space=sflag, size = 0x4, scoped, tag = 'scoped memory for tpu_custom_call.1']
    #allocation26 [shape = 'u32[9]{0}', space=smem, size = 0x24, scoped, tag = 'DMA stride descriptor']
    #allocation28 [shape = 'u32[9]{0}', space=smem, size = 0x24, scoped, tag = 'DMA stride descriptor']
    %22 = vsyncpa [#allocation10], 0
    %23 = vsyncpa [#allocation12], 0
    %24 = vsyncpa [#allocation15], 0
    %25 = vsyncpa [#allocation18], 0
    %26 = vsyncpa [#allocation21], 0
    %27 = vsyncpa [#allocation24], 0
    // Predicated region
    $region2: #{tpu_custom_call.1} parent=1 // pred_check
      _
    $region3: #{tpu_custom_call.1} parent=1 // pred_check_branch
      %29 = sbr.rel (0) target = $region5
    $region4: #{tpu_custom_call.1} parent=1 // pred_region
      _
    $region5: #{tpu_custom_call.1} parent=1 // pred_fallthru
      _
    // Predicated region
    $region6: #{tpu_custom_call.1} parent=1 // pred_check
      _
    $region7: #{tpu_custom_call.1} parent=1 // pred_check_branch
      %31 = sbr.rel (0) target = $region9
    $region8: #{tpu_custom_call.1} parent=1 // pred_region
      %s33 = ssub.s32 256, 256
      %34 = vsyncadd [#allocation10], %s33
      %s35 = sshll.u32 [#allocation9], 4
      %s36 = int_to_ptr.vmem [resolvable:$true] %s35
      %41 = dma.hbm_to_vmem [thread:$0]  %s1, 256, %s36, [#allocation10], 128, 128, 8
    $region9: #{tpu_custom_call.1} parent=1 // pred_fallthru
      _
    // Predicated region
    $region10: #{tpu_custom_call.1} parent=1 // pred_check
      _
    $region11: #{tpu_custom_call.1} parent=1 // pred_check_branch
      %43 = sbr.rel (0) target = $region13
    $region12: #{tpu_custom_call.1} parent=1 // pred_region
      %s45 = ssub.s32 512, 512
      %46 = vsyncadd [#allocation12], %s45
      %s47 = sshll.u32 [#allocation11], 4
      %s48 = int_to_ptr.vmem [resolvable:$true] %s47
      %53 = dma.hbm_to_vmem [thread:$0]  %s2, 512, %s48, [#allocation12], 128, 128, 8
    $region13: #{tpu_custom_call.1} parent=1 // pred_fallthru
      _
    // Predicated region
    $region14: #{tpu_custom_call.1} parent=1 // pred_check
      _
    $region15: #{tpu_custom_call.1} parent=1 // pred_check_branch
      %55 = sbr.rel (0) target = $region17
    $region16: #{tpu_custom_call.1} parent=1 // pred_region
      %s57 = ssub.s32 16, 16
      %58 = vsyncadd [#allocation12], %s57
      %s60 = sshll.u32 [#allocation13], 4
      %s61 = int_to_ptr.vmem [resolvable:$true] %s60
      %63 = dma.hbm_to_vmem [thread:$0]  %s3, 16, %s61, [#allocation12]
    $region17: #{tpu_custom_call.1} parent=1 // pred_fallthru
      _
    // Predicated region
    $region18: #{tpu_custom_call.1} parent=1 // pred_check
      _
    $region19: #{tpu_custom_call.1} parent=1 // pred_check_branch
      %65 = sbr.rel (0) target = $region21
    $region20: #{tpu_custom_call.1} parent=1 // pred_region
      %s67 = ssub.s32 512, 512
      %68 = vsyncadd [#allocation15], %s67
      %s69 = sshll.u32 [#allocation14], 4
      %s70 = int_to_ptr.vmem [resolvable:$true] %s69
      %75 = dma.hbm_to_vmem [thread:$0]  %s4, 512, %s70, [#allocation15], 128, 128, 8
    $region21: #{tpu_custom_call.1} parent=1 // pred_fallthru
      _
    // Predicated region
    $region22: #{tpu_custom_call.1} parent=1 // pred_check
      _
    $region23: #{tpu_custom_call.1} parent=1 // pred_check_branch
      %77 = sbr.rel (0) target = $region25
    $region24: #{tpu_custom_call.1} parent=1 // pred_region
      %s79 = ssub.s32 512, 512
      %80 = vsyncadd [#allocation15], %s79
      %s81 = sshll.u32 [#allocation16], 4
      %s82 = int_to_ptr.vmem [resolvable:$true] %s81
      %87 = dma.hbm_to_vmem [thread:$0]  %s5, 512, %s82, [#allocation15], 128, 128, 8
    $region25: #{tpu_custom_call.1} parent=1 // pred_fallthru
      _
    // Predicated region
    $region26: #{tpu_custom_call.1} parent=1 // pred_check
      _
    $region27: #{tpu_custom_call.1} parent=1 // pred_check_branch
      %89 = sbr.rel (0) target = $region29
    $region28: #{tpu_custom_call.1} parent=1 // pred_region
      %s91 = ssub.s32 16, 16
      %92 = vsyncadd [#allocation18], %s91
      %s94 = sshll.u32 [#allocation17], 4
      %s95 = int_to_ptr.vmem [resolvable:$true] %s94
      %97 = dma.hbm_to_vmem [thread:$0]  %s6, 16, %s95, [#allocation18]
    $region29: #{tpu_custom_call.1} parent=1 // pred_fallthru
      _
    // Predicated region
    $region30: #{tpu_custom_call.1} parent=1 // pred_check
      _
    $region31: #{tpu_custom_call.1} parent=1 // pred_check_branch
      %99 = sbr.rel (0) target = $region33
    $region32: #{tpu_custom_call.1} parent=1 // pred_region
      %s101 = ssub.s32 160, 160
      %102 = vsyncadd [#allocation18], %s101
      %s104 = sshll.u32 [#allocation19], 4
      %s105 = int_to_ptr.vmem [resolvable:$true] %s104
      %107 = dma.hbm_to_vmem [thread:$0]  %s10, 160, %s105, [#allocation18]
    $region33: #{tpu_custom_call.1} parent=1 // pred_fallthru
      _
    // Predicated region
    $region34: #{tpu_custom_call.1} parent=1 // pred_check
      _
    $region35: #{tpu_custom_call.1} parent=1 // pred_check_branch
      %109 = sbr.rel (0) target = $region37
    $region36: #{tpu_custom_call.1} parent=1 // pred_region
      %s111 = ssub.s32 80, 80
      %112 = vsyncadd [#allocation21], %s111
      %s114 = sshll.u32 [#allocation20], 4
      %s115 = int_to_ptr.vmem [resolvable:$true] %s114
      %117 = dma.hbm_to_vmem [thread:$0]  %s11, 80, %s115, [#allocation21]
    $region37: #{tpu_custom_call.1} parent=1 // pred_fallthru
      _
    // Predicated region
    $region38: #{tpu_custom_call.1} parent=1 // pred_check
      _
    $region39: #{tpu_custom_call.1} parent=1 // pred_check_branch
      %119 = sbr.rel (0) target = $region41
    $region40: #{tpu_custom_call.1} parent=1 // pred_region
      %s121 = ssub.s32 16, 16
      %122 = vsyncadd [#allocation21], %s121
      %s124 = sshll.u32 [#allocation22], 4
      %s125 = int_to_ptr.vmem [resolvable:$true] %s124
      %127 = dma.hbm_to_vmem [thread:$0]  %s12, 16, %s125, [#allocation21]
    $region41: #{tpu_custom_call.1} parent=1 // pred_fallthru
      _
    // Predicated region
    $region42: #{tpu_custom_call.1} parent=1 // pred_check
      _
    $region43: #{tpu_custom_call.1} parent=1 // pred_check_branch
      %129 = sbr.rel (0) target = $region45
    $region44: #{tpu_custom_call.1} parent=1 // pred_region
      %s131 = ssub.s32 16, 16
      %132 = vsyncadd [#allocation24], %s131
      %s134 = sshll.u32 [#allocation23], 4
      %s135 = int_to_ptr.vmem [resolvable:$true] %s134
      %137 = dma.hbm_to_vmem [thread:$0]  %s13, 16, %s135, [#allocation24]
    $region45: #{tpu_custom_call.1} parent=1 // pred_fallthru
      _
    // Predicated region
    $region46: #{tpu_custom_call.1} parent=1 // pred_check
      _
    $region47: #{tpu_custom_call.1} parent=1 // pred_check_branch
      %139 = sbr.rel (0) target = $region49
    $region48: #{tpu_custom_call.1} parent=1 // pred_region
      _
    $region49: #{tpu_custom_call.1} parent=1 // pred_fallthru
      _
    // Predicated region
    $region50: #{tpu_custom_call.1} parent=1 // pred_check
      _
    $region51: #{tpu_custom_call.1} parent=1 // pred_check_branch
      %141 = sbr.rel (0) target = $region53
    $region52: #{tpu_custom_call.1} parent=1 // pred_region
      %142 = dma.done [#allocation10], 256
    $region53: #{tpu_custom_call.1} parent=1 // pred_fallthru
      _
    // Predicated region
    $region54: #{tpu_custom_call.1} parent=1 // pred_check
      _
    $region55: #{tpu_custom_call.1} parent=1 // pred_check_branch
      %144 = sbr.rel (0) target = $region57
    $region56: #{tpu_custom_call.1} parent=1 // pred_region
      %145 = dma.done [#allocation12], 512
    $region57: #{tpu_custom_call.1} parent=1 // pred_fallthru
      _
    // Predicated region
    $region58: #{tpu_custom_call.1} parent=1 // pred_check
      _
    $region59: #{tpu_custom_call.1} parent=1 // pred_check_branch
      %147 = sbr.rel (0) target = $region61
    $region60: #{tpu_custom_call.1} parent=1 // pred_region
      %148 = dma.done [#allocation12], 16
    $region61: #{tpu_custom_call.1} parent=1 // pred_fallthru
      _
    // Predicated region
    $region62: #{tpu_custom_call.1} parent=1 // pred_check
      _
    $region63: #{tpu_custom_call.1} parent=1 // pred_check_branch
      %150 = sbr.rel (0) target = $region65
    $region64: #{tpu_custom_call.1} parent=1 // pred_region
      %151 = dma.done [#allocation15], 512
    $region65: #{tpu_custom_call.1} parent=1 // pred_fallthru
      _
    // Predicated region
    $region66: #{tpu_custom_call.1} parent=1 // pred_check
      _
    $region67: #{tpu_custom_call.1} parent=1 // pred_check_branch
      %153 = sbr.rel (0) target = $region69
    $region68: #{tpu_custom_call.1} parent=1 // pred_region
      %154 = dma.done [#allocation15], 512
    $region69: #{tpu_custom_call.1} parent=1 // pred_fallthru
      _
    // Predicated region
    $region70: #{tpu_custom_call.1} parent=1 // pred_check
      _
    $region71: #{tpu_custom_call.1} parent=1 // pred_check_branch
      %156 = sbr.rel (0) target = $region73
    $region72: #{tpu_custom_call.1} parent=1 // pred_region
      %157 = dma.done [#allocation18], 16
    $region73: #{tpu_custom_call.1} parent=1 // pred_fallthru
      _
    // Predicated region
    $region74: #{tpu_custom_call.1} parent=1 // pred_check
      _
    $region75: #{tpu_custom_call.1} parent=1 // pred_check_branch
      %159 = sbr.rel (0) target = $region77
    $region76: #{tpu_custom_call.1} parent=1 // pred_region
      %160 = dma.done [#allocation18], 160
    $region77: #{tpu_custom_call.1} parent=1 // pred_fallthru
      _
    // Predicated region
    $region78: #{tpu_custom_call.1} parent=1 // pred_check
      _
    $region79: #{tpu_custom_call.1} parent=1 // pred_check_branch
      %162 = sbr.rel (0) target = $region81
    $region80: #{tpu_custom_call.1} parent=1 // pred_region
      %163 = dma.done [#allocation21], 80
    $region81: #{tpu_custom_call.1} parent=1 // pred_fallthru
      _
    // Predicated region
    $region82: #{tpu_custom_call.1} parent=1 // pred_check
      _
    $region83: #{tpu_custom_call.1} parent=1 // pred_check_branch
      %165 = sbr.rel (0) target = $region85
    $region84: #{tpu_custom_call.1} parent=1 // pred_region
      %166 = dma.done [#allocation21], 16
    $region85: #{tpu_custom_call.1} parent=1 // pred_fallthru
      _
    // Predicated region
    $region86: #{tpu_custom_call.1} parent=1 // pred_check
      _
    $region87: #{tpu_custom_call.1} parent=1 // pred_check_branch
      %168 = sbr.rel (0) target = $region89
    $region88: #{tpu_custom_call.1} parent=1 // pred_region
      %169 = dma.done [#allocation24], 16
    $region89: #{tpu_custom_call.1} parent=1 // pred_fallthru
      _
    %s171 = sshll.u32 1, 14
    %s172 = sxor.u32 4294967295, %s171
    %s174 = sld [smem:[#allocation0]]
    %s175 = sadd.s32 2, %s174
    %s177 = sshll.u32 7, 26
    %s178 = sxor.u32 4294967295, %s177
    %s179 = sand.u32 0, %s178
    %s180 = sshll.u32 %s175, 26
    %s181 = sor.u32 %s179, %s180
    %s182 = sshll.u32 [#allocation2], 4
    %s183 = int_to_ptr.vmem [resolvable:$true] %s182
    %186 = sst [smem:[#allocation26]] 1280
    %s187 = scalar_lea.smem [#allocation26], 1
    %188 = sst [smem:[%s187]] 1280
    %s189 = scalar_lea.smem [#allocation26], 2
    %190 = sst [smem:[%s189]] 10
    %s191 = scalar_lea.smem [#allocation26], 3
    %192 = sst [smem:[%s191]] 64
    %s193 = scalar_lea.smem [#allocation26], 4
    %194 = sst [smem:[%s193]] 128
    %s195 = scalar_lea.smem [#allocation26], 5
    %196 = sst [smem:[%s195]] 2
    %s197 = scalar_lea.smem [#allocation26], 6
    %198 = sst [smem:[%s197]] 640
    %s199 = scalar_lea.smem [#allocation26], 7
    %200 = sst [smem:[%s199]] 64
    %s201 = scalar_lea.smem [#allocation26], 8
    %202 = sst [smem:[%s201]] 4
    %204 = dma.general %s7, 20480, %s183, [#allocation5], [#allocation25], [#allocation26], %s181, 0
    %s205 = scalar_lea.sflag [#allocation5], 1
    %s207 = sshll.u32 1, 14
    %s208 = sxor.u32 4294967295, %s207
    %s210 = sadd.s32 2, %s174
    %s212 = sshll.u32 7, 26
    %s213 = sxor.u32 4294967295, %s212
    %s214 = sand.u32 0, %s213
    %s215 = sshll.u32 %s210, 26
    %s216 = sor.u32 %s214, %s215
    %s217 = sshll.u32 [#allocation3], 4
    %s218 = int_to_ptr.vmem [resolvable:$true] %s217
    %221 = sst [smem:[#allocation28]] 640
    %s222 = scalar_lea.smem [#allocation28], 1
    %223 = sst [smem:[%s222]] 640
    %s224 = scalar_lea.smem [#allocation28], 2
    %225 = sst [smem:[%s224]] 5
    %s226 = scalar_lea.smem [#allocation28], 3
    %227 = sst [smem:[%s226]] 64
    %s228 = scalar_lea.smem [#allocation28], 4
    %229 = sst [smem:[%s228]] 128
    %s230 = scalar_lea.smem [#allocation28], 5
    %231 = sst [smem:[%s230]] 2
    %s232 = scalar_lea.smem [#allocation28], 6
    %233 = sst [smem:[%s232]] 320
    %s234 = scalar_lea.smem [#allocation28], 7
    %235 = sst [smem:[%s234]] 64
    %s236 = scalar_lea.smem [#allocation28], 8
    %237 = sst [smem:[%s236]] 4
    %239 = dma.general %s8, 51200, %s218, %s205, [#allocation27], [#allocation28], %s216, 0
    %s240 = scalar_lea.sflag [#allocation5], 2
    // Predicated region
    $region90: #{tpu_custom_call.1} parent=1 // pred_check
      _
    $region91: #{tpu_custom_call.1} parent=1 // pred_check_branch
      %242 = sbr.rel target = $region93
    $region92: #{tpu_custom_call.1} parent=1 // pred_region
      %243 = sst [smem:[#allocation31]] [#allocation30]
      %244 = sst [smem:[#allocation32]] [#allocation29]
    $region93: #{tpu_custom_call.1} parent=1 // pred_fallthru
      _
    %246 = shalt.err (0)
    %s248 = sshll.u32 [#allocation4], 4
    %s249 = int_to_ptr.vmem [resolvable:$true] %s248
    %251 = dma.hbm_to_vmem [thread:$0]  %s9, 5120, %s249, %s240
    %v252 = vld [vmem:[#allocation9] sm:$0xff]
    %v253 = vld [vmem:[#allocation9 + $0x8] sm:$0xff]
    %v254 = vld [vmem:[#allocation11] sm:$0xff]
    %v255 = vld [vmem:[#allocation11 + $0x8] sm:$0xff]
    %v256 = vld [vmem:[#allocation11 + $0x10] sm:$0xff]
    %v257 = vld [vmem:[#allocation11 + $0x18] sm:$0xff]
    %v258 = vld [vmem:[#allocation13] sm:$0x1]
    %v259 = vld [vmem:[%s0] sm:$0xff]
    %v260 = vld [vmem:[%s0 + $0x8] sm:$0xff]
    %v261 = vld [vmem:[%s0 + $0x10] sm:$0xff]
    %v262 = vld [vmem:[%s0 + $0x18] sm:$0xff]
    %v263 = vld [vmem:[%s0 + $0x20] sm:$0xff]
    %v264 = vld [vmem:[%s0 + $0x28] sm:$0xff]
    %v265 = vld [vmem:[%s0 + $0x30] sm:$0xff]
    %v266 = vld [vmem:[%s0 + $0x38] sm:$0xff]
    %v268 = vlaneseq
    %v269 = vshrl.u32 %v268, 7
    %v270 = vsub.s32 0, %v269
    %v271 = vrot.slane %v258, %v270
    %vm273 = vcmask 130048
    %v275 = vsel %vm273, %v259, 0
    %v278 = vsel %vm273, %v260, 0
    %v281 = vsel %vm273, %v261, 0
    %v284 = vsel %vm273, %v262, 0
    %v287 = vsel %vm273, %v263, 0
    %v290 = vsel %vm273, %v264, 0
    %v293 = vsel %vm273, %v265, 0
    %v296 = vsel %vm273, %v266, 0
    %298 = vmatprep.subr.mxu0 0.0
    %299 = vmatpush1.msra.mxu0 %v252
    %300 = vmatprep.subr.mxu0 0.0
    %301 = vmatpush1.msra.mxu0 %v253
    %302 = vmatprep.subr.mxu0 0.0
    %303 = vmatpush1.msra.mxu0 0.0
    %304 = vmatprep.subr.mxu0 0.0
    %305 = vmatpush1.msra.mxu0 0.0
    %306 = vmatprep.subr.mxu0 0.0
    %307 = vmatpush1.msra.mxu0 0.0
    %308 = vmatprep.subr.mxu0 0.0
    %309 = vmatpush1.msra.mxu0 0.0
    %310 = vmatprep.subr.mxu0 0.0
    %311 = vmatpush1.msra.mxu0 0.0
    %312 = vmatprep.subr.mxu0 0.0
    %313 = vmatpush1.msra.mxu0 0.0
    %314 = vmatprep.subr.mxu0 0.0
    %315 = vmatpush1.msra.mxu0 0.0
    %316 = vmatprep.subr.mxu0 0.0
    %317 = vmatpush1.msra.mxu0 0.0
    %318 = vmatprep.subr.mxu0 0.0
    %319 = vmatpush1.msra.mxu0 0.0
    %320 = vmatprep.subr.mxu0 0.0
    %321 = vmatpush1.msra.mxu0 0.0
    %322 = vmatprep.subr.mxu0 0.0
    %323 = vmatpush1.msra.mxu0 0.0
    %324 = vmatprep.subr.mxu0 0.0
    %325 = vmatpush1.msra.mxu0 0.0
    %326 = vmatprep.subr.mxu0 0.0
    %327 = vmatpush1.msra.mxu0 0.0
    %328 = vmatprep.subr.mxu0 0.0
    %329 = vmatpush1.msra.mxu0 0.0
    %330 = vmatprep.subr.mxu0 0.0
    %331 = vmatpush1.msra.mxu0 0.0
    %332 = vmatprep.subr.mxu0 0.0
    %333 = vmatpush1.msra.mxu0 0.0
    %334 = vmatprep.subr.mxu0 0.0
    %335 = vmatpush1.msra.mxu0 0.0
    %336 = vmatprep.subr.mxu0 0.0
    %337 = vmatpush1.msra.mxu0 0.0
    %338 = vmatprep.subr.mxu0 0.0
    %339 = vmatpush1.msra.mxu0 0.0
    %340 = vmatprep.subr.mxu0 0.0
    %341 = vmatpush1.msra.mxu0 0.0
    %342 = vmatprep.subr.mxu0 0.0
    %343 = vmatpush1.msra.mxu0 0.0
    %344 = vmatprep.subr.mxu0 0.0
    %345 = vmatpush1.msra.mxu0 0.0
    %346 = vmatprep.subr.mxu0 0.0
    %347 = vmatpush1.msra.mxu0 0.0
    %348 = vmatprep.subr.mxu0 0.0
    %349 = vmatpush1.msra.mxu0 0.0
    %350 = vmatprep.subr.mxu0 0.0
    %351 = vmatpush1.msra.mxu0 0.0
    %352 = vmatprep.subr.mxu0 0.0
    %353 = vmatpush1.msra.mxu0 0.0
    %354 = vmatprep.subr.mxu0 0.0
    %355 = vmatpush1.msra.mxu0 0.0
    %356 = vmatprep.subr.mxu0 0.0
    %357 = vmatpush1.msra.mxu0 0.0
    %358 = vmatprep.subr.mxu0 0.0
    %359 = vmatpush1.msra.mxu0 0.0
    %360 = vmatprep.subr.mxu0 0.0
    %361 = vmatpush1.msra.mxu0 0.0
    %362 = vmatprep.mubr.f32.mxu0 0.0
    %363 = vmatmul.mubr.f32.gmra.mrb[0].mxu0 %v275
    %v364 = vpop.f32.mrb[0].mxu0
    %v365 = vadd.f32 %v271, %v364
    %v366 = vpop.f32.mrb[0].mxu0
    %367 = vmatprep.mubr.f32.mxu0 0.0
    %368 = vmatmul.mubr.f32.gmra.mrb[0].mxu0 %v278
    %v369 = vpop.f32.mrb[0].mxu0
    %v370 = vadd.f32 %v271, %v369
    %v371 = vpop.f32.mrb[0].mxu0
    %372 = vmatprep.mubr.f32.mxu0 0.0
    %373 = vmatmul.mubr.f32.gmra.mrb[0].mxu0 %v281
    %v374 = vpop.f32.mrb[0].mxu0
    %v375 = vadd.f32 %v271, %v374
    %v376 = vpop.f32.mrb[0].mxu0
    %377 = vmatprep.mubr.f32.mxu0 0.0
    %378 = vmatmul.mubr.f32.gmra.mrb[0].mxu0 %v284
    %v379 = vpop.f32.mrb[0].mxu0
    %v380 = vadd.f32 %v271, %v379
    %v381 = vpop.f32.mrb[0].mxu0
    %382 = vmatprep.mubr.f32.mxu0 0.0
    %383 = vmatmul.mubr.f32.gmra.mrb[0].mxu0 %v287
    %v384 = vpop.f32.mrb[0].mxu0
    %v385 = vadd.f32 %v271, %v384
    %v386 = vpop.f32.mrb[0].mxu0
    %387 = vmatprep.mubr.f32.mxu0 0.0
    %388 = vmatmul.mubr.f32.gmra.mrb[0].mxu0 %v290
    %v389 = vpop.f32.mrb[0].mxu0
    %v390 = vadd.f32 %v271, %v389
    %v391 = vpop.f32.mrb[0].mxu0
    %392 = vmatprep.mubr.f32.mxu0 0.0
    %393 = vmatmul.mubr.f32.gmra.mrb[0].mxu0 %v293
    %v394 = vpop.f32.mrb[0].mxu0
    %v395 = vadd.f32 %v271, %v394
    %v396 = vpop.f32.mrb[0].mxu0
    %397 = vmatprep.mubr.f32.mxu0 0.0
    %398 = vmatmul.mubr.f32.gmra.mrb[0].mxu0 %v296
    %v399 = vpop.f32.mrb[0].mxu0
    %v400 = vadd.f32 %v271, %v399
    %v401 = vpop.f32.mrb[0].mxu0
    %402 = vdwg.mxu0
    %vm403 = vcmask 261120
    %v405 = vsel %vm403, 0.0, 0
    %407 = vmatprep.subr.mxu0 0.0
    %408 = vmatpush1.msra.mxu0 %v254
    %409 = vmatprep.subr.mxu0 0.0
    %410 = vmatpush1.msra.mxu0 %v255
    %411 = vmatprep.subr.mxu0 0.0
    %412 = vmatpush1.msra.mxu0 %v256
    %413 = vmatprep.subr.mxu0 0.0
    %414 = vmatpush1.msra.mxu0 %v257
    %415 = vmatprep.subr.mxu0 0.0
    %416 = vmatpush1.msra.mxu0 0.0
    %417 = vmatprep.subr.mxu0 0.0
    %418 = vmatpush1.msra.mxu0 0.0
    %419 = vmatprep.subr.mxu0 0.0
    %420 = vmatpush1.msra.mxu0 0.0
    %421 = vmatprep.subr.mxu0 0.0
    %422 = vmatpush1.msra.mxu0 0.0
    %423 = vmatprep.subr.mxu0 0.0
    %424 = vmatpush1.msra.mxu0 0.0
    %425 = vmatprep.subr.mxu0 0.0
    %426 = vmatpush1.msra.mxu0 0.0
    %427 = vmatprep.subr.mxu0 0.0
    %428 = vmatpush1.msra.mxu0 0.0
    %429 = vmatprep.subr.mxu0 0.0
    %430 = vmatpush1.msra.mxu0 0.0
    %431 = vmatprep.subr.mxu0 0.0
    %432 = vmatpush1.msra.mxu0 0.0
    %433 = vmatprep.subr.mxu0 0.0
    %434 = vmatpush1.msra.mxu0 0.0
    %435 = vmatprep.subr.mxu0 0.0
    %436 = vmatpush1.msra.mxu0 0.0
    %437 = vmatprep.subr.mxu0 0.0
    %438 = vmatpush1.msra.mxu0 0.0
    %439 = vmatprep.subr.mxu0 0.0
    %440 = vmatpush1.msra.mxu0 0.0
    %441 = vmatprep.subr.mxu0 0.0
    %442 = vmatpush1.msra.mxu0 0.0
    %443 = vmatprep.subr.mxu0 0.0
    %444 = vmatpush1.msra.mxu0 0.0
    %445 = vmatprep.subr.mxu0 0.0
    %446 = vmatpush1.msra.mxu0 0.0
    %447 = vmatprep.subr.mxu0 0.0
    %448 = vmatpush1.msra.mxu0 0.0
    %449 = vmatprep.subr.mxu0 0.0
    %450 = vmatpush1.msra.mxu0 0.0
    %451 = vmatprep.subr.mxu0 0.0
    %452 = vmatpush1.msra.mxu0 0.0
    %453 = vmatprep.subr.mxu0 0.0
    %454 = vmatpush1.msra.mxu0 0.0
    %455 = vmatprep.subr.mxu0 0.0
    %456 = vmatpush1.msra.mxu0 0.0
    %457 = vmatprep.subr.mxu0 0.0
    %458 = vmatpush1.msra.mxu0 0.0
    %459 = vmatprep.subr.mxu0 0.0
    %460 = vmatpush1.msra.mxu0 0.0
    %461 = vmatprep.subr.mxu0 0.0
    %462 = vmatpush1.msra.mxu0 0.0
    %463 = vmatprep.subr.mxu0 0.0
    %464 = vmatpush1.msra.mxu0 0.0
    %465 = vmatprep.subr.mxu0 0.0
    %466 = vmatpush1.msra.mxu0 0.0
    %467 = vmatprep.subr.mxu0 0.0
    %468 = vmatpush1.msra.mxu0 0.0
    %469 = vmatprep.subr.mxu0 0.0
    %470 = vmatpush1.msra.mxu0 0.0
    %471 = vmatprep.mubr.f32.mxu0 0.0
    %472 = vmatmul.mubr.f32.gmra.mrb[0].mxu0 %v405
    %v473 = vpop.f32.mrb[0].mxu0
    %v474 = vadd.f32 0.0, %v473
    %v475 = vpop.f32.mrb[0].mxu0
    %476 = vdwg.mxu0
    %v477 = vadd.f32 %v365, %v474
    %v478 = vxor.u32 %v477, 2147483648
    %v479 = vmul.f32 %v478, 1.442695
    %v480 = vpow.pop %v479
    %v481 = vadd.f32 %v480, 1.0
    %v482 = vrcp.pop %v481
    %v483 = vmul.f32 1.0, %v482
    %v484 = vtanh.pop %v477
    %v485 = vmul.f32 %v483, 0.0
    %487 = vrot.lane.b32.xlu0 %v484, 32
    %v488 = vpop.permute.xlu0 %487
    %v490 = vmul.f32 %v483, %v488
    %492 = vrot.lane.b32.xlu0 %v490, 32
    %v493 = vpop.permute.xlu0 %492
    %v495 = vadd.f32 %v485, %v493
    %v496 = vtanh.pop %v495
    %498 = vrot.lane.b32.xlu0 %v496, 32
    %v499 = vpop.permute.xlu0 %498
    %v501 = vmul.f32 %v483, %v499
    %503 = vrot.lane.b32.xlu0 %v501, 64
    %v504 = vpop.permute.xlu0 %503
    %506 = vst.msk [vmem:[#allocation6] sm:$0xff] %vm403, %v504
    %v507 = vsel %vm403, %v504, 0
    %509 = vmatprep.subr.mxu0 0.0
    %510 = vmatpush1.msra.mxu0 %v254
    %511 = vmatprep.subr.mxu0 0.0
    %512 = vmatpush1.msra.mxu0 %v255
    %513 = vmatprep.subr.mxu0 0.0
    %514 = vmatpush1.msra.mxu0 %v256
    %515 = vmatprep.subr.mxu0 0.0
    %516 = vmatpush1.msra.mxu0 %v257
    %517 = vmatprep.subr.mxu0 0.0
    %518 = vmatpush1.msra.mxu0 0.0
    %519 = vmatprep.subr.mxu0 0.0
    %520 = vmatpush1.msra.mxu0 0.0
    %521 = vmatprep.subr.mxu0 0.0
    %522 = vmatpush1.msra.mxu0 0.0
    %523 = vmatprep.subr.mxu0 0.0
    %524 = vmatpush1.msra.mxu0 0.0
    %525 = vmatprep.subr.mxu0 0.0
    %526 = vmatpush1.msra.mxu0 0.0
    %527 = vmatprep.subr.mxu0 0.0
    %528 = vmatpush1.msra.mxu0 0.0
    %529 = vmatprep.subr.mxu0 0.0
    %530 = vmatpush1.msra.mxu0 0.0
    %531 = vmatprep.subr.mxu0 0.0
    %532 = vmatpush1.msra.mxu0 0.0
    %533 = vmatprep.subr.mxu0 0.0
    %534 = vmatpush1.msra.mxu0 0.0
    %535 = vmatprep.subr.mxu0 0.0
    %536 = vmatpush1.msra.mxu0 0.0
    %537 = vmatprep.subr.mxu0 0.0
    %538 = vmatpush1.msra.mxu0 0.0
    %539 = vmatprep.subr.mxu0 0.0
    %540 = vmatpush1.msra.mxu0 0.0
    %541 = vmatprep.subr.mxu0 0.0
    %542 = vmatpush1.msra.mxu0 0.0
    %543 = vmatprep.subr.mxu0 0.0
    %544 = vmatpush1.msra.mxu0 0.0
    %545 = vmatprep.subr.mxu0 0.0
    %546 = vmatpush1.msra.mxu0 0.0
    %547 = vmatprep.subr.mxu0 0.0
    %548 = vmatpush1.msra.mxu0 0.0
    %549 = vmatprep.subr.mxu0 0.0
    %550 = vmatpush1.msra.mxu0 0.0
    %551 = vmatprep.subr.mxu0 0.0
    %552 = vmatpush1.msra.mxu0 0.0
    %553 = vmatprep.subr.mxu0 0.0
    %554 = vmatpush1.msra.mxu0 0.0
    %555 = vmatprep.subr.mxu0 0.0
    %556 = vmatpush1.msra.mxu0 0.0
    %557 = vmatprep.subr.mxu0 0.0
    %558 = vmatpush1.msra.mxu0 0.0
    %559 = vmatprep.subr.mxu0 0.0
    %560 = vmatpush1.msra.mxu0 0.0
    %561 = vmatprep.subr.mxu0 0.0
    %562 = vmatpush1.msra.mxu0 0.0
    %563 = vmatprep.subr.mxu0 0.0
    %564 = vmatpush1.msra.mxu0 0.0
    %565 = vmatprep.subr.mxu0 0.0
    %566 = vmatpush1.msra.mxu0 0.0
    %567 = vmatprep.subr.mxu0 0.0
    %568 = vmatpush1.msra.mxu0 0.0
    %569 = vmatprep.subr.mxu0 0.0
    %570 = vmatpush1.msra.mxu0 0.0
    %571 = vmatprep.subr.mxu0 0.0
    %572 = vmatpush1.msra.mxu0 0.0
    %573 = vmatprep.mubr.f32.mxu0 0.0
    %574 = vmatmul.mubr.f32.gmra.mrb[0].mxu0 %v507
    %v575 = vpop.f32.mrb[0].mxu0
    %v576 = vadd.f32 0.0, %v575
    %v577 = vpop.f32.mrb[0].mxu0
    %578 = vdwg.mxu0
    %v579 = vadd.f32 %v370, %v576
    %v580 = vxor.u32 %v579, 2147483648
    %v581 = vmul.f32 %v580, 1.442695
    %v582 = vpow.pop %v581
    %v583 = vadd.f32 %v582, 1.0
    %v584 = vrcp.pop %v583
    %v585 = vmul.f32 1.0, %v584
    %v586 = vtanh.pop %v579
    %v587 = vmul.f32 %v585, %v495
    %589 = vrot.lane.b32.xlu0 %v586, 32
    %v590 = vpop.permute.xlu0 %589
    %v592 = vmul.f32 %v585, %v590
    %594 = vrot.lane.b32.xlu0 %v592, 32
    %v595 = vpop.permute.xlu0 %594
    %v597 = vadd.f32 %v587, %v595
    %v598 = vtanh.pop %v597
    %600 = vrot.lane.b32.xlu0 %v598, 32
    %v601 = vpop.permute.xlu0 %600
    %v603 = vmul.f32 %v585, %v601
    %605 = vrot.lane.b32.xlu0 %v603, 64
    %v606 = vpop.permute.xlu0 %605
    %608 = vst.msk [vmem:[#allocation6 + $0x8] sm:$0xff] %vm403, %v606
    %v609 = vsel %vm403, %v606, 0
    %611 = vmatprep.subr.mxu0 0.0
    %612 = vmatpush1.msra.mxu0 %v254
    %613 = vmatprep.subr.mxu0 0.0
    %614 = vmatpush1.msra.mxu0 %v255
    %615 = vmatprep.subr.mxu0 0.0
    %616 = vmatpush1.msra.mxu0 %v256
    %617 = vmatprep.subr.mxu0 0.0
    %618 = vmatpush1.msra.mxu0 %v257
    %619 = vmatprep.subr.mxu0 0.0
    %620 = vmatpush1.msra.mxu0 0.0
    %621 = vmatprep.subr.mxu0 0.0
    %622 = vmatpush1.msra.mxu0 0.0
    %623 = vmatprep.subr.mxu0 0.0
    %624 = vmatpush1.msra.mxu0 0.0
    %625 = vmatprep.subr.mxu0 0.0
    %626 = vmatpush1.msra.mxu0 0.0
    %627 = vmatprep.subr.mxu0 0.0
    %628 = vmatpush1.msra.mxu0 0.0
    %629 = vmatprep.subr.mxu0 0.0
    %630 = vmatpush1.msra.mxu0 0.0
    %631 = vmatprep.subr.mxu0 0.0
    %632 = vmatpush1.msra.mxu0 0.0
    %633 = vmatprep.subr.mxu0 0.0
    %634 = vmatpush1.msra.mxu0 0.0
    %635 = vmatprep.subr.mxu0 0.0
    %636 = vmatpush1.msra.mxu0 0.0
    %637 = vmatprep.subr.mxu0 0.0
    %638 = vmatpush1.msra.mxu0 0.0
    %639 = vmatprep.subr.mxu0 0.0
    %640 = vmatpush1.msra.mxu0 0.0
    %641 = vmatprep.subr.mxu0 0.0
    %642 = vmatpush1.msra.mxu0 0.0
    %643 = vmatprep.subr.mxu0 0.0
    %644 = vmatpush1.msra.mxu0 0.0
    %645 = vmatprep.subr.mxu0 0.0
    %646 = vmatpush1.msra.mxu0 0.0
    %647 = vmatprep.subr.mxu0 0.0
    %648 = vmatpush1.msra.mxu0 0.0
    %649 = vmatprep.subr.mxu0 0.0
    %650 = vmatpush1.msra.mxu0 0.0
    %651 = vmatprep.subr.mxu0 0.0
    %652 = vmatpush1.msra.mxu0 0.0
    %653 = vmatprep.subr.mxu0 0.0
    %654 = vmatpush1.msra.mxu0 0.0
    %655 = vmatprep.subr.mxu0 0.0
    %656 = vmatpush1.msra.mxu0 0.0
    %657 = vmatprep.subr.mxu0 0.0
    %658 = vmatpush1.msra.mxu0 0.0
    %659 = vmatprep.subr.mxu0 0.0
    %660 = vmatpush1.msra.mxu0 0.0
    %661 = vmatprep.subr.mxu0 0.0
    %662 = vmatpush1.msra.mxu0 0.0
    %663 = vmatprep.subr.mxu0 0.0
    %664 = vmatpush1.msra.mxu0 0.0
    %665 = vmatprep.subr.mxu0 0.0
    %666 = vmatpush1.msra.mxu0 0.0
    %667 = vmatprep.subr.mxu0 0.0
    %668 = vmatpush1.msra.mxu0 0.0
    %669 = vmatprep.subr.mxu0 0.0
    %670 = vmatpush1.msra.mxu0 0.0
    %671 = vmatprep.subr.mxu0 0.0
    %672 = vmatpush1.msra.mxu0 0.0
    %673 = vmatprep.subr.mxu0 0.0
    %674 = vmatpush1.msra.mxu0 0.0
    %675 = vmatprep.mubr.f32.mxu0 0.0
    %676 = vmatmul.mubr.f32.gmra.mrb[0].mxu0 %v609
    %v677 = vpop.f32.mrb[0].mxu0
    %v678 = vadd.f32 0.0, %v677
    %v679 = vpop.f32.mrb[0].mxu0
    %680 = vdwg.mxu0
    %v681 = vadd.f32 %v375, %v678
    %v682 = vxor.u32 %v681, 2147483648
    %v683 = vmul.f32 %v682, 1.442695
    %v684 = vpow.pop %v683
    %v685 = vadd.f32 %v684, 1.0
    %v686 = vrcp.pop %v685
    %v687 = vmul.f32 1.0, %v686
    %v688 = vtanh.pop %v681
    %v689 = vmul.f32 %v687, %v597
    %691 = vrot.lane.b32.xlu0 %v688, 32
    %v692 = vpop.permute.xlu0 %691
    %v694 = vmul.f32 %v687, %v692
    %696 = vrot.lane.b32.xlu0 %v694, 32
    %v697 = vpop.permute.xlu0 %696
    %v699 = vadd.f32 %v689, %v697
    %v700 = vtanh.pop %v699
    %702 = vrot.lane.b32.xlu0 %v700, 32
    %v703 = vpop.permute.xlu0 %702
    %v705 = vmul.f32 %v687, %v703
    %707 = vrot.lane.b32.xlu0 %v705, 64
    %v708 = vpop.permute.xlu0 %707
    %710 = vst.msk [vmem:[#allocation6 + $0x10] sm:$0xff] %vm403, %v708
    %v711 = vsel %vm403, %v708, 0
    %713 = vmatprep.subr.mxu0 0.0
    %714 = vmatpush1.msra.mxu0 %v254
    %715 = vmatprep.subr.mxu0 0.0
    %716 = vmatpush1.msra.mxu0 %v255
    %717 = vmatprep.subr.mxu0 0.0
    %718 = vmatpush1.msra.mxu0 %v256
    %719 = vmatprep.subr.mxu0 0.0
    %720 = vmatpush1.msra.mxu0 %v257
    %721 = vmatprep.subr.mxu0 0.0
    %722 = vmatpush1.msra.mxu0 0.0
    %723 = vmatprep.subr.mxu0 0.0
    %724 = vmatpush1.msra.mxu0 0.0
    %725 = vmatprep.subr.mxu0 0.0
    %726 = vmatpush1.msra.mxu0 0.0
    %727 = vmatprep.subr.mxu0 0.0
    %728 = vmatpush1.msra.mxu0 0.0
    %729 = vmatprep.subr.mxu0 0.0
    %730 = vmatpush1.msra.mxu0 0.0
    %731 = vmatprep.subr.mxu0 0.0
    %732 = vmatpush1.msra.mxu0 0.0
    %733 = vmatprep.subr.mxu0 0.0
    %734 = vmatpush1.msra.mxu0 0.0
    %735 = vmatprep.subr.mxu0 0.0
    %736 = vmatpush1.msra.mxu0 0.0
    %737 = vmatprep.subr.mxu0 0.0
    %738 = vmatpush1.msra.mxu0 0.0
    %739 = vmatprep.subr.mxu0 0.0
    %740 = vmatpush1.msra.mxu0 0.0
    %741 = vmatprep.subr.mxu0 0.0
    %742 = vmatpush1.msra.mxu0 0.0
    %743 = vmatprep.subr.mxu0 0.0
    %744 = vmatpush1.msra.mxu0 0.0
    %745 = vmatprep.subr.mxu0 0.0
    %746 = vmatpush1.msra.mxu0 0.0
    %747 = vmatprep.subr.mxu0 0.0
    %748 = vmatpush1.msra.mxu0 0.0
    %749 = vmatprep.subr.mxu0 0.0
    %750 = vmatpush1.msra.mxu0 0.0
    %751 = vmatprep.subr.mxu0 0.0
    %752 = vmatpush1.msra.mxu0 0.0
    %753 = vmatprep.subr.mxu0 0.0
    %754 = vmatpush1.msra.mxu0 0.0
    %755 = vmatprep.subr.mxu0 0.0
    %756 = vmatpush1.msra.mxu0 0.0
    %757 = vmatprep.subr.mxu0 0.0
    %758 = vmatpush1.msra.mxu0 0.0
    %759 = vmatprep.subr.mxu0 0.0
    %760 = vmatpush1.msra.mxu0 0.0
    %761 = vmatprep.subr.mxu0 0.0
    %762 = vmatpush1.msra.mxu0 0.0
    %763 = vmatprep.subr.mxu0 0.0
    %764 = vmatpush1.msra.mxu0 0.0
    %765 = vmatprep.subr.mxu0 0.0
    %766 = vmatpush1.msra.mxu0 0.0
    %767 = vmatprep.subr.mxu0 0.0
    %768 = vmatpush1.msra.mxu0 0.0
    %769 = vmatprep.subr.mxu0 0.0
    %770 = vmatpush1.msra.mxu0 0.0
    %771 = vmatprep.subr.mxu0 0.0
    %772 = vmatpush1.msra.mxu0 0.0
    %773 = vmatprep.subr.mxu0 0.0
    %774 = vmatpush1.msra.mxu0 0.0
    %775 = vmatprep.subr.mxu0 0.0
    %776 = vmatpush1.msra.mxu0 0.0
    %777 = vmatprep.mubr.f32.mxu0 0.0
    %778 = vmatmul.mubr.f32.gmra.mrb[0].mxu0 %v711
    %v779 = vpop.f32.mrb[0].mxu0
    %v780 = vadd.f32 0.0, %v779
    %v781 = vpop.f32.mrb[0].mxu0
    %782 = vdwg.mxu0
    %v783 = vadd.f32 %v380, %v780
    %v784 = vxor.u32 %v783, 2147483648
    %v785 = vmul.f32 %v784, 1.442695
    %v786 = vpow.pop %v785
    %v787 = vadd.f32 %v786, 1.0
    %v788 = vrcp.pop %v787
    %v789 = vmul.f32 1.0, %v788
    %v790 = vtanh.pop %v783
    %v791 = vmul.f32 %v789, %v699
    %793 = vrot.lane.b32.xlu0 %v790, 32
    %v794 = vpop.permute.xlu0 %793
    %v796 = vmul.f32 %v789, %v794
    %798 = vrot.lane.b32.xlu0 %v796, 32
    %v799 = vpop.permute.xlu0 %798
    %v801 = vadd.f32 %v791, %v799
    %v802 = vtanh.pop %v801
    %804 = vrot.lane.b32.xlu0 %v802, 32
    %v805 = vpop.permute.xlu0 %804
    %v807 = vmul.f32 %v789, %v805
    %809 = vrot.lane.b32.xlu0 %v807, 64
    %v810 = vpop.permute.xlu0 %809
    %812 = vst.msk [vmem:[#allocation6 + $0x18] sm:$0xff] %vm403, %v810
    %v813 = vsel %vm403, %v810, 0
    %815 = vmatprep.subr.mxu0 0.0
    %816 = vmatpush1.msra.mxu0 %v254
    %817 = vmatprep.subr.mxu0 0.0
    %818 = vmatpush1.msra.mxu0 %v255
    %819 = vmatprep.subr.mxu0 0.0
    %820 = vmatpush1.msra.mxu0 %v256
    %821 = vmatprep.subr.mxu0 0.0
    %822 = vmatpush1.msra.mxu0 %v257
    %823 = vmatprep.subr.mxu0 0.0
    %824 = vmatpush1.msra.mxu0 0.0
    %825 = vmatprep.subr.mxu0 0.0
    %826 = vmatpush1.msra.mxu0 0.0
    %827 = vmatprep.subr.mxu0 0.0
    %828 = vmatpush1.msra.mxu0 0.0
    %829 = vmatprep.subr.mxu0 0.0
    %830 = vmatpush1.msra.mxu0 0.0
    %831 = vmatprep.subr.mxu0 0.0
    %832 = vmatpush1.msra.mxu0 0.0
    %833 = vmatprep.subr.mxu0 0.0
    %834 = vmatpush1.msra.mxu0 0.0
    %835 = vmatprep.subr.mxu0 0.0
    %836 = vmatpush1.msra.mxu0 0.0
    %837 = vmatprep.subr.mxu0 0.0
    %838 = vmatpush1.msra.mxu0 0.0
    %839 = vmatprep.subr.mxu0 0.0
    %840 = vmatpush1.msra.mxu0 0.0
    %841 = vmatprep.subr.mxu0 0.0
    %842 = vmatpush1.msra.mxu0 0.0
    %843 = vmatprep.subr.mxu0 0.0
    %844 = vmatpush1.msra.mxu0 0.0
    %845 = vmatprep.subr.mxu0 0.0
    %846 = vmatpush1.msra.mxu0 0.0
    %847 = vmatprep.subr.mxu0 0.0
    %848 = vmatpush1.msra.mxu0 0.0
    %849 = vmatprep.subr.mxu0 0.0
    %850 = vmatpush1.msra.mxu0 0.0
    %851 = vmatprep.subr.mxu0 0.0
    %852 = vmatpush1.msra.mxu0 0.0
    %853 = vmatprep.subr.mxu0 0.0
    %854 = vmatpush1.msra.mxu0 0.0
    %855 = vmatprep.subr.mxu0 0.0
    %856 = vmatpush1.msra.mxu0 0.0
    %857 = vmatprep.subr.mxu0 0.0
    %858 = vmatpush1.msra.mxu0 0.0
    %859 = vmatprep.subr.mxu0 0.0
    %860 = vmatpush1.msra.mxu0 0.0
    %861 = vmatprep.subr.mxu0 0.0
    %862 = vmatpush1.msra.mxu0 0.0
    %863 = vmatprep.subr.mxu0 0.0
    %864 = vmatpush1.msra.mxu0 0.0
    %865 = vmatprep.subr.mxu0 0.0
    %866 = vmatpush1.msra.mxu0 0.0
    %867 = vmatprep.subr.mxu0 0.0
    %868 = vmatpush1.msra.mxu0 0.0
    %869 = vmatprep.subr.mxu0 0.0
    %870 = vmatpush1.msra.mxu0 0.0
    %871 = vmatprep.subr.mxu0 0.0
    %872 = vmatpush1.msra.mxu0 0.0
    %873 = vmatprep.subr.mxu0 0.0
    %874 = vmatpush1.msra.mxu0 0.0
    %875 = vmatprep.subr.mxu0 0.0
    %876 = vmatpush1.msra.mxu0 0.0
    %877 = vmatprep.subr.mxu0 0.0
    %878 = vmatpush1.msra.mxu0 0.0
    %879 = vmatprep.mubr.f32.mxu0 0.0
    %880 = vmatmul.mubr.f32.gmra.mrb[0].mxu0 %v813
    %v881 = vpop.f32.mrb[0].mxu0
    %v882 = vadd.f32 0.0, %v881
    %v883 = vpop.f32.mrb[0].mxu0
    %884 = vdwg.mxu0
    %v885 = vadd.f32 %v385, %v882
    %v886 = vxor.u32 %v885, 2147483648
    %v887 = vmul.f32 %v886, 1.442695
    %v888 = vpow.pop %v887
    %v889 = vadd.f32 %v888, 1.0
    %v890 = vrcp.pop %v889
    %v891 = vmul.f32 1.0, %v890
    %v892 = vtanh.pop %v885
    %v893 = vmul.f32 %v891, %v801
    %895 = vrot.lane.b32.xlu0 %v892, 32
    %v896 = vpop.permute.xlu0 %895
    %v898 = vmul.f32 %v891, %v896
    %900 = vrot.lane.b32.xlu0 %v898, 32
    %v901 = vpop.permute.xlu0 %900
    %v903 = vadd.f32 %v893, %v901
    %v904 = vtanh.pop %v903
    %906 = vrot.lane.b32.xlu0 %v904, 32
    %v907 = vpop.permute.xlu0 %906
    %v909 = vmul.f32 %v891, %v907
    %911 = vrot.lane.b32.xlu0 %v909, 64
    %v912 = vpop.permute.xlu0 %911
    %914 = vst.msk [vmem:[#allocation6 + $0x20] sm:$0xff] %vm403, %v912
    %v915 = vsel %vm403, %v912, 0
    %917 = vmatprep.subr.mxu0 0.0
    %918 = vmatpush1.msra.mxu0 %v254
    %919 = vmatprep.subr.mxu0 0.0
    %920 = vmatpush1.msra.mxu0 %v255
    %921 = vmatprep.subr.mxu0 0.0
    %922 = vmatpush1.msra.mxu0 %v256
    %923 = vmatprep.subr.mxu0 0.0
    %924 = vmatpush1.msra.mxu0 %v257
    %925 = vmatprep.subr.mxu0 0.0
    %926 = vmatpush1.msra.mxu0 0.0
    %927 = vmatprep.subr.mxu0 0.0
    %928 = vmatpush1.msra.mxu0 0.0
    %929 = vmatprep.subr.mxu0 0.0
    %930 = vmatpush1.msra.mxu0 0.0
    %931 = vmatprep.subr.mxu0 0.0
    %932 = vmatpush1.msra.mxu0 0.0
    %933 = vmatprep.subr.mxu0 0.0
    %934 = vmatpush1.msra.mxu0 0.0
    %935 = vmatprep.subr.mxu0 0.0
    %936 = vmatpush1.msra.mxu0 0.0
    %937 = vmatprep.subr.mxu0 0.0
    %938 = vmatpush1.msra.mxu0 0.0
    %939 = vmatprep.subr.mxu0 0.0
    %940 = vmatpush1.msra.mxu0 0.0
    %941 = vmatprep.subr.mxu0 0.0
    %942 = vmatpush1.msra.mxu0 0.0
    %943 = vmatprep.subr.mxu0 0.0
    %944 = vmatpush1.msra.mxu0 0.0
    %945 = vmatprep.subr.mxu0 0.0
    %946 = vmatpush1.msra.mxu0 0.0
    %947 = vmatprep.subr.mxu0 0.0
    %948 = vmatpush1.msra.mxu0 0.0
    %949 = vmatprep.subr.mxu0 0.0
    %950 = vmatpush1.msra.mxu0 0.0
    %951 = vmatprep.subr.mxu0 0.0
    %952 = vmatpush1.msra.mxu0 0.0
    %953 = vmatprep.subr.mxu0 0.0
    %954 = vmatpush1.msra.mxu0 0.0
    %955 = vmatprep.subr.mxu0 0.0
    %956 = vmatpush1.msra.mxu0 0.0
    %957 = vmatprep.subr.mxu0 0.0
    %958 = vmatpush1.msra.mxu0 0.0
    %959 = vmatprep.subr.mxu0 0.0
    %960 = vmatpush1.msra.mxu0 0.0
    %961 = vmatprep.subr.mxu0 0.0
    %962 = vmatpush1.msra.mxu0 0.0
    %963 = vmatprep.subr.mxu0 0.0
    %964 = vmatpush1.msra.mxu0 0.0
    %965 = vmatprep.subr.mxu0 0.0
    %966 = vmatpush1.msra.mxu0 0.0
    %967 = vmatprep.subr.mxu0 0.0
    %968 = vmatpush1.msra.mxu0 0.0
    %969 = vmatprep.subr.mxu0 0.0
    %970 = vmatpush1.msra.mxu0 0.0
    %971 = vmatprep.subr.mxu0 0.0
    %972 = vmatpush1.msra.mxu0 0.0
    %973 = vmatprep.subr.mxu0 0.0
    %974 = vmatpush1.msra.mxu0 0.0
    %975 = vmatprep.subr.mxu0 0.0
    %976 = vmatpush1.msra.mxu0 0.0
    %977 = vmatprep.subr.mxu0 0.0
    %978 = vmatpush1.msra.mxu0 0.0
    %979 = vmatprep.subr.mxu0 0.0
    %980 = vmatpush1.msra.mxu0 0.0
    %981 = vmatprep.mubr.f32.mxu0 0.0
    %982 = vmatmul.mubr.f32.gmra.mrb[0].mxu0 %v915
    %v983 = vpop.f32.mrb[0].mxu0
    %v984 = vadd.f32 0.0, %v983
    %v985 = vpop.f32.mrb[0].mxu0
    %986 = vdwg.mxu0
    %v987 = vadd.f32 %v390, %v984
    %v988 = vxor.u32 %v987, 2147483648
    %v989 = vmul.f32 %v988, 1.442695
    %v990 = vpow.pop %v989
    %v991 = vadd.f32 %v990, 1.0
    %v992 = vrcp.pop %v991
    %v993 = vmul.f32 1.0, %v992
    %v994 = vtanh.pop %v987
    %v995 = vmul.f32 %v993, %v903
    %997 = vrot.lane.b32.xlu0 %v994, 32
    %v998 = vpop.permute.xlu0 %997
    %v1000 = vmul.f32 %v993, %v998
    %1002 = vrot.lane.b32.xlu0 %v1000, 32
    %v1003 = vpop.permute.xlu0 %1002
    %v1005 = vadd.f32 %v995, %v1003
    %v1006 = vtanh.pop %v1005
    %1008 = vrot.lane.b32.xlu0 %v1006, 32
    %v1009 = vpop.permute.xlu0 %1008
    %v1011 = vmul.f32 %v993, %v1009
    %1013 = vrot.lane.b32.xlu0 %v1011, 64
    %v1014 = vpop.permute.xlu0 %1013
    %1016 = vst.msk [vmem:[#allocation6 + $0x28] sm:$0xff] %vm403, %v1014
    %v1017 = vsel %vm403, %v1014, 0
    %1019 = vmatprep.subr.mxu0 0.0
    %1020 = vmatpush1.msra.mxu0 %v254
    %1021 = vmatprep.subr.mxu0 0.0
    %1022 = vmatpush1.msra.mxu0 %v255
    %1023 = vmatprep.subr.mxu0 0.0
    %1024 = vmatpush1.msra.mxu0 %v256
    %1025 = vmatprep.subr.mxu0 0.0
    %1026 = vmatpush1.msra.mxu0 %v257
    %1027 = vmatprep.subr.mxu0 0.0
    %1028 = vmatpush1.msra.mxu0 0.0
    %1029 = vmatprep.subr.mxu0 0.0
    %1030 = vmatpush1.msra.mxu0 0.0
    %1031 = vmatprep.subr.mxu0 0.0
    %1032 = vmatpush1.msra.mxu0 0.0
    %1033 = vmatprep.subr.mxu0 0.0
    %1034 = vmatpush1.msra.mxu0 0.0
    %1035 = vmatprep.subr.mxu0 0.0
    %1036 = vmatpush1.msra.mxu0 0.0
    %1037 = vmatprep.subr.mxu0 0.0
    %1038 = vmatpush1.msra.mxu0 0.0
    %1039 = vmatprep.subr.mxu0 0.0
    %1040 = vmatpush1.msra.mxu0 0.0
    %1041 = vmatprep.subr.mxu0 0.0
    %1042 = vmatpush1.msra.mxu0 0.0
    %1043 = vmatprep.subr.mxu0 0.0
    %1044 = vmatpush1.msra.mxu0 0.0
    %1045 = vmatprep.subr.mxu0 0.0
    %1046 = vmatpush1.msra.mxu0 0.0
    %1047 = vmatprep.subr.mxu0 0.0
    %1048 = vmatpush1.msra.mxu0 0.0
    %1049 = vmatprep.subr.mxu0 0.0
    %1050 = vmatpush1.msra.mxu0 0.0
    %1051 = vmatprep.subr.mxu0 0.0
    %1052 = vmatpush1.msra.mxu0 0.0
    %1053 = vmatprep.subr.mxu0 0.0
    %1054 = vmatpush1.msra.mxu0 0.0
    %1055 = vmatprep.subr.mxu0 0.0
    %1056 = vmatpush1.msra.mxu0 0.0
    %1057 = vmatprep.subr.mxu0 0.0
    %1058 = vmatpush1.msra.mxu0 0.0
    %1059 = vmatprep.subr.mxu0 0.0
    %1060 = vmatpush1.msra.mxu0 0.0
    %1061 = vmatprep.subr.mxu0 0.0
    %1062 = vmatpush1.msra.mxu0 0.0
    %1063 = vmatprep.subr.mxu0 0.0
    %1064 = vmatpush1.msra.mxu0 0.0
    %1065 = vmatprep.subr.mxu0 0.0
    %1066 = vmatpush1.msra.mxu0 0.0
    %1067 = vmatprep.subr.mxu0 0.0
    %1068 = vmatpush1.msra.mxu0 0.0
    %1069 = vmatprep.subr.mxu0 0.0
    %1070 = vmatpush1.msra.mxu0 0.0
    %1071 = vmatprep.subr.mxu0 0.0
    %1072 = vmatpush1.msra.mxu0 0.0
    %1073 = vmatprep.subr.mxu0 0.0
    %1074 = vmatpush1.msra.mxu0 0.0
    %1075 = vmatprep.subr.mxu0 0.0
    %1076 = vmatpush1.msra.mxu0 0.0
    %1077 = vmatprep.subr.mxu0 0.0
    %1078 = vmatpush1.msra.mxu0 0.0
    %1079 = vmatprep.subr.mxu0 0.0
    %1080 = vmatpush1.msra.mxu0 0.0
    %1081 = vmatprep.subr.mxu0 0.0
    %1082 = vmatpush1.msra.mxu0 0.0
    %1083 = vmatprep.mubr.f32.mxu0 0.0
    %1084 = vmatmul.mubr.f32.gmra.mrb[0].mxu0 %v1017
    %v1085 = vpop.f32.mrb[0].mxu0
    %v1086 = vadd.f32 0.0, %v1085
    %v1087 = vpop.f32.mrb[0].mxu0
    %1088 = vdwg.mxu0
    %v1089 = vadd.f32 %v395, %v1086
    %v1090 = vxor.u32 %v1089, 2147483648
    %v1091 = vmul.f32 %v1090, 1.442695
    %v1092 = vpow.pop %v1091
    %v1093 = vadd.f32 %v1092, 1.0
    %v1094 = vrcp.pop %v1093
    %v1095 = vmul.f32 1.0, %v1094
    %v1096 = vtanh.pop %v1089
    %v1097 = vmul.f32 %v1095, %v1005
    %1099 = vrot.lane.b32.xlu0 %v1096, 32
    %v1100 = vpop.permute.xlu0 %1099
    %v1102 = vmul.f32 %v1095, %v1100
    %1104 = vrot.lane.b32.xlu0 %v1102, 32
    %v1105 = vpop.permute.xlu0 %1104
    %v1107 = vadd.f32 %v1097, %v1105
    %v1108 = vtanh.pop %v1107
    %1110 = vrot.lane.b32.xlu0 %v1108, 32
    %v1111 = vpop.permute.xlu0 %1110
    %v1113 = vmul.f32 %v1095, %v1111
    %1115 = vrot.lane.b32.xlu0 %v1113, 64
    %v1116 = vpop.permute.xlu0 %1115
    %1118 = vst.msk [vmem:[#allocation6 + $0x30] sm:$0xff] %vm403, %v1116
    %v1119 = vsel %vm403, %v1116, 0
    %1121 = vmatprep.subr.mxu0 0.0
    %1122 = vmatpush1.msra.mxu0 %v254
    %1123 = vmatprep.subr.mxu0 0.0
    %1124 = vmatpush1.msra.mxu0 %v255
    %1125 = vmatprep.subr.mxu0 0.0
    %1126 = vmatpush1.msra.mxu0 %v256
    %1127 = vmatprep.subr.mxu0 0.0
    %1128 = vmatpush1.msra.mxu0 %v257
    %1129 = vmatprep.subr.mxu0 0.0
    %1130 = vmatpush1.msra.mxu0 0.0
    %1131 = vmatprep.subr.mxu0 0.0
    %1132 = vmatpush1.msra.mxu0 0.0
    %1133 = vmatprep.subr.mxu0 0.0
    %1134 = vmatpush1.msra.mxu0 0.0
    %1135 = vmatprep.subr.mxu0 0.0
    %1136 = vmatpush1.msra.mxu0 0.0
    %1137 = vmatprep.subr.mxu0 0.0
    %1138 = vmatpush1.msra.mxu0 0.0
    %1139 = vmatprep.subr.mxu0 0.0
    %1140 = vmatpush1.msra.mxu0 0.0
    %1141 = vmatprep.subr.mxu0 0.0
    %1142 = vmatpush1.msra.mxu0 0.0
    %1143 = vmatprep.subr.mxu0 0.0
    %1144 = vmatpush1.msra.mxu0 0.0
    %1145 = vmatprep.subr.mxu0 0.0
    %1146 = vmatpush1.msra.mxu0 0.0
    %1147 = vmatprep.subr.mxu0 0.0
    %1148 = vmatpush1.msra.mxu0 0.0
    %1149 = vmatprep.subr.mxu0 0.0
    %1150 = vmatpush1.msra.mxu0 0.0
    %1151 = vmatprep.subr.mxu0 0.0
    %1152 = vmatpush1.msra.mxu0 0.0
    %1153 = vmatprep.subr.mxu0 0.0
    %1154 = vmatpush1.msra.mxu0 0.0
    %1155 = vmatprep.subr.mxu0 0.0
    %1156 = vmatpush1.msra.mxu0 0.0
    %1157 = vmatprep.subr.mxu0 0.0
    %1158 = vmatpush1.msra.mxu0 0.0
    %1159 = vmatprep.subr.mxu0 0.0
    %1160 = vmatpush1.msra.mxu0 0.0
    %1161 = vmatprep.subr.mxu0 0.0
    %1162 = vmatpush1.msra.mxu0 0.0
    %1163 = vmatprep.subr.mxu0 0.0
    %1164 = vmatpush1.msra.mxu0 0.0
    %1165 = vmatprep.subr.mxu0 0.0
    %1166 = vmatpush1.msra.mxu0 0.0
    %1167 = vmatprep.subr.mxu0 0.0
    %1168 = vmatpush1.msra.mxu0 0.0
    %1169 = vmatprep.subr.mxu0 0.0
    %1170 = vmatpush1.msra.mxu0 0.0
    %1171 = vmatprep.subr.mxu0 0.0
    %1172 = vmatpush1.msra.mxu0 0.0
    %1173 = vmatprep.subr.mxu0 0.0
    %1174 = vmatpush1.msra.mxu0 0.0
    %1175 = vmatprep.subr.mxu0 0.0
    %1176 = vmatpush1.msra.mxu0 0.0
    %1177 = vmatprep.subr.mxu0 0.0
    %1178 = vmatpush1.msra.mxu0 0.0
    %1179 = vmatprep.subr.mxu0 0.0
    %1180 = vmatpush1.msra.mxu0 0.0
    %1181 = vmatprep.subr.mxu0 0.0
    %1182 = vmatpush1.msra.mxu0 0.0
    %1183 = vmatprep.subr.mxu0 0.0
    %1184 = vmatpush1.msra.mxu0 0.0
    %1185 = vmatprep.mubr.f32.mxu0 0.0
    %1186 = vmatmul.mubr.f32.gmra.mrb[0].mxu0 %v1119
    %v1187 = vpop.f32.mrb[0].mxu0
    %v1188 = vadd.f32 0.0, %v1187
    %v1189 = vpop.f32.mrb[0].mxu0
    %1190 = vdwg.mxu0
    %v1191 = vadd.f32 %v400, %v1188
    %v1192 = vxor.u32 %v1191, 2147483648
    %v1193 = vmul.f32 %v1192, 1.442695
    %v1194 = vpow.pop %v1193
    %v1195 = vadd.f32 %v1194, 1.0
    %v1196 = vrcp.pop %v1195
    %v1197 = vmul.f32 1.0, %v1196
    %v1198 = vtanh.pop %v1191
    %v1199 = vmul.f32 %v1197, %v1107
    %1201 = vrot.lane.b32.xlu0 %v1198, 32
    %v1202 = vpop.permute.xlu0 %1201
    %v1204 = vmul.f32 %v1197, %v1202
    %1206 = vrot.lane.b32.xlu0 %v1204, 32
    %v1207 = vpop.permute.xlu0 %1206
    %v1209 = vadd.f32 %v1199, %v1207
    %v1210 = vtanh.pop %v1209
    %1212 = vrot.lane.b32.xlu0 %v1210, 32
    %v1213 = vpop.permute.xlu0 %1212
    %v1215 = vmul.f32 %v1197, %v1213
    %1217 = vrot.lane.b32.xlu0 %v1215, 64
    %v1218 = vpop.permute.xlu0 %1217
    %1220 = vst.msk [vmem:[#allocation6 + $0x38] sm:$0xff] %vm403, %v1218
    %v1221 = vld [vmem:[#allocation14] sm:$0xff]
    %v1222 = vld [vmem:[#allocation14 + $0x8] sm:$0xff]
    %v1223 = vld [vmem:[#allocation14 + $0x10] sm:$0xff]
    %v1224 = vld [vmem:[#allocation14 + $0x18] sm:$0xff]
    %v1225 = vld [vmem:[#allocation16] sm:$0xff]
    %v1226 = vld [vmem:[#allocation16 + $0x8] sm:$0xff]
    %v1227 = vld [vmem:[#allocation16 + $0x10] sm:$0xff]
    %v1228 = vld [vmem:[#allocation16 + $0x18] sm:$0xff]
    %v1229 = vld [vmem:[#allocation17] sm:$0x1]
    %v1230 = vld [vmem:[#allocation6] sm:$0xff]
    %v1231 = vld [vmem:[#allocation6 + $0x8] sm:$0xff]
    %v1232 = vld [vmem:[#allocation6 + $0x10] sm:$0xff]
    %v1233 = vld [vmem:[#allocation6 + $0x18] sm:$0xff]
    %v1234 = vld [vmem:[#allocation6 + $0x20] sm:$0xff]
    %v1235 = vld [vmem:[#allocation6 + $0x28] sm:$0xff]
    %v1236 = vld [vmem:[#allocation6 + $0x30] sm:$0xff]
    %v1237 = vld [vmem:[#allocation6 + $0x38] sm:$0xff]
    %v1239 = vlaneseq
    %v1240 = vshrl.u32 %v1239, 7
    %v1241 = vsub.s32 0, %v1240
    %v1242 = vrot.slane %v1229, %v1241
    %v1245 = vsel %vm403, %v1230, 0
    %v1248 = vsel %vm403, %v1231, 0
    %v1251 = vsel %vm403, %v1232, 0
    %v1254 = vsel %vm403, %v1233, 0
    %v1257 = vsel %vm403, %v1234, 0
    %v1260 = vsel %vm403, %v1235, 0
    %v1263 = vsel %vm403, %v1236, 0
    %v1266 = vsel %vm403, %v1237, 0
    %1268 = vmatprep.subr.mxu0 0.0
    %1269 = vmatpush1.msra.mxu0 %v1221
    %1270 = vmatprep.subr.mxu0 0.0
    %1271 = vmatpush1.msra.mxu0 %v1222
    %1272 = vmatprep.subr.mxu0 0.0
    %1273 = vmatpush1.msra.mxu0 %v1223
    %1274 = vmatprep.subr.mxu0 0.0
    %1275 = vmatpush1.msra.mxu0 %v1224
    %1276 = vmatprep.subr.mxu0 0.0
    %1277 = vmatpush1.msra.mxu0 0.0
    %1278 = vmatprep.subr.mxu0 0.0
    %1279 = vmatpush1.msra.mxu0 0.0
    %1280 = vmatprep.subr.mxu0 0.0
    %1281 = vmatpush1.msra.mxu0 0.0
    %1282 = vmatprep.subr.mxu0 0.0
    %1283 = vmatpush1.msra.mxu0 0.0
    %1284 = vmatprep.subr.mxu0 0.0
    %1285 = vmatpush1.msra.mxu0 0.0
    %1286 = vmatprep.subr.mxu0 0.0
    %1287 = vmatpush1.msra.mxu0 0.0
    %1288 = vmatprep.subr.mxu0 0.0
    %1289 = vmatpush1.msra.mxu0 0.0
    %1290 = vmatprep.subr.mxu0 0.0
    %1291 = vmatpush1.msra.mxu0 0.0
    %1292 = vmatprep.subr.mxu0 0.0
    %1293 = vmatpush1.msra.mxu0 0.0
    %1294 = vmatprep.subr.mxu0 0.0
    %1295 = vmatpush1.msra.mxu0 0.0
    %1296 = vmatprep.subr.mxu0 0.0
    %1297 = vmatpush1.msra.mxu0 0.0
    %1298 = vmatprep.subr.mxu0 0.0
    %1299 = vmatpush1.msra.mxu0 0.0
    %1300 = vmatprep.subr.mxu0 0.0
    %1301 = vmatpush1.msra.mxu0 0.0
    %1302 = vmatprep.subr.mxu0 0.0
    %1303 = vmatpush1.msra.mxu0 0.0
    %1304 = vmatprep.subr.mxu0 0.0
    %1305 = vmatpush1.msra.mxu0 0.0
    %1306 = vmatprep.subr.mxu0 0.0
    %1307 = vmatpush1.msra.mxu0 0.0
    %1308 = vmatprep.subr.mxu0 0.0
    %1309 = vmatpush1.msra.mxu0 0.0
    %1310 = vmatprep.subr.mxu0 0.0
    %1311 = vmatpush1.msra.mxu0 0.0
    %1312 = vmatprep.subr.mxu0 0.0
    %1313 = vmatpush1.msra.mxu0 0.0
    %1314 = vmatprep.subr.mxu0 0.0
    %1315 = vmatpush1.msra.mxu0 0.0
    %1316 = vmatprep.subr.mxu0 0.0
    %1317 = vmatpush1.msra.mxu0 0.0
    %1318 = vmatprep.subr.mxu0 0.0
    %1319 = vmatpush1.msra.mxu0 0.0
    %1320 = vmatprep.subr.mxu0 0.0
    %1321 = vmatpush1.msra.mxu0 0.0
    %1322 = vmatprep.subr.mxu0 0.0
    %1323 = vmatpush1.msra.mxu0 0.0
    %1324 = vmatprep.subr.mxu0 0.0
    %1325 = vmatpush1.msra.mxu0 0.0
    %1326 = vmatprep.subr.mxu0 0.0
    %1327 = vmatpush1.msra.mxu0 0.0
    %1328 = vmatprep.subr.mxu0 0.0
    %1329 = vmatpush1.msra.mxu0 0.0
    %1330 = vmatprep.subr.mxu0 0.0
    %1331 = vmatpush1.msra.mxu0 0.0
    %1332 = vmatprep.mubr.f32.mxu0 0.0
    %1333 = vmatmul.mubr.f32.gmra.mrb[0].mxu0 %v1245
    %v1334 = vpop.f32.mrb[0].mxu0
    %v1335 = vadd.f32 %v1242, %v1334
    %v1336 = vpop.f32.mrb[0].mxu0
    %1337 = vmatprep.mubr.f32.mxu0 0.0
    %1338 = vmatmul.mubr.f32.gmra.mrb[0].mxu0 %v1248
    %v1339 = vpop.f32.mrb[0].mxu0
    %v1340 = vadd.f32 %v1242, %v1339
    %v1341 = vpop.f32.mrb[0].mxu0
    %1342 = vmatprep.mubr.f32.mxu0 0.0
    %1343 = vmatmul.mubr.f32.gmra.mrb[0].mxu0 %v1251
    %v1344 = vpop.f32.mrb[0].mxu0
    %v1345 = vadd.f32 %v1242, %v1344
    %v1346 = vpop.f32.mrb[0].mxu0
    %1347 = vmatprep.mubr.f32.mxu0 0.0
    %1348 = vmatmul.mubr.f32.gmra.mrb[0].mxu0 %v1254
    %v1349 = vpop.f32.mrb[0].mxu0
    %v1350 = vadd.f32 %v1242, %v1349
    %v1351 = vpop.f32.mrb[0].mxu0
    %1352 = vmatprep.mubr.f32.mxu0 0.0
    %1353 = vmatmul.mubr.f32.gmra.mrb[0].mxu0 %v1257
    %v1354 = vpop.f32.mrb[0].mxu0
    %v1355 = vadd.f32 %v1242, %v1354
    %v1356 = vpop.f32.mrb[0].mxu0
    %1357 = vmatprep.mubr.f32.mxu0 0.0
    %1358 = vmatmul.mubr.f32.gmra.mrb[0].mxu0 %v1260
    %v1359 = vpop.f32.mrb[0].mxu0
    %v1360 = vadd.f32 %v1242, %v1359
    %v1361 = vpop.f32.mrb[0].mxu0
    %1362 = vmatprep.mubr.f32.mxu0 0.0
    %1363 = vmatmul.mubr.f32.gmra.mrb[0].mxu0 %v1263
    %v1364 = vpop.f32.mrb[0].mxu0
    %v1365 = vadd.f32 %v1242, %v1364
    %v1366 = vpop.f32.mrb[0].mxu0
    %1367 = vmatprep.mubr.f32.mxu0 0.0
    %1368 = vmatmul.mubr.f32.gmra.mrb[0].mxu0 %v1266
    %v1369 = vpop.f32.mrb[0].mxu0
    %v1370 = vadd.f32 %v1242, %v1369
    %v1371 = vpop.f32.mrb[0].mxu0
    %1372 = vdwg.mxu0
    %1373 = vmatprep.subr.mxu0 0.0
    %1374 = vmatpush1.msra.mxu0 %v1225
    %1375 = vmatprep.subr.mxu0 0.0
    %1376 = vmatpush1.msra.mxu0 %v1226
    %1377 = vmatprep.subr.mxu0 0.0
    %1378 = vmatpush1.msra.mxu0 %v1227
    %1379 = vmatprep.subr.mxu0 0.0
    %1380 = vmatpush1.msra.mxu0 %v1228
    %1381 = vmatprep.subr.mxu0 0.0
    %1382 = vmatpush1.msra.mxu0 0.0
    %1383 = vmatprep.subr.mxu0 0.0
    %1384 = vmatpush1.msra.mxu0 0.0
    %1385 = vmatprep.subr.mxu0 0.0
    %1386 = vmatpush1.msra.mxu0 0.0
    %1387 = vmatprep.subr.mxu0 0.0
    %1388 = vmatpush1.msra.mxu0 0.0
    %1389 = vmatprep.subr.mxu0 0.0
    %1390 = vmatpush1.msra.mxu0 0.0
    %1391 = vmatprep.subr.mxu0 0.0
    %1392 = vmatpush1.msra.mxu0 0.0
    %1393 = vmatprep.subr.mxu0 0.0
    %1394 = vmatpush1.msra.mxu0 0.0
    %1395 = vmatprep.subr.mxu0 0.0
    %1396 = vmatpush1.msra.mxu0 0.0
    %1397 = vmatprep.subr.mxu0 0.0
    %1398 = vmatpush1.msra.mxu0 0.0
    %1399 = vmatprep.subr.mxu0 0.0
    %1400 = vmatpush1.msra.mxu0 0.0
    %1401 = vmatprep.subr.mxu0 0.0
    %1402 = vmatpush1.msra.mxu0 0.0
    %1403 = vmatprep.subr.mxu0 0.0
    %1404 = vmatpush1.msra.mxu0 0.0
    %1405 = vmatprep.subr.mxu0 0.0
    %1406 = vmatpush1.msra.mxu0 0.0
    %1407 = vmatprep.subr.mxu0 0.0
    %1408 = vmatpush1.msra.mxu0 0.0
    %1409 = vmatprep.subr.mxu0 0.0
    %1410 = vmatpush1.msra.mxu0 0.0
    %1411 = vmatprep.subr.mxu0 0.0
    %1412 = vmatpush1.msra.mxu0 0.0
    %1413 = vmatprep.subr.mxu0 0.0
    %1414 = vmatpush1.msra.mxu0 0.0
    %1415 = vmatprep.subr.mxu0 0.0
    %1416 = vmatpush1.msra.mxu0 0.0
    %1417 = vmatprep.subr.mxu0 0.0
    %1418 = vmatpush1.msra.mxu0 0.0
    %1419 = vmatprep.subr.mxu0 0.0
    %1420 = vmatpush1.msra.mxu0 0.0
    %1421 = vmatprep.subr.mxu0 0.0
    %1422 = vmatpush1.msra.mxu0 0.0
    %1423 = vmatprep.subr.mxu0 0.0
    %1424 = vmatpush1.msra.mxu0 0.0
    %1425 = vmatprep.subr.mxu0 0.0
    %1426 = vmatpush1.msra.mxu0 0.0
    %1427 = vmatprep.subr.mxu0 0.0
    %1428 = vmatpush1.msra.mxu0 0.0
    %1429 = vmatprep.subr.mxu0 0.0
    %1430 = vmatpush1.msra.mxu0 0.0
    %1431 = vmatprep.subr.mxu0 0.0
    %1432 = vmatpush1.msra.mxu0 0.0
    %1433 = vmatprep.subr.mxu0 0.0
    %1434 = vmatpush1.msra.mxu0 0.0
    %1435 = vmatprep.subr.mxu0 0.0
    %1436 = vmatpush1.msra.mxu0 0.0
    %1437 = vmatprep.mubr.f32.mxu0 0.0
    %1438 = vmatmul.mubr.f32.gmra.mrb[0].mxu0 %v405
    %v1439 = vpop.f32.mrb[0].mxu0
    %v1440 = vadd.f32 0.0, %v1439
    %v1441 = vpop.f32.mrb[0].mxu0
    %1442 = vdwg.mxu0
    %v1443 = vadd.f32 %v1335, %v1440
    %v1444 = vxor.u32 %v1443, 2147483648
    %v1445 = vmul.f32 %v1444, 1.442695
    %v1446 = vpow.pop %v1445
    %v1447 = vadd.f32 %v1446, 1.0
    %v1448 = vrcp.pop %v1447
    %v1449 = vmul.f32 1.0, %v1448
    %v1450 = vtanh.pop %v1443
    %v1451 = vmul.f32 %v1449, 0.0
    %1453 = vrot.lane.b32.xlu0 %v1450, 32
    %v1454 = vpop.permute.xlu0 %1453
    %v1456 = vmul.f32 %v1449, %v1454
    %1458 = vrot.lane.b32.xlu0 %v1456, 32
    %v1459 = vpop.permute.xlu0 %1458
    %v1461 = vadd.f32 %v1451, %v1459
    %v1462 = vtanh.pop %v1461
    %1464 = vrot.lane.b32.xlu0 %v1462, 32
    %v1465 = vpop.permute.xlu0 %1464
    %v1467 = vmul.f32 %v1449, %v1465
    %1469 = vrot.lane.b32.xlu0 %v1467, 64
    %v1470 = vpop.permute.xlu0 %1469
    %1472 = vst.msk [vmem:[#allocation7] sm:$0xff] %vm403, %v1470
    %v1473 = vsel %vm403, %v1470, 0
    %1475 = vmatprep.subr.mxu0 0.0
    %1476 = vmatpush1.msra.mxu0 %v1225
    %1477 = vmatprep.subr.mxu0 0.0
    %1478 = vmatpush1.msra.mxu0 %v1226
    %1479 = vmatprep.subr.mxu0 0.0
    %1480 = vmatpush1.msra.mxu0 %v1227
    %1481 = vmatprep.subr.mxu0 0.0
    %1482 = vmatpush1.msra.mxu0 %v1228
    %1483 = vmatprep.subr.mxu0 0.0
    %1484 = vmatpush1.msra.mxu0 0.0
    %1485 = vmatprep.subr.mxu0 0.0
    %1486 = vmatpush1.msra.mxu0 0.0
    %1487 = vmatprep.subr.mxu0 0.0
    %1488 = vmatpush1.msra.mxu0 0.0
    %1489 = vmatprep.subr.mxu0 0.0
    %1490 = vmatpush1.msra.mxu0 0.0
    %1491 = vmatprep.subr.mxu0 0.0
    %1492 = vmatpush1.msra.mxu0 0.0
    %1493 = vmatprep.subr.mxu0 0.0
    %1494 = vmatpush1.msra.mxu0 0.0
    %1495 = vmatprep.subr.mxu0 0.0
    %1496 = vmatpush1.msra.mxu0 0.0
    %1497 = vmatprep.subr.mxu0 0.0
    %1498 = vmatpush1.msra.mxu0 0.0
    %1499 = vmatprep.subr.mxu0 0.0
    %1500 = vmatpush1.msra.mxu0 0.0
    %1501 = vmatprep.subr.mxu0 0.0
    %1502 = vmatpush1.msra.mxu0 0.0
    %1503 = vmatprep.subr.mxu0 0.0
    %1504 = vmatpush1.msra.mxu0 0.0
    %1505 = vmatprep.subr.mxu0 0.0
    %1506 = vmatpush1.msra.mxu0 0.0
    %1507 = vmatprep.subr.mxu0 0.0
    %1508 = vmatpush1.msra.mxu0 0.0
    %1509 = vmatprep.subr.mxu0 0.0
    %1510 = vmatpush1.msra.mxu0 0.0
    %1511 = vmatprep.subr.mxu0 0.0
    %1512 = vmatpush1.msra.mxu0 0.0
    %1513 = vmatprep.subr.mxu0 0.0
    %1514 = vmatpush1.msra.mxu0 0.0
    %1515 = vmatprep.subr.mxu0 0.0
    %1516 = vmatpush1.msra.mxu0 0.0
    %1517 = vmatprep.subr.mxu0 0.0
    %1518 = vmatpush1.msra.mxu0 0.0
    %1519 = vmatprep.subr.mxu0 0.0
    %1520 = vmatpush1.msra.mxu0 0.0
    %1521 = vmatprep.subr.mxu0 0.0
    %1522 = vmatpush1.msra.mxu0 0.0
    %1523 = vmatprep.subr.mxu0 0.0
    %1524 = vmatpush1.msra.mxu0 0.0
    %1525 = vmatprep.subr.mxu0 0.0
    %1526 = vmatpush1.msra.mxu0 0.0
    %1527 = vmatprep.subr.mxu0 0.0
    %1528 = vmatpush1.msra.mxu0 0.0
    %1529 = vmatprep.subr.mxu0 0.0
    %1530 = vmatpush1.msra.mxu0 0.0
    %1531 = vmatprep.subr.mxu0 0.0
    %1532 = vmatpush1.msra.mxu0 0.0
    %1533 = vmatprep.subr.mxu0 0.0
    %1534 = vmatpush1.msra.mxu0 0.0
    %1535 = vmatprep.subr.mxu0 0.0
    %1536 = vmatpush1.msra.mxu0 0.0
    %1537 = vmatprep.subr.mxu0 0.0
    %1538 = vmatpush1.msra.mxu0 0.0
    %1539 = vmatprep.mubr.f32.mxu0 0.0
    %1540 = vmatmul.mubr.f32.gmra.mrb[0].mxu0 %v1473
    %v1541 = vpop.f32.mrb[0].mxu0
    %v1542 = vadd.f32 0.0, %v1541
    %v1543 = vpop.f32.mrb[0].mxu0
    %1544 = vdwg.mxu0
    %v1545 = vadd.f32 %v1340, %v1542
    %v1546 = vxor.u32 %v1545, 2147483648
    %v1547 = vmul.f32 %v1546, 1.442695
    %v1548 = vpow.pop %v1547
    %v1549 = vadd.f32 %v1548, 1.0
    %v1550 = vrcp.pop %v1549
    %v1551 = vmul.f32 1.0, %v1550
    %v1552 = vtanh.pop %v1545
    %v1553 = vmul.f32 %v1551, %v1461
    %1555 = vrot.lane.b32.xlu0 %v1552, 32
    %v1556 = vpop.permute.xlu0 %1555
    %v1558 = vmul.f32 %v1551, %v1556
    %1560 = vrot.lane.b32.xlu0 %v1558, 32
    %v1561 = vpop.permute.xlu0 %1560
    %v1563 = vadd.f32 %v1553, %v1561
    %v1564 = vtanh.pop %v1563
    %1566 = vrot.lane.b32.xlu0 %v1564, 32
    %v1567 = vpop.permute.xlu0 %1566
    %v1569 = vmul.f32 %v1551, %v1567
    %1571 = vrot.lane.b32.xlu0 %v1569, 96
    %v1572 = vpop.permute.xlu0 %1571
    %vm1574 = vcmask 523520
    %1575 = vst.msk [vmem:[#allocation7] sm:$0xff] %vm1574, %v1572
    %1576 = vrot.lane.b32.xlu0 %v1569, 64
    %v1577 = vpop.permute.xlu0 %1576
    %v1578 = vsel %vm403, %v1577, 0
    %1580 = vmatprep.subr.mxu0 0.0
    %1581 = vmatpush1.msra.mxu0 %v1225
    %1582 = vmatprep.subr.mxu0 0.0
    %1583 = vmatpush1.msra.mxu0 %v1226
    %1584 = vmatprep.subr.mxu0 0.0
    %1585 = vmatpush1.msra.mxu0 %v1227
    %1586 = vmatprep.subr.mxu0 0.0
    %1587 = vmatpush1.msra.mxu0 %v1228
    %1588 = vmatprep.subr.mxu0 0.0
    %1589 = vmatpush1.msra.mxu0 0.0
    %1590 = vmatprep.subr.mxu0 0.0
    %1591 = vmatpush1.msra.mxu0 0.0
    %1592 = vmatprep.subr.mxu0 0.0
    %1593 = vmatpush1.msra.mxu0 0.0
    %1594 = vmatprep.subr.mxu0 0.0
    %1595 = vmatpush1.msra.mxu0 0.0
    %1596 = vmatprep.subr.mxu0 0.0
    %1597 = vmatpush1.msra.mxu0 0.0
    %1598 = vmatprep.subr.mxu0 0.0
    %1599 = vmatpush1.msra.mxu0 0.0
    %1600 = vmatprep.subr.mxu0 0.0
    %1601 = vmatpush1.msra.mxu0 0.0
    %1602 = vmatprep.subr.mxu0 0.0
    %1603 = vmatpush1.msra.mxu0 0.0
    %1604 = vmatprep.subr.mxu0 0.0
    %1605 = vmatpush1.msra.mxu0 0.0
    %1606 = vmatprep.subr.mxu0 0.0
    %1607 = vmatpush1.msra.mxu0 0.0
    %1608 = vmatprep.subr.mxu0 0.0
    %1609 = vmatpush1.msra.mxu0 0.0
    %1610 = vmatprep.subr.mxu0 0.0
    %1611 = vmatpush1.msra.mxu0 0.0
    %1612 = vmatprep.subr.mxu0 0.0
    %1613 = vmatpush1.msra.mxu0 0.0
    %1614 = vmatprep.subr.mxu0 0.0
    %1615 = vmatpush1.msra.mxu0 0.0
    %1616 = vmatprep.subr.mxu0 0.0
    %1617 = vmatpush1.msra.mxu0 0.0
    %1618 = vmatprep.subr.mxu0 0.0
    %1619 = vmatpush1.msra.mxu0 0.0
    %1620 = vmatprep.subr.mxu0 0.0
    %1621 = vmatpush1.msra.mxu0 0.0
    %1622 = vmatprep.subr.mxu0 0.0
    %1623 = vmatpush1.msra.mxu0 0.0
    %1624 = vmatprep.subr.mxu0 0.0
    %1625 = vmatpush1.msra.mxu0 0.0
    %1626 = vmatprep.subr.mxu0 0.0
    %1627 = vmatpush1.msra.mxu0 0.0
    %1628 = vmatprep.subr.mxu0 0.0
    %1629 = vmatpush1.msra.mxu0 0.0
    %1630 = vmatprep.subr.mxu0 0.0
    %1631 = vmatpush1.msra.mxu0 0.0
    %1632 = vmatprep.subr.mxu0 0.0
    %1633 = vmatpush1.msra.mxu0 0.0
    %1634 = vmatprep.subr.mxu0 0.0
    %1635 = vmatpush1.msra.mxu0 0.0
    %1636 = vmatprep.subr.mxu0 0.0
    %1637 = vmatpush1.msra.mxu0 0.0
    %1638 = vmatprep.subr.mxu0 0.0
    %1639 = vmatpush1.msra.mxu0 0.0
    %1640 = vmatprep.subr.mxu0 0.0
    %1641 = vmatpush1.msra.mxu0 0.0
    %1642 = vmatprep.subr.mxu0 0.0
    %1643 = vmatpush1.msra.mxu0 0.0
    %1644 = vmatprep.mubr.f32.mxu0 0.0
    %1645 = vmatmul.mubr.f32.gmra.mrb[0].mxu0 %v1578
    %v1646 = vpop.f32.mrb[0].mxu0
    %v1647 = vadd.f32 0.0, %v1646
    %v1648 = vpop.f32.mrb[0].mxu0
    %1649 = vdwg.mxu0
    %v1650 = vadd.f32 %v1345, %v1647
    %v1651 = vxor.u32 %v1650, 2147483648
    %v1652 = vmul.f32 %v1651, 1.442695
    %v1653 = vpow.pop %v1652
    %v1654 = vadd.f32 %v1653, 1.0
    %v1655 = vrcp.pop %v1654
    %v1656 = vmul.f32 1.0, %v1655
    %v1657 = vtanh.pop %v1650
    %v1658 = vmul.f32 %v1656, %v1563
    %1660 = vrot.lane.b32.xlu0 %v1657, 32
    %v1661 = vpop.permute.xlu0 %1660
    %v1663 = vmul.f32 %v1656, %v1661
    %1665 = vrot.lane.b32.xlu0 %v1663, 32
    %v1666 = vpop.permute.xlu0 %1665
    %v1668 = vadd.f32 %v1658, %v1666
    %v1669 = vtanh.pop %v1668
    %1671 = vrot.lane.b32.xlu0 %v1669, 32
    %v1672 = vpop.permute.xlu0 %1671
    %v1674 = vmul.f32 %v1656, %v1672
    %vm1675 = vcmask 785920
    %1676 = vst.msk [vmem:[#allocation7] sm:$0xff] %vm1675, %v1674
    %1678 = vrot.lane.b32.xlu0 %v1674, 64
    %v1679 = vpop.permute.xlu0 %1678
    %v1680 = vsel %vm403, %v1679, 0
    %1682 = vmatprep.subr.mxu0 0.0
    %1683 = vmatpush1.msra.mxu0 %v1225
    %1684 = vmatprep.subr.mxu0 0.0
    %1685 = vmatpush1.msra.mxu0 %v1226
    %1686 = vmatprep.subr.mxu0 0.0
    %1687 = vmatpush1.msra.mxu0 %v1227
    %1688 = vmatprep.subr.mxu0 0.0
    %1689 = vmatpush1.msra.mxu0 %v1228
    %1690 = vmatprep.subr.mxu0 0.0
    %1691 = vmatpush1.msra.mxu0 0.0
    %1692 = vmatprep.subr.mxu0 0.0
    %1693 = vmatpush1.msra.mxu0 0.0
    %1694 = vmatprep.subr.mxu0 0.0
    %1695 = vmatpush1.msra.mxu0 0.0
    %1696 = vmatprep.subr.mxu0 0.0
    %1697 = vmatpush1.msra.mxu0 0.0
    %1698 = vmatprep.subr.mxu0 0.0
    %1699 = vmatpush1.msra.mxu0 0.0
    %1700 = vmatprep.subr.mxu0 0.0
    %1701 = vmatpush1.msra.mxu0 0.0
    %1702 = vmatprep.subr.mxu0 0.0
    %1703 = vmatpush1.msra.mxu0 0.0
    %1704 = vmatprep.subr.mxu0 0.0
    %1705 = vmatpush1.msra.mxu0 0.0
    %1706 = vmatprep.subr.mxu0 0.0
    %1707 = vmatpush1.msra.mxu0 0.0
    %1708 = vmatprep.subr.mxu0 0.0
    %1709 = vmatpush1.msra.mxu0 0.0
    %1710 = vmatprep.subr.mxu0 0.0
    %1711 = vmatpush1.msra.mxu0 0.0
    %1712 = vmatprep.subr.mxu0 0.0
    %1713 = vmatpush1.msra.mxu0 0.0
    %1714 = vmatprep.subr.mxu0 0.0
    %1715 = vmatpush1.msra.mxu0 0.0
    %1716 = vmatprep.subr.mxu0 0.0
    %1717 = vmatpush1.msra.mxu0 0.0
    %1718 = vmatprep.subr.mxu0 0.0
    %1719 = vmatpush1.msra.mxu0 0.0
    %1720 = vmatprep.subr.mxu0 0.0
    %1721 = vmatpush1.msra.mxu0 0.0
    %1722 = vmatprep.subr.mxu0 0.0
    %1723 = vmatpush1.msra.mxu0 0.0
    %1724 = vmatprep.subr.mxu0 0.0
    %1725 = vmatpush1.msra.mxu0 0.0
    %1726 = vmatprep.subr.mxu0 0.0
    %1727 = vmatpush1.msra.mxu0 0.0
    %1728 = vmatprep.subr.mxu0 0.0
    %1729 = vmatpush1.msra.mxu0 0.0
    %1730 = vmatprep.subr.mxu0 0.0
    %1731 = vmatpush1.msra.mxu0 0.0
    %1732 = vmatprep.subr.mxu0 0.0
    %1733 = vmatpush1.msra.mxu0 0.0
    %1734 = vmatprep.subr.mxu0 0.0
    %1735 = vmatpush1.msra.mxu0 0.0
    %1736 = vmatprep.subr.mxu0 0.0
    %1737 = vmatpush1.msra.mxu0 0.0
    %1738 = vmatprep.subr.mxu0 0.0
    %1739 = vmatpush1.msra.mxu0 0.0
    %1740 = vmatprep.subr.mxu0 0.0
    %1741 = vmatpush1.msra.mxu0 0.0
    %1742 = vmatprep.subr.mxu0 0.0
    %1743 = vmatpush1.msra.mxu0 0.0
    %1744 = vmatprep.subr.mxu0 0.0
    %1745 = vmatpush1.msra.mxu0 0.0
    %1746 = vmatprep.mubr.f32.mxu0 0.0
    %1747 = vmatmul.mubr.f32.gmra.mrb[0].mxu0 %v1680
    %v1748 = vpop.f32.mrb[0].mxu0
    %v1749 = vadd.f32 0.0, %v1748
    %v1750 = vpop.f32.mrb[0].mxu0
    %1751 = vdwg.mxu0
    %v1752 = vadd.f32 %v1350, %v1749
    %v1753 = vxor.u32 %v1752, 2147483648
    %v1754 = vmul.f32 %v1753, 1.442695
    %v1755 = vpow.pop %v1754
    %v1756 = vadd.f32 %v1755, 1.0
    %v1757 = vrcp.pop %v1756
    %v1758 = vmul.f32 1.0, %v1757
    %v1759 = vtanh.pop %v1752
    %v1760 = vmul.f32 %v1758, %v1668
    %1762 = vrot.lane.b32.xlu0 %v1759, 32
    %v1763 = vpop.permute.xlu0 %1762
    %v1765 = vmul.f32 %v1758, %v1763
    %1767 = vrot.lane.b32.xlu0 %v1765, 32
    %v1768 = vpop.permute.xlu0 %1767
    %v1770 = vadd.f32 %v1760, %v1768
    %v1771 = vtanh.pop %v1770
    %1773 = vrot.lane.b32.xlu0 %v1771, 32
    %v1774 = vpop.permute.xlu0 %1773
    %v1776 = vmul.f32 %v1758, %v1774
    %1778 = vrot.lane.b32.xlu0 %v1776, 32
    %v1779 = vpop.permute.xlu0 %1778
    %vm1781 = vcmask 1048320
    %1782 = vst.msk [vmem:[#allocation7] sm:$0xff] %vm1781, %v1779
    %1783 = vrot.lane.b32.xlu0 %v1776, 64
    %v1784 = vpop.permute.xlu0 %1783
    %v1785 = vsel %vm403, %v1784, 0
    %1787 = vmatprep.subr.mxu0 0.0
    %1788 = vmatpush1.msra.mxu0 %v1225
    %1789 = vmatprep.subr.mxu0 0.0
    %1790 = vmatpush1.msra.mxu0 %v1226
    %1791 = vmatprep.subr.mxu0 0.0
    %1792 = vmatpush1.msra.mxu0 %v1227
    %1793 = vmatprep.subr.mxu0 0.0
    %1794 = vmatpush1.msra.mxu0 %v1228
    %1795 = vmatprep.subr.mxu0 0.0
    %1796 = vmatpush1.msra.mxu0 0.0
    %1797 = vmatprep.subr.mxu0 0.0
    %1798 = vmatpush1.msra.mxu0 0.0
    %1799 = vmatprep.subr.mxu0 0.0
    %1800 = vmatpush1.msra.mxu0 0.0
    %1801 = vmatprep.subr.mxu0 0.0
    %1802 = vmatpush1.msra.mxu0 0.0
    %1803 = vmatprep.subr.mxu0 0.0
    %1804 = vmatpush1.msra.mxu0 0.0
    %1805 = vmatprep.subr.mxu0 0.0
    %1806 = vmatpush1.msra.mxu0 0.0
    %1807 = vmatprep.subr.mxu0 0.0
    %1808 = vmatpush1.msra.mxu0 0.0
    %1809 = vmatprep.subr.mxu0 0.0
    %1810 = vmatpush1.msra.mxu0 0.0
    %1811 = vmatprep.subr.mxu0 0.0
    %1812 = vmatpush1.msra.mxu0 0.0
    %1813 = vmatprep.subr.mxu0 0.0
    %1814 = vmatpush1.msra.mxu0 0.0
    %1815 = vmatprep.subr.mxu0 0.0
    %1816 = vmatpush1.msra.mxu0 0.0
    %1817 = vmatprep.subr.mxu0 0.0
    %1818 = vmatpush1.msra.mxu0 0.0
    %1819 = vmatprep.subr.mxu0 0.0
    %1820 = vmatpush1.msra.mxu0 0.0
    %1821 = vmatprep.subr.mxu0 0.0
    %1822 = vmatpush1.msra.mxu0 0.0
    %1823 = vmatprep.subr.mxu0 0.0
    %1824 = vmatpush1.msra.mxu0 0.0
    %1825 = vmatprep.subr.mxu0 0.0
    %1826 = vmatpush1.msra.mxu0 0.0
    %1827 = vmatprep.subr.mxu0 0.0
    %1828 = vmatpush1.msra.mxu0 0.0
    %1829 = vmatprep.subr.mxu0 0.0
    %1830 = vmatpush1.msra.mxu0 0.0
    %1831 = vmatprep.subr.mxu0 0.0
    %1832 = vmatpush1.msra.mxu0 0.0
    %1833 = vmatprep.subr.mxu0 0.0
    %1834 = vmatpush1.msra.mxu0 0.0
    %1835 = vmatprep.subr.mxu0 0.0
    %1836 = vmatpush1.msra.mxu0 0.0
    %1837 = vmatprep.subr.mxu0 0.0
    %1838 = vmatpush1.msra.mxu0 0.0
    %1839 = vmatprep.subr.mxu0 0.0
    %1840 = vmatpush1.msra.mxu0 0.0
    %1841 = vmatprep.subr.mxu0 0.0
    %1842 = vmatpush1.msra.mxu0 0.0
    %1843 = vmatprep.subr.mxu0 0.0
    %1844 = vmatpush1.msra.mxu0 0.0
    %1845 = vmatprep.subr.mxu0 0.0
    %1846 = vmatpush1.msra.mxu0 0.0
    %1847 = vmatprep.subr.mxu0 0.0
    %1848 = vmatpush1.msra.mxu0 0.0
    %1849 = vmatprep.subr.mxu0 0.0
    %1850 = vmatpush1.msra.mxu0 0.0
    %1851 = vmatprep.mubr.f32.mxu0 0.0
    %1852 = vmatmul.mubr.f32.gmra.mrb[0].mxu0 %v1785
    %v1853 = vpop.f32.mrb[0].mxu0
    %v1854 = vadd.f32 0.0, %v1853
    %v1855 = vpop.f32.mrb[0].mxu0
    %1856 = vdwg.mxu0
    %v1857 = vadd.f32 %v1355, %v1854
    %v1858 = vxor.u32 %v1857, 2147483648
    %v1859 = vmul.f32 %v1858, 1.442695
    %v1860 = vpow.pop %v1859
    %v1861 = vadd.f32 %v1860, 1.0
    %v1862 = vrcp.pop %v1861
    %v1863 = vmul.f32 1.0, %v1862
    %v1864 = vtanh.pop %v1857
    %v1865 = vmul.f32 %v1863, %v1770
    %1867 = vrot.lane.b32.xlu0 %v1864, 32
    %v1868 = vpop.permute.xlu0 %1867
    %v1870 = vmul.f32 %v1863, %v1868
    %1872 = vrot.lane.b32.xlu0 %v1870, 32
    %v1873 = vpop.permute.xlu0 %1872
    %v1875 = vadd.f32 %v1865, %v1873
    %v1876 = vtanh.pop %v1875
    %1878 = vrot.lane.b32.xlu0 %v1876, 32
    %v1879 = vpop.permute.xlu0 %1878
    %v1881 = vmul.f32 %v1863, %v1879
    %1883 = vrot.lane.b32.xlu0 %v1881, 64
    %v1884 = vpop.permute.xlu0 %1883
    %1886 = vst.msk [vmem:[#allocation7 + $0x8] sm:$0xff] %vm403, %v1884
    %v1887 = vsel %vm403, %v1884, 0
    %1889 = vmatprep.subr.mxu0 0.0
    %1890 = vmatpush1.msra.mxu0 %v1225
    %1891 = vmatprep.subr.mxu0 0.0
    %1892 = vmatpush1.msra.mxu0 %v1226
    %1893 = vmatprep.subr.mxu0 0.0
    %1894 = vmatpush1.msra.mxu0 %v1227
    %1895 = vmatprep.subr.mxu0 0.0
    %1896 = vmatpush1.msra.mxu0 %v1228
    %1897 = vmatprep.subr.mxu0 0.0
    %1898 = vmatpush1.msra.mxu0 0.0
    %1899 = vmatprep.subr.mxu0 0.0
    %1900 = vmatpush1.msra.mxu0 0.0
    %1901 = vmatprep.subr.mxu0 0.0
    %1902 = vmatpush1.msra.mxu0 0.0
    %1903 = vmatprep.subr.mxu0 0.0
    %1904 = vmatpush1.msra.mxu0 0.0
    %1905 = vmatprep.subr.mxu0 0.0
    %1906 = vmatpush1.msra.mxu0 0.0
    %1907 = vmatprep.subr.mxu0 0.0
    %1908 = vmatpush1.msra.mxu0 0.0
    %1909 = vmatprep.subr.mxu0 0.0
    %1910 = vmatpush1.msra.mxu0 0.0
    %1911 = vmatprep.subr.mxu0 0.0
    %1912 = vmatpush1.msra.mxu0 0.0
    %1913 = vmatprep.subr.mxu0 0.0
    %1914 = vmatpush1.msra.mxu0 0.0
    %1915 = vmatprep.subr.mxu0 0.0
    %1916 = vmatpush1.msra.mxu0 0.0
    %1917 = vmatprep.subr.mxu0 0.0
    %1918 = vmatpush1.msra.mxu0 0.0
    %1919 = vmatprep.subr.mxu0 0.0
    %1920 = vmatpush1.msra.mxu0 0.0
    %1921 = vmatprep.subr.mxu0 0.0
    %1922 = vmatpush1.msra.mxu0 0.0
    %1923 = vmatprep.subr.mxu0 0.0
    %1924 = vmatpush1.msra.mxu0 0.0
    %1925 = vmatprep.subr.mxu0 0.0
    %1926 = vmatpush1.msra.mxu0 0.0
    %1927 = vmatprep.subr.mxu0 0.0
    %1928 = vmatpush1.msra.mxu0 0.0
    %1929 = vmatprep.subr.mxu0 0.0
    %1930 = vmatpush1.msra.mxu0 0.0
    %1931 = vmatprep.subr.mxu0 0.0
    %1932 = vmatpush1.msra.mxu0 0.0
    %1933 = vmatprep.subr.mxu0 0.0
    %1934 = vmatpush1.msra.mxu0 0.0
    %1935 = vmatprep.subr.mxu0 0.0
    %1936 = vmatpush1.msra.mxu0 0.0
    %1937 = vmatprep.subr.mxu0 0.0
    %1938 = vmatpush1.msra.mxu0 0.0
    %1939 = vmatprep.subr.mxu0 0.0
    %1940 = vmatpush1.msra.mxu0 0.0
    %1941 = vmatprep.subr.mxu0 0.0
    %1942 = vmatpush1.msra.mxu0 0.0
    %1943 = vmatprep.subr.mxu0 0.0
    %1944 = vmatpush1.msra.mxu0 0.0
    %1945 = vmatprep.subr.mxu0 0.0
    %1946 = vmatpush1.msra.mxu0 0.0
    %1947 = vmatprep.subr.mxu0 0.0
    %1948 = vmatpush1.msra.mxu0 0.0
    %1949 = vmatprep.subr.mxu0 0.0
    %1950 = vmatpush1.msra.mxu0 0.0
    %1951 = vmatprep.subr.mxu0 0.0
    %1952 = vmatpush1.msra.mxu0 0.0
    %1953 = vmatprep.mubr.f32.mxu0 0.0
    %1954 = vmatmul.mubr.f32.gmra.mrb[0].mxu0 %v1887
    %v1955 = vpop.f32.mrb[0].mxu0
    %v1956 = vadd.f32 0.0, %v1955
    %v1957 = vpop.f32.mrb[0].mxu0
    %1958 = vdwg.mxu0
    %v1959 = vadd.f32 %v1360, %v1956
    %v1960 = vxor.u32 %v1959, 2147483648
    %v1961 = vmul.f32 %v1960, 1.442695
    %v1962 = vpow.pop %v1961
    %v1963 = vadd.f32 %v1962, 1.0
    %v1964 = vrcp.pop %v1963
    %v1965 = vmul.f32 1.0, %v1964
    %v1966 = vtanh.pop %v1959
    %v1967 = vmul.f32 %v1965, %v1875
    %1969 = vrot.lane.b32.xlu0 %v1966, 32
    %v1970 = vpop.permute.xlu0 %1969
    %v1972 = vmul.f32 %v1965, %v1970
    %1974 = vrot.lane.b32.xlu0 %v1972, 32
    %v1975 = vpop.permute.xlu0 %1974
    %v1977 = vadd.f32 %v1967, %v1975
    %v1978 = vtanh.pop %v1977
    %1980 = vrot.lane.b32.xlu0 %v1978, 32
    %v1981 = vpop.permute.xlu0 %1980
    %v1983 = vmul.f32 %v1965, %v1981
    %1985 = vrot.lane.b32.xlu0 %v1983, 96
    %v1986 = vpop.permute.xlu0 %1985
    %1988 = vst.msk [vmem:[#allocation7 + $0x8] sm:$0xff] %vm1574, %v1986
    %1989 = vrot.lane.b32.xlu0 %v1983, 64
    %v1990 = vpop.permute.xlu0 %1989
    %v1991 = vsel %vm403, %v1990, 0
    %1993 = vmatprep.subr.mxu0 0.0
    %1994 = vmatpush1.msra.mxu0 %v1225
    %1995 = vmatprep.subr.mxu0 0.0
    %1996 = vmatpush1.msra.mxu0 %v1226
    %1997 = vmatprep.subr.mxu0 0.0
    %1998 = vmatpush1.msra.mxu0 %v1227
    %1999 = vmatprep.subr.mxu0 0.0
    %2000 = vmatpush1.msra.mxu0 %v1228
    %2001 = vmatprep.subr.mxu0 0.0
    %2002 = vmatpush1.msra.mxu0 0.0
    %2003 = vmatprep.subr.mxu0 0.0
    %2004 = vmatpush1.msra.mxu0 0.0
    %2005 = vmatprep.subr.mxu0 0.0
    %2006 = vmatpush1.msra.mxu0 0.0
    %2007 = vmatprep.subr.mxu0 0.0
    %2008 = vmatpush1.msra.mxu0 0.0
    %2009 = vmatprep.subr.mxu0 0.0
    %2010 = vmatpush1.msra.mxu0 0.0
    %2011 = vmatprep.subr.mxu0 0.0
    %2012 = vmatpush1.msra.mxu0 0.0
    %2013 = vmatprep.subr.mxu0 0.0
    %2014 = vmatpush1.msra.mxu0 0.0
    %2015 = vmatprep.subr.mxu0 0.0
    %2016 = vmatpush1.msra.mxu0 0.0
    %2017 = vmatprep.subr.mxu0 0.0
    %2018 = vmatpush1.msra.mxu0 0.0
    %2019 = vmatprep.subr.mxu0 0.0
    %2020 = vmatpush1.msra.mxu0 0.0
    %2021 = vmatprep.subr.mxu0 0.0
    %2022 = vmatpush1.msra.mxu0 0.0
    %2023 = vmatprep.subr.mxu0 0.0
    %2024 = vmatpush1.msra.mxu0 0.0
    %2025 = vmatprep.subr.mxu0 0.0
    %2026 = vmatpush1.msra.mxu0 0.0
    %2027 = vmatprep.subr.mxu0 0.0
    %2028 = vmatpush1.msra.mxu0 0.0
    %2029 = vmatprep.subr.mxu0 0.0
    %2030 = vmatpush1.msra.mxu0 0.0
    %2031 = vmatprep.subr.mxu0 0.0
    %2032 = vmatpush1.msra.mxu0 0.0
    %2033 = vmatprep.subr.mxu0 0.0
    %2034 = vmatpush1.msra.mxu0 0.0
    %2035 = vmatprep.subr.mxu0 0.0
    %2036 = vmatpush1.msra.mxu0 0.0
    %2037 = vmatprep.subr.mxu0 0.0
    %2038 = vmatpush1.msra.mxu0 0.0
    %2039 = vmatprep.subr.mxu0 0.0
    %2040 = vmatpush1.msra.mxu0 0.0
    %2041 = vmatprep.subr.mxu0 0.0
    %2042 = vmatpush1.msra.mxu0 0.0
    %2043 = vmatprep.subr.mxu0 0.0
    %2044 = vmatpush1.msra.mxu0 0.0
    %2045 = vmatprep.subr.mxu0 0.0
    %2046 = vmatpush1.msra.mxu0 0.0
    %2047 = vmatprep.subr.mxu0 0.0
    %2048 = vmatpush1.msra.mxu0 0.0
    %2049 = vmatprep.subr.mxu0 0.0
    %2050 = vmatpush1.msra.mxu0 0.0
    %2051 = vmatprep.subr.mxu0 0.0
    %2052 = vmatpush1.msra.mxu0 0.0
    %2053 = vmatprep.subr.mxu0 0.0
    %2054 = vmatpush1.msra.mxu0 0.0
    %2055 = vmatprep.subr.mxu0 0.0
    %2056 = vmatpush1.msra.mxu0 0.0
    %2057 = vmatprep.mubr.f32.mxu0 0.0
    %2058 = vmatmul.mubr.f32.gmra.mrb[0].mxu0 %v1991
    %v2059 = vpop.f32.mrb[0].mxu0
    %v2060 = vadd.f32 0.0, %v2059
    %v2061 = vpop.f32.mrb[0].mxu0
    %2062 = vdwg.mxu0
    %v2063 = vadd.f32 %v1365, %v2060
    %v2064 = vxor.u32 %v2063, 2147483648
    %v2065 = vmul.f32 %v2064, 1.442695
    %v2066 = vpow.pop %v2065
    %v2067 = vadd.f32 %v2066, 1.0
    %v2068 = vrcp.pop %v2067
    %v2069 = vmul.f32 1.0, %v2068
    %v2070 = vtanh.pop %v2063
    %v2071 = vmul.f32 %v2069, %v1977
    %2073 = vrot.lane.b32.xlu0 %v2070, 32
    %v2074 = vpop.permute.xlu0 %2073
    %v2076 = vmul.f32 %v2069, %v2074
    %2078 = vrot.lane.b32.xlu0 %v2076, 32
    %v2079 = vpop.permute.xlu0 %2078
    %v2081 = vadd.f32 %v2071, %v2079
    %v2082 = vtanh.pop %v2081
    %2084 = vrot.lane.b32.xlu0 %v2082, 32
    %v2085 = vpop.permute.xlu0 %2084
    %v2087 = vmul.f32 %v2069, %v2085
    %2088 = vst.msk [vmem:[#allocation7 + $0x8] sm:$0xff] %vm1675, %v2087
    %2090 = vrot.lane.b32.xlu0 %v2087, 64
    %v2091 = vpop.permute.xlu0 %2090
    %v2092 = vsel %vm403, %v2091, 0
    %2094 = vmatprep.subr.mxu0 0.0
    %2095 = vmatpush1.msra.mxu0 %v1225
    %2096 = vmatprep.subr.mxu0 0.0
    %2097 = vmatpush1.msra.mxu0 %v1226
    %2098 = vmatprep.subr.mxu0 0.0
    %2099 = vmatpush1.msra.mxu0 %v1227
    %2100 = vmatprep.subr.mxu0 0.0
    %2101 = vmatpush1.msra.mxu0 %v1228
    %2102 = vmatprep.subr.mxu0 0.0
    %2103 = vmatpush1.msra.mxu0 0.0
    %2104 = vmatprep.subr.mxu0 0.0
    %2105 = vmatpush1.msra.mxu0 0.0
    %2106 = vmatprep.subr.mxu0 0.0
    %2107 = vmatpush1.msra.mxu0 0.0
    %2108 = vmatprep.subr.mxu0 0.0
    %2109 = vmatpush1.msra.mxu0 0.0
    %2110 = vmatprep.subr.mxu0 0.0
    %2111 = vmatpush1.msra.mxu0 0.0
    %2112 = vmatprep.subr.mxu0 0.0
    %2113 = vmatpush1.msra.mxu0 0.0
    %2114 = vmatprep.subr.mxu0 0.0
    %2115 = vmatpush1.msra.mxu0 0.0
    %2116 = vmatprep.subr.mxu0 0.0
    %2117 = vmatpush1.msra.mxu0 0.0
    %2118 = vmatprep.subr.mxu0 0.0
    %2119 = vmatpush1.msra.mxu0 0.0
    %2120 = vmatprep.subr.mxu0 0.0
    %2121 = vmatpush1.msra.mxu0 0.0
    %2122 = vmatprep.subr.mxu0 0.0
    %2123 = vmatpush1.msra.mxu0 0.0
    %2124 = vmatprep.subr.mxu0 0.0
    %2125 = vmatpush1.msra.mxu0 0.0
    %2126 = vmatprep.subr.mxu0 0.0
    %2127 = vmatpush1.msra.mxu0 0.0
    %2128 = vmatprep.subr.mxu0 0.0
    %2129 = vmatpush1.msra.mxu0 0.0
    %2130 = vmatprep.subr.mxu0 0.0
    %2131 = vmatpush1.msra.mxu0 0.0
    %2132 = vmatprep.subr.mxu0 0.0
    %2133 = vmatpush1.msra.mxu0 0.0
    %2134 = vmatprep.subr.mxu0 0.0
    %2135 = vmatpush1.msra.mxu0 0.0
    %2136 = vmatprep.subr.mxu0 0.0
    %2137 = vmatpush1.msra.mxu0 0.0
    %2138 = vmatprep.subr.mxu0 0.0
    %2139 = vmatpush1.msra.mxu0 0.0
    %2140 = vmatprep.subr.mxu0 0.0
    %2141 = vmatpush1.msra.mxu0 0.0
    %2142 = vmatprep.subr.mxu0 0.0
    %2143 = vmatpush1.msra.mxu0 0.0
    %2144 = vmatprep.subr.mxu0 0.0
    %2145 = vmatpush1.msra.mxu0 0.0
    %2146 = vmatprep.subr.mxu0 0.0
    %2147 = vmatpush1.msra.mxu0 0.0
    %2148 = vmatprep.subr.mxu0 0.0
    %2149 = vmatpush1.msra.mxu0 0.0
    %2150 = vmatprep.subr.mxu0 0.0
    %2151 = vmatpush1.msra.mxu0 0.0
    %2152 = vmatprep.subr.mxu0 0.0
    %2153 = vmatpush1.msra.mxu0 0.0
    %2154 = vmatprep.subr.mxu0 0.0
    %2155 = vmatpush1.msra.mxu0 0.0
    %2156 = vmatprep.subr.mxu0 0.0
    %2157 = vmatpush1.msra.mxu0 0.0
    %2158 = vmatprep.mubr.f32.mxu0 0.0
    %2159 = vmatmul.mubr.f32.gmra.mrb[0].mxu0 %v2092
    %v2160 = vpop.f32.mrb[0].mxu0
    %v2161 = vadd.f32 0.0, %v2160
    %v2162 = vpop.f32.mrb[0].mxu0
    %2163 = vdwg.mxu0
    %v2164 = vadd.f32 %v1370, %v2161
    %v2165 = vxor.u32 %v2164, 2147483648
    %v2166 = vmul.f32 %v2165, 1.442695
    %v2167 = vpow.pop %v2166
    %v2168 = vadd.f32 %v2167, 1.0
    %v2169 = vrcp.pop %v2168
    %v2170 = vmul.f32 1.0, %v2169
    %v2171 = vtanh.pop %v2164
    %v2172 = vmul.f32 %v2170, %v2081
    %2174 = vrot.lane.b32.xlu0 %v2171, 32
    %v2175 = vpop.permute.xlu0 %2174
    %v2177 = vmul.f32 %v2170, %v2175
    %2179 = vrot.lane.b32.xlu0 %v2177, 32
    %v2180 = vpop.permute.xlu0 %2179
    %v2182 = vadd.f32 %v2172, %v2180
    %v2183 = vtanh.pop %v2182
    %2185 = vrot.lane.b32.xlu0 %v2183, 32
    %v2186 = vpop.permute.xlu0 %2185
    %v2188 = vmul.f32 %v2170, %v2186
    %2190 = vrot.lane.b32.xlu0 %v2188, 32
    %v2191 = vpop.permute.xlu0 %2190
    %2193 = vst.msk [vmem:[#allocation7 + $0x8] sm:$0xff] %vm1781, %v2191
    %v2194 = vld [vmem:[#allocation7] sm:$0xff]
    %v2195 = vld [vmem:[#allocation7 + $0x8] sm:$0xff]
    %s2196 = smul.u32 4, 32
    %s2197 = smul.u32 %s2196, 10
    %s2198 = sshll.u32 %s2197, 4
    %2199 = dma.done [#allocation5], %s2198
    %v2200 = vld [vmem:[#allocation2] sm:$0xff]
    %v2201 = vld [vmem:[#allocation2 + $0x8] sm:$0xff]
    %v2202 = vld [vmem:[#allocation2 + $0x10] sm:$0xff]
    %v2203 = vld [vmem:[#allocation2 + $0x18] sm:$0xff]
    %v2204 = vld [vmem:[#allocation2 + $0x20] sm:$0xff]
    %v2205 = vld [vmem:[#allocation2 + $0x28] sm:$0xff]
    %v2206 = vld [vmem:[#allocation2 + $0x30] sm:$0xff]
    %v2207 = vld [vmem:[#allocation2 + $0x38] sm:$0xff]
    %v2208 = vld [vmem:[#allocation2 + $0x40] sm:$0xff]
    %v2209 = vld [vmem:[#allocation2 + $0x48] sm:$0xff]
    %v2210 = vld [vmem:[#allocation2 + $0x50] sm:$0xff]
    %v2211 = vld [vmem:[#allocation2 + $0x58] sm:$0xff]
    %v2212 = vld [vmem:[#allocation2 + $0x60] sm:$0xff]
    %v2213 = vld [vmem:[#allocation2 + $0x68] sm:$0xff]
    %v2214 = vld [vmem:[#allocation2 + $0x70] sm:$0xff]
    %v2215 = vld [vmem:[#allocation2 + $0x78] sm:$0xff]
    %v2216 = vld [vmem:[#allocation2 + $0x80] sm:$0xff]
    %v2217 = vld [vmem:[#allocation2 + $0x88] sm:$0xff]
    %v2218 = vld [vmem:[#allocation2 + $0x90] sm:$0xff]
    %v2219 = vld [vmem:[#allocation2 + $0x98] sm:$0xff]
    %v2220 = vld [vmem:[#allocation2 + $0xa0] sm:$0xff]
    %v2221 = vld [vmem:[#allocation2 + $0xa8] sm:$0xff]
    %v2222 = vld [vmem:[#allocation2 + $0xb0] sm:$0xff]
    %v2223 = vld [vmem:[#allocation2 + $0xb8] sm:$0xff]
    %v2224 = vld [vmem:[#allocation2 + $0xc0] sm:$0xff]
    %v2225 = vld [vmem:[#allocation2 + $0xc8] sm:$0xff]
    %v2226 = vld [vmem:[#allocation2 + $0xd0] sm:$0xff]
    %v2227 = vld [vmem:[#allocation2 + $0xd8] sm:$0xff]
    %v2228 = vld [vmem:[#allocation2 + $0xe0] sm:$0xff]
    %v2229 = vld [vmem:[#allocation2 + $0xe8] sm:$0xff]
    %v2230 = vld [vmem:[#allocation2 + $0xf0] sm:$0xff]
    %v2231 = vld [vmem:[#allocation2 + $0xf8] sm:$0xff]
    %v2232 = vld [vmem:[#allocation2 + $0x100] sm:$0xff]
    %v2233 = vld [vmem:[#allocation2 + $0x108] sm:$0xff]
    %v2234 = vld [vmem:[#allocation2 + $0x110] sm:$0xff]
    %v2235 = vld [vmem:[#allocation2 + $0x118] sm:$0xff]
    %v2236 = vld [vmem:[#allocation2 + $0x120] sm:$0xff]
    %v2237 = vld [vmem:[#allocation2 + $0x128] sm:$0xff]
    %v2238 = vld [vmem:[#allocation2 + $0x130] sm:$0xff]
    %v2239 = vld [vmem:[#allocation2 + $0x138] sm:$0xff]
    %v2240 = vld [vmem:[#allocation2 + $0x140] sm:$0xff]
    %v2241 = vld [vmem:[#allocation2 + $0x148] sm:$0xff]
    %v2242 = vld [vmem:[#allocation2 + $0x150] sm:$0xff]
    %v2243 = vld [vmem:[#allocation2 + $0x158] sm:$0xff]
    %v2244 = vld [vmem:[#allocation2 + $0x160] sm:$0xff]
    %v2245 = vld [vmem:[#allocation2 + $0x168] sm:$0xff]
    %v2246 = vld [vmem:[#allocation2 + $0x170] sm:$0xff]
    %v2247 = vld [vmem:[#allocation2 + $0x178] sm:$0xff]
    %v2248 = vld [vmem:[#allocation2 + $0x180] sm:$0xff]
    %v2249 = vld [vmem:[#allocation2 + $0x188] sm:$0xff]
    %v2250 = vld [vmem:[#allocation2 + $0x190] sm:$0xff]
    %v2251 = vld [vmem:[#allocation2 + $0x198] sm:$0xff]
    %v2252 = vld [vmem:[#allocation2 + $0x1a0] sm:$0xff]
    %v2253 = vld [vmem:[#allocation2 + $0x1a8] sm:$0xff]
    %v2254 = vld [vmem:[#allocation2 + $0x1b0] sm:$0xff]
    %v2255 = vld [vmem:[#allocation2 + $0x1b8] sm:$0xff]
    %v2256 = vld [vmem:[#allocation2 + $0x1c0] sm:$0xff]
    %v2257 = vld [vmem:[#allocation2 + $0x1c8] sm:$0xff]
    %v2258 = vld [vmem:[#allocation2 + $0x1d0] sm:$0xff]
    %v2259 = vld [vmem:[#allocation2 + $0x1d8] sm:$0xff]
    %v2260 = vld [vmem:[#allocation2 + $0x1e0] sm:$0xff]
    %v2261 = vld [vmem:[#allocation2 + $0x1e8] sm:$0xff]
    %v2262 = vld [vmem:[#allocation2 + $0x1f0] sm:$0xff]
    %v2263 = vld [vmem:[#allocation2 + $0x1f8] sm:$0xff]
    %v2264 = vld [vmem:[#allocation2 + $0x200] sm:$0xff]
    %v2265 = vld [vmem:[#allocation2 + $0x208] sm:$0xff]
    %v2266 = vld [vmem:[#allocation2 + $0x210] sm:$0xff]
    %v2267 = vld [vmem:[#allocation2 + $0x218] sm:$0xff]
    %v2268 = vld [vmem:[#allocation2 + $0x220] sm:$0xff]
    %v2269 = vld [vmem:[#allocation2 + $0x228] sm:$0xff]
    %v2270 = vld [vmem:[#allocation2 + $0x230] sm:$0xff]
    %v2271 = vld [vmem:[#allocation2 + $0x238] sm:$0xff]
    %v2272 = vld [vmem:[#allocation2 + $0x240] sm:$0xff]
    %v2273 = vld [vmem:[#allocation2 + $0x248] sm:$0xff]
    %v2274 = vld [vmem:[#allocation2 + $0x250] sm:$0xff]
    %v2275 = vld [vmem:[#allocation2 + $0x258] sm:$0xff]
    %v2276 = vld [vmem:[#allocation2 + $0x260] sm:$0xff]
    %v2277 = vld [vmem:[#allocation2 + $0x268] sm:$0xff]
    %v2278 = vld [vmem:[#allocation2 + $0x270] sm:$0xff]
    %v2279 = vld [vmem:[#allocation2 + $0x278] sm:$0xff]
    %v2280 = vld [vmem:[#allocation2 + $0x280] sm:$0xff]
    %v2281 = vld [vmem:[#allocation2 + $0x288] sm:$0xff]
    %v2282 = vld [vmem:[#allocation2 + $0x290] sm:$0xff]
    %v2283 = vld [vmem:[#allocation2 + $0x298] sm:$0xff]
    %v2284 = vld [vmem:[#allocation2 + $0x2a0] sm:$0xff]
    %v2285 = vld [vmem:[#allocation2 + $0x2a8] sm:$0xff]
    %v2286 = vld [vmem:[#allocation2 + $0x2b0] sm:$0xff]
    %v2287 = vld [vmem:[#allocation2 + $0x2b8] sm:$0xff]
    %v2288 = vld [vmem:[#allocation2 + $0x2c0] sm:$0xff]
    %v2289 = vld [vmem:[#allocation2 + $0x2c8] sm:$0xff]
    %v2290 = vld [vmem:[#allocation2 + $0x2d0] sm:$0xff]
    %v2291 = vld [vmem:[#allocation2 + $0x2d8] sm:$0xff]
    %v2292 = vld [vmem:[#allocation2 + $0x2e0] sm:$0xff]
    %v2293 = vld [vmem:[#allocation2 + $0x2e8] sm:$0xff]
    %v2294 = vld [vmem:[#allocation2 + $0x2f0] sm:$0xff]
    %v2295 = vld [vmem:[#allocation2 + $0x2f8] sm:$0xff]
    %v2296 = vld [vmem:[#allocation2 + $0x300] sm:$0xff]
    %v2297 = vld [vmem:[#allocation2 + $0x308] sm:$0xff]
    %v2298 = vld [vmem:[#allocation2 + $0x310] sm:$0xff]
    %v2299 = vld [vmem:[#allocation2 + $0x318] sm:$0xff]
    %v2300 = vld [vmem:[#allocation2 + $0x320] sm:$0xff]
    %v2301 = vld [vmem:[#allocation2 + $0x328] sm:$0xff]
    %v2302 = vld [vmem:[#allocation2 + $0x330] sm:$0xff]
    %v2303 = vld [vmem:[#allocation2 + $0x338] sm:$0xff]
    %v2304 = vld [vmem:[#allocation2 + $0x340] sm:$0xff]
    %v2305 = vld [vmem:[#allocation2 + $0x348] sm:$0xff]
    %v2306 = vld [vmem:[#allocation2 + $0x350] sm:$0xff]
    %v2307 = vld [vmem:[#allocation2 + $0x358] sm:$0xff]
    %v2308 = vld [vmem:[#allocation2 + $0x360] sm:$0xff]
    %v2309 = vld [vmem:[#allocation2 + $0x368] sm:$0xff]
    %v2310 = vld [vmem:[#allocation2 + $0x370] sm:$0xff]
    %v2311 = vld [vmem:[#allocation2 + $0x378] sm:$0xff]
    %v2312 = vld [vmem:[#allocation2 + $0x380] sm:$0xff]
    %v2313 = vld [vmem:[#allocation2 + $0x388] sm:$0xff]
    %v2314 = vld [vmem:[#allocation2 + $0x390] sm:$0xff]
    %v2315 = vld [vmem:[#allocation2 + $0x398] sm:$0xff]
    %v2316 = vld [vmem:[#allocation2 + $0x3a0] sm:$0xff]
    %v2317 = vld [vmem:[#allocation2 + $0x3a8] sm:$0xff]
    %v2318 = vld [vmem:[#allocation2 + $0x3b0] sm:$0xff]
    %v2319 = vld [vmem:[#allocation2 + $0x3b8] sm:$0xff]
    %v2320 = vld [vmem:[#allocation2 + $0x3c0] sm:$0xff]
    %v2321 = vld [vmem:[#allocation2 + $0x3c8] sm:$0xff]
    %v2322 = vld [vmem:[#allocation2 + $0x3d0] sm:$0xff]
    %v2323 = vld [vmem:[#allocation2 + $0x3d8] sm:$0xff]
    %v2324 = vld [vmem:[#allocation2 + $0x3e0] sm:$0xff]
    %v2325 = vld [vmem:[#allocation2 + $0x3e8] sm:$0xff]
    %v2326 = vld [vmem:[#allocation2 + $0x3f0] sm:$0xff]
    %v2327 = vld [vmem:[#allocation2 + $0x3f8] sm:$0xff]
    %v2328 = vld [vmem:[#allocation2 + $0x400] sm:$0xff]
    %v2329 = vld [vmem:[#allocation2 + $0x408] sm:$0xff]
    %v2330 = vld [vmem:[#allocation2 + $0x410] sm:$0xff]
    %v2331 = vld [vmem:[#allocation2 + $0x418] sm:$0xff]
    %v2332 = vld [vmem:[#allocation2 + $0x420] sm:$0xff]
    %v2333 = vld [vmem:[#allocation2 + $0x428] sm:$0xff]
    %v2334 = vld [vmem:[#allocation2 + $0x430] sm:$0xff]
    %v2335 = vld [vmem:[#allocation2 + $0x438] sm:$0xff]
    %v2336 = vld [vmem:[#allocation2 + $0x440] sm:$0xff]
    %v2337 = vld [vmem:[#allocation2 + $0x448] sm:$0xff]
    %v2338 = vld [vmem:[#allocation2 + $0x450] sm:$0xff]
    %v2339 = vld [vmem:[#allocation2 + $0x458] sm:$0xff]
    %v2340 = vld [vmem:[#allocation2 + $0x460] sm:$0xff]
    %v2341 = vld [vmem:[#allocation2 + $0x468] sm:$0xff]
    %v2342 = vld [vmem:[#allocation2 + $0x470] sm:$0xff]
    %v2343 = vld [vmem:[#allocation2 + $0x478] sm:$0xff]
    %v2344 = vld [vmem:[#allocation2 + $0x480] sm:$0xff]
    %v2345 = vld [vmem:[#allocation2 + $0x488] sm:$0xff]
    %v2346 = vld [vmem:[#allocation2 + $0x490] sm:$0xff]
    %v2347 = vld [vmem:[#allocation2 + $0x498] sm:$0xff]
    %v2348 = vld [vmem:[#allocation2 + $0x4a0] sm:$0xff]
    %v2349 = vld [vmem:[#allocation2 + $0x4a8] sm:$0xff]
    %v2350 = vld [vmem:[#allocation2 + $0x4b0] sm:$0xff]
    %v2351 = vld [vmem:[#allocation2 + $0x4b8] sm:$0xff]
    %v2352 = vld [vmem:[#allocation2 + $0x4c0] sm:$0xff]
    %v2353 = vld [vmem:[#allocation2 + $0x4c8] sm:$0xff]
    %v2354 = vld [vmem:[#allocation2 + $0x4d0] sm:$0xff]
    %v2355 = vld [vmem:[#allocation2 + $0x4d8] sm:$0xff]
    %v2356 = vld [vmem:[#allocation2 + $0x4e0] sm:$0xff]
    %v2357 = vld [vmem:[#allocation2 + $0x4e8] sm:$0xff]
    %v2358 = vld [vmem:[#allocation2 + $0x4f0] sm:$0xff]
    %v2359 = vld [vmem:[#allocation2 + $0x4f8] sm:$0xff]
    %v2360 = vunpack.c.l.bf16 %v2200
    %v2361 = vunpack.c.l.bf16 %v2201
    %v2362 = vunpack.c.l.bf16 %v2202
    %v2363 = vunpack.c.l.bf16 %v2203
    %v2364 = vunpack.c.l.bf16 %v2204
    %v2365 = vunpack.c.l.bf16 %v2205
    %v2366 = vunpack.c.l.bf16 %v2206
    %v2367 = vunpack.c.l.bf16 %v2207
    %v2368 = vunpack.c.l.bf16 %v2208
    %v2369 = vunpack.c.l.bf16 %v2209
    %v2370 = vunpack.c.h.bf16 %v2200
    %v2371 = vunpack.c.h.bf16 %v2201
    %v2372 = vunpack.c.h.bf16 %v2202
    %v2373 = vunpack.c.h.bf16 %v2203
    %v2374 = vunpack.c.h.bf16 %v2204
    %v2375 = vunpack.c.h.bf16 %v2205
    %v2376 = vunpack.c.h.bf16 %v2206
    %v2377 = vunpack.c.h.bf16 %v2207
    %v2378 = vunpack.c.h.bf16 %v2208
    %v2379 = vunpack.c.h.bf16 %v2209
    %v2380 = vunpack.c.l.bf16 %v2210
    %v2381 = vunpack.c.l.bf16 %v2211
    %v2382 = vunpack.c.l.bf16 %v2212
    %v2383 = vunpack.c.l.bf16 %v2213
    %v2384 = vunpack.c.l.bf16 %v2214
    %v2385 = vunpack.c.l.bf16 %v2215
    %v2386 = vunpack.c.l.bf16 %v2216
    %v2387 = vunpack.c.l.bf16 %v2217
    %v2388 = vunpack.c.l.bf16 %v2218
    %v2389 = vunpack.c.l.bf16 %v2219
    %v2390 = vunpack.c.h.bf16 %v2210
    %v2391 = vunpack.c.h.bf16 %v2211
    %v2392 = vunpack.c.h.bf16 %v2212
    %v2393 = vunpack.c.h.bf16 %v2213
    %v2394 = vunpack.c.h.bf16 %v2214
    %v2395 = vunpack.c.h.bf16 %v2215
    %v2396 = vunpack.c.h.bf16 %v2216
    %v2397 = vunpack.c.h.bf16 %v2217
    %v2398 = vunpack.c.h.bf16 %v2218
    %v2399 = vunpack.c.h.bf16 %v2219
    %v2400 = vunpack.c.l.bf16 %v2220
    %v2401 = vunpack.c.l.bf16 %v2221
    %v2402 = vunpack.c.l.bf16 %v2222
    %v2403 = vunpack.c.l.bf16 %v2223
    %v2404 = vunpack.c.l.bf16 %v2224
    %v2405 = vunpack.c.l.bf16 %v2225
    %v2406 = vunpack.c.l.bf16 %v2226
    %v2407 = vunpack.c.l.bf16 %v2227
    %v2408 = vunpack.c.l.bf16 %v2228
    %v2409 = vunpack.c.l.bf16 %v2229
    %v2410 = vunpack.c.h.bf16 %v2220
    %v2411 = vunpack.c.h.bf16 %v2221
    %v2412 = vunpack.c.h.bf16 %v2222
    %v2413 = vunpack.c.h.bf16 %v2223
    %v2414 = vunpack.c.h.bf16 %v2224
    %v2415 = vunpack.c.h.bf16 %v2225
    %v2416 = vunpack.c.h.bf16 %v2226
    %v2417 = vunpack.c.h.bf16 %v2227
    %v2418 = vunpack.c.h.bf16 %v2228
    %v2419 = vunpack.c.h.bf16 %v2229
    %v2420 = vunpack.c.l.bf16 %v2230
    %v2421 = vunpack.c.l.bf16 %v2231
    %v2422 = vunpack.c.l.bf16 %v2232
    %v2423 = vunpack.c.l.bf16 %v2233
    %v2424 = vunpack.c.l.bf16 %v2234
    %v2425 = vunpack.c.l.bf16 %v2235
    %v2426 = vunpack.c.l.bf16 %v2236
    %v2427 = vunpack.c.l.bf16 %v2237
    %v2428 = vunpack.c.l.bf16 %v2238
    %v2429 = vunpack.c.l.bf16 %v2239
    %v2430 = vunpack.c.h.bf16 %v2230
    %v2431 = vunpack.c.h.bf16 %v2231
    %v2432 = vunpack.c.h.bf16 %v2232
    %v2433 = vunpack.c.h.bf16 %v2233
    %v2434 = vunpack.c.h.bf16 %v2234
    %v2435 = vunpack.c.h.bf16 %v2235
    %v2436 = vunpack.c.h.bf16 %v2236
    %v2437 = vunpack.c.h.bf16 %v2237
    %v2438 = vunpack.c.h.bf16 %v2238
    %v2439 = vunpack.c.h.bf16 %v2239
    %v2440 = vunpack.c.l.bf16 %v2240
    %v2441 = vunpack.c.l.bf16 %v2241
    %v2442 = vunpack.c.l.bf16 %v2242
    %v2443 = vunpack.c.l.bf16 %v2243
    %v2444 = vunpack.c.l.bf16 %v2244
    %v2445 = vunpack.c.l.bf16 %v2245
    %v2446 = vunpack.c.l.bf16 %v2246
    %v2447 = vunpack.c.l.bf16 %v2247
    %v2448 = vunpack.c.l.bf16 %v2248
    %v2449 = vunpack.c.l.bf16 %v2249
    %v2450 = vunpack.c.h.bf16 %v2240
    %v2451 = vunpack.c.h.bf16 %v2241
    %v2452 = vunpack.c.h.bf16 %v2242
    %v2453 = vunpack.c.h.bf16 %v2243
    %v2454 = vunpack.c.h.bf16 %v2244
    %v2455 = vunpack.c.h.bf16 %v2245
    %v2456 = vunpack.c.h.bf16 %v2246
    %v2457 = vunpack.c.h.bf16 %v2247
    %v2458 = vunpack.c.h.bf16 %v2248
    %v2459 = vunpack.c.h.bf16 %v2249
    %v2460 = vunpack.c.l.bf16 %v2250
    %v2461 = vunpack.c.l.bf16 %v2251
    %v2462 = vunpack.c.l.bf16 %v2252
    %v2463 = vunpack.c.l.bf16 %v2253
    %v2464 = vunpack.c.l.bf16 %v2254
    %v2465 = vunpack.c.l.bf16 %v2255
    %v2466 = vunpack.c.l.bf16 %v2256
    %v2467 = vunpack.c.l.bf16 %v2257
    %v2468 = vunpack.c.l.bf16 %v2258
    %v2469 = vunpack.c.l.bf16 %v2259
    %v2470 = vunpack.c.h.bf16 %v2250
    %v2471 = vunpack.c.h.bf16 %v2251
    %v2472 = vunpack.c.h.bf16 %v2252
    %v2473 = vunpack.c.h.bf16 %v2253
    %v2474 = vunpack.c.h.bf16 %v2254
    %v2475 = vunpack.c.h.bf16 %v2255
    %v2476 = vunpack.c.h.bf16 %v2256
    %v2477 = vunpack.c.h.bf16 %v2257
    %v2478 = vunpack.c.h.bf16 %v2258
    %v2479 = vunpack.c.h.bf16 %v2259
    %v2480 = vunpack.c.l.bf16 %v2260
    %v2481 = vunpack.c.l.bf16 %v2261
    %v2482 = vunpack.c.l.bf16 %v2262
    %v2483 = vunpack.c.l.bf16 %v2263
    %v2484 = vunpack.c.l.bf16 %v2264
    %v2485 = vunpack.c.l.bf16 %v2265
    %v2486 = vunpack.c.l.bf16 %v2266
    %v2487 = vunpack.c.l.bf16 %v2267
    %v2488 = vunpack.c.l.bf16 %v2268
    %v2489 = vunpack.c.l.bf16 %v2269
    %v2490 = vunpack.c.h.bf16 %v2260
    %v2491 = vunpack.c.h.bf16 %v2261
    %v2492 = vunpack.c.h.bf16 %v2262
    %v2493 = vunpack.c.h.bf16 %v2263
    %v2494 = vunpack.c.h.bf16 %v2264
    %v2495 = vunpack.c.h.bf16 %v2265
    %v2496 = vunpack.c.h.bf16 %v2266
    %v2497 = vunpack.c.h.bf16 %v2267
    %v2498 = vunpack.c.h.bf16 %v2268
    %v2499 = vunpack.c.h.bf16 %v2269
    %v2500 = vunpack.c.l.bf16 %v2270
    %v2501 = vunpack.c.l.bf16 %v2271
    %v2502 = vunpack.c.l.bf16 %v2272
    %v2503 = vunpack.c.l.bf16 %v2273
    %v2504 = vunpack.c.l.bf16 %v2274
    %v2505 = vunpack.c.l.bf16 %v2275
    %v2506 = vunpack.c.l.bf16 %v2276
    %v2507 = vunpack.c.l.bf16 %v2277
    %v2508 = vunpack.c.l.bf16 %v2278
    %v2509 = vunpack.c.l.bf16 %v2279
    %v2510 = vunpack.c.h.bf16 %v2270
    %v2511 = vunpack.c.h.bf16 %v2271
    %v2512 = vunpack.c.h.bf16 %v2272
    %v2513 = vunpack.c.h.bf16 %v2273
    %v2514 = vunpack.c.h.bf16 %v2274
    %v2515 = vunpack.c.h.bf16 %v2275
    %v2516 = vunpack.c.h.bf16 %v2276
    %v2517 = vunpack.c.h.bf16 %v2277
    %v2518 = vunpack.c.h.bf16 %v2278
    %v2519 = vunpack.c.h.bf16 %v2279
    %v2520 = vunpack.c.l.bf16 %v2280
    %v2521 = vunpack.c.l.bf16 %v2281
    %v2522 = vunpack.c.l.bf16 %v2282
    %v2523 = vunpack.c.l.bf16 %v2283
    %v2524 = vunpack.c.l.bf16 %v2284
    %v2525 = vunpack.c.l.bf16 %v2285
    %v2526 = vunpack.c.l.bf16 %v2286
    %v2527 = vunpack.c.l.bf16 %v2287
    %v2528 = vunpack.c.l.bf16 %v2288
    %v2529 = vunpack.c.l.bf16 %v2289
    %v2530 = vunpack.c.h.bf16 %v2280
    %v2531 = vunpack.c.h.bf16 %v2281
    %v2532 = vunpack.c.h.bf16 %v2282
    %v2533 = vunpack.c.h.bf16 %v2283
    %v2534 = vunpack.c.h.bf16 %v2284
    %v2535 = vunpack.c.h.bf16 %v2285
    %v2536 = vunpack.c.h.bf16 %v2286
    %v2537 = vunpack.c.h.bf16 %v2287
    %v2538 = vunpack.c.h.bf16 %v2288
    %v2539 = vunpack.c.h.bf16 %v2289
    %v2540 = vunpack.c.l.bf16 %v2290
    %v2541 = vunpack.c.l.bf16 %v2291
    %v2542 = vunpack.c.l.bf16 %v2292
    %v2543 = vunpack.c.l.bf16 %v2293
    %v2544 = vunpack.c.l.bf16 %v2294
    %v2545 = vunpack.c.l.bf16 %v2295
    %v2546 = vunpack.c.l.bf16 %v2296
    %v2547 = vunpack.c.l.bf16 %v2297
    %v2548 = vunpack.c.l.bf16 %v2298
    %v2549 = vunpack.c.l.bf16 %v2299
    %v2550 = vunpack.c.h.bf16 %v2290
    %v2551 = vunpack.c.h.bf16 %v2291
    %v2552 = vunpack.c.h.bf16 %v2292
    %v2553 = vunpack.c.h.bf16 %v2293
    %v2554 = vunpack.c.h.bf16 %v2294
    %v2555 = vunpack.c.h.bf16 %v2295
    %v2556 = vunpack.c.h.bf16 %v2296
    %v2557 = vunpack.c.h.bf16 %v2297
    %v2558 = vunpack.c.h.bf16 %v2298
    %v2559 = vunpack.c.h.bf16 %v2299
    %v2560 = vunpack.c.l.bf16 %v2300
    %v2561 = vunpack.c.l.bf16 %v2301
    %v2562 = vunpack.c.l.bf16 %v2302
    %v2563 = vunpack.c.l.bf16 %v2303
    %v2564 = vunpack.c.l.bf16 %v2304
    %v2565 = vunpack.c.l.bf16 %v2305
    %v2566 = vunpack.c.l.bf16 %v2306
    %v2567 = vunpack.c.l.bf16 %v2307
    %v2568 = vunpack.c.l.bf16 %v2308
    %v2569 = vunpack.c.l.bf16 %v2309
    %v2570 = vunpack.c.h.bf16 %v2300
    %v2571 = vunpack.c.h.bf16 %v2301
    %v2572 = vunpack.c.h.bf16 %v2302
    %v2573 = vunpack.c.h.bf16 %v2303
    %v2574 = vunpack.c.h.bf16 %v2304
    %v2575 = vunpack.c.h.bf16 %v2305
    %v2576 = vunpack.c.h.bf16 %v2306
    %v2577 = vunpack.c.h.bf16 %v2307
    %v2578 = vunpack.c.h.bf16 %v2308
    %v2579 = vunpack.c.h.bf16 %v2309
    %v2580 = vunpack.c.l.bf16 %v2310
    %v2581 = vunpack.c.l.bf16 %v2311
    %v2582 = vunpack.c.l.bf16 %v2312
    %v2583 = vunpack.c.l.bf16 %v2313
    %v2584 = vunpack.c.l.bf16 %v2314
    %v2585 = vunpack.c.l.bf16 %v2315
    %v2586 = vunpack.c.l.bf16 %v2316
    %v2587 = vunpack.c.l.bf16 %v2317
    %v2588 = vunpack.c.l.bf16 %v2318
    %v2589 = vunpack.c.l.bf16 %v2319
    %v2590 = vunpack.c.h.bf16 %v2310
    %v2591 = vunpack.c.h.bf16 %v2311
    %v2592 = vunpack.c.h.bf16 %v2312
    %v2593 = vunpack.c.h.bf16 %v2313
    %v2594 = vunpack.c.h.bf16 %v2314
    %v2595 = vunpack.c.h.bf16 %v2315
    %v2596 = vunpack.c.h.bf16 %v2316
    %v2597 = vunpack.c.h.bf16 %v2317
    %v2598 = vunpack.c.h.bf16 %v2318
    %v2599 = vunpack.c.h.bf16 %v2319
    %v2600 = vunpack.c.l.bf16 %v2320
    %v2601 = vunpack.c.l.bf16 %v2321
    %v2602 = vunpack.c.l.bf16 %v2322
    %v2603 = vunpack.c.l.bf16 %v2323
    %v2604 = vunpack.c.l.bf16 %v2324
    %v2605 = vunpack.c.l.bf16 %v2325
    %v2606 = vunpack.c.l.bf16 %v2326
    %v2607 = vunpack.c.l.bf16 %v2327
    %v2608 = vunpack.c.l.bf16 %v2328
    %v2609 = vunpack.c.l.bf16 %v2329
    %v2610 = vunpack.c.h.bf16 %v2320
    %v2611 = vunpack.c.h.bf16 %v2321
    %v2612 = vunpack.c.h.bf16 %v2322
    %v2613 = vunpack.c.h.bf16 %v2323
    %v2614 = vunpack.c.h.bf16 %v2324
    %v2615 = vunpack.c.h.bf16 %v2325
    %v2616 = vunpack.c.h.bf16 %v2326
    %v2617 = vunpack.c.h.bf16 %v2327
    %v2618 = vunpack.c.h.bf16 %v2328
    %v2619 = vunpack.c.h.bf16 %v2329
    %v2620 = vunpack.c.l.bf16 %v2330
    %v2621 = vunpack.c.l.bf16 %v2331
    %v2622 = vunpack.c.l.bf16 %v2332
    %v2623 = vunpack.c.l.bf16 %v2333
    %v2624 = vunpack.c.l.bf16 %v2334
    %v2625 = vunpack.c.l.bf16 %v2335
    %v2626 = vunpack.c.l.bf16 %v2336
    %v2627 = vunpack.c.l.bf16 %v2337
    %v2628 = vunpack.c.l.bf16 %v2338
    %v2629 = vunpack.c.l.bf16 %v2339
    %v2630 = vunpack.c.h.bf16 %v2330
    %v2631 = vunpack.c.h.bf16 %v2331
    %v2632 = vunpack.c.h.bf16 %v2332
    %v2633 = vunpack.c.h.bf16 %v2333
    %v2634 = vunpack.c.h.bf16 %v2334
    %v2635 = vunpack.c.h.bf16 %v2335
    %v2636 = vunpack.c.h.bf16 %v2336
    %v2637 = vunpack.c.h.bf16 %v2337
    %v2638 = vunpack.c.h.bf16 %v2338
    %v2639 = vunpack.c.h.bf16 %v2339
    %v2640 = vunpack.c.l.bf16 %v2340
    %v2641 = vunpack.c.l.bf16 %v2341
    %v2642 = vunpack.c.l.bf16 %v2342
    %v2643 = vunpack.c.l.bf16 %v2343
    %v2644 = vunpack.c.l.bf16 %v2344
    %v2645 = vunpack.c.l.bf16 %v2345
    %v2646 = vunpack.c.l.bf16 %v2346
    %v2647 = vunpack.c.l.bf16 %v2347
    %v2648 = vunpack.c.l.bf16 %v2348
    %v2649 = vunpack.c.l.bf16 %v2349
    %v2650 = vunpack.c.h.bf16 %v2340
    %v2651 = vunpack.c.h.bf16 %v2341
    %v2652 = vunpack.c.h.bf16 %v2342
    %v2653 = vunpack.c.h.bf16 %v2343
    %v2654 = vunpack.c.h.bf16 %v2344
    %v2655 = vunpack.c.h.bf16 %v2345
    %v2656 = vunpack.c.h.bf16 %v2346
    %v2657 = vunpack.c.h.bf16 %v2347
    %v2658 = vunpack.c.h.bf16 %v2348
    %v2659 = vunpack.c.h.bf16 %v2349
    %v2660 = vunpack.c.l.bf16 %v2350
    %v2661 = vunpack.c.l.bf16 %v2351
    %v2662 = vunpack.c.l.bf16 %v2352
    %v2663 = vunpack.c.l.bf16 %v2353
    %v2664 = vunpack.c.l.bf16 %v2354
    %v2665 = vunpack.c.l.bf16 %v2355
    %v2666 = vunpack.c.l.bf16 %v2356
    %v2667 = vunpack.c.l.bf16 %v2357
    %v2668 = vunpack.c.l.bf16 %v2358
    %v2669 = vunpack.c.l.bf16 %v2359
    %v2670 = vunpack.c.h.bf16 %v2350
    %v2671 = vunpack.c.h.bf16 %v2351
    %v2672 = vunpack.c.h.bf16 %v2352
    %v2673 = vunpack.c.h.bf16 %v2353
    %v2674 = vunpack.c.h.bf16 %v2354
    %v2675 = vunpack.c.h.bf16 %v2355
    %v2676 = vunpack.c.h.bf16 %v2356
    %v2677 = vunpack.c.h.bf16 %v2357
    %v2678 = vunpack.c.h.bf16 %v2358
    %v2679 = vunpack.c.h.bf16 %v2359
    %v2680 = vld [vmem:[#allocation19] sm:$0xff]
    %v2681 = vld [vmem:[#allocation19 + $0x8] sm:$0x3]
    %v2684 = vlaneseq
    %v2685 = vshrl.u32 %v2684, 7
    %v2686 = vsub.s32 0, %v2685
    %v2687 = vrot.slane %v2680, %v2686
    %v2688 = vlaneseq
    %v2689 = vshrl.u32 %v2688, 7
    %v2690 = vsub.s32 1, %v2689
    %v2691 = vrot.slane %v2680, %v2690
    %v2692 = vlaneseq
    %v2693 = vshrl.u32 %v2692, 7
    %v2694 = vsub.s32 2, %v2693
    %v2695 = vrot.slane %v2680, %v2694
    %v2696 = vlaneseq
    %v2697 = vshrl.u32 %v2696, 7
    %v2698 = vsub.s32 3, %v2697
    %v2699 = vrot.slane %v2680, %v2698
    %v2700 = vlaneseq
    %v2701 = vshrl.u32 %v2700, 7
    %v2702 = vsub.s32 4, %v2701
    %v2703 = vrot.slane %v2680, %v2702
    %v2704 = vlaneseq
    %v2705 = vshrl.u32 %v2704, 7
    %v2706 = vsub.s32 5, %v2705
    %v2707 = vrot.slane %v2680, %v2706
    %v2708 = vlaneseq
    %v2709 = vshrl.u32 %v2708, 7
    %v2710 = vsub.s32 6, %v2709
    %v2711 = vrot.slane %v2680, %v2710
    %v2712 = vlaneseq
    %v2713 = vshrl.u32 %v2712, 7
    %v2714 = vsub.s32 7, %v2713
    %v2715 = vrot.slane %v2680, %v2714
    %v2716 = vlaneseq
    %v2717 = vshrl.u32 %v2716, 7
    %v2718 = vsub.s32 0, %v2717
    %v2719 = vrot.slane %v2681, %v2718
    %v2720 = vlaneseq
    %v2721 = vshrl.u32 %v2720, 7
    %v2722 = vsub.s32 1, %v2721
    %v2723 = vrot.slane %v2681, %v2722
    %2734 = vmatprep.subr.mxu0 %v2361
    %2735 = vmatpush1.msra.mxu0 %v2360
    %2736 = vmatprep.subr.mxu0 %v2371
    %2737 = vmatpush1.msra.mxu0 %v2370
    %2738 = vmatprep.subr.mxu0 %v2381
    %2739 = vmatpush1.msra.mxu0 %v2380
    %2740 = vmatprep.subr.mxu0 %v2391
    %2741 = vmatpush1.msra.mxu0 %v2390
    %2742 = vmatprep.subr.mxu0 %v2401
    %2743 = vmatpush1.msra.mxu0 %v2400
    %2744 = vmatprep.subr.mxu0 %v2411
    %2745 = vmatpush1.msra.mxu0 %v2410
    %2746 = vmatprep.subr.mxu0 %v2421
    %2747 = vmatpush1.msra.mxu0 %v2420
    %2748 = vmatprep.subr.mxu0 %v2431
    %2749 = vmatpush1.msra.mxu0 %v2430
    %2750 = vmatprep.subr.mxu0 %v2441
    %2751 = vmatpush1.msra.mxu0 %v2440
    %2752 = vmatprep.subr.mxu0 %v2451
    %2753 = vmatpush1.msra.mxu0 %v2450
    %2754 = vmatprep.subr.mxu0 %v2461
    %2755 = vmatpush1.msra.mxu0 %v2460
    %2756 = vmatprep.subr.mxu0 %v2471
    %2757 = vmatpush1.msra.mxu0 %v2470
    %2758 = vmatprep.subr.mxu0 %v2481
    %2759 = vmatpush1.msra.mxu0 %v2480
    %2760 = vmatprep.subr.mxu0 %v2491
    %2761 = vmatpush1.msra.mxu0 %v2490
    %2762 = vmatprep.subr.mxu0 %v2501
    %2763 = vmatpush1.msra.mxu0 %v2500
    %2764 = vmatprep.subr.mxu0 %v2511
    %2765 = vmatpush1.msra.mxu0 %v2510
    %2766 = vmatprep.subr.mxu0 %v2521
    %2767 = vmatpush1.msra.mxu0 %v2520
    %2768 = vmatprep.subr.mxu0 %v2531
    %2769 = vmatpush1.msra.mxu0 %v2530
    %2770 = vmatprep.subr.mxu0 %v2541
    %2771 = vmatpush1.msra.mxu0 %v2540
    %2772 = vmatprep.subr.mxu0 %v2551
    %2773 = vmatpush1.msra.mxu0 %v2550
    %2774 = vmatprep.subr.mxu0 %v2561
    %2775 = vmatpush1.msra.mxu0 %v2560
    %2776 = vmatprep.subr.mxu0 %v2571
    %2777 = vmatpush1.msra.mxu0 %v2570
    %2778 = vmatprep.subr.mxu0 %v2581
    %2779 = vmatpush1.msra.mxu0 %v2580
    %2780 = vmatprep.subr.mxu0 %v2591
    %2781 = vmatpush1.msra.mxu0 %v2590
    %2782 = vmatprep.subr.mxu0 %v2601
    %2783 = vmatpush1.msra.mxu0 %v2600
    %2784 = vmatprep.subr.mxu0 %v2611
    %2785 = vmatpush1.msra.mxu0 %v2610
    %2786 = vmatprep.subr.mxu0 %v2621
    %2787 = vmatpush1.msra.mxu0 %v2620
    %2788 = vmatprep.subr.mxu0 %v2631
    %2789 = vmatpush1.msra.mxu0 %v2630
    %2790 = vmatprep.subr.mxu0 %v2641
    %2791 = vmatpush1.msra.mxu0 %v2640
    %2792 = vmatprep.subr.mxu0 %v2651
    %2793 = vmatpush1.msra.mxu0 %v2650
    %2794 = vmatprep.subr.mxu0 %v2661
    %2795 = vmatpush1.msra.mxu0 %v2660
    %2796 = vmatprep.subr.mxu0 %v2671
    %2797 = vmatpush1.msra.mxu0 %v2670
    %2798 = vmatprep.mubr.f32.mxu0 %v2195
    %2799 = vmatmul.mubr.f32.gmra.mrb[0].mxu0 %v2194
    %v2800 = vpop.f32.mrb[0].mxu0
    %v2801 = vadd.f32 %v2687, %v2800
    %v2802 = vpop.f32.mrb[0].mxu0
    %v2803 = vadd.f32 %v2691, %v2802
    %2804 = vdwg.mxu0
    %2805 = vmatprep.subr.mxu0 %v2363
    %2806 = vmatpush1.msra.mxu0 %v2362
    %2807 = vmatprep.subr.mxu0 %v2373
    %2808 = vmatpush1.msra.mxu0 %v2372
    %2809 = vmatprep.subr.mxu0 %v2383
    %2810 = vmatpush1.msra.mxu0 %v2382
    %2811 = vmatprep.subr.mxu0 %v2393
    %2812 = vmatpush1.msra.mxu0 %v2392
    %2813 = vmatprep.subr.mxu0 %v2403
    %2814 = vmatpush1.msra.mxu0 %v2402
    %2815 = vmatprep.subr.mxu0 %v2413
    %2816 = vmatpush1.msra.mxu0 %v2412
    %2817 = vmatprep.subr.mxu0 %v2423
    %2818 = vmatpush1.msra.mxu0 %v2422
    %2819 = vmatprep.subr.mxu0 %v2433
    %2820 = vmatpush1.msra.mxu0 %v2432
    %2821 = vmatprep.subr.mxu0 %v2443
    %2822 = vmatpush1.msra.mxu0 %v2442
    %2823 = vmatprep.subr.mxu0 %v2453
    %2824 = vmatpush1.msra.mxu0 %v2452
    %2825 = vmatprep.subr.mxu0 %v2463
    %2826 = vmatpush1.msra.mxu0 %v2462
    %2827 = vmatprep.subr.mxu0 %v2473
    %2828 = vmatpush1.msra.mxu0 %v2472
    %2829 = vmatprep.subr.mxu0 %v2483
    %2830 = vmatpush1.msra.mxu0 %v2482
    %2831 = vmatprep.subr.mxu0 %v2493
    %2832 = vmatpush1.msra.mxu0 %v2492
    %2833 = vmatprep.subr.mxu0 %v2503
    %2834 = vmatpush1.msra.mxu0 %v2502
    %2835 = vmatprep.subr.mxu0 %v2513
    %2836 = vmatpush1.msra.mxu0 %v2512
    %2837 = vmatprep.subr.mxu0 %v2523
    %2838 = vmatpush1.msra.mxu0 %v2522
    %2839 = vmatprep.subr.mxu0 %v2533
    %2840 = vmatpush1.msra.mxu0 %v2532
    %2841 = vmatprep.subr.mxu0 %v2543
    %2842 = vmatpush1.msra.mxu0 %v2542
    %2843 = vmatprep.subr.mxu0 %v2553
    %2844 = vmatpush1.msra.mxu0 %v2552
    %2845 = vmatprep.subr.mxu0 %v2563
    %2846 = vmatpush1.msra.mxu0 %v2562
    %2847 = vmatprep.subr.mxu0 %v2573
    %2848 = vmatpush1.msra.mxu0 %v2572
    %2849 = vmatprep.subr.mxu0 %v2583
    %2850 = vmatpush1.msra.mxu0 %v2582
    %2851 = vmatprep.subr.mxu0 %v2593
    %2852 = vmatpush1.msra.mxu0 %v2592
    %2853 = vmatprep.subr.mxu0 %v2603
    %2854 = vmatpush1.msra.mxu0 %v2602
    %2855 = vmatprep.subr.mxu0 %v2613
    %2856 = vmatpush1.msra.mxu0 %v2612
    %2857 = vmatprep.subr.mxu0 %v2623
    %2858 = vmatpush1.msra.mxu0 %v2622
    %2859 = vmatprep.subr.mxu0 %v2633
    %2860 = vmatpush1.msra.mxu0 %v2632
    %2861 = vmatprep.subr.mxu0 %v2643
    %2862 = vmatpush1.msra.mxu0 %v2642
    %2863 = vmatprep.subr.mxu0 %v2653
    %2864 = vmatpush1.msra.mxu0 %v2652
    %2865 = vmatprep.subr.mxu0 %v2663
    %2866 = vmatpush1.msra.mxu0 %v2662
    %2867 = vmatprep.subr.mxu0 %v2673
    %2868 = vmatpush1.msra.mxu0 %v2672
    %2869 = vmatprep.mubr.f32.mxu0 %v2195
    %2870 = vmatmul.mubr.f32.gmra.mrb[0].mxu0 %v2194
    %v2871 = vpop.f32.mrb[0].mxu0
    %v2872 = vadd.f32 %v2695, %v2871
    %v2873 = vpop.f32.mrb[0].mxu0
    %v2874 = vadd.f32 %v2699, %v2873
    %2875 = vdwg.mxu0
    %2876 = vmatprep.subr.mxu0 %v2365
    %2877 = vmatpush1.msra.mxu0 %v2364
    %2878 = vmatprep.subr.mxu0 %v2375
    %2879 = vmatpush1.msra.mxu0 %v2374
    %2880 = vmatprep.subr.mxu0 %v2385
    %2881 = vmatpush1.msra.mxu0 %v2384
    %2882 = vmatprep.subr.mxu0 %v2395
    %2883 = vmatpush1.msra.mxu0 %v2394
    %2884 = vmatprep.subr.mxu0 %v2405
    %2885 = vmatpush1.msra.mxu0 %v2404
    %2886 = vmatprep.subr.mxu0 %v2415
    %2887 = vmatpush1.msra.mxu0 %v2414
    %2888 = vmatprep.subr.mxu0 %v2425
    %2889 = vmatpush1.msra.mxu0 %v2424
    %2890 = vmatprep.subr.mxu0 %v2435
    %2891 = vmatpush1.msra.mxu0 %v2434
    %2892 = vmatprep.subr.mxu0 %v2445
    %2893 = vmatpush1.msra.mxu0 %v2444
    %2894 = vmatprep.subr.mxu0 %v2455
    %2895 = vmatpush1.msra.mxu0 %v2454
    %2896 = vmatprep.subr.mxu0 %v2465
    %2897 = vmatpush1.msra.mxu0 %v2464
    %2898 = vmatprep.subr.mxu0 %v2475
    %2899 = vmatpush1.msra.mxu0 %v2474
    %2900 = vmatprep.subr.mxu0 %v2485
    %2901 = vmatpush1.msra.mxu0 %v2484
    %2902 = vmatprep.subr.mxu0 %v2495
    %2903 = vmatpush1.msra.mxu0 %v2494
    %2904 = vmatprep.subr.mxu0 %v2505
    %2905 = vmatpush1.msra.mxu0 %v2504
    %2906 = vmatprep.subr.mxu0 %v2515
    %2907 = vmatpush1.msra.mxu0 %v2514
    %2908 = vmatprep.subr.mxu0 %v2525
    %2909 = vmatpush1.msra.mxu0 %v2524
    %2910 = vmatprep.subr.mxu0 %v2535
    %2911 = vmatpush1.msra.mxu0 %v2534
    %2912 = vmatprep.subr.mxu0 %v2545
    %2913 = vmatpush1.msra.mxu0 %v2544
    %2914 = vmatprep.subr.mxu0 %v2555
    %2915 = vmatpush1.msra.mxu0 %v2554
    %2916 = vmatprep.subr.mxu0 %v2565
    %2917 = vmatpush1.msra.mxu0 %v2564
    %2918 = vmatprep.subr.mxu0 %v2575
    %2919 = vmatpush1.msra.mxu0 %v2574
    %2920 = vmatprep.subr.mxu0 %v2585
    %2921 = vmatpush1.msra.mxu0 %v2584
    %2922 = vmatprep.subr.mxu0 %v2595
    %2923 = vmatpush1.msra.mxu0 %v2594
    %2924 = vmatprep.subr.mxu0 %v2605
    %2925 = vmatpush1.msra.mxu0 %v2604
    %2926 = vmatprep.subr.mxu0 %v2615
    %2927 = vmatpush1.msra.mxu0 %v2614
    %2928 = vmatprep.subr.mxu0 %v2625
    %2929 = vmatpush1.msra.mxu0 %v2624
    %2930 = vmatprep.subr.mxu0 %v2635
    %2931 = vmatpush1.msra.mxu0 %v2634
    %2932 = vmatprep.subr.mxu0 %v2645
    %2933 = vmatpush1.msra.mxu0 %v2644
    %2934 = vmatprep.subr.mxu0 %v2655
    %2935 = vmatpush1.msra.mxu0 %v2654
    %2936 = vmatprep.subr.mxu0 %v2665
    %2937 = vmatpush1.msra.mxu0 %v2664
    %2938 = vmatprep.subr.mxu0 %v2675
    %2939 = vmatpush1.msra.mxu0 %v2674
    %2940 = vmatprep.mubr.f32.mxu0 %v2195
    %2941 = vmatmul.mubr.f32.gmra.mrb[0].mxu0 %v2194
    %v2942 = vpop.f32.mrb[0].mxu0
    %v2943 = vadd.f32 %v2703, %v2942
    %v2944 = vpop.f32.mrb[0].mxu0
    %v2945 = vadd.f32 %v2707, %v2944
    %2946 = vdwg.mxu0
    %2947 = vmatprep.subr.mxu0 %v2367
    %2948 = vmatpush1.msra.mxu0 %v2366
    %2949 = vmatprep.subr.mxu0 %v2377
    %2950 = vmatpush1.msra.mxu0 %v2376
    %2951 = vmatprep.subr.mxu0 %v2387
    %2952 = vmatpush1.msra.mxu0 %v2386
    %2953 = vmatprep.subr.mxu0 %v2397
    %2954 = vmatpush1.msra.mxu0 %v2396
    %2955 = vmatprep.subr.mxu0 %v2407
    %2956 = vmatpush1.msra.mxu0 %v2406
    %2957 = vmatprep.subr.mxu0 %v2417
    %2958 = vmatpush1.msra.mxu0 %v2416
    %2959 = vmatprep.subr.mxu0 %v2427
    %2960 = vmatpush1.msra.mxu0 %v2426
    %2961 = vmatprep.subr.mxu0 %v2437
    %2962 = vmatpush1.msra.mxu0 %v2436
    %2963 = vmatprep.subr.mxu0 %v2447
    %2964 = vmatpush1.msra.mxu0 %v2446
    %2965 = vmatprep.subr.mxu0 %v2457
    %2966 = vmatpush1.msra.mxu0 %v2456
    %2967 = vmatprep.subr.mxu0 %v2467
    %2968 = vmatpush1.msra.mxu0 %v2466
    %2969 = vmatprep.subr.mxu0 %v2477
    %2970 = vmatpush1.msra.mxu0 %v2476
    %2971 = vmatprep.subr.mxu0 %v2487
    %2972 = vmatpush1.msra.mxu0 %v2486
    %2973 = vmatprep.subr.mxu0 %v2497
    %2974 = vmatpush1.msra.mxu0 %v2496
    %2975 = vmatprep.subr.mxu0 %v2507
    %2976 = vmatpush1.msra.mxu0 %v2506
    %2977 = vmatprep.subr.mxu0 %v2517
    %2978 = vmatpush1.msra.mxu0 %v2516
    %2979 = vmatprep.subr.mxu0 %v2527
    %2980 = vmatpush1.msra.mxu0 %v2526
    %2981 = vmatprep.subr.mxu0 %v2537
    %2982 = vmatpush1.msra.mxu0 %v2536
    %2983 = vmatprep.subr.mxu0 %v2547
    %2984 = vmatpush1.msra.mxu0 %v2546
    %2985 = vmatprep.subr.mxu0 %v2557
    %2986 = vmatpush1.msra.mxu0 %v2556
    %2987 = vmatprep.subr.mxu0 %v2567
    %2988 = vmatpush1.msra.mxu0 %v2566
    %2989 = vmatprep.subr.mxu0 %v2577
    %2990 = vmatpush1.msra.mxu0 %v2576
    %2991 = vmatprep.subr.mxu0 %v2587
    %2992 = vmatpush1.msra.mxu0 %v2586
    %2993 = vmatprep.subr.mxu0 %v2597
    %2994 = vmatpush1.msra.mxu0 %v2596
    %2995 = vmatprep.subr.mxu0 %v2607
    %2996 = vmatpush1.msra.mxu0 %v2606
    %2997 = vmatprep.subr.mxu0 %v2617
    %2998 = vmatpush1.msra.mxu0 %v2616
    %2999 = vmatprep.subr.mxu0 %v2627
    %3000 = vmatpush1.msra.mxu0 %v2626
    %3001 = vmatprep.subr.mxu0 %v2637
    %3002 = vmatpush1.msra.mxu0 %v2636
    %3003 = vmatprep.subr.mxu0 %v2647
    %3004 = vmatpush1.msra.mxu0 %v2646
    %3005 = vmatprep.subr.mxu0 %v2657
    %3006 = vmatpush1.msra.mxu0 %v2656
    %3007 = vmatprep.subr.mxu0 %v2667
    %3008 = vmatpush1.msra.mxu0 %v2666
    %3009 = vmatprep.subr.mxu0 %v2677
    %3010 = vmatpush1.msra.mxu0 %v2676
    %3011 = vmatprep.mubr.f32.mxu0 %v2195
    %3012 = vmatmul.mubr.f32.gmra.mrb[0].mxu0 %v2194
    %v3013 = vpop.f32.mrb[0].mxu0
    %v3014 = vadd.f32 %v2711, %v3013
    %v3015 = vpop.f32.mrb[0].mxu0
    %v3016 = vadd.f32 %v2715, %v3015
    %3017 = vdwg.mxu0
    %3018 = vmatprep.subr.mxu0 %v2369
    %3019 = vmatpush1.msra.mxu0 %v2368
    %3020 = vmatprep.subr.mxu0 %v2379
    %3021 = vmatpush1.msra.mxu0 %v2378
    %3022 = vmatprep.subr.mxu0 %v2389
    %3023 = vmatpush1.msra.mxu0 %v2388
    %3024 = vmatprep.subr.mxu0 %v2399
    %3025 = vmatpush1.msra.mxu0 %v2398
    %3026 = vmatprep.subr.mxu0 %v2409
    %3027 = vmatpush1.msra.mxu0 %v2408
    %3028 = vmatprep.subr.mxu0 %v2419
    %3029 = vmatpush1.msra.mxu0 %v2418
    %3030 = vmatprep.subr.mxu0 %v2429
    %3031 = vmatpush1.msra.mxu0 %v2428
    %3032 = vmatprep.subr.mxu0 %v2439
    %3033 = vmatpush1.msra.mxu0 %v2438
    %3034 = vmatprep.subr.mxu0 %v2449
    %3035 = vmatpush1.msra.mxu0 %v2448
    %3036 = vmatprep.subr.mxu0 %v2459
    %3037 = vmatpush1.msra.mxu0 %v2458
    %3038 = vmatprep.subr.mxu0 %v2469
    %3039 = vmatpush1.msra.mxu0 %v2468
    %3040 = vmatprep.subr.mxu0 %v2479
    %3041 = vmatpush1.msra.mxu0 %v2478
    %3042 = vmatprep.subr.mxu0 %v2489
    %3043 = vmatpush1.msra.mxu0 %v2488
    %3044 = vmatprep.subr.mxu0 %v2499
    %3045 = vmatpush1.msra.mxu0 %v2498
    %3046 = vmatprep.subr.mxu0 %v2509
    %3047 = vmatpush1.msra.mxu0 %v2508
    %3048 = vmatprep.subr.mxu0 %v2519
    %3049 = vmatpush1.msra.mxu0 %v2518
    %3050 = vmatprep.subr.mxu0 %v2529
    %3051 = vmatpush1.msra.mxu0 %v2528
    %3052 = vmatprep.subr.mxu0 %v2539
    %3053 = vmatpush1.msra.mxu0 %v2538
    %3054 = vmatprep.subr.mxu0 %v2549
    %3055 = vmatpush1.msra.mxu0 %v2548
    %3056 = vmatprep.subr.mxu0 %v2559
    %3057 = vmatpush1.msra.mxu0 %v2558
    %3058 = vmatprep.subr.mxu0 %v2569
    %3059 = vmatpush1.msra.mxu0 %v2568
    %3060 = vmatprep.subr.mxu0 %v2579
    %3061 = vmatpush1.msra.mxu0 %v2578
    %3062 = vmatprep.subr.mxu0 %v2589
    %3063 = vmatpush1.msra.mxu0 %v2588
    %3064 = vmatprep.subr.mxu0 %v2599
    %3065 = vmatpush1.msra.mxu0 %v2598
    %3066 = vmatprep.subr.mxu0 %v2609
    %3067 = vmatpush1.msra.mxu0 %v2608
    %3068 = vmatprep.subr.mxu0 %v2619
    %3069 = vmatpush1.msra.mxu0 %v2618
    %3070 = vmatprep.subr.mxu0 %v2629
    %3071 = vmatpush1.msra.mxu0 %v2628
    %3072 = vmatprep.subr.mxu0 %v2639
    %3073 = vmatpush1.msra.mxu0 %v2638
    %3074 = vmatprep.subr.mxu0 %v2649
    %3075 = vmatpush1.msra.mxu0 %v2648
    %3076 = vmatprep.subr.mxu0 %v2659
    %3077 = vmatpush1.msra.mxu0 %v2658
    %3078 = vmatprep.subr.mxu0 %v2669
    %3079 = vmatpush1.msra.mxu0 %v2668
    %3080 = vmatprep.subr.mxu0 %v2679
    %3081 = vmatpush1.msra.mxu0 %v2678
    %3082 = vmatprep.mubr.f32.mxu0 %v2195
    %3083 = vmatmul.mubr.f32.gmra.mrb[0].mxu0 %v2194
    %v3084 = vpop.f32.mrb[0].mxu0
    %v3085 = vadd.f32 %v2719, %v3084
    %v3086 = vpop.f32.mrb[0].mxu0
    %v3087 = vadd.f32 %v2723, %v3086
    %3088 = vdwg.mxu0
    %v3089 = vmax.f32 %v2801, 0.0
    %v3090 = vmax.f32 %v2803, 0.0
    %v3091 = vmax.f32 %v2872, 0.0
    %v3092 = vmax.f32 %v2874, 0.0
    %v3093 = vmax.f32 %v2943, 0.0
    %v3094 = vmax.f32 %v2945, 0.0
    %v3095 = vmax.f32 %v3014, 0.0
    %v3096 = vmax.f32 %v3016, 0.0
    %v3097 = vmax.f32 %v3085, 0.0
    %v3098 = vmax.f32 %v3087, 0.0
    %s3099 = smul.u32 4, 160
    %s3100 = smul.u32 %s3099, 5
    %s3101 = sshll.u32 %s3100, 4
    %3102 = dma.done %s205, %s3101
    %v3103 = vld [vmem:[#allocation3] sm:$0xff]
    %v3104 = vld [vmem:[#allocation3 + $0x8] sm:$0xff]
    %v3105 = vld [vmem:[#allocation3 + $0x10] sm:$0xff]
    %v3106 = vld [vmem:[#allocation3 + $0x18] sm:$0xff]
    %v3107 = vld [vmem:[#allocation3 + $0x20] sm:$0xff]
    %v3108 = vld [vmem:[#allocation3 + $0x28] sm:$0xff]
    %v3109 = vld [vmem:[#allocation3 + $0x30] sm:$0xff]
    %v3110 = vld [vmem:[#allocation3 + $0x38] sm:$0xff]
    %v3111 = vld [vmem:[#allocation3 + $0x40] sm:$0xff]
    %v3112 = vld [vmem:[#allocation3 + $0x48] sm:$0xff]
    %v3113 = vld [vmem:[#allocation3 + $0x50] sm:$0xff]
    %v3114 = vld [vmem:[#allocation3 + $0x58] sm:$0xff]
    %v3115 = vld [vmem:[#allocation3 + $0x60] sm:$0xff]
    %v3116 = vld [vmem:[#allocation3 + $0x68] sm:$0xff]
    %v3117 = vld [vmem:[#allocation3 + $0x70] sm:$0xff]
    %v3118 = vld [vmem:[#allocation3 + $0x78] sm:$0xff]
    %v3119 = vld [vmem:[#allocation3 + $0x80] sm:$0xff]
    %v3120 = vld [vmem:[#allocation3 + $0x88] sm:$0xff]
    %v3121 = vld [vmem:[#allocation3 + $0x90] sm:$0xff]
    %v3122 = vld [vmem:[#allocation3 + $0x98] sm:$0xff]
    %v3123 = vld [vmem:[#allocation3 + $0xa0] sm:$0xff]
    %v3124 = vld [vmem:[#allocation3 + $0xa8] sm:$0xff]
    %v3125 = vld [vmem:[#allocation3 + $0xb0] sm:$0xff]
    %v3126 = vld [vmem:[#allocation3 + $0xb8] sm:$0xff]
    %v3127 = vld [vmem:[#allocation3 + $0xc0] sm:$0xff]
    %v3128 = vld [vmem:[#allocation3 + $0xc8] sm:$0xff]
    %v3129 = vld [vmem:[#allocation3 + $0xd0] sm:$0xff]
    %v3130 = vld [vmem:[#allocation3 + $0xd8] sm:$0xff]
    %v3131 = vld [vmem:[#allocation3 + $0xe0] sm:$0xff]
    %v3132 = vld [vmem:[#allocation3 + $0xe8] sm:$0xff]
    %v3133 = vld [vmem:[#allocation3 + $0xf0] sm:$0xff]
    %v3134 = vld [vmem:[#allocation3 + $0xf8] sm:$0xff]
    %v3135 = vld [vmem:[#allocation3 + $0x100] sm:$0xff]
    %v3136 = vld [vmem:[#allocation3 + $0x108] sm:$0xff]
    %v3137 = vld [vmem:[#allocation3 + $0x110] sm:$0xff]
    %v3138 = vld [vmem:[#allocation3 + $0x118] sm:$0xff]
    %v3139 = vld [vmem:[#allocation3 + $0x120] sm:$0xff]
    %v3140 = vld [vmem:[#allocation3 + $0x128] sm:$0xff]
    %v3141 = vld [vmem:[#allocation3 + $0x130] sm:$0xff]
    %v3142 = vld [vmem:[#allocation3 + $0x138] sm:$0xff]
    %v3143 = vld [vmem:[#allocation3 + $0x140] sm:$0xff]
    %v3144 = vld [vmem:[#allocation3 + $0x148] sm:$0xff]
    %v3145 = vld [vmem:[#allocation3 + $0x150] sm:$0xff]
    %v3146 = vld [vmem:[#allocation3 + $0x158] sm:$0xff]
    %v3147 = vld [vmem:[#allocation3 + $0x160] sm:$0xff]
    %v3148 = vld [vmem:[#allocation3 + $0x168] sm:$0xff]
    %v3149 = vld [vmem:[#allocation3 + $0x170] sm:$0xff]
    %v3150 = vld [vmem:[#allocation3 + $0x178] sm:$0xff]
    %v3151 = vld [vmem:[#allocation3 + $0x180] sm:$0xff]
    %v3152 = vld [vmem:[#allocation3 + $0x188] sm:$0xff]
    %v3153 = vld [vmem:[#allocation3 + $0x190] sm:$0xff]
    %v3154 = vld [vmem:[#allocation3 + $0x198] sm:$0xff]
    %v3155 = vld [vmem:[#allocation3 + $0x1a0] sm:$0xff]
    %v3156 = vld [vmem:[#allocation3 + $0x1a8] sm:$0xff]
    %v3157 = vld [vmem:[#allocation3 + $0x1b0] sm:$0xff]
    %v3158 = vld [vmem:[#allocation3 + $0x1b8] sm:$0xff]
    %v3159 = vld [vmem:[#allocation3 + $0x1c0] sm:$0xff]
    %v3160 = vld [vmem:[#allocation3 + $0x1c8] sm:$0xff]
    %v3161 = vld [vmem:[#allocation3 + $0x1d0] sm:$0xff]
    %v3162 = vld [vmem:[#allocation3 + $0x1d8] sm:$0xff]
    %v3163 = vld [vmem:[#allocation3 + $0x1e0] sm:$0xff]
    %v3164 = vld [vmem:[#allocation3 + $0x1e8] sm:$0xff]
    %v3165 = vld [vmem:[#allocation3 + $0x1f0] sm:$0xff]
    %v3166 = vld [vmem:[#allocation3 + $0x1f8] sm:$0xff]
    %v3167 = vld [vmem:[#allocation3 + $0x200] sm:$0xff]
    %v3168 = vld [vmem:[#allocation3 + $0x208] sm:$0xff]
    %v3169 = vld [vmem:[#allocation3 + $0x210] sm:$0xff]
    %v3170 = vld [vmem:[#allocation3 + $0x218] sm:$0xff]
    %v3171 = vld [vmem:[#allocation3 + $0x220] sm:$0xff]
    %v3172 = vld [vmem:[#allocation3 + $0x228] sm:$0xff]
    %v3173 = vld [vmem:[#allocation3 + $0x230] sm:$0xff]
    %v3174 = vld [vmem:[#allocation3 + $0x238] sm:$0xff]
    %v3175 = vld [vmem:[#allocation3 + $0x240] sm:$0xff]
    %v3176 = vld [vmem:[#allocation3 + $0x248] sm:$0xff]
    %v3177 = vld [vmem:[#allocation3 + $0x250] sm:$0xff]
    %v3178 = vld [vmem:[#allocation3 + $0x258] sm:$0xff]
    %v3179 = vld [vmem:[#allocation3 + $0x260] sm:$0xff]
    %v3180 = vld [vmem:[#allocation3 + $0x268] sm:$0xff]
    %v3181 = vld [vmem:[#allocation3 + $0x270] sm:$0xff]
    %v3182 = vld [vmem:[#allocation3 + $0x278] sm:$0xff]
    %v3183 = vld [vmem:[#allocation3 + $0x280] sm:$0xff]
    %v3184 = vld [vmem:[#allocation3 + $0x288] sm:$0xff]
    %v3185 = vld [vmem:[#allocation3 + $0x290] sm:$0xff]
    %v3186 = vld [vmem:[#allocation3 + $0x298] sm:$0xff]
    %v3187 = vld [vmem:[#allocation3 + $0x2a0] sm:$0xff]
    %v3188 = vld [vmem:[#allocation3 + $0x2a8] sm:$0xff]
    %v3189 = vld [vmem:[#allocation3 + $0x2b0] sm:$0xff]
    %v3190 = vld [vmem:[#allocation3 + $0x2b8] sm:$0xff]
    %v3191 = vld [vmem:[#allocation3 + $0x2c0] sm:$0xff]
    %v3192 = vld [vmem:[#allocation3 + $0x2c8] sm:$0xff]
    %v3193 = vld [vmem:[#allocation3 + $0x2d0] sm:$0xff]
    %v3194 = vld [vmem:[#allocation3 + $0x2d8] sm:$0xff]
    %v3195 = vld [vmem:[#allocation3 + $0x2e0] sm:$0xff]
    %v3196 = vld [vmem:[#allocation3 + $0x2e8] sm:$0xff]
    %v3197 = vld [vmem:[#allocation3 + $0x2f0] sm:$0xff]
    %v3198 = vld [vmem:[#allocation3 + $0x2f8] sm:$0xff]
    %v3199 = vld [vmem:[#allocation3 + $0x300] sm:$0xff]
    %v3200 = vld [vmem:[#allocation3 + $0x308] sm:$0xff]
    %v3201 = vld [vmem:[#allocation3 + $0x310] sm:$0xff]
    %v3202 = vld [vmem:[#allocation3 + $0x318] sm:$0xff]
    %v3203 = vld [vmem:[#allocation3 + $0x320] sm:$0xff]
    %v3204 = vld [vmem:[#allocation3 + $0x328] sm:$0xff]
    %v3205 = vld [vmem:[#allocation3 + $0x330] sm:$0xff]
    %v3206 = vld [vmem:[#allocation3 + $0x338] sm:$0xff]
    %v3207 = vld [vmem:[#allocation3 + $0x340] sm:$0xff]
    %v3208 = vld [vmem:[#allocation3 + $0x348] sm:$0xff]
    %v3209 = vld [vmem:[#allocation3 + $0x350] sm:$0xff]
    %v3210 = vld [vmem:[#allocation3 + $0x358] sm:$0xff]
    %v3211 = vld [vmem:[#allocation3 + $0x360] sm:$0xff]
    %v3212 = vld [vmem:[#allocation3 + $0x368] sm:$0xff]
    %v3213 = vld [vmem:[#allocation3 + $0x370] sm:$0xff]
    %v3214 = vld [vmem:[#allocation3 + $0x378] sm:$0xff]
    %v3215 = vld [vmem:[#allocation3 + $0x380] sm:$0xff]
    %v3216 = vld [vmem:[#allocation3 + $0x388] sm:$0xff]
    %v3217 = vld [vmem:[#allocation3 + $0x390] sm:$0xff]
    %v3218 = vld [vmem:[#allocation3 + $0x398] sm:$0xff]
    %v3219 = vld [vmem:[#allocation3 + $0x3a0] sm:$0xff]
    %v3220 = vld [vmem:[#allocation3 + $0x3a8] sm:$0xff]
    %v3221 = vld [vmem:[#allocation3 + $0x3b0] sm:$0xff]
    %v3222 = vld [vmem:[#allocation3 + $0x3b8] sm:$0xff]
    %v3223 = vld [vmem:[#allocation3 + $0x3c0] sm:$0xff]
    %v3224 = vld [vmem:[#allocation3 + $0x3c8] sm:$0xff]
    %v3225 = vld [vmem:[#allocation3 + $0x3d0] sm:$0xff]
    %v3226 = vld [vmem:[#allocation3 + $0x3d8] sm:$0xff]
    %v3227 = vld [vmem:[#allocation3 + $0x3e0] sm:$0xff]
    %v3228 = vld [vmem:[#allocation3 + $0x3e8] sm:$0xff]
    %v3229 = vld [vmem:[#allocation3 + $0x3f0] sm:$0xff]
    %v3230 = vld [vmem:[#allocation3 + $0x3f8] sm:$0xff]
    %v3231 = vld [vmem:[#allocation3 + $0x400] sm:$0xff]
    %v3232 = vld [vmem:[#allocation3 + $0x408] sm:$0xff]
    %v3233 = vld [vmem:[#allocation3 + $0x410] sm:$0xff]
    %v3234 = vld [vmem:[#allocation3 + $0x418] sm:$0xff]
    %v3235 = vld [vmem:[#allocation3 + $0x420] sm:$0xff]
    %v3236 = vld [vmem:[#allocation3 + $0x428] sm:$0xff]
    %v3237 = vld [vmem:[#allocation3 + $0x430] sm:$0xff]
    %v3238 = vld [vmem:[#allocation3 + $0x438] sm:$0xff]
    %v3239 = vld [vmem:[#allocation3 + $0x440] sm:$0xff]
    %v3240 = vld [vmem:[#allocation3 + $0x448] sm:$0xff]
    %v3241 = vld [vmem:[#allocation3 + $0x450] sm:$0xff]
    %v3242 = vld [vmem:[#allocation3 + $0x458] sm:$0xff]
    %v3243 = vld [vmem:[#allocation3 + $0x460] sm:$0xff]
    %v3244 = vld [vmem:[#allocation3 + $0x468] sm:$0xff]
    %v3245 = vld [vmem:[#allocation3 + $0x470] sm:$0xff]
    %v3246 = vld [vmem:[#allocation3 + $0x478] sm:$0xff]
    %v3247 = vld [vmem:[#allocation3 + $0x480] sm:$0xff]
    %v3248 = vld [vmem:[#allocation3 + $0x488] sm:$0xff]
    %v3249 = vld [vmem:[#allocation3 + $0x490] sm:$0xff]
    %v3250 = vld [vmem:[#allocation3 + $0x498] sm:$0xff]
    %v3251 = vld [vmem:[#allocation3 + $0x4a0] sm:$0xff]
    %v3252 = vld [vmem:[#allocation3 + $0x4a8] sm:$0xff]
    %v3253 = vld [vmem:[#allocation3 + $0x4b0] sm:$0xff]
    %v3254 = vld [vmem:[#allocation3 + $0x4b8] sm:$0xff]
    %v3255 = vld [vmem:[#allocation3 + $0x4c0] sm:$0xff]
    %v3256 = vld [vmem:[#allocation3 + $0x4c8] sm:$0xff]
    %v3257 = vld [vmem:[#allocation3 + $0x4d0] sm:$0xff]
    %v3258 = vld [vmem:[#allocation3 + $0x4d8] sm:$0xff]
    %v3259 = vld [vmem:[#allocation3 + $0x4e0] sm:$0xff]
    %v3260 = vld [vmem:[#allocation3 + $0x4e8] sm:$0xff]
    %v3261 = vld [vmem:[#allocation3 + $0x4f0] sm:$0xff]
    %v3262 = vld [vmem:[#allocation3 + $0x4f8] sm:$0xff]
    %v3263 = vld [vmem:[#allocation3 + $0x500] sm:$0xff]
    %v3264 = vld [vmem:[#allocation3 + $0x508] sm:$0xff]
    %v3265 = vld [vmem:[#allocation3 + $0x510] sm:$0xff]
    %v3266 = vld [vmem:[#allocation3 + $0x518] sm:$0xff]
    %v3267 = vld [vmem:[#allocation3 + $0x520] sm:$0xff]
    %v3268 = vld [vmem:[#allocation3 + $0x528] sm:$0xff]
    %v3269 = vld [vmem:[#allocation3 + $0x530] sm:$0xff]
    %v3270 = vld [vmem:[#allocation3 + $0x538] sm:$0xff]
    %v3271 = vld [vmem:[#allocation3 + $0x540] sm:$0xff]
    %v3272 = vld [vmem:[#allocation3 + $0x548] sm:$0xff]
    %v3273 = vld [vmem:[#allocation3 + $0x550] sm:$0xff]
    %v3274 = vld [vmem:[#allocation3 + $0x558] sm:$0xff]
    %v3275 = vld [vmem:[#allocation3 + $0x560] sm:$0xff]
    %v3276 = vld [vmem:[#allocation3 + $0x568] sm:$0xff]
    %v3277 = vld [vmem:[#allocation3 + $0x570] sm:$0xff]
    %v3278 = vld [vmem:[#allocation3 + $0x578] sm:$0xff]
    %v3279 = vld [vmem:[#allocation3 + $0x580] sm:$0xff]
    %v3280 = vld [vmem:[#allocation3 + $0x588] sm:$0xff]
    %v3281 = vld [vmem:[#allocation3 + $0x590] sm:$0xff]
    %v3282 = vld [vmem:[#allocation3 + $0x598] sm:$0xff]
    %v3283 = vld [vmem:[#allocation3 + $0x5a0] sm:$0xff]
    %v3284 = vld [vmem:[#allocation3 + $0x5a8] sm:$0xff]
    %v3285 = vld [vmem:[#allocation3 + $0x5b0] sm:$0xff]
    %v3286 = vld [vmem:[#allocation3 + $0x5b8] sm:$0xff]
    %v3287 = vld [vmem:[#allocation3 + $0x5c0] sm:$0xff]
    %v3288 = vld [vmem:[#allocation3 + $0x5c8] sm:$0xff]
    %v3289 = vld [vmem:[#allocation3 + $0x5d0] sm:$0xff]
    %v3290 = vld [vmem:[#allocation3 + $0x5d8] sm:$0xff]
    %v3291 = vld [vmem:[#allocation3 + $0x5e0] sm:$0xff]
    %v3292 = vld [vmem:[#allocation3 + $0x5e8] sm:$0xff]
    %v3293 = vld [vmem:[#allocation3 + $0x5f0] sm:$0xff]
    %v3294 = vld [vmem:[#allocation3 + $0x5f8] sm:$0xff]
    %v3295 = vld [vmem:[#allocation3 + $0x600] sm:$0xff]
    %v3296 = vld [vmem:[#allocation3 + $0x608] sm:$0xff]
    %v3297 = vld [vmem:[#allocation3 + $0x610] sm:$0xff]
    %v3298 = vld [vmem:[#allocation3 + $0x618] sm:$0xff]
    %v3299 = vld [vmem:[#allocation3 + $0x620] sm:$0xff]
    %v3300 = vld [vmem:[#allocation3 + $0x628] sm:$0xff]
    %v3301 = vld [vmem:[#allocation3 + $0x630] sm:$0xff]
    %v3302 = vld [vmem:[#allocation3 + $0x638] sm:$0xff]
    %v3303 = vld [vmem:[#allocation3 + $0x640] sm:$0xff]
    %v3304 = vld [vmem:[#allocation3 + $0x648] sm:$0xff]
    %v3305 = vld [vmem:[#allocation3 + $0x650] sm:$0xff]
    %v3306 = vld [vmem:[#allocation3 + $0x658] sm:$0xff]
    %v3307 = vld [vmem:[#allocation3 + $0x660] sm:$0xff]
    %v3308 = vld [vmem:[#allocation3 + $0x668] sm:$0xff]
    %v3309 = vld [vmem:[#allocation3 + $0x670] sm:$0xff]
    %v3310 = vld [vmem:[#allocation3 + $0x678] sm:$0xff]
    %v3311 = vld [vmem:[#allocation3 + $0x680] sm:$0xff]
    %v3312 = vld [vmem:[#allocation3 + $0x688] sm:$0xff]
    %v3313 = vld [vmem:[#allocation3 + $0x690] sm:$0xff]
    %v3314 = vld [vmem:[#allocation3 + $0x698] sm:$0xff]
    %v3315 = vld [vmem:[#allocation3 + $0x6a0] sm:$0xff]
    %v3316 = vld [vmem:[#allocation3 + $0x6a8] sm:$0xff]
    %v3317 = vld [vmem:[#allocation3 + $0x6b0] sm:$0xff]
    %v3318 = vld [vmem:[#allocation3 + $0x6b8] sm:$0xff]
    %v3319 = vld [vmem:[#allocation3 + $0x6c0] sm:$0xff]
    %v3320 = vld [vmem:[#allocation3 + $0x6c8] sm:$0xff]
    %v3321 = vld [vmem:[#allocation3 + $0x6d0] sm:$0xff]
    %v3322 = vld [vmem:[#allocation3 + $0x6d8] sm:$0xff]
    %v3323 = vld [vmem:[#allocation3 + $0x6e0] sm:$0xff]
    %v3324 = vld [vmem:[#allocation3 + $0x6e8] sm:$0xff]
    %v3325 = vld [vmem:[#allocation3 + $0x6f0] sm:$0xff]
    %v3326 = vld [vmem:[#allocation3 + $0x6f8] sm:$0xff]
    %v3327 = vld [vmem:[#allocation3 + $0x700] sm:$0xff]
    %v3328 = vld [vmem:[#allocation3 + $0x708] sm:$0xff]
    %v3329 = vld [vmem:[#allocation3 + $0x710] sm:$0xff]
    %v3330 = vld [vmem:[#allocation3 + $0x718] sm:$0xff]
    %v3331 = vld [vmem:[#allocation3 + $0x720] sm:$0xff]
    %v3332 = vld [vmem:[#allocation3 + $0x728] sm:$0xff]
    %v3333 = vld [vmem:[#allocation3 + $0x730] sm:$0xff]
    %v3334 = vld [vmem:[#allocation3 + $0x738] sm:$0xff]
    %v3335 = vld [vmem:[#allocation3 + $0x740] sm:$0xff]
    %v3336 = vld [vmem:[#allocation3 + $0x748] sm:$0xff]
    %v3337 = vld [vmem:[#allocation3 + $0x750] sm:$0xff]
    %v3338 = vld [vmem:[#allocation3 + $0x758] sm:$0xff]
    %v3339 = vld [vmem:[#allocation3 + $0x760] sm:$0xff]
    %v3340 = vld [vmem:[#allocation3 + $0x768] sm:$0xff]
    %v3341 = vld [vmem:[#allocation3 + $0x770] sm:$0xff]
    %v3342 = vld [vmem:[#allocation3 + $0x778] sm:$0xff]
    %v3343 = vld [vmem:[#allocation3 + $0x780] sm:$0xff]
    %v3344 = vld [vmem:[#allocation3 + $0x788] sm:$0xff]
    %v3345 = vld [vmem:[#allocation3 + $0x790] sm:$0xff]
    %v3346 = vld [vmem:[#allocation3 + $0x798] sm:$0xff]
    %v3347 = vld [vmem:[#allocation3 + $0x7a0] sm:$0xff]
    %v3348 = vld [vmem:[#allocation3 + $0x7a8] sm:$0xff]
    %v3349 = vld [vmem:[#allocation3 + $0x7b0] sm:$0xff]
    %v3350 = vld [vmem:[#allocation3 + $0x7b8] sm:$0xff]
    %v3351 = vld [vmem:[#allocation3 + $0x7c0] sm:$0xff]
    %v3352 = vld [vmem:[#allocation3 + $0x7c8] sm:$0xff]
    %v3353 = vld [vmem:[#allocation3 + $0x7d0] sm:$0xff]
    %v3354 = vld [vmem:[#allocation3 + $0x7d8] sm:$0xff]
    %v3355 = vld [vmem:[#allocation3 + $0x7e0] sm:$0xff]
    %v3356 = vld [vmem:[#allocation3 + $0x7e8] sm:$0xff]
    %v3357 = vld [vmem:[#allocation3 + $0x7f0] sm:$0xff]
    %v3358 = vld [vmem:[#allocation3 + $0x7f8] sm:$0xff]
    %v3359 = vld [vmem:[#allocation3 + $0x800] sm:$0xff]
    %v3360 = vld [vmem:[#allocation3 + $0x808] sm:$0xff]
    %v3361 = vld [vmem:[#allocation3 + $0x810] sm:$0xff]
    %v3362 = vld [vmem:[#allocation3 + $0x818] sm:$0xff]
    %v3363 = vld [vmem:[#allocation3 + $0x820] sm:$0xff]
    %v3364 = vld [vmem:[#allocation3 + $0x828] sm:$0xff]
    %v3365 = vld [vmem:[#allocation3 + $0x830] sm:$0xff]
    %v3366 = vld [vmem:[#allocation3 + $0x838] sm:$0xff]
    %v3367 = vld [vmem:[#allocation3 + $0x840] sm:$0xff]
    %v3368 = vld [vmem:[#allocation3 + $0x848] sm:$0xff]
    %v3369 = vld [vmem:[#allocation3 + $0x850] sm:$0xff]
    %v3370 = vld [vmem:[#allocation3 + $0x858] sm:$0xff]
    %v3371 = vld [vmem:[#allocation3 + $0x860] sm:$0xff]
    %v3372 = vld [vmem:[#allocation3 + $0x868] sm:$0xff]
    %v3373 = vld [vmem:[#allocation3 + $0x870] sm:$0xff]
    %v3374 = vld [vmem:[#allocation3 + $0x878] sm:$0xff]
    %v3375 = vld [vmem:[#allocation3 + $0x880] sm:$0xff]
    %v3376 = vld [vmem:[#allocation3 + $0x888] sm:$0xff]
    %v3377 = vld [vmem:[#allocation3 + $0x890] sm:$0xff]
    %v3378 = vld [vmem:[#allocation3 + $0x898] sm:$0xff]
    %v3379 = vld [vmem:[#allocation3 + $0x8a0] sm:$0xff]
    %v3380 = vld [vmem:[#allocation3 + $0x8a8] sm:$0xff]
    %v3381 = vld [vmem:[#allocation3 + $0x8b0] sm:$0xff]
    %v3382 = vld [vmem:[#allocation3 + $0x8b8] sm:$0xff]
    %v3383 = vld [vmem:[#allocation3 + $0x8c0] sm:$0xff]
    %v3384 = vld [vmem:[#allocation3 + $0x8c8] sm:$0xff]
    %v3385 = vld [vmem:[#allocation3 + $0x8d0] sm:$0xff]
    %v3386 = vld [vmem:[#allocation3 + $0x8d8] sm:$0xff]
    %v3387 = vld [vmem:[#allocation3 + $0x8e0] sm:$0xff]
    %v3388 = vld [vmem:[#allocation3 + $0x8e8] sm:$0xff]
    %v3389 = vld [vmem:[#allocation3 + $0x8f0] sm:$0xff]
    %v3390 = vld [vmem:[#allocation3 + $0x8f8] sm:$0xff]
    %v3391 = vld [vmem:[#allocation3 + $0x900] sm:$0xff]
    %v3392 = vld [vmem:[#allocation3 + $0x908] sm:$0xff]
    %v3393 = vld [vmem:[#allocation3 + $0x910] sm:$0xff]
    %v3394 = vld [vmem:[#allocation3 + $0x918] sm:$0xff]
    %v3395 = vld [vmem:[#allocation3 + $0x920] sm:$0xff]
    %v3396 = vld [vmem:[#allocation3 + $0x928] sm:$0xff]
    %v3397 = vld [vmem:[#allocation3 + $0x930] sm:$0xff]
    %v3398 = vld [vmem:[#allocation3 + $0x938] sm:$0xff]
    %v3399 = vld [vmem:[#allocation3 + $0x940] sm:$0xff]
    %v3400 = vld [vmem:[#allocation3 + $0x948] sm:$0xff]
    %v3401 = vld [vmem:[#allocation3 + $0x950] sm:$0xff]
    %v3402 = vld [vmem:[#allocation3 + $0x958] sm:$0xff]
    %v3403 = vld [vmem:[#allocation3 + $0x960] sm:$0xff]
    %v3404 = vld [vmem:[#allocation3 + $0x968] sm:$0xff]
    %v3405 = vld [vmem:[#allocation3 + $0x970] sm:$0xff]
    %v3406 = vld [vmem:[#allocation3 + $0x978] sm:$0xff]
    %v3407 = vld [vmem:[#allocation3 + $0x980] sm:$0xff]
    %v3408 = vld [vmem:[#allocation3 + $0x988] sm:$0xff]
    %v3409 = vld [vmem:[#allocation3 + $0x990] sm:$0xff]
    %v3410 = vld [vmem:[#allocation3 + $0x998] sm:$0xff]
    %v3411 = vld [vmem:[#allocation3 + $0x9a0] sm:$0xff]
    %v3412 = vld [vmem:[#allocation3 + $0x9a8] sm:$0xff]
    %v3413 = vld [vmem:[#allocation3 + $0x9b0] sm:$0xff]
    %v3414 = vld [vmem:[#allocation3 + $0x9b8] sm:$0xff]
    %v3415 = vld [vmem:[#allocation3 + $0x9c0] sm:$0xff]
    %v3416 = vld [vmem:[#allocation3 + $0x9c8] sm:$0xff]
    %v3417 = vld [vmem:[#allocation3 + $0x9d0] sm:$0xff]
    %v3418 = vld [vmem:[#allocation3 + $0x9d8] sm:$0xff]
    %v3419 = vld [vmem:[#allocation3 + $0x9e0] sm:$0xff]
    %v3420 = vld [vmem:[#allocation3 + $0x9e8] sm:$0xff]
    %v3421 = vld [vmem:[#allocation3 + $0x9f0] sm:$0xff]
    %v3422 = vld [vmem:[#allocation3 + $0x9f8] sm:$0xff]
    %v3423 = vld [vmem:[#allocation3 + $0xa00] sm:$0xff]
    %v3424 = vld [vmem:[#allocation3 + $0xa08] sm:$0xff]
    %v3425 = vld [vmem:[#allocation3 + $0xa10] sm:$0xff]
    %v3426 = vld [vmem:[#allocation3 + $0xa18] sm:$0xff]
    %v3427 = vld [vmem:[#allocation3 + $0xa20] sm:$0xff]
    %v3428 = vld [vmem:[#allocation3 + $0xa28] sm:$0xff]
    %v3429 = vld [vmem:[#allocation3 + $0xa30] sm:$0xff]
    %v3430 = vld [vmem:[#allocation3 + $0xa38] sm:$0xff]
    %v3431 = vld [vmem:[#allocation3 + $0xa40] sm:$0xff]
    %v3432 = vld [vmem:[#allocation3 + $0xa48] sm:$0xff]
    %v3433 = vld [vmem:[#allocation3 + $0xa50] sm:$0xff]
    %v3434 = vld [vmem:[#allocation3 + $0xa58] sm:$0xff]
    %v3435 = vld [vmem:[#allocation3 + $0xa60] sm:$0xff]
    %v3436 = vld [vmem:[#allocation3 + $0xa68] sm:$0xff]
    %v3437 = vld [vmem:[#allocation3 + $0xa70] sm:$0xff]
    %v3438 = vld [vmem:[#allocation3 + $0xa78] sm:$0xff]
    %v3439 = vld [vmem:[#allocation3 + $0xa80] sm:$0xff]
    %v3440 = vld [vmem:[#allocation3 + $0xa88] sm:$0xff]
    %v3441 = vld [vmem:[#allocation3 + $0xa90] sm:$0xff]
    %v3442 = vld [vmem:[#allocation3 + $0xa98] sm:$0xff]
    %v3443 = vld [vmem:[#allocation3 + $0xaa0] sm:$0xff]
    %v3444 = vld [vmem:[#allocation3 + $0xaa8] sm:$0xff]
    %v3445 = vld [vmem:[#allocation3 + $0xab0] sm:$0xff]
    %v3446 = vld [vmem:[#allocation3 + $0xab8] sm:$0xff]
    %v3447 = vld [vmem:[#allocation3 + $0xac0] sm:$0xff]
    %v3448 = vld [vmem:[#allocation3 + $0xac8] sm:$0xff]
    %v3449 = vld [vmem:[#allocation3 + $0xad0] sm:$0xff]
    %v3450 = vld [vmem:[#allocation3 + $0xad8] sm:$0xff]
    %v3451 = vld [vmem:[#allocation3 + $0xae0] sm:$0xff]
    %v3452 = vld [vmem:[#allocation3 + $0xae8] sm:$0xff]
    %v3453 = vld [vmem:[#allocation3 + $0xaf0] sm:$0xff]
    %v3454 = vld [vmem:[#allocation3 + $0xaf8] sm:$0xff]
    %v3455 = vld [vmem:[#allocation3 + $0xb00] sm:$0xff]
    %v3456 = vld [vmem:[#allocation3 + $0xb08] sm:$0xff]
    %v3457 = vld [vmem:[#allocation3 + $0xb10] sm:$0xff]
    %v3458 = vld [vmem:[#allocation3 + $0xb18] sm:$0xff]
    %v3459 = vld [vmem:[#allocation3 + $0xb20] sm:$0xff]
    %v3460 = vld [vmem:[#allocation3 + $0xb28] sm:$0xff]
    %v3461 = vld [vmem:[#allocation3 + $0xb30] sm:$0xff]
    %v3462 = vld [vmem:[#allocation3 + $0xb38] sm:$0xff]
    %v3463 = vld [vmem:[#allocation3 + $0xb40] sm:$0xff]
    %v3464 = vld [vmem:[#allocation3 + $0xb48] sm:$0xff]
    %v3465 = vld [vmem:[#allocation3 + $0xb50] sm:$0xff]
    %v3466 = vld [vmem:[#allocation3 + $0xb58] sm:$0xff]
    %v3467 = vld [vmem:[#allocation3 + $0xb60] sm:$0xff]
    %v3468 = vld [vmem:[#allocation3 + $0xb68] sm:$0xff]
    %v3469 = vld [vmem:[#allocation3 + $0xb70] sm:$0xff]
    %v3470 = vld [vmem:[#allocation3 + $0xb78] sm:$0xff]
    %v3471 = vld [vmem:[#allocation3 + $0xb80] sm:$0xff]
    %v3472 = vld [vmem:[#allocation3 + $0xb88] sm:$0xff]
    %v3473 = vld [vmem:[#allocation3 + $0xb90] sm:$0xff]
    %v3474 = vld [vmem:[#allocation3 + $0xb98] sm:$0xff]
    %v3475 = vld [vmem:[#allocation3 + $0xba0] sm:$0xff]
    %v3476 = vld [vmem:[#allocation3 + $0xba8] sm:$0xff]
    %v3477 = vld [vmem:[#allocation3 + $0xbb0] sm:$0xff]
    %v3478 = vld [vmem:[#allocation3 + $0xbb8] sm:$0xff]
    %v3479 = vld [vmem:[#allocation3 + $0xbc0] sm:$0xff]
    %v3480 = vld [vmem:[#allocation3 + $0xbc8] sm:$0xff]
    %v3481 = vld [vmem:[#allocation3 + $0xbd0] sm:$0xff]
    %v3482 = vld [vmem:[#allocation3 + $0xbd8] sm:$0xff]
    %v3483 = vld [vmem:[#allocation3 + $0xbe0] sm:$0xff]
    %v3484 = vld [vmem:[#allocation3 + $0xbe8] sm:$0xff]
    %v3485 = vld [vmem:[#allocation3 + $0xbf0] sm:$0xff]
    %v3486 = vld [vmem:[#allocation3 + $0xbf8] sm:$0xff]
    %v3487 = vld [vmem:[#allocation3 + $0xc00] sm:$0xff]
    %v3488 = vld [vmem:[#allocation3 + $0xc08] sm:$0xff]
    %v3489 = vld [vmem:[#allocation3 + $0xc10] sm:$0xff]
    %v3490 = vld [vmem:[#allocation3 + $0xc18] sm:$0xff]
    %v3491 = vld [vmem:[#allocation3 + $0xc20] sm:$0xff]
    %v3492 = vld [vmem:[#allocation3 + $0xc28] sm:$0xff]
    %v3493 = vld [vmem:[#allocation3 + $0xc30] sm:$0xff]
    %v3494 = vld [vmem:[#allocation3 + $0xc38] sm:$0xff]
    %v3495 = vld [vmem:[#allocation3 + $0xc40] sm:$0xff]
    %v3496 = vld [vmem:[#allocation3 + $0xc48] sm:$0xff]
    %v3497 = vld [vmem:[#allocation3 + $0xc50] sm:$0xff]
    %v3498 = vld [vmem:[#allocation3 + $0xc58] sm:$0xff]
    %v3499 = vld [vmem:[#allocation3 + $0xc60] sm:$0xff]
    %v3500 = vld [vmem:[#allocation3 + $0xc68] sm:$0xff]
    %v3501 = vld [vmem:[#allocation3 + $0xc70] sm:$0xff]
    %v3502 = vld [vmem:[#allocation3 + $0xc78] sm:$0xff]
    %v3503 = vunpack.c.l.bf16 %v3103
    %v3504 = vunpack.c.l.bf16 %v3104
    %v3505 = vunpack.c.l.bf16 %v3105
    %v3506 = vunpack.c.l.bf16 %v3106
    %v3507 = vunpack.c.l.bf16 %v3107
    %v3508 = vunpack.c.h.bf16 %v3103
    %v3509 = vunpack.c.h.bf16 %v3104
    %v3510 = vunpack.c.h.bf16 %v3105
    %v3511 = vunpack.c.h.bf16 %v3106
    %v3512 = vunpack.c.h.bf16 %v3107
    %v3513 = vunpack.c.l.bf16 %v3108
    %v3514 = vunpack.c.l.bf16 %v3109
    %v3515 = vunpack.c.l.bf16 %v3110
    %v3516 = vunpack.c.l.bf16 %v3111
    %v3517 = vunpack.c.l.bf16 %v3112
    %v3518 = vunpack.c.h.bf16 %v3108
    %v3519 = vunpack.c.h.bf16 %v3109
    %v3520 = vunpack.c.h.bf16 %v3110
    %v3521 = vunpack.c.h.bf16 %v3111
    %v3522 = vunpack.c.h.bf16 %v3112
    %v3523 = vunpack.c.l.bf16 %v3113
    %v3524 = vunpack.c.l.bf16 %v3114
    %v3525 = vunpack.c.l.bf16 %v3115
    %v3526 = vunpack.c.l.bf16 %v3116
    %v3527 = vunpack.c.l.bf16 %v3117
    %v3528 = vunpack.c.h.bf16 %v3113
    %v3529 = vunpack.c.h.bf16 %v3114
    %v3530 = vunpack.c.h.bf16 %v3115
    %v3531 = vunpack.c.h.bf16 %v3116
    %v3532 = vunpack.c.h.bf16 %v3117
    %v3533 = vunpack.c.l.bf16 %v3118
    %v3534 = vunpack.c.l.bf16 %v3119
    %v3535 = vunpack.c.l.bf16 %v3120
    %v3536 = vunpack.c.l.bf16 %v3121
    %v3537 = vunpack.c.l.bf16 %v3122
    %v3538 = vunpack.c.h.bf16 %v3118
    %v3539 = vunpack.c.h.bf16 %v3119
    %v3540 = vunpack.c.h.bf16 %v3120
    %v3541 = vunpack.c.h.bf16 %v3121
    %v3542 = vunpack.c.h.bf16 %v3122
    %v3543 = vunpack.c.l.bf16 %v3123
    %v3544 = vunpack.c.l.bf16 %v3124
    %v3545 = vunpack.c.l.bf16 %v3125
    %v3546 = vunpack.c.l.bf16 %v3126
    %v3547 = vunpack.c.l.bf16 %v3127
    %v3548 = vunpack.c.h.bf16 %v3123
    %v3549 = vunpack.c.h.bf16 %v3124
    %v3550 = vunpack.c.h.bf16 %v3125
    %v3551 = vunpack.c.h.bf16 %v3126
    %v3552 = vunpack.c.h.bf16 %v3127
    %v3553 = vunpack.c.l.bf16 %v3128
    %v3554 = vunpack.c.l.bf16 %v3129
    %v3555 = vunpack.c.l.bf16 %v3130
    %v3556 = vunpack.c.l.bf16 %v3131
    %v3557 = vunpack.c.l.bf16 %v3132
    %v3558 = vunpack.c.h.bf16 %v3128
    %v3559 = vunpack.c.h.bf16 %v3129
    %v3560 = vunpack.c.h.bf16 %v3130
    %v3561 = vunpack.c.h.bf16 %v3131
    %v3562 = vunpack.c.h.bf16 %v3132
    %v3563 = vunpack.c.l.bf16 %v3133
    %v3564 = vunpack.c.l.bf16 %v3134
    %v3565 = vunpack.c.l.bf16 %v3135
    %v3566 = vunpack.c.l.bf16 %v3136
    %v3567 = vunpack.c.l.bf16 %v3137
    %v3568 = vunpack.c.h.bf16 %v3133
    %v3569 = vunpack.c.h.bf16 %v3134
    %v3570 = vunpack.c.h.bf16 %v3135
    %v3571 = vunpack.c.h.bf16 %v3136
    %v3572 = vunpack.c.h.bf16 %v3137
    %v3573 = vunpack.c.l.bf16 %v3138
    %v3574 = vunpack.c.l.bf16 %v3139
    %v3575 = vunpack.c.l.bf16 %v3140
    %v3576 = vunpack.c.l.bf16 %v3141
    %v3577 = vunpack.c.l.bf16 %v3142
    %v3578 = vunpack.c.h.bf16 %v3138
    %v3579 = vunpack.c.h.bf16 %v3139
    %v3580 = vunpack.c.h.bf16 %v3140
    %v3581 = vunpack.c.h.bf16 %v3141
    %v3582 = vunpack.c.h.bf16 %v3142
    %v3583 = vunpack.c.l.bf16 %v3143
    %v3584 = vunpack.c.l.bf16 %v3144
    %v3585 = vunpack.c.l.bf16 %v3145
    %v3586 = vunpack.c.l.bf16 %v3146
    %v3587 = vunpack.c.l.bf16 %v3147
    %v3588 = vunpack.c.h.bf16 %v3143
    %v3589 = vunpack.c.h.bf16 %v3144
    %v3590 = vunpack.c.h.bf16 %v3145
    %v3591 = vunpack.c.h.bf16 %v3146
    %v3592 = vunpack.c.h.bf16 %v3147
    %v3593 = vunpack.c.l.bf16 %v3148
    %v3594 = vunpack.c.l.bf16 %v3149
    %v3595 = vunpack.c.l.bf16 %v3150
    %v3596 = vunpack.c.l.bf16 %v3151
    %v3597 = vunpack.c.l.bf16 %v3152
    %v3598 = vunpack.c.h.bf16 %v3148
    %v3599 = vunpack.c.h.bf16 %v3149
    %v3600 = vunpack.c.h.bf16 %v3150
    %v3601 = vunpack.c.h.bf16 %v3151
    %v3602 = vunpack.c.h.bf16 %v3152
    %v3603 = vunpack.c.l.bf16 %v3153
    %v3604 = vunpack.c.l.bf16 %v3154
    %v3605 = vunpack.c.l.bf16 %v3155
    %v3606 = vunpack.c.l.bf16 %v3156
    %v3607 = vunpack.c.l.bf16 %v3157
    %v3608 = vunpack.c.h.bf16 %v3153
    %v3609 = vunpack.c.h.bf16 %v3154
    %v3610 = vunpack.c.h.bf16 %v3155
    %v3611 = vunpack.c.h.bf16 %v3156
    %v3612 = vunpack.c.h.bf16 %v3157
    %v3613 = vunpack.c.l.bf16 %v3158
    %v3614 = vunpack.c.l.bf16 %v3159
    %v3615 = vunpack.c.l.bf16 %v3160
    %v3616 = vunpack.c.l.bf16 %v3161
    %v3617 = vunpack.c.l.bf16 %v3162
    %v3618 = vunpack.c.h.bf16 %v3158
    %v3619 = vunpack.c.h.bf16 %v3159
    %v3620 = vunpack.c.h.bf16 %v3160
    %v3621 = vunpack.c.h.bf16 %v3161
    %v3622 = vunpack.c.h.bf16 %v3162
    %v3623 = vunpack.c.l.bf16 %v3163
    %v3624 = vunpack.c.l.bf16 %v3164
    %v3625 = vunpack.c.l.bf16 %v3165
    %v3626 = vunpack.c.l.bf16 %v3166
    %v3627 = vunpack.c.l.bf16 %v3167
    %v3628 = vunpack.c.h.bf16 %v3163
    %v3629 = vunpack.c.h.bf16 %v3164
    %v3630 = vunpack.c.h.bf16 %v3165
    %v3631 = vunpack.c.h.bf16 %v3166
    %v3632 = vunpack.c.h.bf16 %v3167
    %v3633 = vunpack.c.l.bf16 %v3168
    %v3634 = vunpack.c.l.bf16 %v3169
    %v3635 = vunpack.c.l.bf16 %v3170
    %v3636 = vunpack.c.l.bf16 %v3171
    %v3637 = vunpack.c.l.bf16 %v3172
    %v3638 = vunpack.c.h.bf16 %v3168
    %v3639 = vunpack.c.h.bf16 %v3169
    %v3640 = vunpack.c.h.bf16 %v3170
    %v3641 = vunpack.c.h.bf16 %v3171
    %v3642 = vunpack.c.h.bf16 %v3172
    %v3643 = vunpack.c.l.bf16 %v3173
    %v3644 = vunpack.c.l.bf16 %v3174
    %v3645 = vunpack.c.l.bf16 %v3175
    %v3646 = vunpack.c.l.bf16 %v3176
    %v3647 = vunpack.c.l.bf16 %v3177
    %v3648 = vunpack.c.h.bf16 %v3173
    %v3649 = vunpack.c.h.bf16 %v3174
    %v3650 = vunpack.c.h.bf16 %v3175
    %v3651 = vunpack.c.h.bf16 %v3176
    %v3652 = vunpack.c.h.bf16 %v3177
    %v3653 = vunpack.c.l.bf16 %v3178
    %v3654 = vunpack.c.l.bf16 %v3179
    %v3655 = vunpack.c.l.bf16 %v3180
    %v3656 = vunpack.c.l.bf16 %v3181
    %v3657 = vunpack.c.l.bf16 %v3182
    %v3658 = vunpack.c.h.bf16 %v3178
    %v3659 = vunpack.c.h.bf16 %v3179
    %v3660 = vunpack.c.h.bf16 %v3180
    %v3661 = vunpack.c.h.bf16 %v3181
    %v3662 = vunpack.c.h.bf16 %v3182
    %v3663 = vunpack.c.l.bf16 %v3183
    %v3664 = vunpack.c.l.bf16 %v3184
    %v3665 = vunpack.c.l.bf16 %v3185
    %v3666 = vunpack.c.l.bf16 %v3186
    %v3667 = vunpack.c.l.bf16 %v3187
    %v3668 = vunpack.c.h.bf16 %v3183
    %v3669 = vunpack.c.h.bf16 %v3184
    %v3670 = vunpack.c.h.bf16 %v3185
    %v3671 = vunpack.c.h.bf16 %v3186
    %v3672 = vunpack.c.h.bf16 %v3187
    %v3673 = vunpack.c.l.bf16 %v3188
    %v3674 = vunpack.c.l.bf16 %v3189
    %v3675 = vunpack.c.l.bf16 %v3190
    %v3676 = vunpack.c.l.bf16 %v3191
    %v3677 = vunpack.c.l.bf16 %v3192
    %v3678 = vunpack.c.h.bf16 %v3188
    %v3679 = vunpack.c.h.bf16 %v3189
    %v3680 = vunpack.c.h.bf16 %v3190
    %v3681 = vunpack.c.h.bf16 %v3191
    %v3682 = vunpack.c.h.bf16 %v3192
    %v3683 = vunpack.c.l.bf16 %v3193
    %v3684 = vunpack.c.l.bf16 %v3194
    %v3685 = vunpack.c.l.bf16 %v3195
    %v3686 = vunpack.c.l.bf16 %v3196
    %v3687 = vunpack.c.l.bf16 %v3197
    %v3688 = vunpack.c.h.bf16 %v3193
    %v3689 = vunpack.c.h.bf16 %v3194
    %v3690 = vunpack.c.h.bf16 %v3195
    %v3691 = vunpack.c.h.bf16 %v3196
    %v3692 = vunpack.c.h.bf16 %v3197
    %v3693 = vunpack.c.l.bf16 %v3198
    %v3694 = vunpack.c.l.bf16 %v3199
    %v3695 = vunpack.c.l.bf16 %v3200
    %v3696 = vunpack.c.l.bf16 %v3201
    %v3697 = vunpack.c.l.bf16 %v3202
    %v3698 = vunpack.c.h.bf16 %v3198
    %v3699 = vunpack.c.h.bf16 %v3199
    %v3700 = vunpack.c.h.bf16 %v3200
    %v3701 = vunpack.c.h.bf16 %v3201
    %v3702 = vunpack.c.h.bf16 %v3202
    %v3703 = vunpack.c.l.bf16 %v3203
    %v3704 = vunpack.c.l.bf16 %v3204
    %v3705 = vunpack.c.l.bf16 %v3205
    %v3706 = vunpack.c.l.bf16 %v3206
    %v3707 = vunpack.c.l.bf16 %v3207
    %v3708 = vunpack.c.h.bf16 %v3203
    %v3709 = vunpack.c.h.bf16 %v3204
    %v3710 = vunpack.c.h.bf16 %v3205
    %v3711 = vunpack.c.h.bf16 %v3206
    %v3712 = vunpack.c.h.bf16 %v3207
    %v3713 = vunpack.c.l.bf16 %v3208
    %v3714 = vunpack.c.l.bf16 %v3209
    %v3715 = vunpack.c.l.bf16 %v3210
    %v3716 = vunpack.c.l.bf16 %v3211
    %v3717 = vunpack.c.l.bf16 %v3212
    %v3718 = vunpack.c.h.bf16 %v3208
    %v3719 = vunpack.c.h.bf16 %v3209
    %v3720 = vunpack.c.h.bf16 %v3210
    %v3721 = vunpack.c.h.bf16 %v3211
    %v3722 = vunpack.c.h.bf16 %v3212
    %v3723 = vunpack.c.l.bf16 %v3213
    %v3724 = vunpack.c.l.bf16 %v3214
    %v3725 = vunpack.c.l.bf16 %v3215
    %v3726 = vunpack.c.l.bf16 %v3216
    %v3727 = vunpack.c.l.bf16 %v3217
    %v3728 = vunpack.c.h.bf16 %v3213
    %v3729 = vunpack.c.h.bf16 %v3214
    %v3730 = vunpack.c.h.bf16 %v3215
    %v3731 = vunpack.c.h.bf16 %v3216
    %v3732 = vunpack.c.h.bf16 %v3217
    %v3733 = vunpack.c.l.bf16 %v3218
    %v3734 = vunpack.c.l.bf16 %v3219
    %v3735 = vunpack.c.l.bf16 %v3220
    %v3736 = vunpack.c.l.bf16 %v3221
    %v3737 = vunpack.c.l.bf16 %v3222
    %v3738 = vunpack.c.h.bf16 %v3218
    %v3739 = vunpack.c.h.bf16 %v3219
    %v3740 = vunpack.c.h.bf16 %v3220
    %v3741 = vunpack.c.h.bf16 %v3221
    %v3742 = vunpack.c.h.bf16 %v3222
    %v3743 = vunpack.c.l.bf16 %v3223
    %v3744 = vunpack.c.l.bf16 %v3224
    %v3745 = vunpack.c.l.bf16 %v3225
    %v3746 = vunpack.c.l.bf16 %v3226
    %v3747 = vunpack.c.l.bf16 %v3227
    %v3748 = vunpack.c.h.bf16 %v3223
    %v3749 = vunpack.c.h.bf16 %v3224
    %v3750 = vunpack.c.h.bf16 %v3225
    %v3751 = vunpack.c.h.bf16 %v3226
    %v3752 = vunpack.c.h.bf16 %v3227
    %v3753 = vunpack.c.l.bf16 %v3228
    %v3754 = vunpack.c.l.bf16 %v3229
    %v3755 = vunpack.c.l.bf16 %v3230
    %v3756 = vunpack.c.l.bf16 %v3231
    %v3757 = vunpack.c.l.bf16 %v3232
    %v3758 = vunpack.c.h.bf16 %v3228
    %v3759 = vunpack.c.h.bf16 %v3229
    %v3760 = vunpack.c.h.bf16 %v3230
    %v3761 = vunpack.c.h.bf16 %v3231
    %v3762 = vunpack.c.h.bf16 %v3232
    %v3763 = vunpack.c.l.bf16 %v3233
    %v3764 = vunpack.c.l.bf16 %v3234
    %v3765 = vunpack.c.l.bf16 %v3235
    %v3766 = vunpack.c.l.bf16 %v3236
    %v3767 = vunpack.c.l.bf16 %v3237
    %v3768 = vunpack.c.h.bf16 %v3233
    %v3769 = vunpack.c.h.bf16 %v3234
    %v3770 = vunpack.c.h.bf16 %v3235
    %v3771 = vunpack.c.h.bf16 %v3236
    %v3772 = vunpack.c.h.bf16 %v3237
    %v3773 = vunpack.c.l.bf16 %v3238
    %v3774 = vunpack.c.l.bf16 %v3239
    %v3775 = vunpack.c.l.bf16 %v3240
    %v3776 = vunpack.c.l.bf16 %v3241
    %v3777 = vunpack.c.l.bf16 %v3242
    %v3778 = vunpack.c.h.bf16 %v3238
    %v3779 = vunpack.c.h.bf16 %v3239
    %v3780 = vunpack.c.h.bf16 %v3240
    %v3781 = vunpack.c.h.bf16 %v3241
    %v3782 = vunpack.c.h.bf16 %v3242
    %v3783 = vunpack.c.l.bf16 %v3243
    %v3784 = vunpack.c.l.bf16 %v3244
    %v3785 = vunpack.c.l.bf16 %v3245
    %v3786 = vunpack.c.l.bf16 %v3246
    %v3787 = vunpack.c.l.bf16 %v3247
    %v3788 = vunpack.c.h.bf16 %v3243
    %v3789 = vunpack.c.h.bf16 %v3244
    %v3790 = vunpack.c.h.bf16 %v3245
    %v3791 = vunpack.c.h.bf16 %v3246
    %v3792 = vunpack.c.h.bf16 %v3247
    %v3793 = vunpack.c.l.bf16 %v3248
    %v3794 = vunpack.c.l.bf16 %v3249
    %v3795 = vunpack.c.l.bf16 %v3250
    %v3796 = vunpack.c.l.bf16 %v3251
    %v3797 = vunpack.c.l.bf16 %v3252
    %v3798 = vunpack.c.h.bf16 %v3248
    %v3799 = vunpack.c.h.bf16 %v3249
    %v3800 = vunpack.c.h.bf16 %v3250
    %v3801 = vunpack.c.h.bf16 %v3251
    %v3802 = vunpack.c.h.bf16 %v3252
    %v3803 = vunpack.c.l.bf16 %v3253
    %v3804 = vunpack.c.l.bf16 %v3254
    %v3805 = vunpack.c.l.bf16 %v3255
    %v3806 = vunpack.c.l.bf16 %v3256
    %v3807 = vunpack.c.l.bf16 %v3257
    %v3808 = vunpack.c.h.bf16 %v3253
    %v3809 = vunpack.c.h.bf16 %v3254
    %v3810 = vunpack.c.h.bf16 %v3255
    %v3811 = vunpack.c.h.bf16 %v3256
    %v3812 = vunpack.c.h.bf16 %v3257
    %v3813 = vunpack.c.l.bf16 %v3258
    %v3814 = vunpack.c.l.bf16 %v3259
    %v3815 = vunpack.c.l.bf16 %v3260
    %v3816 = vunpack.c.l.bf16 %v3261
    %v3817 = vunpack.c.l.bf16 %v3262
    %v3818 = vunpack.c.h.bf16 %v3258
    %v3819 = vunpack.c.h.bf16 %v3259
    %v3820 = vunpack.c.h.bf16 %v3260
    %v3821 = vunpack.c.h.bf16 %v3261
    %v3822 = vunpack.c.h.bf16 %v3262
    %v3823 = vunpack.c.l.bf16 %v3263
    %v3824 = vunpack.c.l.bf16 %v3264
    %v3825 = vunpack.c.l.bf16 %v3265
    %v3826 = vunpack.c.l.bf16 %v3266
    %v3827 = vunpack.c.l.bf16 %v3267
    %v3828 = vunpack.c.h.bf16 %v3263
    %v3829 = vunpack.c.h.bf16 %v3264
    %v3830 = vunpack.c.h.bf16 %v3265
    %v3831 = vunpack.c.h.bf16 %v3266
    %v3832 = vunpack.c.h.bf16 %v3267
    %v3833 = vunpack.c.l.bf16 %v3268
    %v3834 = vunpack.c.l.bf16 %v3269
    %v3835 = vunpack.c.l.bf16 %v3270
    %v3836 = vunpack.c.l.bf16 %v3271
    %v3837 = vunpack.c.l.bf16 %v3272
    %v3838 = vunpack.c.h.bf16 %v3268
    %v3839 = vunpack.c.h.bf16 %v3269
    %v3840 = vunpack.c.h.bf16 %v3270
    %v3841 = vunpack.c.h.bf16 %v3271
    %v3842 = vunpack.c.h.bf16 %v3272
    %v3843 = vunpack.c.l.bf16 %v3273
    %v3844 = vunpack.c.l.bf16 %v3274
    %v3845 = vunpack.c.l.bf16 %v3275
    %v3846 = vunpack.c.l.bf16 %v3276
    %v3847 = vunpack.c.l.bf16 %v3277
    %v3848 = vunpack.c.h.bf16 %v3273
    %v3849 = vunpack.c.h.bf16 %v3274
    %v3850 = vunpack.c.h.bf16 %v3275
    %v3851 = vunpack.c.h.bf16 %v3276
    %v3852 = vunpack.c.h.bf16 %v3277
    %v3853 = vunpack.c.l.bf16 %v3278
    %v3854 = vunpack.c.l.bf16 %v3279
    %v3855 = vunpack.c.l.bf16 %v3280
    %v3856 = vunpack.c.l.bf16 %v3281
    %v3857 = vunpack.c.l.bf16 %v3282
    %v3858 = vunpack.c.h.bf16 %v3278
    %v3859 = vunpack.c.h.bf16 %v3279
    %v3860 = vunpack.c.h.bf16 %v3280
    %v3861 = vunpack.c.h.bf16 %v3281
    %v3862 = vunpack.c.h.bf16 %v3282
    %v3863 = vunpack.c.l.bf16 %v3283
    %v3864 = vunpack.c.l.bf16 %v3284
    %v3865 = vunpack.c.l.bf16 %v3285
    %v3866 = vunpack.c.l.bf16 %v3286
    %v3867 = vunpack.c.l.bf16 %v3287
    %v3868 = vunpack.c.h.bf16 %v3283
    %v3869 = vunpack.c.h.bf16 %v3284
    %v3870 = vunpack.c.h.bf16 %v3285
    %v3871 = vunpack.c.h.bf16 %v3286
    %v3872 = vunpack.c.h.bf16 %v3287
    %v3873 = vunpack.c.l.bf16 %v3288
    %v3874 = vunpack.c.l.bf16 %v3289
    %v3875 = vunpack.c.l.bf16 %v3290
    %v3876 = vunpack.c.l.bf16 %v3291
    %v3877 = vunpack.c.l.bf16 %v3292
    %v3878 = vunpack.c.h.bf16 %v3288
    %v3879 = vunpack.c.h.bf16 %v3289
    %v3880 = vunpack.c.h.bf16 %v3290
    %v3881 = vunpack.c.h.bf16 %v3291
    %v3882 = vunpack.c.h.bf16 %v3292
    %v3883 = vunpack.c.l.bf16 %v3293
    %v3884 = vunpack.c.l.bf16 %v3294
    %v3885 = vunpack.c.l.bf16 %v3295
    %v3886 = vunpack.c.l.bf16 %v3296
    %v3887 = vunpack.c.l.bf16 %v3297
    %v3888 = vunpack.c.h.bf16 %v3293
    %v3889 = vunpack.c.h.bf16 %v3294
    %v3890 = vunpack.c.h.bf16 %v3295
    %v3891 = vunpack.c.h.bf16 %v3296
    %v3892 = vunpack.c.h.bf16 %v3297
    %v3893 = vunpack.c.l.bf16 %v3298
    %v3894 = vunpack.c.l.bf16 %v3299
    %v3895 = vunpack.c.l.bf16 %v3300
    %v3896 = vunpack.c.l.bf16 %v3301
    %v3897 = vunpack.c.l.bf16 %v3302
    %v3898 = vunpack.c.h.bf16 %v3298
    %v3899 = vunpack.c.h.bf16 %v3299
    %v3900 = vunpack.c.h.bf16 %v3300
    %v3901 = vunpack.c.h.bf16 %v3301
    %v3902 = vunpack.c.h.bf16 %v3302
    %v3903 = vunpack.c.l.bf16 %v3303
    %v3904 = vunpack.c.l.bf16 %v3304
    %v3905 = vunpack.c.l.bf16 %v3305
    %v3906 = vunpack.c.l.bf16 %v3306
    %v3907 = vunpack.c.l.bf16 %v3307
    %v3908 = vunpack.c.h.bf16 %v3303
    %v3909 = vunpack.c.h.bf16 %v3304
    %v3910 = vunpack.c.h.bf16 %v3305
    %v3911 = vunpack.c.h.bf16 %v3306
    %v3912 = vunpack.c.h.bf16 %v3307
    %v3913 = vunpack.c.l.bf16 %v3308
    %v3914 = vunpack.c.l.bf16 %v3309
    %v3915 = vunpack.c.l.bf16 %v3310
    %v3916 = vunpack.c.l.bf16 %v3311
    %v3917 = vunpack.c.l.bf16 %v3312
    %v3918 = vunpack.c.h.bf16 %v3308
    %v3919 = vunpack.c.h.bf16 %v3309
    %v3920 = vunpack.c.h.bf16 %v3310
    %v3921 = vunpack.c.h.bf16 %v3311
    %v3922 = vunpack.c.h.bf16 %v3312
    %v3923 = vunpack.c.l.bf16 %v3313
    %v3924 = vunpack.c.l.bf16 %v3314
    %v3925 = vunpack.c.l.bf16 %v3315
    %v3926 = vunpack.c.l.bf16 %v3316
    %v3927 = vunpack.c.l.bf16 %v3317
    %v3928 = vunpack.c.h.bf16 %v3313
    %v3929 = vunpack.c.h.bf16 %v3314
    %v3930 = vunpack.c.h.bf16 %v3315
    %v3931 = vunpack.c.h.bf16 %v3316
    %v3932 = vunpack.c.h.bf16 %v3317
    %v3933 = vunpack.c.l.bf16 %v3318
    %v3934 = vunpack.c.l.bf16 %v3319
    %v3935 = vunpack.c.l.bf16 %v3320
    %v3936 = vunpack.c.l.bf16 %v3321
    %v3937 = vunpack.c.l.bf16 %v3322
    %v3938 = vunpack.c.h.bf16 %v3318
    %v3939 = vunpack.c.h.bf16 %v3319
    %v3940 = vunpack.c.h.bf16 %v3320
    %v3941 = vunpack.c.h.bf16 %v3321
    %v3942 = vunpack.c.h.bf16 %v3322
    %v3943 = vunpack.c.l.bf16 %v3323
    %v3944 = vunpack.c.l.bf16 %v3324
    %v3945 = vunpack.c.l.bf16 %v3325
    %v3946 = vunpack.c.l.bf16 %v3326
    %v3947 = vunpack.c.l.bf16 %v3327
    %v3948 = vunpack.c.h.bf16 %v3323
    %v3949 = vunpack.c.h.bf16 %v3324
    %v3950 = vunpack.c.h.bf16 %v3325
    %v3951 = vunpack.c.h.bf16 %v3326
    %v3952 = vunpack.c.h.bf16 %v3327
    %v3953 = vunpack.c.l.bf16 %v3328
    %v3954 = vunpack.c.l.bf16 %v3329
    %v3955 = vunpack.c.l.bf16 %v3330
    %v3956 = vunpack.c.l.bf16 %v3331
    %v3957 = vunpack.c.l.bf16 %v3332
    %v3958 = vunpack.c.h.bf16 %v3328
    %v3959 = vunpack.c.h.bf16 %v3329
    %v3960 = vunpack.c.h.bf16 %v3330
    %v3961 = vunpack.c.h.bf16 %v3331
    %v3962 = vunpack.c.h.bf16 %v3332
    %v3963 = vunpack.c.l.bf16 %v3333
    %v3964 = vunpack.c.l.bf16 %v3334
    %v3965 = vunpack.c.l.bf16 %v3335
    %v3966 = vunpack.c.l.bf16 %v3336
    %v3967 = vunpack.c.l.bf16 %v3337
    %v3968 = vunpack.c.h.bf16 %v3333
    %v3969 = vunpack.c.h.bf16 %v3334
    %v3970 = vunpack.c.h.bf16 %v3335
    %v3971 = vunpack.c.h.bf16 %v3336
    %v3972 = vunpack.c.h.bf16 %v3337
    %v3973 = vunpack.c.l.bf16 %v3338
    %v3974 = vunpack.c.l.bf16 %v3339
    %v3975 = vunpack.c.l.bf16 %v3340
    %v3976 = vunpack.c.l.bf16 %v3341
    %v3977 = vunpack.c.l.bf16 %v3342
    %v3978 = vunpack.c.h.bf16 %v3338
    %v3979 = vunpack.c.h.bf16 %v3339
    %v3980 = vunpack.c.h.bf16 %v3340
    %v3981 = vunpack.c.h.bf16 %v3341
    %v3982 = vunpack.c.h.bf16 %v3342
    %v3983 = vunpack.c.l.bf16 %v3343
    %v3984 = vunpack.c.l.bf16 %v3344
    %v3985 = vunpack.c.l.bf16 %v3345
    %v3986 = vunpack.c.l.bf16 %v3346
    %v3987 = vunpack.c.l.bf16 %v3347
    %v3988 = vunpack.c.h.bf16 %v3343
    %v3989 = vunpack.c.h.bf16 %v3344
    %v3990 = vunpack.c.h.bf16 %v3345
    %v3991 = vunpack.c.h.bf16 %v3346
    %v3992 = vunpack.c.h.bf16 %v3347
    %v3993 = vunpack.c.l.bf16 %v3348
    %v3994 = vunpack.c.l.bf16 %v3349
    %v3995 = vunpack.c.l.bf16 %v3350
    %v3996 = vunpack.c.l.bf16 %v3351
    %v3997 = vunpack.c.l.bf16 %v3352
    %v3998 = vunpack.c.h.bf16 %v3348
    %v3999 = vunpack.c.h.bf16 %v3349
    %v4000 = vunpack.c.h.bf16 %v3350
    %v4001 = vunpack.c.h.bf16 %v3351
    %v4002 = vunpack.c.h.bf16 %v3352
    %v4003 = vunpack.c.l.bf16 %v3353
    %v4004 = vunpack.c.l.bf16 %v3354
    %v4005 = vunpack.c.l.bf16 %v3355
    %v4006 = vunpack.c.l.bf16 %v3356
    %v4007 = vunpack.c.l.bf16 %v3357
    %v4008 = vunpack.c.h.bf16 %v3353
    %v4009 = vunpack.c.h.bf16 %v3354
    %v4010 = vunpack.c.h.bf16 %v3355
    %v4011 = vunpack.c.h.bf16 %v3356
    %v4012 = vunpack.c.h.bf16 %v3357
    %v4013 = vunpack.c.l.bf16 %v3358
    %v4014 = vunpack.c.l.bf16 %v3359
    %v4015 = vunpack.c.l.bf16 %v3360
    %v4016 = vunpack.c.l.bf16 %v3361
    %v4017 = vunpack.c.l.bf16 %v3362
    %v4018 = vunpack.c.h.bf16 %v3358
    %v4019 = vunpack.c.h.bf16 %v3359
    %v4020 = vunpack.c.h.bf16 %v3360
    %v4021 = vunpack.c.h.bf16 %v3361
    %v4022 = vunpack.c.h.bf16 %v3362
    %v4023 = vunpack.c.l.bf16 %v3363
    %v4024 = vunpack.c.l.bf16 %v3364
    %v4025 = vunpack.c.l.bf16 %v3365
    %v4026 = vunpack.c.l.bf16 %v3366
    %v4027 = vunpack.c.l.bf16 %v3367
    %v4028 = vunpack.c.h.bf16 %v3363
    %v4029 = vunpack.c.h.bf16 %v3364
    %v4030 = vunpack.c.h.bf16 %v3365
    %v4031 = vunpack.c.h.bf16 %v3366
    %v4032 = vunpack.c.h.bf16 %v3367
    %v4033 = vunpack.c.l.bf16 %v3368
    %v4034 = vunpack.c.l.bf16 %v3369
    %v4035 = vunpack.c.l.bf16 %v3370
    %v4036 = vunpack.c.l.bf16 %v3371
    %v4037 = vunpack.c.l.bf16 %v3372
    %v4038 = vunpack.c.h.bf16 %v3368
    %v4039 = vunpack.c.h.bf16 %v3369
    %v4040 = vunpack.c.h.bf16 %v3370
    %v4041 = vunpack.c.h.bf16 %v3371
    %v4042 = vunpack.c.h.bf16 %v3372
    %v4043 = vunpack.c.l.bf16 %v3373
    %v4044 = vunpack.c.l.bf16 %v3374
    %v4045 = vunpack.c.l.bf16 %v3375
    %v4046 = vunpack.c.l.bf16 %v3376
    %v4047 = vunpack.c.l.bf16 %v3377
    %v4048 = vunpack.c.h.bf16 %v3373
    %v4049 = vunpack.c.h.bf16 %v3374
    %v4050 = vunpack.c.h.bf16 %v3375
    %v4051 = vunpack.c.h.bf16 %v3376
    %v4052 = vunpack.c.h.bf16 %v3377
    %v4053 = vunpack.c.l.bf16 %v3378
    %v4054 = vunpack.c.l.bf16 %v3379
    %v4055 = vunpack.c.l.bf16 %v3380
    %v4056 = vunpack.c.l.bf16 %v3381
    %v4057 = vunpack.c.l.bf16 %v3382
    %v4058 = vunpack.c.h.bf16 %v3378
    %v4059 = vunpack.c.h.bf16 %v3379
    %v4060 = vunpack.c.h.bf16 %v3380
    %v4061 = vunpack.c.h.bf16 %v3381
    %v4062 = vunpack.c.h.bf16 %v3382
    %v4063 = vunpack.c.l.bf16 %v3383
    %v4064 = vunpack.c.l.bf16 %v3384
    %v4065 = vunpack.c.l.bf16 %v3385
    %v4066 = vunpack.c.l.bf16 %v3386
    %v4067 = vunpack.c.l.bf16 %v3387
    %v4068 = vunpack.c.h.bf16 %v3383
    %v4069 = vunpack.c.h.bf16 %v3384
    %v4070 = vunpack.c.h.bf16 %v3385
    %v4071 = vunpack.c.h.bf16 %v3386
    %v4072 = vunpack.c.h.bf16 %v3387
    %v4073 = vunpack.c.l.bf16 %v3388
    %v4074 = vunpack.c.l.bf16 %v3389
    %v4075 = vunpack.c.l.bf16 %v3390
    %v4076 = vunpack.c.l.bf16 %v3391
    %v4077 = vunpack.c.l.bf16 %v3392
    %v4078 = vunpack.c.h.bf16 %v3388
    %v4079 = vunpack.c.h.bf16 %v3389
    %v4080 = vunpack.c.h.bf16 %v3390
    %v4081 = vunpack.c.h.bf16 %v3391
    %v4082 = vunpack.c.h.bf16 %v3392
    %v4083 = vunpack.c.l.bf16 %v3393
    %v4084 = vunpack.c.l.bf16 %v3394
    %v4085 = vunpack.c.l.bf16 %v3395
    %v4086 = vunpack.c.l.bf16 %v3396
    %v4087 = vunpack.c.l.bf16 %v3397
    %v4088 = vunpack.c.h.bf16 %v3393
    %v4089 = vunpack.c.h.bf16 %v3394
    %v4090 = vunpack.c.h.bf16 %v3395
    %v4091 = vunpack.c.h.bf16 %v3396
    %v4092 = vunpack.c.h.bf16 %v3397
    %v4093 = vunpack.c.l.bf16 %v3398
    %v4094 = vunpack.c.l.bf16 %v3399
    %v4095 = vunpack.c.l.bf16 %v3400
    %v4096 = vunpack.c.l.bf16 %v3401
    %v4097 = vunpack.c.l.bf16 %v3402
    %v4098 = vunpack.c.h.bf16 %v3398
    %v4099 = vunpack.c.h.bf16 %v3399
    %v4100 = vunpack.c.h.bf16 %v3400
    %v4101 = vunpack.c.h.bf16 %v3401
    %v4102 = vunpack.c.h.bf16 %v3402
    %v4103 = vunpack.c.l.bf16 %v3403
    %v4104 = vunpack.c.l.bf16 %v3404
    %v4105 = vunpack.c.l.bf16 %v3405
    %v4106 = vunpack.c.l.bf16 %v3406
    %v4107 = vunpack.c.l.bf16 %v3407
    %v4108 = vunpack.c.h.bf16 %v3403
    %v4109 = vunpack.c.h.bf16 %v3404
    %v4110 = vunpack.c.h.bf16 %v3405
    %v4111 = vunpack.c.h.bf16 %v3406
    %v4112 = vunpack.c.h.bf16 %v3407
    %v4113 = vunpack.c.l.bf16 %v3408
    %v4114 = vunpack.c.l.bf16 %v3409
    %v4115 = vunpack.c.l.bf16 %v3410
    %v4116 = vunpack.c.l.bf16 %v3411
    %v4117 = vunpack.c.l.bf16 %v3412
    %v4118 = vunpack.c.h.bf16 %v3408
    %v4119 = vunpack.c.h.bf16 %v3409
    %v4120 = vunpack.c.h.bf16 %v3410
    %v4121 = vunpack.c.h.bf16 %v3411
    %v4122 = vunpack.c.h.bf16 %v3412
    %v4123 = vunpack.c.l.bf16 %v3413
    %v4124 = vunpack.c.l.bf16 %v3414
    %v4125 = vunpack.c.l.bf16 %v3415
    %v4126 = vunpack.c.l.bf16 %v3416
    %v4127 = vunpack.c.l.bf16 %v3417
    %v4128 = vunpack.c.h.bf16 %v3413
    %v4129 = vunpack.c.h.bf16 %v3414
    %v4130 = vunpack.c.h.bf16 %v3415
    %v4131 = vunpack.c.h.bf16 %v3416
    %v4132 = vunpack.c.h.bf16 %v3417
    %v4133 = vunpack.c.l.bf16 %v3418
    %v4134 = vunpack.c.l.bf16 %v3419
    %v4135 = vunpack.c.l.bf16 %v3420
    %v4136 = vunpack.c.l.bf16 %v3421
    %v4137 = vunpack.c.l.bf16 %v3422
    %v4138 = vunpack.c.h.bf16 %v3418
    %v4139 = vunpack.c.h.bf16 %v3419
    %v4140 = vunpack.c.h.bf16 %v3420
    %v4141 = vunpack.c.h.bf16 %v3421
    %v4142 = vunpack.c.h.bf16 %v3422
    %v4143 = vunpack.c.l.bf16 %v3423
    %v4144 = vunpack.c.l.bf16 %v3424
    %v4145 = vunpack.c.l.bf16 %v3425
    %v4146 = vunpack.c.l.bf16 %v3426
    %v4147 = vunpack.c.l.bf16 %v3427
    %v4148 = vunpack.c.h.bf16 %v3423
    %v4149 = vunpack.c.h.bf16 %v3424
    %v4150 = vunpack.c.h.bf16 %v3425
    %v4151 = vunpack.c.h.bf16 %v3426
    %v4152 = vunpack.c.h.bf16 %v3427
    %v4153 = vunpack.c.l.bf16 %v3428
    %v4154 = vunpack.c.l.bf16 %v3429
    %v4155 = vunpack.c.l.bf16 %v3430
    %v4156 = vunpack.c.l.bf16 %v3431
    %v4157 = vunpack.c.l.bf16 %v3432
    %v4158 = vunpack.c.h.bf16 %v3428
    %v4159 = vunpack.c.h.bf16 %v3429
    %v4160 = vunpack.c.h.bf16 %v3430
    %v4161 = vunpack.c.h.bf16 %v3431
    %v4162 = vunpack.c.h.bf16 %v3432
    %v4163 = vunpack.c.l.bf16 %v3433
    %v4164 = vunpack.c.l.bf16 %v3434
    %v4165 = vunpack.c.l.bf16 %v3435
    %v4166 = vunpack.c.l.bf16 %v3436
    %v4167 = vunpack.c.l.bf16 %v3437
    %v4168 = vunpack.c.h.bf16 %v3433
    %v4169 = vunpack.c.h.bf16 %v3434
    %v4170 = vunpack.c.h.bf16 %v3435
    %v4171 = vunpack.c.h.bf16 %v3436
    %v4172 = vunpack.c.h.bf16 %v3437
    %v4173 = vunpack.c.l.bf16 %v3438
    %v4174 = vunpack.c.l.bf16 %v3439
    %v4175 = vunpack.c.l.bf16 %v3440
    %v4176 = vunpack.c.l.bf16 %v3441
    %v4177 = vunpack.c.l.bf16 %v3442
    %v4178 = vunpack.c.h.bf16 %v3438
    %v4179 = vunpack.c.h.bf16 %v3439
    %v4180 = vunpack.c.h.bf16 %v3440
    %v4181 = vunpack.c.h.bf16 %v3441
    %v4182 = vunpack.c.h.bf16 %v3442
    %v4183 = vunpack.c.l.bf16 %v3443
    %v4184 = vunpack.c.l.bf16 %v3444
    %v4185 = vunpack.c.l.bf16 %v3445
    %v4186 = vunpack.c.l.bf16 %v3446
    %v4187 = vunpack.c.l.bf16 %v3447
    %v4188 = vunpack.c.h.bf16 %v3443
    %v4189 = vunpack.c.h.bf16 %v3444
    %v4190 = vunpack.c.h.bf16 %v3445
    %v4191 = vunpack.c.h.bf16 %v3446
    %v4192 = vunpack.c.h.bf16 %v3447
    %v4193 = vunpack.c.l.bf16 %v3448
    %v4194 = vunpack.c.l.bf16 %v3449
    %v4195 = vunpack.c.l.bf16 %v3450
    %v4196 = vunpack.c.l.bf16 %v3451
    %v4197 = vunpack.c.l.bf16 %v3452
    %v4198 = vunpack.c.h.bf16 %v3448
    %v4199 = vunpack.c.h.bf16 %v3449
    %v4200 = vunpack.c.h.bf16 %v3450
    %v4201 = vunpack.c.h.bf16 %v3451
    %v4202 = vunpack.c.h.bf16 %v3452
    %v4203 = vunpack.c.l.bf16 %v3453
    %v4204 = vunpack.c.l.bf16 %v3454
    %v4205 = vunpack.c.l.bf16 %v3455
    %v4206 = vunpack.c.l.bf16 %v3456
    %v4207 = vunpack.c.l.bf16 %v3457
    %v4208 = vunpack.c.h.bf16 %v3453
    %v4209 = vunpack.c.h.bf16 %v3454
    %v4210 = vunpack.c.h.bf16 %v3455
    %v4211 = vunpack.c.h.bf16 %v3456
    %v4212 = vunpack.c.h.bf16 %v3457
    %v4213 = vunpack.c.l.bf16 %v3458
    %v4214 = vunpack.c.l.bf16 %v3459
    %v4215 = vunpack.c.l.bf16 %v3460
    %v4216 = vunpack.c.l.bf16 %v3461
    %v4217 = vunpack.c.l.bf16 %v3462
    %v4218 = vunpack.c.h.bf16 %v3458
    %v4219 = vunpack.c.h.bf16 %v3459
    %v4220 = vunpack.c.h.bf16 %v3460
    %v4221 = vunpack.c.h.bf16 %v3461
    %v4222 = vunpack.c.h.bf16 %v3462
    %v4223 = vunpack.c.l.bf16 %v3463
    %v4224 = vunpack.c.l.bf16 %v3464
    %v4225 = vunpack.c.l.bf16 %v3465
    %v4226 = vunpack.c.l.bf16 %v3466
    %v4227 = vunpack.c.l.bf16 %v3467
    %v4228 = vunpack.c.h.bf16 %v3463
    %v4229 = vunpack.c.h.bf16 %v3464
    %v4230 = vunpack.c.h.bf16 %v3465
    %v4231 = vunpack.c.h.bf16 %v3466
    %v4232 = vunpack.c.h.bf16 %v3467
    %v4233 = vunpack.c.l.bf16 %v3468
    %v4234 = vunpack.c.l.bf16 %v3469
    %v4235 = vunpack.c.l.bf16 %v3470
    %v4236 = vunpack.c.l.bf16 %v3471
    %v4237 = vunpack.c.l.bf16 %v3472
    %v4238 = vunpack.c.h.bf16 %v3468
    %v4239 = vunpack.c.h.bf16 %v3469
    %v4240 = vunpack.c.h.bf16 %v3470
    %v4241 = vunpack.c.h.bf16 %v3471
    %v4242 = vunpack.c.h.bf16 %v3472
    %v4243 = vunpack.c.l.bf16 %v3473
    %v4244 = vunpack.c.l.bf16 %v3474
    %v4245 = vunpack.c.l.bf16 %v3475
    %v4246 = vunpack.c.l.bf16 %v3476
    %v4247 = vunpack.c.l.bf16 %v3477
    %v4248 = vunpack.c.h.bf16 %v3473
    %v4249 = vunpack.c.h.bf16 %v3474
    %v4250 = vunpack.c.h.bf16 %v3475
    %v4251 = vunpack.c.h.bf16 %v3476
    %v4252 = vunpack.c.h.bf16 %v3477
    %v4253 = vunpack.c.l.bf16 %v3478
    %v4254 = vunpack.c.l.bf16 %v3479
    %v4255 = vunpack.c.l.bf16 %v3480
    %v4256 = vunpack.c.l.bf16 %v3481
    %v4257 = vunpack.c.l.bf16 %v3482
    %v4258 = vunpack.c.h.bf16 %v3478
    %v4259 = vunpack.c.h.bf16 %v3479
    %v4260 = vunpack.c.h.bf16 %v3480
    %v4261 = vunpack.c.h.bf16 %v3481
    %v4262 = vunpack.c.h.bf16 %v3482
    %v4263 = vunpack.c.l.bf16 %v3483
    %v4264 = vunpack.c.l.bf16 %v3484
    %v4265 = vunpack.c.l.bf16 %v3485
    %v4266 = vunpack.c.l.bf16 %v3486
    %v4267 = vunpack.c.l.bf16 %v3487
    %v4268 = vunpack.c.h.bf16 %v3483
    %v4269 = vunpack.c.h.bf16 %v3484
    %v4270 = vunpack.c.h.bf16 %v3485
    %v4271 = vunpack.c.h.bf16 %v3486
    %v4272 = vunpack.c.h.bf16 %v3487
    %v4273 = vunpack.c.l.bf16 %v3488
    %v4274 = vunpack.c.l.bf16 %v3489
    %v4275 = vunpack.c.l.bf16 %v3490
    %v4276 = vunpack.c.l.bf16 %v3491
    %v4277 = vunpack.c.l.bf16 %v3492
    %v4278 = vunpack.c.h.bf16 %v3488
    %v4279 = vunpack.c.h.bf16 %v3489
    %v4280 = vunpack.c.h.bf16 %v3490
    %v4281 = vunpack.c.h.bf16 %v3491
    %v4282 = vunpack.c.h.bf16 %v3492
    %v4283 = vunpack.c.l.bf16 %v3493
    %v4284 = vunpack.c.l.bf16 %v3494
    %v4285 = vunpack.c.l.bf16 %v3495
    %v4286 = vunpack.c.l.bf16 %v3496
    %v4287 = vunpack.c.l.bf16 %v3497
    %v4288 = vunpack.c.h.bf16 %v3493
    %v4289 = vunpack.c.h.bf16 %v3494
    %v4290 = vunpack.c.h.bf16 %v3495
    %v4291 = vunpack.c.h.bf16 %v3496
    %v4292 = vunpack.c.h.bf16 %v3497
    %v4293 = vunpack.c.l.bf16 %v3498
    %v4294 = vunpack.c.l.bf16 %v3499
    %v4295 = vunpack.c.l.bf16 %v3500
    %v4296 = vunpack.c.l.bf16 %v3501
    %v4297 = vunpack.c.l.bf16 %v3502
    %v4298 = vunpack.c.h.bf16 %v3498
    %v4299 = vunpack.c.h.bf16 %v3499
    %v4300 = vunpack.c.h.bf16 %v3500
    %v4301 = vunpack.c.h.bf16 %v3501
    %v4302 = vunpack.c.h.bf16 %v3502
    %v4303 = vld [vmem:[#allocation20] sm:$0x1f]
    %v4305 = vlaneseq
    %v4306 = vshrl.u32 %v4305, 7
    %v4307 = vsub.s32 0, %v4306
    %v4308 = vrot.slane %v4303, %v4307
    %v4309 = vlaneseq
    %v4310 = vshrl.u32 %v4309, 7
    %v4311 = vsub.s32 1, %v4310
    %v4312 = vrot.slane %v4303, %v4311
    %v4313 = vlaneseq
    %v4314 = vshrl.u32 %v4313, 7
    %v4315 = vsub.s32 2, %v4314
    %v4316 = vrot.slane %v4303, %v4315
    %v4317 = vlaneseq
    %v4318 = vshrl.u32 %v4317, 7
    %v4319 = vsub.s32 3, %v4318
    %v4320 = vrot.slane %v4303, %v4319
    %v4321 = vlaneseq
    %v4322 = vshrl.u32 %v4321, 7
    %v4323 = vsub.s32 4, %v4322
    %v4324 = vrot.slane %v4303, %v4323
    %4330 = vmatprep.subr.mxu0 %v3504
    %4331 = vmatpush1.msra.mxu0 %v3503
    %4332 = vmatprep.subr.mxu0 %v3509
    %4333 = vmatpush1.msra.mxu0 %v3508
    %4334 = vmatprep.subr.mxu0 %v3514
    %4335 = vmatpush1.msra.mxu0 %v3513
    %4336 = vmatprep.subr.mxu0 %v3519
    %4337 = vmatpush1.msra.mxu0 %v3518
    %4338 = vmatprep.subr.mxu0 %v3524
    %4339 = vmatpush1.msra.mxu0 %v3523
    %4340 = vmatprep.subr.mxu0 %v3529
    %4341 = vmatpush1.msra.mxu0 %v3528
    %4342 = vmatprep.subr.mxu0 %v3534
    %4343 = vmatpush1.msra.mxu0 %v3533
    %4344 = vmatprep.subr.mxu0 %v3539
    %4345 = vmatpush1.msra.mxu0 %v3538
    %4346 = vmatprep.subr.mxu0 %v3544
    %4347 = vmatpush1.msra.mxu0 %v3543
    %4348 = vmatprep.subr.mxu0 %v3549
    %4349 = vmatpush1.msra.mxu0 %v3548
    %4350 = vmatprep.subr.mxu0 %v3554
    %4351 = vmatpush1.msra.mxu0 %v3553
    %4352 = vmatprep.subr.mxu0 %v3559
    %4353 = vmatpush1.msra.mxu0 %v3558
    %4354 = vmatprep.subr.mxu0 %v3564
    %4355 = vmatpush1.msra.mxu0 %v3563
    %4356 = vmatprep.subr.mxu0 %v3569
    %4357 = vmatpush1.msra.mxu0 %v3568
    %4358 = vmatprep.subr.mxu0 %v3574
    %4359 = vmatpush1.msra.mxu0 %v3573
    %4360 = vmatprep.subr.mxu0 %v3579
    %4361 = vmatpush1.msra.mxu0 %v3578
    %4362 = vmatprep.subr.mxu0 %v3584
    %4363 = vmatpush1.msra.mxu0 %v3583
    %4364 = vmatprep.subr.mxu0 %v3589
    %4365 = vmatpush1.msra.mxu0 %v3588
    %4366 = vmatprep.subr.mxu0 %v3594
    %4367 = vmatpush1.msra.mxu0 %v3593
    %4368 = vmatprep.subr.mxu0 %v3599
    %4369 = vmatpush1.msra.mxu0 %v3598
    %4370 = vmatprep.subr.mxu0 %v3604
    %4371 = vmatpush1.msra.mxu0 %v3603
    %4372 = vmatprep.subr.mxu0 %v3609
    %4373 = vmatpush1.msra.mxu0 %v3608
    %4374 = vmatprep.subr.mxu0 %v3614
    %4375 = vmatpush1.msra.mxu0 %v3613
    %4376 = vmatprep.subr.mxu0 %v3619
    %4377 = vmatpush1.msra.mxu0 %v3618
    %4378 = vmatprep.subr.mxu0 %v3624
    %4379 = vmatpush1.msra.mxu0 %v3623
    %4380 = vmatprep.subr.mxu0 %v3629
    %4381 = vmatpush1.msra.mxu0 %v3628
    %4382 = vmatprep.subr.mxu0 %v3634
    %4383 = vmatpush1.msra.mxu0 %v3633
    %4384 = vmatprep.subr.mxu0 %v3639
    %4385 = vmatpush1.msra.mxu0 %v3638
    %4386 = vmatprep.subr.mxu0 %v3644
    %4387 = vmatpush1.msra.mxu0 %v3643
    %4388 = vmatprep.subr.mxu0 %v3649
    %4389 = vmatpush1.msra.mxu0 %v3648
    %4390 = vmatprep.subr.mxu0 %v3654
    %4391 = vmatpush1.msra.mxu0 %v3653
    %4392 = vmatprep.subr.mxu0 %v3659
    %4393 = vmatpush1.msra.mxu0 %v3658
    %4394 = vmatprep.mubr.f32.mxu0 %v3090
    %4395 = vmatmul.mubr.f32.gmra.mrb[0].mxu0 %v3089
    %v4396 = vpop.f32.mrb[0].mxu0
    %v4397 = vadd.f32 %v4308, %v4396
    %v4398 = vpop.f32.mrb[0].mxu0
    %v4399 = vadd.f32 %v4312, %v4398
    %4400 = vdwg.mxu0
    %4401 = vmatprep.subr.mxu0 %v3664
    %4402 = vmatpush1.msra.mxu0 %v3663
    %4403 = vmatprep.subr.mxu0 %v3669
    %4404 = vmatpush1.msra.mxu0 %v3668
    %4405 = vmatprep.subr.mxu0 %v3674
    %4406 = vmatpush1.msra.mxu0 %v3673
    %4407 = vmatprep.subr.mxu0 %v3679
    %4408 = vmatpush1.msra.mxu0 %v3678
    %4409 = vmatprep.subr.mxu0 %v3684
    %4410 = vmatpush1.msra.mxu0 %v3683
    %4411 = vmatprep.subr.mxu0 %v3689
    %4412 = vmatpush1.msra.mxu0 %v3688
    %4413 = vmatprep.subr.mxu0 %v3694
    %4414 = vmatpush1.msra.mxu0 %v3693
    %4415 = vmatprep.subr.mxu0 %v3699
    %4416 = vmatpush1.msra.mxu0 %v3698
    %4417 = vmatprep.subr.mxu0 %v3704
    %4418 = vmatpush1.msra.mxu0 %v3703
    %4419 = vmatprep.subr.mxu0 %v3709
    %4420 = vmatpush1.msra.mxu0 %v3708
    %4421 = vmatprep.subr.mxu0 %v3714
    %4422 = vmatpush1.msra.mxu0 %v3713
    %4423 = vmatprep.subr.mxu0 %v3719
    %4424 = vmatpush1.msra.mxu0 %v3718
    %4425 = vmatprep.subr.mxu0 %v3724
    %4426 = vmatpush1.msra.mxu0 %v3723
    %4427 = vmatprep.subr.mxu0 %v3729
    %4428 = vmatpush1.msra.mxu0 %v3728
    %4429 = vmatprep.subr.mxu0 %v3734
    %4430 = vmatpush1.msra.mxu0 %v3733
    %4431 = vmatprep.subr.mxu0 %v3739
    %4432 = vmatpush1.msra.mxu0 %v3738
    %4433 = vmatprep.subr.mxu0 %v3744
    %4434 = vmatpush1.msra.mxu0 %v3743
    %4435 = vmatprep.subr.mxu0 %v3749
    %4436 = vmatpush1.msra.mxu0 %v3748
    %4437 = vmatprep.subr.mxu0 %v3754
    %4438 = vmatpush1.msra.mxu0 %v3753
    %4439 = vmatprep.subr.mxu0 %v3759
    %4440 = vmatpush1.msra.mxu0 %v3758
    %4441 = vmatprep.subr.mxu0 %v3764
    %4442 = vmatpush1.msra.mxu0 %v3763
    %4443 = vmatprep.subr.mxu0 %v3769
    %4444 = vmatpush1.msra.mxu0 %v3768
    %4445 = vmatprep.subr.mxu0 %v3774
    %4446 = vmatpush1.msra.mxu0 %v3773
    %4447 = vmatprep.subr.mxu0 %v3779
    %4448 = vmatpush1.msra.mxu0 %v3778
    %4449 = vmatprep.subr.mxu0 %v3784
    %4450 = vmatpush1.msra.mxu0 %v3783
    %4451 = vmatprep.subr.mxu0 %v3789
    %4452 = vmatpush1.msra.mxu0 %v3788
    %4453 = vmatprep.subr.mxu0 %v3794
    %4454 = vmatpush1.msra.mxu0 %v3793
    %4455 = vmatprep.subr.mxu0 %v3799
    %4456 = vmatpush1.msra.mxu0 %v3798
    %4457 = vmatprep.subr.mxu0 %v3804
    %4458 = vmatpush1.msra.mxu0 %v3803
    %4459 = vmatprep.subr.mxu0 %v3809
    %4460 = vmatpush1.msra.mxu0 %v3808
    %4461 = vmatprep.subr.mxu0 %v3814
    %4462 = vmatpush1.msra.mxu0 %v3813
    %4463 = vmatprep.subr.mxu0 %v3819
    %4464 = vmatpush1.msra.mxu0 %v3818
    %4465 = vmatprep.mubr.f32.mxu0 %v3092
    %4466 = vmatmul.mubr.f32.gmra.mrb[0].mxu0 %v3091
    %v4467 = vpop.f32.mrb[0].mxu0
    %v4468 = vadd.f32 %v4397, %v4467
    %v4469 = vpop.f32.mrb[0].mxu0
    %v4470 = vadd.f32 %v4399, %v4469
    %4471 = vdwg.mxu0
    %4472 = vmatprep.subr.mxu0 %v3824
    %4473 = vmatpush1.msra.mxu0 %v3823
    %4474 = vmatprep.subr.mxu0 %v3829
    %4475 = vmatpush1.msra.mxu0 %v3828
    %4476 = vmatprep.subr.mxu0 %v3834
    %4477 = vmatpush1.msra.mxu0 %v3833
    %4478 = vmatprep.subr.mxu0 %v3839
    %4479 = vmatpush1.msra.mxu0 %v3838
    %4480 = vmatprep.subr.mxu0 %v3844
    %4481 = vmatpush1.msra.mxu0 %v3843
    %4482 = vmatprep.subr.mxu0 %v3849
    %4483 = vmatpush1.msra.mxu0 %v3848
    %4484 = vmatprep.subr.mxu0 %v3854
    %4485 = vmatpush1.msra.mxu0 %v3853
    %4486 = vmatprep.subr.mxu0 %v3859
    %4487 = vmatpush1.msra.mxu0 %v3858
    %4488 = vmatprep.subr.mxu0 %v3864
    %4489 = vmatpush1.msra.mxu0 %v3863
    %4490 = vmatprep.subr.mxu0 %v3869
    %4491 = vmatpush1.msra.mxu0 %v3868
    %4492 = vmatprep.subr.mxu0 %v3874
    %4493 = vmatpush1.msra.mxu0 %v3873
    %4494 = vmatprep.subr.mxu0 %v3879
    %4495 = vmatpush1.msra.mxu0 %v3878
    %4496 = vmatprep.subr.mxu0 %v3884
    %4497 = vmatpush1.msra.mxu0 %v3883
    %4498 = vmatprep.subr.mxu0 %v3889
    %4499 = vmatpush1.msra.mxu0 %v3888
    %4500 = vmatprep.subr.mxu0 %v3894
    %4501 = vmatpush1.msra.mxu0 %v3893
    %4502 = vmatprep.subr.mxu0 %v3899
    %4503 = vmatpush1.msra.mxu0 %v3898
    %4504 = vmatprep.subr.mxu0 %v3904
    %4505 = vmatpush1.msra.mxu0 %v3903
    %4506 = vmatprep.subr.mxu0 %v3909
    %4507 = vmatpush1.msra.mxu0 %v3908
    %4508 = vmatprep.subr.mxu0 %v3914
    %4509 = vmatpush1.msra.mxu0 %v3913
    %4510 = vmatprep.subr.mxu0 %v3919
    %4511 = vmatpush1.msra.mxu0 %v3918
    %4512 = vmatprep.subr.mxu0 %v3924
    %4513 = vmatpush1.msra.mxu0 %v3923
    %4514 = vmatprep.subr.mxu0 %v3929
    %4515 = vmatpush1.msra.mxu0 %v3928
    %4516 = vmatprep.subr.mxu0 %v3934
    %4517 = vmatpush1.msra.mxu0 %v3933
    %4518 = vmatprep.subr.mxu0 %v3939
    %4519 = vmatpush1.msra.mxu0 %v3938
    %4520 = vmatprep.subr.mxu0 %v3944
    %4521 = vmatpush1.msra.mxu0 %v3943
    %4522 = vmatprep.subr.mxu0 %v3949
    %4523 = vmatpush1.msra.mxu0 %v3948
    %4524 = vmatprep.subr.mxu0 %v3954
    %4525 = vmatpush1.msra.mxu0 %v3953
    %4526 = vmatprep.subr.mxu0 %v3959
    %4527 = vmatpush1.msra.mxu0 %v3958
    %4528 = vmatprep.subr.mxu0 %v3964
    %4529 = vmatpush1.msra.mxu0 %v3963
    %4530 = vmatprep.subr.mxu0 %v3969
    %4531 = vmatpush1.msra.mxu0 %v3968
    %4532 = vmatprep.subr.mxu0 %v3974
    %4533 = vmatpush1.msra.mxu0 %v3973
    %4534 = vmatprep.subr.mxu0 %v3979
    %4535 = vmatpush1.msra.mxu0 %v3978
    %4536 = vmatprep.mubr.f32.mxu0 %v3094
    %4537 = vmatmul.mubr.f32.gmra.mrb[0].mxu0 %v3093
    %v4538 = vpop.f32.mrb[0].mxu0
    %v4539 = vadd.f32 %v4468, %v4538
    %v4540 = vpop.f32.mrb[0].mxu0
    %v4541 = vadd.f32 %v4470, %v4540
    %4542 = vdwg.mxu0
    %4543 = vmatprep.subr.mxu0 %v3984
    %4544 = vmatpush1.msra.mxu0 %v3983
    %4545 = vmatprep.subr.mxu0 %v3989
    %4546 = vmatpush1.msra.mxu0 %v3988
    %4547 = vmatprep.subr.mxu0 %v3994
    %4548 = vmatpush1.msra.mxu0 %v3993
    %4549 = vmatprep.subr.mxu0 %v3999
    %4550 = vmatpush1.msra.mxu0 %v3998
    %4551 = vmatprep.subr.mxu0 %v4004
    %4552 = vmatpush1.msra.mxu0 %v4003
    %4553 = vmatprep.subr.mxu0 %v4009
    %4554 = vmatpush1.msra.mxu0 %v4008
    %4555 = vmatprep.subr.mxu0 %v4014
    %4556 = vmatpush1.msra.mxu0 %v4013
    %4557 = vmatprep.subr.mxu0 %v4019
    %4558 = vmatpush1.msra.mxu0 %v4018
    %4559 = vmatprep.subr.mxu0 %v4024
    %4560 = vmatpush1.msra.mxu0 %v4023
    %4561 = vmatprep.subr.mxu0 %v4029
    %4562 = vmatpush1.msra.mxu0 %v4028
    %4563 = vmatprep.subr.mxu0 %v4034
    %4564 = vmatpush1.msra.mxu0 %v4033
    %4565 = vmatprep.subr.mxu0 %v4039
    %4566 = vmatpush1.msra.mxu0 %v4038
    %4567 = vmatprep.subr.mxu0 %v4044
    %4568 = vmatpush1.msra.mxu0 %v4043
    %4569 = vmatprep.subr.mxu0 %v4049
    %4570 = vmatpush1.msra.mxu0 %v4048
    %4571 = vmatprep.subr.mxu0 %v4054
    %4572 = vmatpush1.msra.mxu0 %v4053
    %4573 = vmatprep.subr.mxu0 %v4059
    %4574 = vmatpush1.msra.mxu0 %v4058
    %4575 = vmatprep.subr.mxu0 %v4064
    %4576 = vmatpush1.msra.mxu0 %v4063
    %4577 = vmatprep.subr.mxu0 %v4069
    %4578 = vmatpush1.msra.mxu0 %v4068
    %4579 = vmatprep.subr.mxu0 %v4074
    %4580 = vmatpush1.msra.mxu0 %v4073
    %4581 = vmatprep.subr.mxu0 %v4079
    %4582 = vmatpush1.msra.mxu0 %v4078
    %4583 = vmatprep.subr.mxu0 %v4084
    %4584 = vmatpush1.msra.mxu0 %v4083
    %4585 = vmatprep.subr.mxu0 %v4089
    %4586 = vmatpush1.msra.mxu0 %v4088
    %4587 = vmatprep.subr.mxu0 %v4094
    %4588 = vmatpush1.msra.mxu0 %v4093
    %4589 = vmatprep.subr.mxu0 %v4099
    %4590 = vmatpush1.msra.mxu0 %v4098
    %4591 = vmatprep.subr.mxu0 %v4104
    %4592 = vmatpush1.msra.mxu0 %v4103
    %4593 = vmatprep.subr.mxu0 %v4109
    %4594 = vmatpush1.msra.mxu0 %v4108
    %4595 = vmatprep.subr.mxu0 %v4114
    %4596 = vmatpush1.msra.mxu0 %v4113
    %4597 = vmatprep.subr.mxu0 %v4119
    %4598 = vmatpush1.msra.mxu0 %v4118
    %4599 = vmatprep.subr.mxu0 %v4124
    %4600 = vmatpush1.msra.mxu0 %v4123
    %4601 = vmatprep.subr.mxu0 %v4129
    %4602 = vmatpush1.msra.mxu0 %v4128
    %4603 = vmatprep.subr.mxu0 %v4134
    %4604 = vmatpush1.msra.mxu0 %v4133
    %4605 = vmatprep.subr.mxu0 %v4139
    %4606 = vmatpush1.msra.mxu0 %v4138
    %4607 = vmatprep.mubr.f32.mxu0 %v3096
    %4608 = vmatmul.mubr.f32.gmra.mrb[0].mxu0 %v3095
    %v4609 = vpop.f32.mrb[0].mxu0
    %v4610 = vadd.f32 %v4539, %v4609
    %v4611 = vpop.f32.mrb[0].mxu0
    %v4612 = vadd.f32 %v4541, %v4611
    %4613 = vdwg.mxu0
    %4614 = vmatprep.subr.mxu0 %v4144
    %4615 = vmatpush1.msra.mxu0 %v4143
    %4616 = vmatprep.subr.mxu0 %v4149
    %4617 = vmatpush1.msra.mxu0 %v4148
    %4618 = vmatprep.subr.mxu0 %v4154
    %4619 = vmatpush1.msra.mxu0 %v4153
    %4620 = vmatprep.subr.mxu0 %v4159
    %4621 = vmatpush1.msra.mxu0 %v4158
    %4622 = vmatprep.subr.mxu0 %v4164
    %4623 = vmatpush1.msra.mxu0 %v4163
    %4624 = vmatprep.subr.mxu0 %v4169
    %4625 = vmatpush1.msra.mxu0 %v4168
    %4626 = vmatprep.subr.mxu0 %v4174
    %4627 = vmatpush1.msra.mxu0 %v4173
    %4628 = vmatprep.subr.mxu0 %v4179
    %4629 = vmatpush1.msra.mxu0 %v4178
    %4630 = vmatprep.subr.mxu0 %v4184
    %4631 = vmatpush1.msra.mxu0 %v4183
    %4632 = vmatprep.subr.mxu0 %v4189
    %4633 = vmatpush1.msra.mxu0 %v4188
    %4634 = vmatprep.subr.mxu0 %v4194
    %4635 = vmatpush1.msra.mxu0 %v4193
    %4636 = vmatprep.subr.mxu0 %v4199
    %4637 = vmatpush1.msra.mxu0 %v4198
    %4638 = vmatprep.subr.mxu0 %v4204
    %4639 = vmatpush1.msra.mxu0 %v4203
    %4640 = vmatprep.subr.mxu0 %v4209
    %4641 = vmatpush1.msra.mxu0 %v4208
    %4642 = vmatprep.subr.mxu0 %v4214
    %4643 = vmatpush1.msra.mxu0 %v4213
    %4644 = vmatprep.subr.mxu0 %v4219
    %4645 = vmatpush1.msra.mxu0 %v4218
    %4646 = vmatprep.subr.mxu0 %v4224
    %4647 = vmatpush1.msra.mxu0 %v4223
    %4648 = vmatprep.subr.mxu0 %v4229
    %4649 = vmatpush1.msra.mxu0 %v4228
    %4650 = vmatprep.subr.mxu0 %v4234
    %4651 = vmatpush1.msra.mxu0 %v4233
    %4652 = vmatprep.subr.mxu0 %v4239
    %4653 = vmatpush1.msra.mxu0 %v4238
    %4654 = vmatprep.subr.mxu0 %v4244
    %4655 = vmatpush1.msra.mxu0 %v4243
    %4656 = vmatprep.subr.mxu0 %v4249
    %4657 = vmatpush1.msra.mxu0 %v4248
    %4658 = vmatprep.subr.mxu0 %v4254
    %4659 = vmatpush1.msra.mxu0 %v4253
    %4660 = vmatprep.subr.mxu0 %v4259
    %4661 = vmatpush1.msra.mxu0 %v4258
    %4662 = vmatprep.subr.mxu0 %v4264
    %4663 = vmatpush1.msra.mxu0 %v4263
    %4664 = vmatprep.subr.mxu0 %v4269
    %4665 = vmatpush1.msra.mxu0 %v4268
    %4666 = vmatprep.subr.mxu0 %v4274
    %4667 = vmatpush1.msra.mxu0 %v4273
    %4668 = vmatprep.subr.mxu0 %v4279
    %4669 = vmatpush1.msra.mxu0 %v4278
    %4670 = vmatprep.subr.mxu0 %v4284
    %4671 = vmatpush1.msra.mxu0 %v4283
    %4672 = vmatprep.subr.mxu0 %v4289
    %4673 = vmatpush1.msra.mxu0 %v4288
    %4674 = vmatprep.subr.mxu0 %v4294
    %4675 = vmatpush1.msra.mxu0 %v4293
    %4676 = vmatprep.subr.mxu0 %v4299
    %4677 = vmatpush1.msra.mxu0 %v4298
    %4678 = vmatprep.mubr.f32.mxu0 %v3098
    %4679 = vmatmul.mubr.f32.gmra.mrb[0].mxu0 %v3097
    %v4680 = vpop.f32.mrb[0].mxu0
    %v4681 = vadd.f32 %v4610, %v4680
    %v4682 = vpop.f32.mrb[0].mxu0
    %v4683 = vadd.f32 %v4612, %v4682
    %4684 = vdwg.mxu0
    %4685 = vmatprep.subr.mxu0 %v3506
    %4686 = vmatpush1.msra.mxu0 %v3505
    %4687 = vmatprep.subr.mxu0 %v3511
    %4688 = vmatpush1.msra.mxu0 %v3510
    %4689 = vmatprep.subr.mxu0 %v3516
    %4690 = vmatpush1.msra.mxu0 %v3515
    %4691 = vmatprep.subr.mxu0 %v3521
    %4692 = vmatpush1.msra.mxu0 %v3520
    %4693 = vmatprep.subr.mxu0 %v3526
    %4694 = vmatpush1.msra.mxu0 %v3525
    %4695 = vmatprep.subr.mxu0 %v3531
    %4696 = vmatpush1.msra.mxu0 %v3530
    %4697 = vmatprep.subr.mxu0 %v3536
    %4698 = vmatpush1.msra.mxu0 %v3535
    %4699 = vmatprep.subr.mxu0 %v3541
    %4700 = vmatpush1.msra.mxu0 %v3540
    %4701 = vmatprep.subr.mxu0 %v3546
    %4702 = vmatpush1.msra.mxu0 %v3545
    %4703 = vmatprep.subr.mxu0 %v3551
    %4704 = vmatpush1.msra.mxu0 %v3550
    %4705 = vmatprep.subr.mxu0 %v3556
    %4706 = vmatpush1.msra.mxu0 %v3555
    %4707 = vmatprep.subr.mxu0 %v3561
    %4708 = vmatpush1.msra.mxu0 %v3560
    %4709 = vmatprep.subr.mxu0 %v3566
    %4710 = vmatpush1.msra.mxu0 %v3565
    %4711 = vmatprep.subr.mxu0 %v3571
    %4712 = vmatpush1.msra.mxu0 %v3570
    %4713 = vmatprep.subr.mxu0 %v3576
    %4714 = vmatpush1.msra.mxu0 %v3575
    %4715 = vmatprep.subr.mxu0 %v3581
    %4716 = vmatpush1.msra.mxu0 %v3580
    %4717 = vmatprep.subr.mxu0 %v3586
    %4718 = vmatpush1.msra.mxu0 %v3585
    %4719 = vmatprep.subr.mxu0 %v3591
    %4720 = vmatpush1.msra.mxu0 %v3590
    %4721 = vmatprep.subr.mxu0 %v3596
    %4722 = vmatpush1.msra.mxu0 %v3595
    %4723 = vmatprep.subr.mxu0 %v3601
    %4724 = vmatpush1.msra.mxu0 %v3600
    %4725 = vmatprep.subr.mxu0 %v3606
    %4726 = vmatpush1.msra.mxu0 %v3605
    %4727 = vmatprep.subr.mxu0 %v3611
    %4728 = vmatpush1.msra.mxu0 %v3610
    %4729 = vmatprep.subr.mxu0 %v3616
    %4730 = vmatpush1.msra.mxu0 %v3615
    %4731 = vmatprep.subr.mxu0 %v3621
    %4732 = vmatpush1.msra.mxu0 %v3620
    %4733 = vmatprep.subr.mxu0 %v3626
    %4734 = vmatpush1.msra.mxu0 %v3625
    %4735 = vmatprep.subr.mxu0 %v3631
    %4736 = vmatpush1.msra.mxu0 %v3630
    %4737 = vmatprep.subr.mxu0 %v3636
    %4738 = vmatpush1.msra.mxu0 %v3635
    %4739 = vmatprep.subr.mxu0 %v3641
    %4740 = vmatpush1.msra.mxu0 %v3640
    %4741 = vmatprep.subr.mxu0 %v3646
    %4742 = vmatpush1.msra.mxu0 %v3645
    %4743 = vmatprep.subr.mxu0 %v3651
    %4744 = vmatpush1.msra.mxu0 %v3650
    %4745 = vmatprep.subr.mxu0 %v3656
    %4746 = vmatpush1.msra.mxu0 %v3655
    %4747 = vmatprep.subr.mxu0 %v3661
    %4748 = vmatpush1.msra.mxu0 %v3660
    %4749 = vmatprep.mubr.f32.mxu0 %v3090
    %4750 = vmatmul.mubr.f32.gmra.mrb[0].mxu0 %v3089
    %v4751 = vpop.f32.mrb[0].mxu0
    %v4752 = vadd.f32 %v4316, %v4751
    %v4753 = vpop.f32.mrb[0].mxu0
    %v4754 = vadd.f32 %v4320, %v4753
    %4755 = vdwg.mxu0
    %4756 = vmatprep.subr.mxu0 %v3666
    %4757 = vmatpush1.msra.mxu0 %v3665
    %4758 = vmatprep.subr.mxu0 %v3671
    %4759 = vmatpush1.msra.mxu0 %v3670
    %4760 = vmatprep.subr.mxu0 %v3676
    %4761 = vmatpush1.msra.mxu0 %v3675
    %4762 = vmatprep.subr.mxu0 %v3681
    %4763 = vmatpush1.msra.mxu0 %v3680
    %4764 = vmatprep.subr.mxu0 %v3686
    %4765 = vmatpush1.msra.mxu0 %v3685
    %4766 = vmatprep.subr.mxu0 %v3691
    %4767 = vmatpush1.msra.mxu0 %v3690
    %4768 = vmatprep.subr.mxu0 %v3696
    %4769 = vmatpush1.msra.mxu0 %v3695
    %4770 = vmatprep.subr.mxu0 %v3701
    %4771 = vmatpush1.msra.mxu0 %v3700
    %4772 = vmatprep.subr.mxu0 %v3706
    %4773 = vmatpush1.msra.mxu0 %v3705
    %4774 = vmatprep.subr.mxu0 %v3711
    %4775 = vmatpush1.msra.mxu0 %v3710
    %4776 = vmatprep.subr.mxu0 %v3716
    %4777 = vmatpush1.msra.mxu0 %v3715
    %4778 = vmatprep.subr.mxu0 %v3721
    %4779 = vmatpush1.msra.mxu0 %v3720
    %4780 = vmatprep.subr.mxu0 %v3726
    %4781 = vmatpush1.msra.mxu0 %v3725
    %4782 = vmatprep.subr.mxu0 %v3731
    %4783 = vmatpush1.msra.mxu0 %v3730
    %4784 = vmatprep.subr.mxu0 %v3736
    %4785 = vmatpush1.msra.mxu0 %v3735
    %4786 = vmatprep.subr.mxu0 %v3741
    %4787 = vmatpush1.msra.mxu0 %v3740
    %4788 = vmatprep.subr.mxu0 %v3746
    %4789 = vmatpush1.msra.mxu0 %v3745
    %4790 = vmatprep.subr.mxu0 %v3751
    %4791 = vmatpush1.msra.mxu0 %v3750
    %4792 = vmatprep.subr.mxu0 %v3756
    %4793 = vmatpush1.msra.mxu0 %v3755
    %4794 = vmatprep.subr.mxu0 %v3761
    %4795 = vmatpush1.msra.mxu0 %v3760
    %4796 = vmatprep.subr.mxu0 %v3766
    %4797 = vmatpush1.msra.mxu0 %v3765
    %4798 = vmatprep.subr.mxu0 %v3771
    %4799 = vmatpush1.msra.mxu0 %v3770
    %4800 = vmatprep.subr.mxu0 %v3776
    %4801 = vmatpush1.msra.mxu0 %v3775
    %4802 = vmatprep.subr.mxu0 %v3781
    %4803 = vmatpush1.msra.mxu0 %v3780
    %4804 = vmatprep.subr.mxu0 %v3786
    %4805 = vmatpush1.msra.mxu0 %v3785
    %4806 = vmatprep.subr.mxu0 %v3791
    %4807 = vmatpush1.msra.mxu0 %v3790
    %4808 = vmatprep.subr.mxu0 %v3796
    %4809 = vmatpush1.msra.mxu0 %v3795
    %4810 = vmatprep.subr.mxu0 %v3801
    %4811 = vmatpush1.msra.mxu0 %v3800
    %4812 = vmatprep.subr.mxu0 %v3806
    %4813 = vmatpush1.msra.mxu0 %v3805
    %4814 = vmatprep.subr.mxu0 %v3811
    %4815 = vmatpush1.msra.mxu0 %v3810
    %4816 = vmatprep.subr.mxu0 %v3816
    %4817 = vmatpush1.msra.mxu0 %v3815
    %4818 = vmatprep.subr.mxu0 %v3821
    %4819 = vmatpush1.msra.mxu0 %v3820
    %4820 = vmatprep.mubr.f32.mxu0 %v3092
    %4821 = vmatmul.mubr.f32.gmra.mrb[0].mxu0 %v3091
    %v4822 = vpop.f32.mrb[0].mxu0
    %v4823 = vadd.f32 %v4752, %v4822
    %v4824 = vpop.f32.mrb[0].mxu0
    %v4825 = vadd.f32 %v4754, %v4824
    %4826 = vdwg.mxu0
    %4827 = vmatprep.subr.mxu0 %v3826
    %4828 = vmatpush1.msra.mxu0 %v3825
    %4829 = vmatprep.subr.mxu0 %v3831
    %4830 = vmatpush1.msra.mxu0 %v3830
    %4831 = vmatprep.subr.mxu0 %v3836
    %4832 = vmatpush1.msra.mxu0 %v3835
    %4833 = vmatprep.subr.mxu0 %v3841
    %4834 = vmatpush1.msra.mxu0 %v3840
    %4835 = vmatprep.subr.mxu0 %v3846
    %4836 = vmatpush1.msra.mxu0 %v3845
    %4837 = vmatprep.subr.mxu0 %v3851
    %4838 = vmatpush1.msra.mxu0 %v3850
    %4839 = vmatprep.subr.mxu0 %v3856
    %4840 = vmatpush1.msra.mxu0 %v3855
    %4841 = vmatprep.subr.mxu0 %v3861
    %4842 = vmatpush1.msra.mxu0 %v3860
    %4843 = vmatprep.subr.mxu0 %v3866
    %4844 = vmatpush1.msra.mxu0 %v3865
    %4845 = vmatprep.subr.mxu0 %v3871
    %4846 = vmatpush1.msra.mxu0 %v3870
    %4847 = vmatprep.subr.mxu0 %v3876
    %4848 = vmatpush1.msra.mxu0 %v3875
    %4849 = vmatprep.subr.mxu0 %v3881
    %4850 = vmatpush1.msra.mxu0 %v3880
    %4851 = vmatprep.subr.mxu0 %v3886
    %4852 = vmatpush1.msra.mxu0 %v3885
    %4853 = vmatprep.subr.mxu0 %v3891
    %4854 = vmatpush1.msra.mxu0 %v3890
    %4855 = vmatprep.subr.mxu0 %v3896
    %4856 = vmatpush1.msra.mxu0 %v3895
    %4857 = vmatprep.subr.mxu0 %v3901
    %4858 = vmatpush1.msra.mxu0 %v3900
    %4859 = vmatprep.subr.mxu0 %v3906
    %4860 = vmatpush1.msra.mxu0 %v3905
    %4861 = vmatprep.subr.mxu0 %v3911
    %4862 = vmatpush1.msra.mxu0 %v3910
    %4863 = vmatprep.subr.mxu0 %v3916
    %4864 = vmatpush1.msra.mxu0 %v3915
    %4865 = vmatprep.subr.mxu0 %v3921
    %4866 = vmatpush1.msra.mxu0 %v3920
    %4867 = vmatprep.subr.mxu0 %v3926
    %4868 = vmatpush1.msra.mxu0 %v3925
    %4869 = vmatprep.subr.mxu0 %v3931
    %4870 = vmatpush1.msra.mxu0 %v3930
    %4871 = vmatprep.subr.mxu0 %v3936
    %4872 = vmatpush1.msra.mxu0 %v3935
    %4873 = vmatprep.subr.mxu0 %v3941
    %4874 = vmatpush1.msra.mxu0 %v3940
    %4875 = vmatprep.subr.mxu0 %v3946
    %4876 = vmatpush1.msra.mxu0 %v3945
    %4877 = vmatprep.subr.mxu0 %v3951
    %4878 = vmatpush1.msra.mxu0 %v3950
    %4879 = vmatprep.subr.mxu0 %v3956
    %4880 = vmatpush1.msra.mxu0 %v3955
    %4881 = vmatprep.subr.mxu0 %v3961
    %4882 = vmatpush1.msra.mxu0 %v3960
    %4883 = vmatprep.subr.mxu0 %v3966
    %4884 = vmatpush1.msra.mxu0 %v3965
    %4885 = vmatprep.subr.mxu0 %v3971
    %4886 = vmatpush1.msra.mxu0 %v3970
    %4887 = vmatprep.subr.mxu0 %v3976
    %4888 = vmatpush1.msra.mxu0 %v3975
    %4889 = vmatprep.subr.mxu0 %v3981
    %4890 = vmatpush1.msra.mxu0 %v3980
    %4891 = vmatprep.mubr.f32.mxu0 %v3094
    %4892 = vmatmul.mubr.f32.gmra.mrb[0].mxu0 %v3093
    %v4893 = vpop.f32.mrb[0].mxu0
    %v4894 = vadd.f32 %v4823, %v4893
    %v4895 = vpop.f32.mrb[0].mxu0
    %v4896 = vadd.f32 %v4825, %v4895
    %4897 = vdwg.mxu0
    %4898 = vmatprep.subr.mxu0 %v3986
    %4899 = vmatpush1.msra.mxu0 %v3985
    %4900 = vmatprep.subr.mxu0 %v3991
    %4901 = vmatpush1.msra.mxu0 %v3990
    %4902 = vmatprep.subr.mxu0 %v3996
    %4903 = vmatpush1.msra.mxu0 %v3995
    %4904 = vmatprep.subr.mxu0 %v4001
    %4905 = vmatpush1.msra.mxu0 %v4000
    %4906 = vmatprep.subr.mxu0 %v4006
    %4907 = vmatpush1.msra.mxu0 %v4005
    %4908 = vmatprep.subr.mxu0 %v4011
    %4909 = vmatpush1.msra.mxu0 %v4010
    %4910 = vmatprep.subr.mxu0 %v4016
    %4911 = vmatpush1.msra.mxu0 %v4015
    %4912 = vmatprep.subr.mxu0 %v4021
    %4913 = vmatpush1.msra.mxu0 %v4020
    %4914 = vmatprep.subr.mxu0 %v4026
    %4915 = vmatpush1.msra.mxu0 %v4025
    %4916 = vmatprep.subr.mxu0 %v4031
    %4917 = vmatpush1.msra.mxu0 %v4030
    %4918 = vmatprep.subr.mxu0 %v4036
    %4919 = vmatpush1.msra.mxu0 %v4035
    %4920 = vmatprep.subr.mxu0 %v4041
    %4921 = vmatpush1.msra.mxu0 %v4040
    %4922 = vmatprep.subr.mxu0 %v4046
    %4923 = vmatpush1.msra.mxu0 %v4045
    %4924 = vmatprep.subr.mxu0 %v4051
    %4925 = vmatpush1.msra.mxu0 %v4050
    %4926 = vmatprep.subr.mxu0 %v4056
    %4927 = vmatpush1.msra.mxu0 %v4055
    %4928 = vmatprep.subr.mxu0 %v4061
    %4929 = vmatpush1.msra.mxu0 %v4060
    %4930 = vmatprep.subr.mxu0 %v4066
    %4931 = vmatpush1.msra.mxu0 %v4065
    %4932 = vmatprep.subr.mxu0 %v4071
    %4933 = vmatpush1.msra.mxu0 %v4070
    %4934 = vmatprep.subr.mxu0 %v4076
    %4935 = vmatpush1.msra.mxu0 %v4075
    %4936 = vmatprep.subr.mxu0 %v4081
    %4937 = vmatpush1.msra.mxu0 %v4080
    %4938 = vmatprep.subr.mxu0 %v4086
    %4939 = vmatpush1.msra.mxu0 %v4085
    %4940 = vmatprep.subr.mxu0 %v4091
    %4941 = vmatpush1.msra.mxu0 %v4090
    %4942 = vmatprep.subr.mxu0 %v4096
    %4943 = vmatpush1.msra.mxu0 %v4095
    %4944 = vmatprep.subr.mxu0 %v4101
    %4945 = vmatpush1.msra.mxu0 %v4100
    %4946 = vmatprep.subr.mxu0 %v4106
    %4947 = vmatpush1.msra.mxu0 %v4105
    %4948 = vmatprep.subr.mxu0 %v4111
    %4949 = vmatpush1.msra.mxu0 %v4110
    %4950 = vmatprep.subr.mxu0 %v4116
    %4951 = vmatpush1.msra.mxu0 %v4115
    %4952 = vmatprep.subr.mxu0 %v4121
    %4953 = vmatpush1.msra.mxu0 %v4120
    %4954 = vmatprep.subr.mxu0 %v4126
    %4955 = vmatpush1.msra.mxu0 %v4125
    %4956 = vmatprep.subr.mxu0 %v4131
    %4957 = vmatpush1.msra.mxu0 %v4130
    %4958 = vmatprep.subr.mxu0 %v4136
    %4959 = vmatpush1.msra.mxu0 %v4135
    %4960 = vmatprep.subr.mxu0 %v4141
    %4961 = vmatpush1.msra.mxu0 %v4140
    %4962 = vmatprep.mubr.f32.mxu0 %v3096
    %4963 = vmatmul.mubr.f32.gmra.mrb[0].mxu0 %v3095
    %v4964 = vpop.f32.mrb[0].mxu0
    %v4965 = vadd.f32 %v4894, %v4964
    %v4966 = vpop.f32.mrb[0].mxu0
    %v4967 = vadd.f32 %v4896, %v4966
    %4968 = vdwg.mxu0
    %4969 = vmatprep.subr.mxu0 %v4146
    %4970 = vmatpush1.msra.mxu0 %v4145
    %4971 = vmatprep.subr.mxu0 %v4151
    %4972 = vmatpush1.msra.mxu0 %v4150
    %4973 = vmatprep.subr.mxu0 %v4156
    %4974 = vmatpush1.msra.mxu0 %v4155
    %4975 = vmatprep.subr.mxu0 %v4161
    %4976 = vmatpush1.msra.mxu0 %v4160
    %4977 = vmatprep.subr.mxu0 %v4166
    %4978 = vmatpush1.msra.mxu0 %v4165
    %4979 = vmatprep.subr.mxu0 %v4171
    %4980 = vmatpush1.msra.mxu0 %v4170
    %4981 = vmatprep.subr.mxu0 %v4176
    %4982 = vmatpush1.msra.mxu0 %v4175
    %4983 = vmatprep.subr.mxu0 %v4181
    %4984 = vmatpush1.msra.mxu0 %v4180
    %4985 = vmatprep.subr.mxu0 %v4186
    %4986 = vmatpush1.msra.mxu0 %v4185
    %4987 = vmatprep.subr.mxu0 %v4191
    %4988 = vmatpush1.msra.mxu0 %v4190
    %4989 = vmatprep.subr.mxu0 %v4196
    %4990 = vmatpush1.msra.mxu0 %v4195
    %4991 = vmatprep.subr.mxu0 %v4201
    %4992 = vmatpush1.msra.mxu0 %v4200
    %4993 = vmatprep.subr.mxu0 %v4206
    %4994 = vmatpush1.msra.mxu0 %v4205
    %4995 = vmatprep.subr.mxu0 %v4211
    %4996 = vmatpush1.msra.mxu0 %v4210
    %4997 = vmatprep.subr.mxu0 %v4216
    %4998 = vmatpush1.msra.mxu0 %v4215
    %4999 = vmatprep.subr.mxu0 %v4221
    %5000 = vmatpush1.msra.mxu0 %v4220
    %5001 = vmatprep.subr.mxu0 %v4226
    %5002 = vmatpush1.msra.mxu0 %v4225
    %5003 = vmatprep.subr.mxu0 %v4231
    %5004 = vmatpush1.msra.mxu0 %v4230
    %5005 = vmatprep.subr.mxu0 %v4236
    %5006 = vmatpush1.msra.mxu0 %v4235
    %5007 = vmatprep.subr.mxu0 %v4241
    %5008 = vmatpush1.msra.mxu0 %v4240
    %5009 = vmatprep.subr.mxu0 %v4246
    %5010 = vmatpush1.msra.mxu0 %v4245
    %5011 = vmatprep.subr.mxu0 %v4251
    %5012 = vmatpush1.msra.mxu0 %v4250
    %5013 = vmatprep.subr.mxu0 %v4256
    %5014 = vmatpush1.msra.mxu0 %v4255
    %5015 = vmatprep.subr.mxu0 %v4261
    %5016 = vmatpush1.msra.mxu0 %v4260
    %5017 = vmatprep.subr.mxu0 %v4266
    %5018 = vmatpush1.msra.mxu0 %v4265
    %5019 = vmatprep.subr.mxu0 %v4271
    %5020 = vmatpush1.msra.mxu0 %v4270
    %5021 = vmatprep.subr.mxu0 %v4276
    %5022 = vmatpush1.msra.mxu0 %v4275
    %5023 = vmatprep.subr.mxu0 %v4281
    %5024 = vmatpush1.msra.mxu0 %v4280
    %5025 = vmatprep.subr.mxu0 %v4286
    %5026 = vmatpush1.msra.mxu0 %v4285
    %5027 = vmatprep.subr.mxu0 %v4291
    %5028 = vmatpush1.msra.mxu0 %v4290
    %5029 = vmatprep.subr.mxu0 %v4296
    %5030 = vmatpush1.msra.mxu0 %v4295
    %5031 = vmatprep.subr.mxu0 %v4301
    %5032 = vmatpush1.msra.mxu0 %v4300
    %5033 = vmatprep.mubr.f32.mxu0 %v3098
    %5034 = vmatmul.mubr.f32.gmra.mrb[0].mxu0 %v3097
    %v5035 = vpop.f32.mrb[0].mxu0
    %v5036 = vadd.f32 %v4965, %v5035
    %v5037 = vpop.f32.mrb[0].mxu0
    %v5038 = vadd.f32 %v4967, %v5037
    %5039 = vdwg.mxu0
    %5040 = vmatprep.subr.mxu0 0.0
    %5041 = vmatpush1.msra.mxu0 %v3507
    %5042 = vmatprep.subr.mxu0 0.0
    %5043 = vmatpush1.msra.mxu0 %v3512
    %5044 = vmatprep.subr.mxu0 0.0
    %5045 = vmatpush1.msra.mxu0 %v3517
    %5046 = vmatprep.subr.mxu0 0.0
    %5047 = vmatpush1.msra.mxu0 %v3522
    %5048 = vmatprep.subr.mxu0 0.0
    %5049 = vmatpush1.msra.mxu0 %v3527
    %5050 = vmatprep.subr.mxu0 0.0
    %5051 = vmatpush1.msra.mxu0 %v3532
    %5052 = vmatprep.subr.mxu0 0.0
    %5053 = vmatpush1.msra.mxu0 %v3537
    %5054 = vmatprep.subr.mxu0 0.0
    %5055 = vmatpush1.msra.mxu0 %v3542
    %5056 = vmatprep.subr.mxu0 0.0
    %5057 = vmatpush1.msra.mxu0 %v3547
    %5058 = vmatprep.subr.mxu0 0.0
    %5059 = vmatpush1.msra.mxu0 %v3552
    %5060 = vmatprep.subr.mxu0 0.0
    %5061 = vmatpush1.msra.mxu0 %v3557
    %5062 = vmatprep.subr.mxu0 0.0
    %5063 = vmatpush1.msra.mxu0 %v3562
    %5064 = vmatprep.subr.mxu0 0.0
    %5065 = vmatpush1.msra.mxu0 %v3567
    %5066 = vmatprep.subr.mxu0 0.0
    %5067 = vmatpush1.msra.mxu0 %v3572
    %5068 = vmatprep.subr.mxu0 0.0
    %5069 = vmatpush1.msra.mxu0 %v3577
    %5070 = vmatprep.subr.mxu0 0.0
    %5071 = vmatpush1.msra.mxu0 %v3582
    %5072 = vmatprep.subr.mxu0 0.0
    %5073 = vmatpush1.msra.mxu0 %v3587
    %5074 = vmatprep.subr.mxu0 0.0
    %5075 = vmatpush1.msra.mxu0 %v3592
    %5076 = vmatprep.subr.mxu0 0.0
    %5077 = vmatpush1.msra.mxu0 %v3597
    %5078 = vmatprep.subr.mxu0 0.0
    %5079 = vmatpush1.msra.mxu0 %v3602
    %5080 = vmatprep.subr.mxu0 0.0
    %5081 = vmatpush1.msra.mxu0 %v3607
    %5082 = vmatprep.subr.mxu0 0.0
    %5083 = vmatpush1.msra.mxu0 %v3612
    %5084 = vmatprep.subr.mxu0 0.0
    %5085 = vmatpush1.msra.mxu0 %v3617
    %5086 = vmatprep.subr.mxu0 0.0
    %5087 = vmatpush1.msra.mxu0 %v3622
    %5088 = vmatprep.subr.mxu0 0.0
    %5089 = vmatpush1.msra.mxu0 %v3627
    %5090 = vmatprep.subr.mxu0 0.0
    %5091 = vmatpush1.msra.mxu0 %v3632
    %5092 = vmatprep.subr.mxu0 0.0
    %5093 = vmatpush1.msra.mxu0 %v3637
    %5094 = vmatprep.subr.mxu0 0.0
    %5095 = vmatpush1.msra.mxu0 %v3642
    %5096 = vmatprep.subr.mxu0 0.0
    %5097 = vmatpush1.msra.mxu0 %v3647
    %5098 = vmatprep.subr.mxu0 0.0
    %5099 = vmatpush1.msra.mxu0 %v3652
    %5100 = vmatprep.subr.mxu0 0.0
    %5101 = vmatpush1.msra.mxu0 %v3657
    %5102 = vmatprep.subr.mxu0 0.0
    %5103 = vmatpush1.msra.mxu0 %v3662
    %5104 = vmatprep.mubr.f32.mxu0 %v3090
    %5105 = vmatmul.mubr.f32.gmra.mrb[0].mxu0 %v3089
    %v5106 = vpop.f32.mrb[0].mxu0
    %v5107 = vadd.f32 %v4324, %v5106
    %v5108 = vpop.f32.mrb[0].mxu0
    %5109 = vdwg.mxu0
    %5110 = vmatprep.subr.mxu0 0.0
    %5111 = vmatpush1.msra.mxu0 %v3667
    %5112 = vmatprep.subr.mxu0 0.0
    %5113 = vmatpush1.msra.mxu0 %v3672
    %5114 = vmatprep.subr.mxu0 0.0
    %5115 = vmatpush1.msra.mxu0 %v3677
    %5116 = vmatprep.subr.mxu0 0.0
    %5117 = vmatpush1.msra.mxu0 %v3682
    %5118 = vmatprep.subr.mxu0 0.0
    %5119 = vmatpush1.msra.mxu0 %v3687
    %5120 = vmatprep.subr.mxu0 0.0
    %5121 = vmatpush1.msra.mxu0 %v3692
    %5122 = vmatprep.subr.mxu0 0.0
    %5123 = vmatpush1.msra.mxu0 %v3697
    %5124 = vmatprep.subr.mxu0 0.0
    %5125 = vmatpush1.msra.mxu0 %v3702
    %5126 = vmatprep.subr.mxu0 0.0
    %5127 = vmatpush1.msra.mxu0 %v3707
    %5128 = vmatprep.subr.mxu0 0.0
    %5129 = vmatpush1.msra.mxu0 %v3712
    %5130 = vmatprep.subr.mxu0 0.0
    %5131 = vmatpush1.msra.mxu0 %v3717
    %5132 = vmatprep.subr.mxu0 0.0
    %5133 = vmatpush1.msra.mxu0 %v3722
    %5134 = vmatprep.subr.mxu0 0.0
    %5135 = vmatpush1.msra.mxu0 %v3727
    %5136 = vmatprep.subr.mxu0 0.0
    %5137 = vmatpush1.msra.mxu0 %v3732
    %5138 = vmatprep.subr.mxu0 0.0
    %5139 = vmatpush1.msra.mxu0 %v3737
    %5140 = vmatprep.subr.mxu0 0.0
    %5141 = vmatpush1.msra.mxu0 %v3742
    %5142 = vmatprep.subr.mxu0 0.0
    %5143 = vmatpush1.msra.mxu0 %v3747
    %5144 = vmatprep.subr.mxu0 0.0
    %5145 = vmatpush1.msra.mxu0 %v3752
    %5146 = vmatprep.subr.mxu0 0.0
    %5147 = vmatpush1.msra.mxu0 %v3757
    %5148 = vmatprep.subr.mxu0 0.0
    %5149 = vmatpush1.msra.mxu0 %v3762
    %5150 = vmatprep.subr.mxu0 0.0
    %5151 = vmatpush1.msra.mxu0 %v3767
    %5152 = vmatprep.subr.mxu0 0.0
    %5153 = vmatpush1.msra.mxu0 %v3772
    %5154 = vmatprep.subr.mxu0 0.0
    %5155 = vmatpush1.msra.mxu0 %v3777
    %5156 = vmatprep.subr.mxu0 0.0
    %5157 = vmatpush1.msra.mxu0 %v3782
    %5158 = vmatprep.subr.mxu0 0.0
    %5159 = vmatpush1.msra.mxu0 %v3787
    %5160 = vmatprep.subr.mxu0 0.0
    %5161 = vmatpush1.msra.mxu0 %v3792
    %5162 = vmatprep.subr.mxu0 0.0
    %5163 = vmatpush1.msra.mxu0 %v3797
    %5164 = vmatprep.subr.mxu0 0.0
    %5165 = vmatpush1.msra.mxu0 %v3802
    %5166 = vmatprep.subr.mxu0 0.0
    %5167 = vmatpush1.msra.mxu0 %v3807
    %5168 = vmatprep.subr.mxu0 0.0
    %5169 = vmatpush1.msra.mxu0 %v3812
    %5170 = vmatprep.subr.mxu0 0.0
    %5171 = vmatpush1.msra.mxu0 %v3817
    %5172 = vmatprep.subr.mxu0 0.0
    %5173 = vmatpush1.msra.mxu0 %v3822
    %5174 = vmatprep.mubr.f32.mxu0 %v3092
    %5175 = vmatmul.mubr.f32.gmra.mrb[0].mxu0 %v3091
    %v5176 = vpop.f32.mrb[0].mxu0
    %v5177 = vadd.f32 %v5107, %v5176
    %v5178 = vpop.f32.mrb[0].mxu0
    %5179 = vdwg.mxu0
    %5180 = vmatprep.subr.mxu0 0.0
    %5181 = vmatpush1.msra.mxu0 %v3827
    %5182 = vmatprep.subr.mxu0 0.0
    %5183 = vmatpush1.msra.mxu0 %v3832
    %5184 = vmatprep.subr.mxu0 0.0
    %5185 = vmatpush1.msra.mxu0 %v3837
    %5186 = vmatprep.subr.mxu0 0.0
    %5187 = vmatpush1.msra.mxu0 %v3842
    %5188 = vmatprep.subr.mxu0 0.0
    %5189 = vmatpush1.msra.mxu0 %v3847
    %5190 = vmatprep.subr.mxu0 0.0
    %5191 = vmatpush1.msra.mxu0 %v3852
    %5192 = vmatprep.subr.mxu0 0.0
    %5193 = vmatpush1.msra.mxu0 %v3857
    %5194 = vmatprep.subr.mxu0 0.0
    %5195 = vmatpush1.msra.mxu0 %v3862
    %5196 = vmatprep.subr.mxu0 0.0
    %5197 = vmatpush1.msra.mxu0 %v3867
    %5198 = vmatprep.subr.mxu0 0.0
    %5199 = vmatpush1.msra.mxu0 %v3872
    %5200 = vmatprep.subr.mxu0 0.0
    %5201 = vmatpush1.msra.mxu0 %v3877
    %5202 = vmatprep.subr.mxu0 0.0
    %5203 = vmatpush1.msra.mxu0 %v3882
    %5204 = vmatprep.subr.mxu0 0.0
    %5205 = vmatpush1.msra.mxu0 %v3887
    %5206 = vmatprep.subr.mxu0 0.0
    %5207 = vmatpush1.msra.mxu0 %v3892
    %5208 = vmatprep.subr.mxu0 0.0
    %5209 = vmatpush1.msra.mxu0 %v3897
    %5210 = vmatprep.subr.mxu0 0.0
    %5211 = vmatpush1.msra.mxu0 %v3902
    %5212 = vmatprep.subr.mxu0 0.0
    %5213 = vmatpush1.msra.mxu0 %v3907
    %5214 = vmatprep.subr.mxu0 0.0
    %5215 = vmatpush1.msra.mxu0 %v3912
    %5216 = vmatprep.subr.mxu0 0.0
    %5217 = vmatpush1.msra.mxu0 %v3917
    %5218 = vmatprep.subr.mxu0 0.0
    %5219 = vmatpush1.msra.mxu0 %v3922
    %5220 = vmatprep.subr.mxu0 0.0
    %5221 = vmatpush1.msra.mxu0 %v3927
    %5222 = vmatprep.subr.mxu0 0.0
    %5223 = vmatpush1.msra.mxu0 %v3932
    %5224 = vmatprep.subr.mxu0 0.0
    %5225 = vmatpush1.msra.mxu0 %v3937
    %5226 = vmatprep.subr.mxu0 0.0
    %5227 = vmatpush1.msra.mxu0 %v3942
    %5228 = vmatprep.subr.mxu0 0.0
    %5229 = vmatpush1.msra.mxu0 %v3947
    %5230 = vmatprep.subr.mxu0 0.0
    %5231 = vmatpush1.msra.mxu0 %v3952
    %5232 = vmatprep.subr.mxu0 0.0
    %5233 = vmatpush1.msra.mxu0 %v3957
    %5234 = vmatprep.subr.mxu0 0.0
    %5235 = vmatpush1.msra.mxu0 %v3962
    %5236 = vmatprep.subr.mxu0 0.0
    %5237 = vmatpush1.msra.mxu0 %v3967
    %5238 = vmatprep.subr.mxu0 0.0
    %5239 = vmatpush1.msra.mxu0 %v3972
    %5240 = vmatprep.subr.mxu0 0.0
    %5241 = vmatpush1.msra.mxu0 %v3977
    %5242 = vmatprep.subr.mxu0 0.0
    %5243 = vmatpush1.msra.mxu0 %v3982
    %5244 = vmatprep.mubr.f32.mxu0 %v3094
    %5245 = vmatmul.mubr.f32.gmra.mrb[0].mxu0 %v3093
    %v5246 = vpop.f32.mrb[0].mxu0
    %v5247 = vadd.f32 %v5177, %v5246
    %v5248 = vpop.f32.mrb[0].mxu0
    %5249 = vdwg.mxu0
    %5250 = vmatprep.subr.mxu0 0.0
    %5251 = vmatpush1.msra.mxu0 %v3987
    %5252 = vmatprep.subr.mxu0 0.0
    %5253 = vmatpush1.msra.mxu0 %v3992
    %5254 = vmatprep.subr.mxu0 0.0
    %5255 = vmatpush1.msra.mxu0 %v3997
    %5256 = vmatprep.subr.mxu0 0.0
    %5257 = vmatpush1.msra.mxu0 %v4002
    %5258 = vmatprep.subr.mxu0 0.0
    %5259 = vmatpush1.msra.mxu0 %v4007
    %5260 = vmatprep.subr.mxu0 0.0
    %5261 = vmatpush1.msra.mxu0 %v4012
    %5262 = vmatprep.subr.mxu0 0.0
    %5263 = vmatpush1.msra.mxu0 %v4017
    %5264 = vmatprep.subr.mxu0 0.0
    %5265 = vmatpush1.msra.mxu0 %v4022
    %5266 = vmatprep.subr.mxu0 0.0
    %5267 = vmatpush1.msra.mxu0 %v4027
    %5268 = vmatprep.subr.mxu0 0.0
    %5269 = vmatpush1.msra.mxu0 %v4032
    %5270 = vmatprep.subr.mxu0 0.0
    %5271 = vmatpush1.msra.mxu0 %v4037
    %5272 = vmatprep.subr.mxu0 0.0
    %5273 = vmatpush1.msra.mxu0 %v4042
    %5274 = vmatprep.subr.mxu0 0.0
    %5275 = vmatpush1.msra.mxu0 %v4047
    %5276 = vmatprep.subr.mxu0 0.0
    %5277 = vmatpush1.msra.mxu0 %v4052
    %5278 = vmatprep.subr.mxu0 0.0
    %5279 = vmatpush1.msra.mxu0 %v4057
    %5280 = vmatprep.subr.mxu0 0.0
    %5281 = vmatpush1.msra.mxu0 %v4062
    %5282 = vmatprep.subr.mxu0 0.0
    %5283 = vmatpush1.msra.mxu0 %v4067
    %5284 = vmatprep.subr.mxu0 0.0
    %5285 = vmatpush1.msra.mxu0 %v4072
    %5286 = vmatprep.subr.mxu0 0.0
    %5287 = vmatpush1.msra.mxu0 %v4077
    %5288 = vmatprep.subr.mxu0 0.0
    %5289 = vmatpush1.msra.mxu0 %v4082
    %5290 = vmatprep.subr.mxu0 0.0
    %5291 = vmatpush1.msra.mxu0 %v4087
    %5292 = vmatprep.subr.mxu0 0.0
    %5293 = vmatpush1.msra.mxu0 %v4092
    %5294 = vmatprep.subr.mxu0 0.0
    %5295 = vmatpush1.msra.mxu0 %v4097
    %5296 = vmatprep.subr.mxu0 0.0
    %5297 = vmatpush1.msra.mxu0 %v4102
    %5298 = vmatprep.subr.mxu0 0.0
    %5299 = vmatpush1.msra.mxu0 %v4107
    %5300 = vmatprep.subr.mxu0 0.0
    %5301 = vmatpush1.msra.mxu0 %v4112
    %5302 = vmatprep.subr.mxu0 0.0
    %5303 = vmatpush1.msra.mxu0 %v4117
    %5304 = vmatprep.subr.mxu0 0.0
    %5305 = vmatpush1.msra.mxu0 %v4122
    %5306 = vmatprep.subr.mxu0 0.0
    %5307 = vmatpush1.msra.mxu0 %v4127
    %5308 = vmatprep.subr.mxu0 0.0
    %5309 = vmatpush1.msra.mxu0 %v4132
    %5310 = vmatprep.subr.mxu0 0.0
    %5311 = vmatpush1.msra.mxu0 %v4137
    %5312 = vmatprep.subr.mxu0 0.0
    %5313 = vmatpush1.msra.mxu0 %v4142
    %5314 = vmatprep.mubr.f32.mxu0 %v3096
    %5315 = vmatmul.mubr.f32.gmra.mrb[0].mxu0 %v3095
    %v5316 = vpop.f32.mrb[0].mxu0
    %v5317 = vadd.f32 %v5247, %v5316
    %v5318 = vpop.f32.mrb[0].mxu0
    %5319 = vdwg.mxu0
    %5320 = vmatprep.subr.mxu0 0.0
    %5321 = vmatpush1.msra.mxu0 %v4147
    %5322 = vmatprep.subr.mxu0 0.0
    %5323 = vmatpush1.msra.mxu0 %v4152
    %5324 = vmatprep.subr.mxu0 0.0
    %5325 = vmatpush1.msra.mxu0 %v4157
    %5326 = vmatprep.subr.mxu0 0.0
    %5327 = vmatpush1.msra.mxu0 %v4162
    %5328 = vmatprep.subr.mxu0 0.0
    %5329 = vmatpush1.msra.mxu0 %v4167
    %5330 = vmatprep.subr.mxu0 0.0
    %5331 = vmatpush1.msra.mxu0 %v4172
    %5332 = vmatprep.subr.mxu0 0.0
    %5333 = vmatpush1.msra.mxu0 %v4177
    %5334 = vmatprep.subr.mxu0 0.0
    %5335 = vmatpush1.msra.mxu0 %v4182
    %5336 = vmatprep.subr.mxu0 0.0
    %5337 = vmatpush1.msra.mxu0 %v4187
    %5338 = vmatprep.subr.mxu0 0.0
    %5339 = vmatpush1.msra.mxu0 %v4192
    %5340 = vmatprep.subr.mxu0 0.0
    %5341 = vmatpush1.msra.mxu0 %v4197
    %5342 = vmatprep.subr.mxu0 0.0
    %5343 = vmatpush1.msra.mxu0 %v4202
    %5344 = vmatprep.subr.mxu0 0.0
    %5345 = vmatpush1.msra.mxu0 %v4207
    %5346 = vmatprep.subr.mxu0 0.0
    %5347 = vmatpush1.msra.mxu0 %v4212
    %5348 = vmatprep.subr.mxu0 0.0
    %5349 = vmatpush1.msra.mxu0 %v4217
    %5350 = vmatprep.subr.mxu0 0.0
    %5351 = vmatpush1.msra.mxu0 %v4222
    %5352 = vmatprep.subr.mxu0 0.0
    %5353 = vmatpush1.msra.mxu0 %v4227
    %5354 = vmatprep.subr.mxu0 0.0
    %5355 = vmatpush1.msra.mxu0 %v4232
    %5356 = vmatprep.subr.mxu0 0.0
    %5357 = vmatpush1.msra.mxu0 %v4237
    %5358 = vmatprep.subr.mxu0 0.0
    %5359 = vmatpush1.msra.mxu0 %v4242
    %5360 = vmatprep.subr.mxu0 0.0
    %5361 = vmatpush1.msra.mxu0 %v4247
    %5362 = vmatprep.subr.mxu0 0.0
    %5363 = vmatpush1.msra.mxu0 %v4252
    %5364 = vmatprep.subr.mxu0 0.0
    %5365 = vmatpush1.msra.mxu0 %v4257
    %5366 = vmatprep.subr.mxu0 0.0
    %5367 = vmatpush1.msra.mxu0 %v4262
    %5368 = vmatprep.subr.mxu0 0.0
    %5369 = vmatpush1.msra.mxu0 %v4267
    %5370 = vmatprep.subr.mxu0 0.0
    %5371 = vmatpush1.msra.mxu0 %v4272
    %5372 = vmatprep.subr.mxu0 0.0
    %5373 = vmatpush1.msra.mxu0 %v4277
    %5374 = vmatprep.subr.mxu0 0.0
    %5375 = vmatpush1.msra.mxu0 %v4282
    %5376 = vmatprep.subr.mxu0 0.0
    %5377 = vmatpush1.msra.mxu0 %v4287
    %5378 = vmatprep.subr.mxu0 0.0
    %5379 = vmatpush1.msra.mxu0 %v4292
    %5380 = vmatprep.subr.mxu0 0.0
    %5381 = vmatpush1.msra.mxu0 %v4297
    %5382 = vmatprep.subr.mxu0 0.0
    %5383 = vmatpush1.msra.mxu0 %v4302
    %5384 = vmatprep.mubr.f32.mxu0 %v3098
    %5385 = vmatmul.mubr.f32.gmra.mrb[0].mxu0 %v3097
    %v5386 = vpop.f32.mrb[0].mxu0
    %v5387 = vadd.f32 %v5317, %v5386
    %v5388 = vpop.f32.mrb[0].mxu0
    %5389 = vdwg.mxu0
    %v5390 = vmax.f32 %v4681, 0.0
    %v5391 = vmax.f32 %v4683, 0.0
    %v5392 = vmax.f32 %v5036, 0.0
    %v5393 = vmax.f32 %v5038, 0.0
    %v5394 = vmax.f32 %v5387, 0.0
    %s5395 = smul.u32 4, 80
    %s5396 = smul.u32 %s5395, 1
    %s5397 = sshll.u32 %s5396, 4
    %5398 = dma.done %s240, %s5397
    %v5399 = vld [vmem:[#allocation4] sm:$0xff]
    %v5400 = vld [vmem:[#allocation4 + $0x8] sm:$0xff]
    %v5401 = vld [vmem:[#allocation4 + $0x10] sm:$0xff]
    %v5402 = vld [vmem:[#allocation4 + $0x18] sm:$0xff]
    %v5403 = vld [vmem:[#allocation4 + $0x20] sm:$0xff]
    %v5404 = vld [vmem:[#allocation4 + $0x28] sm:$0xff]
    %v5405 = vld [vmem:[#allocation4 + $0x30] sm:$0xff]
    %v5406 = vld [vmem:[#allocation4 + $0x38] sm:$0xff]
    %v5407 = vld [vmem:[#allocation4 + $0x40] sm:$0xff]
    %v5408 = vld [vmem:[#allocation4 + $0x48] sm:$0xff]
    %v5409 = vld [vmem:[#allocation4 + $0x50] sm:$0xff]
    %v5410 = vld [vmem:[#allocation4 + $0x58] sm:$0xff]
    %v5411 = vld [vmem:[#allocation4 + $0x60] sm:$0xff]
    %v5412 = vld [vmem:[#allocation4 + $0x68] sm:$0xff]
    %v5413 = vld [vmem:[#allocation4 + $0x70] sm:$0xff]
    %v5414 = vld [vmem:[#allocation4 + $0x78] sm:$0xff]
    %v5415 = vld [vmem:[#allocation4 + $0x80] sm:$0xff]
    %v5416 = vld [vmem:[#allocation4 + $0x88] sm:$0xff]
    %v5417 = vld [vmem:[#allocation4 + $0x90] sm:$0xff]
    %v5418 = vld [vmem:[#allocation4 + $0x98] sm:$0xff]
    %v5419 = vld [vmem:[#allocation4 + $0xa0] sm:$0xff]
    %v5420 = vld [vmem:[#allocation4 + $0xa8] sm:$0xff]
    %v5421 = vld [vmem:[#allocation4 + $0xb0] sm:$0xff]
    %v5422 = vld [vmem:[#allocation4 + $0xb8] sm:$0xff]
    %v5423 = vld [vmem:[#allocation4 + $0xc0] sm:$0xff]
    %v5424 = vld [vmem:[#allocation4 + $0xc8] sm:$0xff]
    %v5425 = vld [vmem:[#allocation4 + $0xd0] sm:$0xff]
    %v5426 = vld [vmem:[#allocation4 + $0xd8] sm:$0xff]
    %v5427 = vld [vmem:[#allocation4 + $0xe0] sm:$0xff]
    %v5428 = vld [vmem:[#allocation4 + $0xe8] sm:$0xff]
    %v5429 = vld [vmem:[#allocation4 + $0xf0] sm:$0xff]
    %v5430 = vld [vmem:[#allocation4 + $0xf8] sm:$0xff]
    %v5431 = vld [vmem:[#allocation4 + $0x100] sm:$0xff]
    %v5432 = vld [vmem:[#allocation4 + $0x108] sm:$0xff]
    %v5433 = vld [vmem:[#allocation4 + $0x110] sm:$0xff]
    %v5434 = vld [vmem:[#allocation4 + $0x118] sm:$0xff]
    %v5435 = vld [vmem:[#allocation4 + $0x120] sm:$0xff]
    %v5436 = vld [vmem:[#allocation4 + $0x128] sm:$0xff]
    %v5437 = vld [vmem:[#allocation4 + $0x130] sm:$0xff]
    %v5438 = vld [vmem:[#allocation4 + $0x138] sm:$0xff]
    %v5439 = vunpack.c.l.bf16 %v5399
    %v5440 = vunpack.c.h.bf16 %v5399
    %v5441 = vunpack.c.l.bf16 %v5400
    %v5442 = vunpack.c.h.bf16 %v5400
    %v5443 = vunpack.c.l.bf16 %v5401
    %v5444 = vunpack.c.h.bf16 %v5401
    %v5445 = vunpack.c.l.bf16 %v5402
    %v5446 = vunpack.c.h.bf16 %v5402
    %v5447 = vunpack.c.l.bf16 %v5403
    %v5448 = vunpack.c.h.bf16 %v5403
    %v5449 = vunpack.c.l.bf16 %v5404
    %v5450 = vunpack.c.h.bf16 %v5404
    %v5451 = vunpack.c.l.bf16 %v5405
    %v5452 = vunpack.c.h.bf16 %v5405
    %v5453 = vunpack.c.l.bf16 %v5406
    %v5454 = vunpack.c.h.bf16 %v5406
    %v5455 = vunpack.c.l.bf16 %v5407
    %v5456 = vunpack.c.h.bf16 %v5407
    %v5457 = vunpack.c.l.bf16 %v5408
    %v5458 = vunpack.c.h.bf16 %v5408
    %v5459 = vunpack.c.l.bf16 %v5409
    %v5460 = vunpack.c.h.bf16 %v5409
    %v5461 = vunpack.c.l.bf16 %v5410
    %v5462 = vunpack.c.h.bf16 %v5410
    %v5463 = vunpack.c.l.bf16 %v5411
    %v5464 = vunpack.c.h.bf16 %v5411
    %v5465 = vunpack.c.l.bf16 %v5412
    %v5466 = vunpack.c.h.bf16 %v5412
    %v5467 = vunpack.c.l.bf16 %v5413
    %v5468 = vunpack.c.h.bf16 %v5413
    %v5469 = vunpack.c.l.bf16 %v5414
    %v5470 = vunpack.c.h.bf16 %v5414
    %v5471 = vunpack.c.l.bf16 %v5415
    %v5472 = vunpack.c.h.bf16 %v5415
    %v5473 = vunpack.c.l.bf16 %v5416
    %v5474 = vunpack.c.h.bf16 %v5416
    %v5475 = vunpack.c.l.bf16 %v5417
    %v5476 = vunpack.c.h.bf16 %v5417
    %v5477 = vunpack.c.l.bf16 %v5418
    %v5478 = vunpack.c.h.bf16 %v5418
    %v5479 = vunpack.c.l.bf16 %v5419
    %v5480 = vunpack.c.h.bf16 %v5419
    %v5481 = vunpack.c.l.bf16 %v5420
    %v5482 = vunpack.c.h.bf16 %v5420
    %v5483 = vunpack.c.l.bf16 %v5421
    %v5484 = vunpack.c.h.bf16 %v5421
    %v5485 = vunpack.c.l.bf16 %v5422
    %v5486 = vunpack.c.h.bf16 %v5422
    %v5487 = vunpack.c.l.bf16 %v5423
    %v5488 = vunpack.c.h.bf16 %v5423
    %v5489 = vunpack.c.l.bf16 %v5424
    %v5490 = vunpack.c.h.bf16 %v5424
    %v5491 = vunpack.c.l.bf16 %v5425
    %v5492 = vunpack.c.h.bf16 %v5425
    %v5493 = vunpack.c.l.bf16 %v5426
    %v5494 = vunpack.c.h.bf16 %v5426
    %v5495 = vunpack.c.l.bf16 %v5427
    %v5496 = vunpack.c.h.bf16 %v5427
    %v5497 = vunpack.c.l.bf16 %v5428
    %v5498 = vunpack.c.h.bf16 %v5428
    %v5499 = vunpack.c.l.bf16 %v5429
    %v5500 = vunpack.c.h.bf16 %v5429
    %v5501 = vunpack.c.l.bf16 %v5430
    %v5502 = vunpack.c.h.bf16 %v5430
    %v5503 = vunpack.c.l.bf16 %v5431
    %v5504 = vunpack.c.h.bf16 %v5431
    %v5505 = vunpack.c.l.bf16 %v5432
    %v5506 = vunpack.c.h.bf16 %v5432
    %v5507 = vunpack.c.l.bf16 %v5433
    %v5508 = vunpack.c.h.bf16 %v5433
    %v5509 = vunpack.c.l.bf16 %v5434
    %v5510 = vunpack.c.h.bf16 %v5434
    %v5511 = vunpack.c.l.bf16 %v5435
    %v5512 = vunpack.c.h.bf16 %v5435
    %v5513 = vunpack.c.l.bf16 %v5436
    %v5514 = vunpack.c.h.bf16 %v5436
    %v5515 = vunpack.c.l.bf16 %v5437
    %v5516 = vunpack.c.h.bf16 %v5437
    %v5517 = vunpack.c.l.bf16 %v5438
    %v5518 = vunpack.c.h.bf16 %v5438
    %v5519 = vld [vmem:[#allocation22] sm:$0x1]
    %v5521 = vlaneseq
    %v5522 = vshrl.u32 %v5521, 7
    %v5523 = vsub.s32 0, %v5522
    %v5524 = vrot.slane %v5519, %v5523
    %5526 = vmatprep.subr.mxu0 0.0
    %5527 = vmatpush1.msra.mxu0 %v5439
    %5528 = vmatprep.subr.mxu0 0.0
    %5529 = vmatpush1.msra.mxu0 %v5440
    %5530 = vmatprep.subr.mxu0 0.0
    %5531 = vmatpush1.msra.mxu0 %v5441
    %5532 = vmatprep.subr.mxu0 0.0
    %5533 = vmatpush1.msra.mxu0 %v5442
    %5534 = vmatprep.subr.mxu0 0.0
    %5535 = vmatpush1.msra.mxu0 %v5443
    %5536 = vmatprep.subr.mxu0 0.0
    %5537 = vmatpush1.msra.mxu0 %v5444
    %5538 = vmatprep.subr.mxu0 0.0
    %5539 = vmatpush1.msra.mxu0 %v5445
    %5540 = vmatprep.subr.mxu0 0.0
    %5541 = vmatpush1.msra.mxu0 %v5446
    %5542 = vmatprep.subr.mxu0 0.0
    %5543 = vmatpush1.msra.mxu0 %v5447
    %5544 = vmatprep.subr.mxu0 0.0
    %5545 = vmatpush1.msra.mxu0 %v5448
    %5546 = vmatprep.subr.mxu0 0.0
    %5547 = vmatpush1.msra.mxu0 %v5449
    %5548 = vmatprep.subr.mxu0 0.0
    %5549 = vmatpush1.msra.mxu0 %v5450
    %5550 = vmatprep.subr.mxu0 0.0
    %5551 = vmatpush1.msra.mxu0 %v5451
    %5552 = vmatprep.subr.mxu0 0.0
    %5553 = vmatpush1.msra.mxu0 %v5452
    %5554 = vmatprep.subr.mxu0 0.0
    %5555 = vmatpush1.msra.mxu0 %v5453
    %5556 = vmatprep.subr.mxu0 0.0
    %5557 = vmatpush1.msra.mxu0 %v5454
    %5558 = vmatprep.subr.mxu0 0.0
    %5559 = vmatpush1.msra.mxu0 %v5455
    %5560 = vmatprep.subr.mxu0 0.0
    %5561 = vmatpush1.msra.mxu0 %v5456
    %5562 = vmatprep.subr.mxu0 0.0
    %5563 = vmatpush1.msra.mxu0 %v5457
    %5564 = vmatprep.subr.mxu0 0.0
    %5565 = vmatpush1.msra.mxu0 %v5458
    %5566 = vmatprep.subr.mxu0 0.0
    %5567 = vmatpush1.msra.mxu0 %v5459
    %5568 = vmatprep.subr.mxu0 0.0
    %5569 = vmatpush1.msra.mxu0 %v5460
    %5570 = vmatprep.subr.mxu0 0.0
    %5571 = vmatpush1.msra.mxu0 %v5461
    %5572 = vmatprep.subr.mxu0 0.0
    %5573 = vmatpush1.msra.mxu0 %v5462
    %5574 = vmatprep.subr.mxu0 0.0
    %5575 = vmatpush1.msra.mxu0 %v5463
    %5576 = vmatprep.subr.mxu0 0.0
    %5577 = vmatpush1.msra.mxu0 %v5464
    %5578 = vmatprep.subr.mxu0 0.0
    %5579 = vmatpush1.msra.mxu0 %v5465
    %5580 = vmatprep.subr.mxu0 0.0
    %5581 = vmatpush1.msra.mxu0 %v5466
    %5582 = vmatprep.subr.mxu0 0.0
    %5583 = vmatpush1.msra.mxu0 %v5467
    %5584 = vmatprep.subr.mxu0 0.0
    %5585 = vmatpush1.msra.mxu0 %v5468
    %5586 = vmatprep.subr.mxu0 0.0
    %5587 = vmatpush1.msra.mxu0 %v5469
    %5588 = vmatprep.subr.mxu0 0.0
    %5589 = vmatpush1.msra.mxu0 %v5470
    %5590 = vmatprep.mubr.f32.mxu0 %v5391
    %5591 = vmatmul.mubr.f32.gmra.mrb[0].mxu0 %v5390
    %v5592 = vpop.f32.mrb[0].mxu0
    %v5593 = vadd.f32 %v5524, %v5592
    %v5594 = vpop.f32.mrb[0].mxu0
    %5595 = vdwg.mxu0
    %5596 = vmatprep.subr.mxu0 0.0
    %5597 = vmatpush1.msra.mxu0 %v5471
    %5598 = vmatprep.subr.mxu0 0.0
    %5599 = vmatpush1.msra.mxu0 %v5472
    %5600 = vmatprep.subr.mxu0 0.0
    %5601 = vmatpush1.msra.mxu0 %v5473
    %5602 = vmatprep.subr.mxu0 0.0
    %5603 = vmatpush1.msra.mxu0 %v5474
    %5604 = vmatprep.subr.mxu0 0.0
    %5605 = vmatpush1.msra.mxu0 %v5475
    %5606 = vmatprep.subr.mxu0 0.0
    %5607 = vmatpush1.msra.mxu0 %v5476
    %5608 = vmatprep.subr.mxu0 0.0
    %5609 = vmatpush1.msra.mxu0 %v5477
    %5610 = vmatprep.subr.mxu0 0.0
    %5611 = vmatpush1.msra.mxu0 %v5478
    %5612 = vmatprep.subr.mxu0 0.0
    %5613 = vmatpush1.msra.mxu0 %v5479
    %5614 = vmatprep.subr.mxu0 0.0
    %5615 = vmatpush1.msra.mxu0 %v5480
    %5616 = vmatprep.subr.mxu0 0.0
    %5617 = vmatpush1.msra.mxu0 %v5481
    %5618 = vmatprep.subr.mxu0 0.0
    %5619 = vmatpush1.msra.mxu0 %v5482
    %5620 = vmatprep.subr.mxu0 0.0
    %5621 = vmatpush1.msra.mxu0 %v5483
    %5622 = vmatprep.subr.mxu0 0.0
    %5623 = vmatpush1.msra.mxu0 %v5484
    %5624 = vmatprep.subr.mxu0 0.0
    %5625 = vmatpush1.msra.mxu0 %v5485
    %5626 = vmatprep.subr.mxu0 0.0
    %5627 = vmatpush1.msra.mxu0 %v5486
    %5628 = vmatprep.subr.mxu0 0.0
    %5629 = vmatpush1.msra.mxu0 %v5487
    %5630 = vmatprep.subr.mxu0 0.0
    %5631 = vmatpush1.msra.mxu0 %v5488
    %5632 = vmatprep.subr.mxu0 0.0
    %5633 = vmatpush1.msra.mxu0 %v5489
    %5634 = vmatprep.subr.mxu0 0.0
    %5635 = vmatpush1.msra.mxu0 %v5490
    %5636 = vmatprep.subr.mxu0 0.0
    %5637 = vmatpush1.msra.mxu0 %v5491
    %5638 = vmatprep.subr.mxu0 0.0
    %5639 = vmatpush1.msra.mxu0 %v5492
    %5640 = vmatprep.subr.mxu0 0.0
    %5641 = vmatpush1.msra.mxu0 %v5493
    %5642 = vmatprep.subr.mxu0 0.0
    %5643 = vmatpush1.msra.mxu0 %v5494
    %5644 = vmatprep.subr.mxu0 0.0
    %5645 = vmatpush1.msra.mxu0 %v5495
    %5646 = vmatprep.subr.mxu0 0.0
    %5647 = vmatpush1.msra.mxu0 %v5496
    %5648 = vmatprep.subr.mxu0 0.0
    %5649 = vmatpush1.msra.mxu0 %v5497
    %5650 = vmatprep.subr.mxu0 0.0
    %5651 = vmatpush1.msra.mxu0 %v5498
    %5652 = vmatprep.subr.mxu0 0.0
    %5653 = vmatpush1.msra.mxu0 %v5499
    %5654 = vmatprep.subr.mxu0 0.0
    %5655 = vmatpush1.msra.mxu0 %v5500
    %5656 = vmatprep.subr.mxu0 0.0
    %5657 = vmatpush1.msra.mxu0 %v5501
    %5658 = vmatprep.subr.mxu0 0.0
    %5659 = vmatpush1.msra.mxu0 %v5502
    %5660 = vmatprep.mubr.f32.mxu0 %v5393
    %5661 = vmatmul.mubr.f32.gmra.mrb[0].mxu0 %v5392
    %v5662 = vpop.f32.mrb[0].mxu0
    %v5663 = vadd.f32 %v5593, %v5662
    %v5664 = vpop.f32.mrb[0].mxu0
    %5665 = vdwg.mxu0
    %5666 = vmatprep.subr.mxu0 0.0
    %5667 = vmatpush1.msra.mxu0 %v5503
    %5668 = vmatprep.subr.mxu0 0.0
    %5669 = vmatpush1.msra.mxu0 %v5504
    %5670 = vmatprep.subr.mxu0 0.0
    %5671 = vmatpush1.msra.mxu0 %v5505
    %5672 = vmatprep.subr.mxu0 0.0
    %5673 = vmatpush1.msra.mxu0 %v5506
    %5674 = vmatprep.subr.mxu0 0.0
    %5675 = vmatpush1.msra.mxu0 %v5507
    %5676 = vmatprep.subr.mxu0 0.0
    %5677 = vmatpush1.msra.mxu0 %v5508
    %5678 = vmatprep.subr.mxu0 0.0
    %5679 = vmatpush1.msra.mxu0 %v5509
    %5680 = vmatprep.subr.mxu0 0.0
    %5681 = vmatpush1.msra.mxu0 %v5510
    %5682 = vmatprep.subr.mxu0 0.0
    %5683 = vmatpush1.msra.mxu0 %v5511
    %5684 = vmatprep.subr.mxu0 0.0
    %5685 = vmatpush1.msra.mxu0 %v5512
    %5686 = vmatprep.subr.mxu0 0.0
    %5687 = vmatpush1.msra.mxu0 %v5513
    %5688 = vmatprep.subr.mxu0 0.0
    %5689 = vmatpush1.msra.mxu0 %v5514
    %5690 = vmatprep.subr.mxu0 0.0
    %5691 = vmatpush1.msra.mxu0 %v5515
    %5692 = vmatprep.subr.mxu0 0.0
    %5693 = vmatpush1.msra.mxu0 %v5516
    %5694 = vmatprep.subr.mxu0 0.0
    %5695 = vmatpush1.msra.mxu0 %v5517
    %5696 = vmatprep.subr.mxu0 0.0
    %5697 = vmatpush1.msra.mxu0 %v5518
    %5698 = vmatprep.subr.mxu0 0.0
    %5699 = vmatpush1.msra.mxu0 0.0
    %5700 = vmatprep.subr.mxu0 0.0
    %5701 = vmatpush1.msra.mxu0 0.0
    %5702 = vmatprep.subr.mxu0 0.0
    %5703 = vmatpush1.msra.mxu0 0.0
    %5704 = vmatprep.subr.mxu0 0.0
    %5705 = vmatpush1.msra.mxu0 0.0
    %5706 = vmatprep.subr.mxu0 0.0
    %5707 = vmatpush1.msra.mxu0 0.0
    %5708 = vmatprep.subr.mxu0 0.0
    %5709 = vmatpush1.msra.mxu0 0.0
    %5710 = vmatprep.subr.mxu0 0.0
    %5711 = vmatpush1.msra.mxu0 0.0
    %5712 = vmatprep.subr.mxu0 0.0
    %5713 = vmatpush1.msra.mxu0 0.0
    %5714 = vmatprep.subr.mxu0 0.0
    %5715 = vmatpush1.msra.mxu0 0.0
    %5716 = vmatprep.subr.mxu0 0.0
    %5717 = vmatpush1.msra.mxu0 0.0
    %5718 = vmatprep.subr.mxu0 0.0
    %5719 = vmatpush1.msra.mxu0 0.0
    %5720 = vmatprep.subr.mxu0 0.0
    %5721 = vmatpush1.msra.mxu0 0.0
    %5722 = vmatprep.subr.mxu0 0.0
    %5723 = vmatpush1.msra.mxu0 0.0
    %5724 = vmatprep.subr.mxu0 0.0
    %5725 = vmatpush1.msra.mxu0 0.0
    %5726 = vmatprep.subr.mxu0 0.0
    %5727 = vmatpush1.msra.mxu0 0.0
    %5728 = vmatprep.subr.mxu0 0.0
    %5729 = vmatpush1.msra.mxu0 0.0
    %5730 = vmatprep.mubr.f32.mxu0 0.0
    %5731 = vmatmul.mubr.f32.gmra.mrb[0].mxu0 %v5394
    %v5732 = vpop.f32.mrb[0].mxu0
    %v5733 = vadd.f32 %v5663, %v5732
    %v5734 = vpop.f32.mrb[0].mxu0
    %5735 = vdwg.mxu0
    %v5736 = vmax.f32 %v5733, 0.0
    %v5737 = vld [vmem:[#allocation23] sm:$0x1]
    %v5739 = vlaneseq
    %v5740 = vshrl.u32 %v5739, 7
    %v5741 = vsub.s32 0, %v5740
    %v5742 = vrot.slane %v5737, %v5741
    %v5744 = vmul.f32 %v5736, %v5742
    %5745 = vadd.xlane.f32.xlu0 %v5744
    %v5746 = vpop.xlane.xlu0 %5745
    %v5747 = vld [vmem:[#allocation8] sm:$0x1]
    %v5749 = vlaneseq
    %v5750 = vshrl.u32 %v5749, 7
    %v5751 = vsub.s32 0, %v5750
    %v5752 = vrot.slane %v5747, %v5751
    %v5754 = vadd.f32 %v5746, %v5752
    %vm5755 = vcmask 7168
    %5756 = vst.msk [vmem:[%s15] sm:$0xff] %vm5755, %v5754
    // Predicated region
    $region94: #{tpu_custom_call.1} parent=1 // pred_check
      _
    $region95: #{tpu_custom_call.1} parent=1 // pred_check_branch
      %5758 = sbr.rel (0) target = $region97
    $region96: #{tpu_custom_call.1} parent=1 // pred_region
      _
    $region97: #{tpu_custom_call.1} parent=1 // pred_fallthru
      _
    // Predicated region
    $region98: #{tpu_custom_call.1} parent=1 // pred_check
      _
    $region99: #{tpu_custom_call.1} parent=1 // pred_check_branch
      %5760 = sbr.rel (0) target = $region101
    $region100: #{tpu_custom_call.1} parent=1 // pred_region
      _
    $region101: #{tpu_custom_call.1} parent=1 // pred_fallthru
      _
    %5761 = vsyncpa [#allocation10], 1
    %5762 = vsyncpa [#allocation12], 1
    %5763 = vsyncpa [#allocation15], 1
    %5764 = vsyncpa [#allocation18], 1
    %5765 = vsyncpa [#allocation21], 1
    %5766 = vsyncpa [#allocation24], 1
  %5767 = vsyncmov [#allocation5]
  %s5768 = vpop.sfrf %5767
  %p5769 = scmp.eq.s32.totalorder %s5768, 0
  %p5770 = pneg %p5769
  %5772 = shalt.err (%p5770)
  %s5773 = scalar_lea.sflag [#allocation5], 1
  %5774 = vsyncmov %s5773
  %s5775 = vpop.sfrf %5774
  %p5776 = scmp.eq.s32.totalorder %s5775, 0
  %p5777 = pneg %p5776
  %5779 = shalt.err (%p5777)
  %s5780 = scalar_lea.sflag [#allocation5], 2
  %5781 = vsyncmov %s5780
  %s5782 = vpop.sfrf %5781
  %p5783 = scmp.eq.s32.totalorder %s5782, 0
  %p5784 = pneg %p5783
  %5786 = shalt.err (%p5784)

</llo_original>
